<compile_context>
chip_gen: v6e
topology: v6e:2x2x1
jax: 0.10.0
libtpu: 0.0.40
codegen_flags: <defaults>
</compile_context>

<pallas_src>
import math

import jax
import jax.numpy as jnp
from jax import lax
from jax.experimental import pallas as pl
from jax.experimental.pallas import tpu as pltpu  # noqa: F401  (TPU backend)

# ---------------- mini Pegasus config ----------------
VOCAB = 128
D_MODEL = 32
N_HEADS = 4
HEAD_DIM = D_MODEL // N_HEADS
FFN_DIM = 64
MAX_POS = 64
PAD_ID = 0
DECODER_START_ID = 0          # Pegasus: decoder_start_token_id == pad_token_id
IGNORE_INDEX = -100
LN_EPS = 1e-5
NEG_INF = -1e9                # safe in f32; make dtype-aware if cast to bf16
EMB_SCALE = math.sqrt(D_MODEL)   # HF Pegasus applies this when scale_embedding
ATT_SCALE = 1.0 / math.sqrt(HEAD_DIM)
LANE = 128                    # lane width used for parameter packing

# ---------------- packed-parameter layouts ----------------
_D, _F, _V = D_MODEL, FFN_DIM, VOCAB
# All (1, w) vectors (LN gains/biases, matmul biases, final_logits_bias) are
# stacked into one (NV, 128) lane-dense tensor; rows indexed by name.
VEC_LAYOUT = [
    ("e_ln1_g", _D), ("e_ln1_b", _D), ("e_bqkv", 3 * _D), ("e_bo", _D),
    ("e_ln2_g", _D), ("e_ln2_b", _D), ("e_fc1_b", _F), ("e_fc2_b", _D),
    ("e_fln_g", _D), ("e_fln_b", _D),
    ("d_ln1_g", _D), ("d_ln1_b", _D), ("d_s_bqkv", 3 * _D), ("d_s_bo", _D),
    ("d_ln2_g", _D), ("d_ln2_b", _D), ("d_c_bq", _D), ("d_c_bkv", 2 * _D),
    ("d_c_bo", _D), ("d_ln3_g", _D), ("d_ln3_b", _D), ("d_fc1_b", _F),
    ("d_fc2_b", _D), ("d_fln_g", _D), ("d_fln_b", _D), ("lbias", _V),
]
VIDX = {name: i for i, (name, _) in enumerate(VEC_LAYOUT)}
VWID = {name: w for name, w in VEC_LAYOUT}

# All (D, <=128) weight matrices stacked along a leading axis (lane-padded).
M32_NAMES = ["e_wqkv", "e_wo", "e_fc1", "d_s_wqkv", "d_s_wo",
             "d_c_wq", "d_c_wkv", "d_c_wo", "d_fc1"]
M32_IDX = {n: i for i, n in enumerate(M32_NAMES)}
# All (FFN, <=128) weight matrices.
M64_NAMES = ["e_fc2", "d_fc2"]
M64_IDX = {n: i for i, n in enumerate(M64_NAMES)}


# ======================= in-kernel helpers (value-level) =======================
def _layer_norm(x, g, b):
    mu = jnp.mean(x, axis=-1, keepdims=True)
    var = jnp.mean((x - mu) * (x - mu), axis=-1, keepdims=True)
    return (x - mu) * lax.rsqrt(var + LN_EPS) * g + b


def _gelu(y):
    # tanh-approx GELU (EUP tanh).
    # TODO(synk): exact-erf GELU (HF Pegasus default) if/when erf lowers on Mosaic.
    c = math.sqrt(2.0 / math.pi)
    return 0.5 * y * (1.0 + jnp.tanh(c * (y + 0.044715 * y * y * y)))


# ======================= single fused Pallas kernel =======================
def _pegasus_kernel(enc_ids_ref, dec_ids_ref, labels_ref, mask_ref,
                    emb_ref, pos_ref, vecs_ref, m32_ref, m64_ref,
                    logits_ref, loss_ref):
    B, Se = mask_ref.shape
    Md = dec_ids_ref.shape[0]
    Sd = Md // B

    emb = emb_ref[...]                                    # (V, D)
    mask = mask_ref[...]                                  # (B, Se) f32
    pad_bias = ((1.0 - mask) * NEG_INF)[:, None, :]       # (B, 1, Se) additive

    # ---- packed parameter accessors (static slices, zero runtime cost) ----
    def vec(name):
        i = VIDX[name]
        return vecs_ref[i:i + 1, 0:VWID[name]]            # (1, w)

    def mat32(name, w):
        return m32_ref[M32_IDX[name], :, 0:w]             # (D, w)

    def mat64(name, w):
        return m64_ref[M64_IDX[name], :, 0:w]             # (FFN, w)

    def linear(x3, w2, bname):
        # (B, S, din) @ (din, dout) + b — flatten leading dims (free reshape).
        b, s, din = x3.shape
        y = jnp.dot(x3.reshape(b * s, din), w2,
                    preferred_element_type=jnp.float32) + vec(bname)
        return y.reshape(b, s, w2.shape[1])

    def embed(ids2, pos2, b, s):
        # One-hot gather on the MXU: (M, V) @ (V, D); keeps the embedding
        # lookup inside the kernel.  Positions added by broadcasting (no concat).
        m = ids2.shape[0]
        onehot = (ids2 == lax.broadcasted_iota(jnp.int32, (m, VOCAB), 1)
                  ).astype(jnp.float32)
        x = jnp.dot(onehot, emb, preferred_element_type=jnp.float32) * EMB_SCALE
        return x.reshape(b, s, D_MODEL) + pos2[None, :, :]

    def attend(q, k, v, bias):
        # q: (B, Sq, D), k/v: (B, Sk, D), bias broadcastable to (B, Sq, Sk).
        # Batched over B with one einsum per head (heads stay lane-packed).
        outs = []
        for h in range(N_HEADS):
            lo, hi = h * HEAD_DIM, (h + 1) * HEAD_DIM
            s = jnp.einsum('bqd,bkd->bqk', q[..., lo:hi] * ATT_SCALE,
                           k[..., lo:hi],
                           preferred_element_type=jnp.float32) + bias
            mx = jnp.max(s, axis=-1, keepdims=True)
            p = jnp.exp(s - mx)
            p = p * pl.reciprocal(jnp.sum(p, axis=-1, keepdims=True),
                                  approx=True)
            outs.append(jnp.einsum('bqk,bkd->bqd', p, v[..., lo:hi],
                                   preferred_element_type=jnp.float32))
        return jnp.concatenate(outs, axis=-1)              # (B, Sq, D)

    # ---------------- encoder ----------------
    x = embed(enc_ids_ref[...], pos_ref[0:Se, :], B, Se)   # (B, Se, D)

    h = _layer_norm(x, vec("e_ln1_g"), vec("e_ln1_b"))
    qkv = linear(h, mat32("e_wqkv", 3 * D_MODEL), "e_bqkv")
    ctx = attend(qkv[..., 0:D_MODEL],
                 qkv[..., D_MODEL:2 * D_MODEL],
                 qkv[..., 2 * D_MODEL:3 * D_MODEL], pad_bias)
    x = x + linear(ctx, mat32("e_wo", D_MODEL), "e_bo")

    h = _layer_norm(x, vec("e_ln2_g"), vec("e_ln2_b"))
    h = _gelu(linear(h, mat32("e_fc1", FFN_DIM), "e_fc1_b"))
    x = x + linear(h, mat64("e_fc2", D_MODEL), "e_fc2_b")

    enc_out = _layer_norm(x, vec("e_fln_g"), vec("e_fln_b"))  # stays on-chip

    # ---------------- decoder ----------------
    y = embed(dec_ids_ref[...], pos_ref[0:Sd, :], B, Sd)    # (B, Sd, D)

    row = lax.broadcasted_iota(jnp.int32, (Sd, Sd), 0)
    col = lax.broadcasted_iota(jnp.int32, (Sd, Sd), 1)
    causal = jnp.where(col <= row, 0.0, NEG_INF).astype(jnp.float32)[None, :, :]

    h = _layer_norm(y, vec("d_ln1_g"), vec("d_ln1_b"))
    qkv = linear(h, mat32("d_s_wqkv", 3 * D_MODEL), "d_s_bqkv")
    ctx = attend(qkv[..., 0:D_MODEL],
                 qkv[..., D_MODEL:2 * D_MODEL],
                 qkv[..., 2 * D_MODEL:3 * D_MODEL], causal)
    y = y + linear(ctx, mat32("d_s_wo", D_MODEL), "d_s_bo")

    # cross-attention over encoder output (fused KV projection)
    h = _layer_norm(y, vec("d_ln2_g"), vec("d_ln2_b"))
    q = linear(h, mat32("d_c_wq", D_MODEL), "d_c_bq")
    kv = linear(enc_out, mat32("d_c_wkv", 2 * D_MODEL), "d_c_bkv")
    ctx = attend(q, kv[..., 0:D_MODEL], kv[..., D_MODEL:2 * D_MODEL], pad_bias)
    y = y + linear(ctx, mat32("d_c_wo", D_MODEL), "d_c_bo")

    h = _layer_norm(y, vec("d_ln3_g"), vec("d_ln3_b"))
    h = _gelu(linear(h, mat32("d_fc1", FFN_DIM), "d_fc1_b"))
    y = y + linear(h, mat64("d_fc2", D_MODEL), "d_fc2_b")

    y = _layer_norm(y, vec("d_fln_g"), vec("d_fln_b"))

    # ---- tied LM head (embedding table read in native (V, D) layout) ----
    y2 = y.reshape(Md, D_MODEL)
    logits = lax.dot_general(y2, emb, (((1,), (1,)), ((), ())),
                             preferred_element_type=jnp.float32) + vec("lbias")
    logits_ref[...] = logits                               # (Md, V), lane-dense

    # ---- fused token cross-entropy (mean over labels != -100) ----
    labels = labels_ref[...]                               # (Md, 1) int32
    mx = jnp.max(logits, axis=-1, keepdims=True)
    lse = mx + jnp.log(jnp.sum(jnp.exp(logits - mx), axis=-1, keepdims=True))
    viota = lax.broadcasted_iota(jnp.int32, (Md, VOCAB), 1)
    picked = jnp.sum(jnp.where(viota == labels, logits, 0.0),
                     axis=-1, keepdims=True)
    valid = (labels >= 0).astype(jnp.float32)              # ignore -100
    per_tok = (lse - picked) * valid
    num = jnp.sum(per_tok, axis=0, keepdims=True)          # (1, 1)
    den = jnp.maximum(jnp.sum(valid, axis=0, keepdims=True), 1.0)
    loss_ref[...] = num / den


# ======================= model glue (plain JAX, tiny ops only) =======================
def shift_tokens_right(labels):
    B = labels.shape[0]
    start = jnp.full((B, 1), DECODER_START_ID, labels.dtype)
    shifted = jnp.concatenate([start, labels[:, :-1]], axis=1)
    return jnp.where(shifted == IGNORE_INDEX, PAD_ID, shifted)


def pegasus_forward(params, input_ids, attention_mask, labels):
    B, Se = input_ids.shape
    Sd = labels.shape[1]
    dec_ids = shift_tokens_right(labels)

    logits2d, loss = pl.pallas_call(
        _pegasus_kernel,
        out_shape=(
            jax.ShapeDtypeStruct((B * Sd, VOCAB), jnp.float32),  # lane-dense
            jax.ShapeDtypeStruct((1, 1), jnp.float32),
        ),
    )(
        input_ids.reshape(B * Se, 1).astype(jnp.int32),
        dec_ids.reshape(B * Sd, 1).astype(jnp.int32),
        labels.reshape(B * Sd, 1).astype(jnp.int32),
        attention_mask.astype(jnp.float32),
        params["emb"],
        params["pos"],
        params["vecs"],
        params["m32"],
        params["m64"],
    )
    return loss[0, 0], logits2d.reshape(B, Sd, VOCAB)


# ======================= deterministic parameter init =======================
def sinusoidal_pos_emb(n_pos, dim):
    j = jnp.arange(dim)
    inv = jnp.power(10000.0, (2.0 * (j // 2)) / dim)
    pe = jnp.arange(n_pos, dtype=jnp.float32)[:, None] / inv[None, :]
    return jnp.concatenate([jnp.sin(pe[:, 0::2]), jnp.cos(pe[:, 1::2])], axis=1)


def init_params(key):
    ks = iter(jax.random.split(key, 16))

    def w(din, dout):
        return jax.random.normal(next(ks), (din, dout), jnp.float32) * 0.02

    D, F = D_MODEL, FFN_DIM

    mats32 = dict(
        e_wqkv=w(D, 3 * D), e_wo=w(D, D), e_fc1=w(D, F),
        d_s_wqkv=w(D, 3 * D), d_s_wo=w(D, D),
        d_c_wq=w(D, D), d_c_wkv=w(D, 2 * D), d_c_wo=w(D, D),
        d_fc1=w(D, F),
    )
    mats64 = dict(e_fc2=w(F, D), d_fc2=w(F, D))
    emb = jax.random.normal(next(ks), (VOCAB, D), jnp.float32) * 0.02

    def pad_lane(a):
        return jnp.pad(a, ((0, 0), (0, LANE - a.shape[-1])))

    # Vectors: LN gains -> ones, all biases (incl. final_logits_bias) -> zeros.
    rows = []
    for name, width in VEC_LAYOUT:
        v = (jnp.ones if name.endswith("_g") else jnp.zeros)((1, width),
                                                             jnp.float32)
        rows.append(pad_lane(v))
    vecs = jnp.concatenate(rows, axis=0)                       # (26, 128)

    m32 = jnp.stack([pad_lane(mats32[n]) for n in M32_NAMES])  # (9, 32, 128)
    m64 = jnp.stack([pad_lane(mats64[n]) for n in M64_NAMES])  # (2, 64, 128)

    return dict(emb=emb, pos=sinusoidal_pos_emb(MAX_POS, D),
                vecs=vecs, m32=m32, m64=m64)


# ======================= main =======================
if __name__ == "__main__":
    root = jax.random.PRNGKey(0)
    k_params, k_in, k_lab = jax.random.split(root, 3)
    params = init_params(k_params)

    B, S = 2, 8
    input_ids = jax.random.randint(k_in, (B, S), 1, VOCAB, dtype=jnp.int32)
    labels = jax.random.randint(k_lab, (B, S), 1, VOCAB, dtype=jnp.int32)
    # second example has 2 trailing pad tokens
    attention_mask = jnp.ones((B, S), jnp.int32).at[1, -2:].set(0)
    input_ids = input_ids.at[1, -2:].set(PAD_ID)

    fwd = jax.jit(pegasus_forward)
    loss, logits = fwd(params, input_ids, attention_mask, labels)
    jax.block_until_ready((loss, logits))

    assert logits.shape == (B, S, VOCAB)
    assert bool(jnp.isfinite(loss)) and bool(jnp.all(jnp.isfinite(logits)))
    print("KERNEL_OK")
</pallas_src>

<mosaic_0001>
module attributes {stable_mosaic.version = 11 : i64} {
  func.func @_pegasus_kernel(%arg0: memref<16x1xi32, #tpu.memory_space<vmem>>, %arg1: memref<16x1xi32, #tpu.memory_space<vmem>>, %arg2: memref<16x1xi32, #tpu.memory_space<vmem>>, %arg3: memref<2x8xf32, #tpu.memory_space<vmem>>, %arg4: memref<128x32xf32, #tpu.memory_space<vmem>>, %arg5: memref<64x32xf32, #tpu.memory_space<vmem>>, %arg6: memref<26x128xf32, #tpu.memory_space<vmem>>, %arg7: memref<9x32x128xf32, #tpu.memory_space<vmem>>, %arg8: memref<2x64x128xf32, #tpu.memory_space<vmem>>, %arg9: memref<16x128xf32, #tpu.memory_space<vmem>>, %arg10: memref<1x1xf32, #tpu.memory_space<vmem>>) attributes {dimension_semantics = [], scalar_prefetch = 0 : i64, scratch_operands = 0 : i64, tpu.core_type = #tpu.core_type<tc>} {
    %c0 = arith.constant 0 : index
    %c0_0 = arith.constant 0 : index
    %0 = vector.load %arg4[%c0, %c0_0] : memref<128x32xf32, #tpu.memory_space<vmem>>, vector<128x32xf32>
    %c0_1 = arith.constant 0 : index
    %c0_2 = arith.constant 0 : index
    %1 = vector.load %arg3[%c0_1, %c0_2] : memref<2x8xf32, #tpu.memory_space<vmem>>, vector<2x8xf32>
    %cst = arith.constant 1.000000e+00 : f32
    %2 = vector.broadcast %cst : f32 to vector<2x8xf32>
    %3 = arith.subf %2, %1 : vector<2x8xf32>
    %cst_3 = arith.constant -1.000000e+09 : f32
    %4 = vector.broadcast %cst_3 : f32 to vector<2x8xf32>
    %5 = arith.mulf %3, %4 : vector<2x8xf32>
    %6 = vector.shape_cast %5 : vector<2x8xf32> to vector<2x1x8xf32>
    %c0_4 = arith.constant 0 : index
    %c0_5 = arith.constant 0 : index
    %7 = vector.load %arg0[%c0_4, %c0_5] : memref<16x1xi32, #tpu.memory_space<vmem>>, vector<16x1xi32>
    %c0_6 = arith.constant 0 : index
    %c0_7 = arith.constant 0 : index
    %8 = vector.load %arg5[%c0_6, %c0_7] : memref<64x32xf32, #tpu.memory_space<vmem>>, vector<8x32xf32>
    %9 = tpu.iota {dimensions = array<i32: 1>} : vector<16x128xi32>
    %10 = vector.broadcast %7 : vector<16x1xi32> to vector<16x128xi32>
    %11 = arith.cmpi eq, %10, %9 : vector<16x128xi32>
    %12 = arith.extui %11 : vector<16x128xi1> to vector<16x128xi32>
    %13 = arith.sitofp %12 : vector<16x128xi32> to vector<16x128xf32>
    %cst_8 = arith.constant dense<0.000000e+00> : vector<16x32xf32>
    %14 = tpu.matmul %13, %0, %cst_8 {dimension_numbers = #tpu.dot_dimension_numbers<[1], [0], [0], [1], [0, 0, 1, 1], [], []>} : vector<16x128xf32>, vector<128x32xf32>, vector<16x32xf32> -> vector<16x32xf32>
    %cst_9 = arith.constant 5.65685415 : f32
    %15 = vector.broadcast %cst_9 : f32 to vector<16x32xf32>
    %16 = arith.mulf %14, %15 : vector<16x32xf32>
    %17 = vector.shape_cast %16 : vector<16x32xf32> to vector<2x8x32xf32>
    %18 = vector.shape_cast %8 : vector<8x32xf32> to vector<1x8x32xf32>
    %19 = vector.broadcast %18 : vector<1x8x32xf32> to vector<2x8x32xf32>
    %20 = arith.addf %17, %19 : vector<2x8x32xf32>
    %c0_10 = arith.constant 0 : index
    %c0_11 = arith.constant 0 : index
    %21 = vector.load %arg6[%c0_10, %c0_11] : memref<26x128xf32, #tpu.memory_space<vmem>>, vector<1x32xf32>
    %c1 = arith.constant 1 : index
    %c0_12 = arith.constant 0 : index
    %22 = vector.load %arg6[%c1, %c0_12] : memref<26x128xf32, #tpu.memory_space<vmem>>, vector<1x32xf32>
    %cst_13 = arith.constant dense<0.000000e+00> : vector<2x8xf32>
    %23 = vector.multi_reduction <add>, %20, %cst_13 [2] : vector<2x8x32xf32> to vector<2x8xf32>
    %24 = vector.shape_cast %23 : vector<2x8xf32> to vector<2x8x1xf32>
    %cst_14 = arith.constant 3.200000e+01 : f32
    %25 = vector.broadcast %cst_14 : f32 to vector<2x8x1xf32>
    %26 = arith.divf %24, %25 : vector<2x8x1xf32>
    %27 = vector.broadcast %26 : vector<2x8x1xf32> to vector<2x8x32xf32>
    %28 = arith.subf %20, %27 : vector<2x8x32xf32>
    %29 = vector.broadcast %26 : vector<2x8x1xf32> to vector<2x8x32xf32>
    %30 = arith.subf %20, %29 : vector<2x8x32xf32>
    %31 = arith.mulf %28, %30 : vector<2x8x32xf32>
    %cst_15 = arith.constant dense<0.000000e+00> : vector<2x8xf32>
    %32 = vector.multi_reduction <add>, %31, %cst_15 [2] : vector<2x8x32xf32> to vector<2x8xf32>
    %33 = vector.shape_cast %32 : vector<2x8xf32> to vector<2x8x1xf32>
    %cst_16 = arith.constant 3.200000e+01 : f32
    %34 = vector.broadcast %cst_16 : f32 to vector<2x8x1xf32>
    %35 = arith.divf %33, %34 : vector<2x8x1xf32>
    %36 = vector.broadcast %26 : vector<2x8x1xf32> to vector<2x8x32xf32>
    %37 = arith.subf %20, %36 : vector<2x8x32xf32>
    %cst_17 = arith.constant 9.99999974E-6 : f32
    %38 = vector.broadcast %cst_17 : f32 to vector<2x8x1xf32>
    %39 = arith.addf %35, %38 : vector<2x8x1xf32>
    %40 = math.rsqrt %39 : vector<2x8x1xf32>
    %41 = vector.broadcast %40 : vector<2x8x1xf32> to vector<2x8x32xf32>
    %42 = arith.mulf %37, %41 : vector<2x8x32xf32>
    %43 = vector.shape_cast %21 : vector<1x32xf32> to vector<1x1x32xf32>
    %44 = vector.broadcast %43 : vector<1x1x32xf32> to vector<2x8x32xf32>
    %45 = arith.mulf %42, %44 : vector<2x8x32xf32>
    %46 = vector.shape_cast %22 : vector<1x32xf32> to vector<1x1x32xf32>
    %47 = vector.broadcast %46 : vector<1x1x32xf32> to vector<2x8x32xf32>
    %48 = arith.addf %45, %47 : vector<2x8x32xf32>
    %c0_18 = arith.constant 0 : index
    %c0_19 = arith.constant 0 : index
    %c0_20 = arith.constant 0 : index
    %49 = vector.load %arg7[%c0_18, %c0_19, %c0_20] : memref<9x32x128xf32, #tpu.memory_space<vmem>>, vector<1x32x96xf32>
    %50 = vector.shape_cast %49 : vector<1x32x96xf32> to vector<32x96xf32>
    %51 = vector.shape_cast %48 : vector<2x8x32xf32> to vector<16x32xf32>
    %cst_21 = arith.constant dense<0.000000e+00> : vector<16x96xf32>
    %52 = tpu.matmul %51, %50, %cst_21 {dimension_numbers = #tpu.dot_dimension_numbers<[1], [0], [0], [1], [0, 0, 1, 1], [], []>} : vector<16x32xf32>, vector<32x96xf32>, vector<16x96xf32> -> vector<16x96xf32>
    %c2 = arith.constant 2 : index
    %c0_22 = arith.constant 0 : index
    %53 = vector.load %arg6[%c2, %c0_22] : memref<26x128xf32, #tpu.memory_space<vmem>>, vector<1x96xf32>
    %54 = vector.broadcast %53 : vector<1x96xf32> to vector<16x96xf32>
    %55 = arith.addf %52, %54 : vector<16x96xf32>
    %56 = vector.shape_cast %55 : vector<16x96xf32> to vector<2x8x96xf32>
    %57 = vector.extract_strided_slice %56 {offsets = [0, 0, 0], sizes = [2, 8, 32], strides = [1, 1, 1]} : vector<2x8x96xf32> to vector<2x8x32xf32>
    %58 = vector.extract_strided_slice %56 {offsets = [0, 0, 32], sizes = [2, 8, 32], strides = [1, 1, 1]} : vector<2x8x96xf32> to vector<2x8x32xf32>
    %59 = vector.extract_strided_slice %56 {offsets = [0, 0, 64], sizes = [2, 8, 32], strides = [1, 1, 1]} : vector<2x8x96xf32> to vector<2x8x32xf32>
    %60 = vector.extract_strided_slice %57 {offsets = [0, 0, 0], sizes = [2, 8, 8], strides = [1, 1, 1]} : vector<2x8x32xf32> to vector<2x8x8xf32>
    %cst_23 = arith.constant 0.353553385 : f32
    %61 = vector.broadcast %cst_23 : f32 to vector<2x8x8xf32>
    %62 = arith.mulf %60, %61 : vector<2x8x8xf32>
    %63 = vector.extract_strided_slice %58 {offsets = [0, 0, 0], sizes = [2, 8, 8], strides = [1, 1, 1]} : vector<2x8x32xf32> to vector<2x8x8xf32>
    "tpu.trace_start"() <{level = 10 : i32, message = "bqd,bkd->bqk"}> : () -> ()
    %cst_24 = arith.constant dense<0.000000e+00> : vector<2x8x8xf32>
    %64 = tpu.matmul %62, %63, %cst_24 {dimension_numbers = #tpu.dot_dimension_numbers<[2], [2], [1], [1], [0, 0, 0, 1, 1, 1], [0], [0]>} : vector<2x8x8xf32>, vector<2x8x8xf32>, vector<2x8x8xf32> -> vector<2x8x8xf32>
    "tpu.trace_stop"() : () -> ()
    %65 = vector.broadcast %6 : vector<2x1x8xf32> to vector<2x8x8xf32>
    %66 = arith.addf %64, %65 : vector<2x8x8xf32>
    %cst_25 = arith.constant dense<0xFF800000> : vector<2x8xf32>
    %67 = vector.multi_reduction <maximumf>, %66, %cst_25 [2] : vector<2x8x8xf32> to vector<2x8xf32>
    %68 = vector.shape_cast %67 : vector<2x8xf32> to vector<2x8x1xf32>
    %69 = vector.broadcast %68 : vector<2x8x1xf32> to vector<2x8x8xf32>
    %70 = arith.subf %66, %69 : vector<2x8x8xf32>
    %71 = math.exp %70 : vector<2x8x8xf32>
    %cst_26 = arith.constant dense<0.000000e+00> : vector<2x8xf32>
    %72 = vector.multi_reduction <add>, %71, %cst_26 [2] : vector<2x8x8xf32> to vector<2x8xf32>
    %73 = vector.shape_cast %72 : vector<2x8xf32> to vector<2x8x1xf32>
    %74 = tpu.reciprocal %73 {approx = true} : vector<2x8x1xf32> -> vector<2x8x1xf32>
    %75 = vector.broadcast %74 : vector<2x8x1xf32> to vector<2x8x8xf32>
    %76 = arith.mulf %71, %75 : vector<2x8x8xf32>
    %77 = vector.extract_strided_slice %59 {offsets = [0, 0, 0], sizes = [2, 8, 8], strides = [1, 1, 1]} : vector<2x8x32xf32> to vector<2x8x8xf32>
    "tpu.trace_start"() <{level = 10 : i32, message = "bqk,bkd->bqd"}> : () -> ()
    %cst_27 = arith.constant dense<0.000000e+00> : vector<2x8x8xf32>
    %78 = tpu.matmul %76, %77, %cst_27 {dimension_numbers = #tpu.dot_dimension_numbers<[2], [1], [1], [2], [0, 0, 0, 1, 1, 2], [0], [0]>} : vector<2x8x8xf32>, vector<2x8x8xf32>, vector<2x8x8xf32> -> vector<2x8x8xf32>
    "tpu.trace_stop"() : () -> ()
    %79 = vector.extract_strided_slice %57 {offsets = [0, 0, 8], sizes = [2, 8, 8], strides = [1, 1, 1]} : vector<2x8x32xf32> to vector<2x8x8xf32>
    %cst_28 = arith.constant 0.353553385 : f32
    %80 = vector.broadcast %cst_28 : f32 to vector<2x8x8xf32>
    %81 = arith.mulf %79, %80 : vector<2x8x8xf32>
    %82 = vector.extract_strided_slice %58 {offsets = [0, 0, 8], sizes = [2, 8, 8], strides = [1, 1, 1]} : vector<2x8x32xf32> to vector<2x8x8xf32>
    "tpu.trace_start"() <{level = 10 : i32, message = "bqd,bkd->bqk"}> : () -> ()
    %cst_29 = arith.constant dense<0.000000e+00> : vector<2x8x8xf32>
    %83 = tpu.matmul %81, %82, %cst_29 {dimension_numbers = #tpu.dot_dimension_numbers<[2], [2], [1], [1], [0, 0, 0, 1, 1, 1], [0], [0]>} : vector<2x8x8xf32>, vector<2x8x8xf32>, vector<2x8x8xf32> -> vector<2x8x8xf32>
    "tpu.trace_stop"() : () -> ()
    %84 = vector.broadcast %6 : vector<2x1x8xf32> to vector<2x8x8xf32>
    %85 = arith.addf %83, %84 : vector<2x8x8xf32>
    %cst_30 = arith.constant dense<0xFF800000> : vector<2x8xf32>
    %86 = vector.multi_reduction <maximumf>, %85, %cst_30 [2] : vector<2x8x8xf32> to vector<2x8xf32>
    %87 = vector.shape_cast %86 : vector<2x8xf32> to vector<2x8x1xf32>
    %88 = vector.broadcast %87 : vector<2x8x1xf32> to vector<2x8x8xf32>
    %89 = arith.subf %85, %88 : vector<2x8x8xf32>
    %90 = math.exp %89 : vector<2x8x8xf32>
    %cst_31 = arith.constant dense<0.000000e+00> : vector<2x8xf32>
    %91 = vector.multi_reduction <add>, %90, %cst_31 [2] : vector<2x8x8xf32> to vector<2x8xf32>
    %92 = vector.shape_cast %91 : vector<2x8xf32> to vector<2x8x1xf32>
    %93 = tpu.reciprocal %92 {approx = true} : vector<2x8x1xf32> -> vector<2x8x1xf32>
    %94 = vector.broadcast %93 : vector<2x8x1xf32> to vector<2x8x8xf32>
    %95 = arith.mulf %90, %94 : vector<2x8x8xf32>
    %96 = vector.extract_strided_slice %59 {offsets = [0, 0, 8], sizes = [2, 8, 8], strides = [1, 1, 1]} : vector<2x8x32xf32> to vector<2x8x8xf32>
    "tpu.trace_start"() <{level = 10 : i32, message = "bqk,bkd->bqd"}> : () -> ()
    %cst_32 = arith.constant dense<0.000000e+00> : vector<2x8x8xf32>
    %97 = tpu.matmul %95, %96, %cst_32 {dimension_numbers = #tpu.dot_dimension_numbers<[2], [1], [1], [2], [0, 0, 0, 1, 1, 2], [0], [0]>} : vector<2x8x8xf32>, vector<2x8x8xf32>, vector<2x8x8xf32> -> vector<2x8x8xf32>
    "tpu.trace_stop"() : () -> ()
    %98 = vector.extract_strided_slice %57 {offsets = [0, 0, 16], sizes = [2, 8, 8], strides = [1, 1, 1]} : vector<2x8x32xf32> to vector<2x8x8xf32>
    %cst_33 = arith.constant 0.353553385 : f32
    %99 = vector.broadcast %cst_33 : f32 to vector<2x8x8xf32>
    %100 = arith.mulf %98, %99 : vector<2x8x8xf32>
    %101 = vector.extract_strided_slice %58 {offsets = [0, 0, 16], sizes = [2, 8, 8], strides = [1, 1, 1]} : vector<2x8x32xf32> to vector<2x8x8xf32>
    "tpu.trace_start"() <{level = 10 : i32, message = "bqd,bkd->bqk"}> : () -> ()
    %cst_34 = arith.constant dense<0.000000e+00> : vector<2x8x8xf32>
    %102 = tpu.matmul %100, %101, %cst_34 {dimension_numbers = #tpu.dot_dimension_numbers<[2], [2], [1], [1], [0, 0, 0, 1, 1, 1], [0], [0]>} : vector<2x8x8xf32>, vector<2x8x8xf32>, vector<2x8x8xf32> -> vector<2x8x8xf32>
    "tpu.trace_stop"() : () -> ()
    %103 = vector.broadcast %6 : vector<2x1x8xf32> to vector<2x8x8xf32>
    %104 = arith.addf %102, %103 : vector<2x8x8xf32>
    %cst_35 = arith.constant dense<0xFF800000> : vector<2x8xf32>
    %105 = vector.multi_reduction <maximumf>, %104, %cst_35 [2] : vector<2x8x8xf32> to vector<2x8xf32>
    %106 = vector.shape_cast %105 : vector<2x8xf32> to vector<2x8x1xf32>
    %107 = vector.broadcast %106 : vector<2x8x1xf32> to vector<2x8x8xf32>
    %108 = arith.subf %104, %107 : vector<2x8x8xf32>
    %109 = math.exp %108 : vector<2x8x8xf32>
    %cst_36 = arith.constant dense<0.000000e+00> : vector<2x8xf32>
    %110 = vector.multi_reduction <add>, %109, %cst_36 [2] : vector<2x8x8xf32> to vector<2x8xf32>
    %111 = vector.shape_cast %110 : vector<2x8xf32> to vector<2x8x1xf32>
    %112 = tpu.reciprocal %111 {approx = true} : vector<2x8x1xf32> -> vector<2x8x1xf32>
    %113 = vector.broadcast %112 : vector<2x8x1xf32> to vector<2x8x8xf32>
    %114 = arith.mulf %109, %113 : vector<2x8x8xf32>
    %115 = vector.extract_strided_slice %59 {offsets = [0, 0, 16], sizes = [2, 8, 8], strides = [1, 1, 1]} : vector<2x8x32xf32> to vector<2x8x8xf32>
    "tpu.trace_start"() <{level = 10 : i32, message = "bqk,bkd->bqd"}> : () -> ()
    %cst_37 = arith.constant dense<0.000000e+00> : vector<2x8x8xf32>
    %116 = tpu.matmul %114, %115, %cst_37 {dimension_numbers = #tpu.dot_dimension_numbers<[2], [1], [1], [2], [0, 0, 0, 1, 1, 2], [0], [0]>} : vector<2x8x8xf32>, vector<2x8x8xf32>, vector<2x8x8xf32> -> vector<2x8x8xf32>
    "tpu.trace_stop"() : () -> ()
    %117 = vector.extract_strided_slice %57 {offsets = [0, 0, 24], sizes = [2, 8, 8], strides = [1, 1, 1]} : vector<2x8x32xf32> to vector<2x8x8xf32>
    %cst_38 = arith.constant 0.353553385 : f32
    %118 = vector.broadcast %cst_38 : f32 to vector<2x8x8xf32>
    %119 = arith.mulf %117, %118 : vector<2x8x8xf32>
    %120 = vector.extract_strided_slice %58 {offsets = [0, 0, 24], sizes = [2, 8, 8], strides = [1, 1, 1]} : vector<2x8x32xf32> to vector<2x8x8xf32>
    "tpu.trace_start"() <{level = 10 : i32, message = "bqd,bkd->bqk"}> : () -> ()
    %cst_39 = arith.constant dense<0.000000e+00> : vector<2x8x8xf32>
    %121 = tpu.matmul %119, %120, %cst_39 {dimension_numbers = #tpu.dot_dimension_numbers<[2], [2], [1], [1], [0, 0, 0, 1, 1, 1], [0], [0]>} : vector<2x8x8xf32>, vector<2x8x8xf32>, vector<2x8x8xf32> -> vector<2x8x8xf32>
    "tpu.trace_stop"() : () -> ()
    %122 = vector.broadcast %6 : vector<2x1x8xf32> to vector<2x8x8xf32>
    %123 = arith.addf %121, %122 : vector<2x8x8xf32>
    %cst_40 = arith.constant dense<0xFF800000> : vector<2x8xf32>
    %124 = vector.multi_reduction <maximumf>, %123, %cst_40 [2] : vector<2x8x8xf32> to vector<2x8xf32>
    %125 = vector.shape_cast %124 : vector<2x8xf32> to vector<2x8x1xf32>
    %126 = vector.broadcast %125 : vector<2x8x1xf32> to vector<2x8x8xf32>
    %127 = arith.subf %123, %126 : vector<2x8x8xf32>
    %128 = math.exp %127 : vector<2x8x8xf32>
    %cst_41 = arith.constant dense<0.000000e+00> : vector<2x8xf32>
    %129 = vector.multi_reduction <add>, %128, %cst_41 [2] : vector<2x8x8xf32> to vector<2x8xf32>
    %130 = vector.shape_cast %129 : vector<2x8xf32> to vector<2x8x1xf32>
    %131 = tpu.reciprocal %130 {approx = true} : vector<2x8x1xf32> -> vector<2x8x1xf32>
    %132 = vector.broadcast %131 : vector<2x8x1xf32> to vector<2x8x8xf32>
    %133 = arith.mulf %128, %132 : vector<2x8x8xf32>
    %134 = vector.extract_strided_slice %59 {offsets = [0, 0, 24], sizes = [2, 8, 8], strides = [1, 1, 1]} : vector<2x8x32xf32> to vector<2x8x8xf32>
    "tpu.trace_start"() <{level = 10 : i32, message = "bqk,bkd->bqd"}> : () -> ()
    %cst_42 = arith.constant dense<0.000000e+00> : vector<2x8x8xf32>
    %135 = tpu.matmul %133, %134, %cst_42 {dimension_numbers = #tpu.dot_dimension_numbers<[2], [1], [1], [2], [0, 0, 0, 1, 1, 2], [0], [0]>} : vector<2x8x8xf32>, vector<2x8x8xf32>, vector<2x8x8xf32> -> vector<2x8x8xf32>
    "tpu.trace_stop"() : () -> ()
    %136 = tpu.concatenate %78, %97, %116, %135 in 2 : vector<2x8x8xf32>, vector<2x8x8xf32>, vector<2x8x8xf32>, vector<2x8x8xf32> -> vector<2x8x32xf32>
    %c1_43 = arith.constant 1 : index
    %c0_44 = arith.constant 0 : index
    %c0_45 = arith.constant 0 : index
    %137 = vector.load %arg7[%c1_43, %c0_44, %c0_45] : memref<9x32x128xf32, #tpu.memory_space<vmem>>, vector<1x32x32xf32>
    %138 = vector.shape_cast %137 : vector<1x32x32xf32> to vector<32x32xf32>
    %139 = vector.shape_cast %136 : vector<2x8x32xf32> to vector<16x32xf32>
    %cst_46 = arith.constant dense<0.000000e+00> : vector<16x32xf32>
    %140 = tpu.matmul %139, %138, %cst_46 {dimension_numbers = #tpu.dot_dimension_numbers<[1], [0], [0], [1], [0, 0, 1, 1], [], []>} : vector<16x32xf32>, vector<32x32xf32>, vector<16x32xf32> -> vector<16x32xf32>
    %c3 = arith.constant 3 : index
    %c0_47 = arith.constant 0 : index
    %141 = vector.load %arg6[%c3, %c0_47] : memref<26x128xf32, #tpu.memory_space<vmem>>, vector<1x32xf32>
    %142 = vector.broadcast %141 : vector<1x32xf32> to vector<16x32xf32>
    %143 = arith.addf %140, %142 : vector<16x32xf32>
    %144 = vector.shape_cast %143 : vector<16x32xf32> to vector<2x8x32xf32>
    %145 = arith.addf %20, %144 : vector<2x8x32xf32>
    %c4 = arith.constant 4 : index
    %c0_48 = arith.constant 0 : index
    %146 = vector.load %arg6[%c4, %c0_48] : memref<26x128xf32, #tpu.memory_space<vmem>>, vector<1x32xf32>
    %c5 = arith.constant 5 : index
    %c0_49 = arith.constant 0 : index
    %147 = vector.load %arg6[%c5, %c0_49] : memref<26x128xf32, #tpu.memory_space<vmem>>, vector<1x32xf32>
    %cst_50 = arith.constant dense<0.000000e+00> : vector<2x8xf32>
    %148 = vector.multi_reduction <add>, %145, %cst_50 [2] : vector<2x8x32xf32> to vector<2x8xf32>
    %149 = vector.shape_cast %148 : vector<2x8xf32> to vector<2x8x1xf32>
    %cst_51 = arith.constant 3.200000e+01 : f32
    %150 = vector.broadcast %cst_51 : f32 to vector<2x8x1xf32>
    %151 = arith.divf %149, %150 : vector<2x8x1xf32>
    %152 = vector.broadcast %151 : vector<2x8x1xf32> to vector<2x8x32xf32>
    %153 = arith.subf %145, %152 : vector<2x8x32xf32>
    %154 = vector.broadcast %151 : vector<2x8x1xf32> to vector<2x8x32xf32>
    %155 = arith.subf %145, %154 : vector<2x8x32xf32>
    %156 = arith.mulf %153, %155 : vector<2x8x32xf32>
    %cst_52 = arith.constant dense<0.000000e+00> : vector<2x8xf32>
    %157 = vector.multi_reduction <add>, %156, %cst_52 [2] : vector<2x8x32xf32> to vector<2x8xf32>
    %158 = vector.shape_cast %157 : vector<2x8xf32> to vector<2x8x1xf32>
    %cst_53 = arith.constant 3.200000e+01 : f32
    %159 = vector.broadcast %cst_53 : f32 to vector<2x8x1xf32>
    %160 = arith.divf %158, %159 : vector<2x8x1xf32>
    %161 = vector.broadcast %151 : vector<2x8x1xf32> to vector<2x8x32xf32>
    %162 = arith.subf %145, %161 : vector<2x8x32xf32>
    %cst_54 = arith.constant 9.99999974E-6 : f32
    %163 = vector.broadcast %cst_54 : f32 to vector<2x8x1xf32>
    %164 = arith.addf %160, %163 : vector<2x8x1xf32>
    %165 = math.rsqrt %164 : vector<2x8x1xf32>
    %166 = vector.broadcast %165 : vector<2x8x1xf32> to vector<2x8x32xf32>
    %167 = arith.mulf %162, %166 : vector<2x8x32xf32>
    %168 = vector.shape_cast %146 : vector<1x32xf32> to vector<1x1x32xf32>
    %169 = vector.broadcast %168 : vector<1x1x32xf32> to vector<2x8x32xf32>
    %170 = arith.mulf %167, %169 : vector<2x8x32xf32>
    %171 = vector.shape_cast %147 : vector<1x32xf32> to vector<1x1x32xf32>
    %172 = vector.broadcast %171 : vector<1x1x32xf32> to vector<2x8x32xf32>
    %173 = arith.addf %170, %172 : vector<2x8x32xf32>
    %c2_55 = arith.constant 2 : index
    %c0_56 = arith.constant 0 : index
    %c0_57 = arith.constant 0 : index
    %174 = vector.load %arg7[%c2_55, %c0_56, %c0_57] : memref<9x32x128xf32, #tpu.memory_space<vmem>>, vector<1x32x64xf32>
    %175 = vector.shape_cast %174 : vector<1x32x64xf32> to vector<32x64xf32>
    %176 = vector.shape_cast %173 : vector<2x8x32xf32> to vector<16x32xf32>
    %cst_58 = arith.constant dense<0.000000e+00> : vector<16x64xf32>
    %177 = tpu.matmul %176, %175, %cst_58 {dimension_numbers = #tpu.dot_dimension_numbers<[1], [0], [0], [1], [0, 0, 1, 1], [], []>} : vector<16x32xf32>, vector<32x64xf32>, vector<16x64xf32> -> vector<16x64xf32>
    %c6 = arith.constant 6 : index
    %c0_59 = arith.constant 0 : index
    %178 = vector.load %arg6[%c6, %c0_59] : memref<26x128xf32, #tpu.memory_space<vmem>>, vector<1x64xf32>
    %179 = vector.broadcast %178 : vector<1x64xf32> to vector<16x64xf32>
    %180 = arith.addf %177, %179 : vector<16x64xf32>
    %181 = vector.shape_cast %180 : vector<16x64xf32> to vector<2x8x64xf32>
    %cst_60 = arith.constant 5.000000e-01 : f32
    %182 = vector.broadcast %cst_60 : f32 to vector<2x8x64xf32>
    %183 = arith.mulf %182, %181 : vector<2x8x64xf32>
    %cst_61 = arith.constant 4.471500e-02 : f32
    %184 = vector.broadcast %cst_61 : f32 to vector<2x8x64xf32>
    %185 = arith.mulf %184, %181 : vector<2x8x64xf32>
    %186 = arith.mulf %185, %181 : vector<2x8x64xf32>
    %187 = arith.mulf %186, %181 : vector<2x8x64xf32>
    %188 = arith.addf %181, %187 : vector<2x8x64xf32>
    %cst_62 = arith.constant 0.797884583 : f32
    %189 = vector.broadcast %cst_62 : f32 to vector<2x8x64xf32>
    %190 = arith.mulf %189, %188 : vector<2x8x64xf32>
    %191 = math.tanh %190 : vector<2x8x64xf32>
    %cst_63 = arith.constant 1.000000e+00 : f32
    %192 = vector.broadcast %cst_63 : f32 to vector<2x8x64xf32>
    %193 = arith.addf %192, %191 : vector<2x8x64xf32>
    %194 = arith.mulf %183, %193 : vector<2x8x64xf32>
    %c0_64 = arith.constant 0 : index
    %c0_65 = arith.constant 0 : index
    %c0_66 = arith.constant 0 : index
    %195 = vector.load %arg8[%c0_64, %c0_65, %c0_66] : memref<2x64x128xf32, #tpu.memory_space<vmem>>, vector<1x64x32xf32>
    %196 = vector.shape_cast %195 : vector<1x64x32xf32> to vector<64x32xf32>
    %197 = vector.shape_cast %194 : vector<2x8x64xf32> to vector<16x64xf32>
    %cst_67 = arith.constant dense<0.000000e+00> : vector<16x32xf32>
    %198 = tpu.matmul %197, %196, %cst_67 {dimension_numbers = #tpu.dot_dimension_numbers<[1], [0], [0], [1], [0, 0, 1, 1], [], []>} : vector<16x64xf32>, vector<64x32xf32>, vector<16x32xf32> -> vector<16x32xf32>
    %c7 = arith.constant 7 : index
    %c0_68 = arith.constant 0 : index
    %199 = vector.load %arg6[%c7, %c0_68] : memref<26x128xf32, #tpu.memory_space<vmem>>, vector<1x32xf32>
    %200 = vector.broadcast %199 : vector<1x32xf32> to vector<16x32xf32>
    %201 = arith.addf %198, %200 : vector<16x32xf32>
    %202 = vector.shape_cast %201 : vector<16x32xf32> to vector<2x8x32xf32>
    %203 = arith.addf %145, %202 : vector<2x8x32xf32>
    %c8 = arith.constant 8 : index
    %c0_69 = arith.constant 0 : index
    %204 = vector.load %arg6[%c8, %c0_69] : memref<26x128xf32, #tpu.memory_space<vmem>>, vector<1x32xf32>
    %c9 = arith.constant 9 : index
    %c0_70 = arith.constant 0 : index
    %205 = vector.load %arg6[%c9, %c0_70] : memref<26x128xf32, #tpu.memory_space<vmem>>, vector<1x32xf32>
    %cst_71 = arith.constant dense<0.000000e+00> : vector<2x8xf32>
    %206 = vector.multi_reduction <add>, %203, %cst_71 [2] : vector<2x8x32xf32> to vector<2x8xf32>
    %207 = vector.shape_cast %206 : vector<2x8xf32> to vector<2x8x1xf32>
    %cst_72 = arith.constant 3.200000e+01 : f32
    %208 = vector.broadcast %cst_72 : f32 to vector<2x8x1xf32>
    %209 = arith.divf %207, %208 : vector<2x8x1xf32>
    %210 = vector.broadcast %209 : vector<2x8x1xf32> to vector<2x8x32xf32>
    %211 = arith.subf %203, %210 : vector<2x8x32xf32>
    %212 = vector.broadcast %209 : vector<2x8x1xf32> to vector<2x8x32xf32>
    %213 = arith.subf %203, %212 : vector<2x8x32xf32>
    %214 = arith.mulf %211, %213 : vector<2x8x32xf32>
    %cst_73 = arith.constant dense<0.000000e+00> : vector<2x8xf32>
    %215 = vector.multi_reduction <add>, %214, %cst_73 [2] : vector<2x8x32xf32> to vector<2x8xf32>
    %216 = vector.shape_cast %215 : vector<2x8xf32> to vector<2x8x1xf32>
    %cst_74 = arith.constant 3.200000e+01 : f32
    %217 = vector.broadcast %cst_74 : f32 to vector<2x8x1xf32>
    %218 = arith.divf %216, %217 : vector<2x8x1xf32>
    %219 = vector.broadcast %209 : vector<2x8x1xf32> to vector<2x8x32xf32>
    %220 = arith.subf %203, %219 : vector<2x8x32xf32>
    %cst_75 = arith.constant 9.99999974E-6 : f32
    %221 = vector.broadcast %cst_75 : f32 to vector<2x8x1xf32>
    %222 = arith.addf %218, %221 : vector<2x8x1xf32>
    %223 = math.rsqrt %222 : vector<2x8x1xf32>
    %224 = vector.broadcast %223 : vector<2x8x1xf32> to vector<2x8x32xf32>
    %225 = arith.mulf %220, %224 : vector<2x8x32xf32>
    %226 = vector.shape_cast %204 : vector<1x32xf32> to vector<1x1x32xf32>
    %227 = vector.broadcast %226 : vector<1x1x32xf32> to vector<2x8x32xf32>
    %228 = arith.mulf %225, %227 : vector<2x8x32xf32>
    %229 = vector.shape_cast %205 : vector<1x32xf32> to vector<1x1x32xf32>
    %230 = vector.broadcast %229 : vector<1x1x32xf32> to vector<2x8x32xf32>
    %231 = arith.addf %228, %230 : vector<2x8x32xf32>
    %c0_76 = arith.constant 0 : index
    %c0_77 = arith.constant 0 : index
    %232 = vector.load %arg1[%c0_76, %c0_77] : memref<16x1xi32, #tpu.memory_space<vmem>>, vector<16x1xi32>
    %c0_78 = arith.constant 0 : index
    %c0_79 = arith.constant 0 : index
    %233 = vector.load %arg5[%c0_78, %c0_79] : memref<64x32xf32, #tpu.memory_space<vmem>>, vector<8x32xf32>
    %234 = tpu.iota {dimensions = array<i32: 1>} : vector<16x128xi32>
    %235 = vector.broadcast %232 : vector<16x1xi32> to vector<16x128xi32>
    %236 = arith.cmpi eq, %235, %234 : vector<16x128xi32>
    %237 = arith.extui %236 : vector<16x128xi1> to vector<16x128xi32>
    %238 = arith.sitofp %237 : vector<16x128xi32> to vector<16x128xf32>
    %cst_80 = arith.constant dense<0.000000e+00> : vector<16x32xf32>
    %239 = tpu.matmul %238, %0, %cst_80 {dimension_numbers = #tpu.dot_dimension_numbers<[1], [0], [0], [1], [0, 0, 1, 1], [], []>} : vector<16x128xf32>, vector<128x32xf32>, vector<16x32xf32> -> vector<16x32xf32>
    %cst_81 = arith.constant 5.65685415 : f32
    %240 = vector.broadcast %cst_81 : f32 to vector<16x32xf32>
    %241 = arith.mulf %239, %240 : vector<16x32xf32>
    %242 = vector.shape_cast %241 : vector<16x32xf32> to vector<2x8x32xf32>
    %243 = vector.shape_cast %233 : vector<8x32xf32> to vector<1x8x32xf32>
    %244 = vector.broadcast %243 : vector<1x8x32xf32> to vector<2x8x32xf32>
    %245 = arith.addf %242, %244 : vector<2x8x32xf32>
    %246 = tpu.iota {dimensions = array<i32: 0>} : vector<8x8xi32>
    %247 = tpu.iota {dimensions = array<i32: 1>} : vector<8x8xi32>
    %248 = arith.cmpi sle, %247, %246 : vector<8x8xi32>
    %cst_82 = arith.constant 0.000000e+00 : f32
    %cst_83 = arith.constant -1.000000e+09 : f32
    %249 = vector.broadcast %cst_82 : f32 to vector<8x8xf32>
    %250 = vector.broadcast %cst_83 : f32 to vector<8x8xf32>
    %251 = arith.select %248, %249, %250 : vector<8x8xi1>, vector<8x8xf32>
    %252 = vector.shape_cast %251 : vector<8x8xf32> to vector<1x8x8xf32>
    %c10 = arith.constant 10 : index
    %c0_84 = arith.constant 0 : index
    %253 = vector.load %arg6[%c10, %c0_84] : memref<26x128xf32, #tpu.memory_space<vmem>>, vector<1x32xf32>
    %c11 = arith.constant 11 : index
    %c0_85 = arith.constant 0 : index
    %254 = vector.load %arg6[%c11, %c0_85] : memref<26x128xf32, #tpu.memory_space<vmem>>, vector<1x32xf32>
    %cst_86 = arith.constant dense<0.000000e+00> : vector<2x8xf32>
    %255 = vector.multi_reduction <add>, %245, %cst_86 [2] : vector<2x8x32xf32> to vector<2x8xf32>
    %256 = vector.shape_cast %255 : vector<2x8xf32> to vector<2x8x1xf32>
    %cst_87 = arith.constant 3.200000e+01 : f32
    %257 = vector.broadcast %cst_87 : f32 to vector<2x8x1xf32>
    %258 = arith.divf %256, %257 : vector<2x8x1xf32>
    %259 = vector.broadcast %258 : vector<2x8x1xf32> to vector<2x8x32xf32>
    %260 = arith.subf %245, %259 : vector<2x8x32xf32>
    %261 = vector.broadcast %258 : vector<2x8x1xf32> to vector<2x8x32xf32>
    %262 = arith.subf %245, %261 : vector<2x8x32xf32>
    %263 = arith.mulf %260, %262 : vector<2x8x32xf32>
    %cst_88 = arith.constant dense<0.000000e+00> : vector<2x8xf32>
    %264 = vector.multi_reduction <add>, %263, %cst_88 [2] : vector<2x8x32xf32> to vector<2x8xf32>
    %265 = vector.shape_cast %264 : vector<2x8xf32> to vector<2x8x1xf32>
    %cst_89 = arith.constant 3.200000e+01 : f32
    %266 = vector.broadcast %cst_89 : f32 to vector<2x8x1xf32>
    %267 = arith.divf %265, %266 : vector<2x8x1xf32>
    %268 = vector.broadcast %258 : vector<2x8x1xf32> to vector<2x8x32xf32>
    %269 = arith.subf %245, %268 : vector<2x8x32xf32>
    %cst_90 = arith.constant 9.99999974E-6 : f32
    %270 = vector.broadcast %cst_90 : f32 to vector<2x8x1xf32>
    %271 = arith.addf %267, %270 : vector<2x8x1xf32>
    %272 = math.rsqrt %271 : vector<2x8x1xf32>
    %273 = vector.broadcast %272 : vector<2x8x1xf32> to vector<2x8x32xf32>
    %274 = arith.mulf %269, %273 : vector<2x8x32xf32>
    %275 = vector.shape_cast %253 : vector<1x32xf32> to vector<1x1x32xf32>
    %276 = vector.broadcast %275 : vector<1x1x32xf32> to vector<2x8x32xf32>
    %277 = arith.mulf %274, %276 : vector<2x8x32xf32>
    %278 = vector.shape_cast %254 : vector<1x32xf32> to vector<1x1x32xf32>
    %279 = vector.broadcast %278 : vector<1x1x32xf32> to vector<2x8x32xf32>
    %280 = arith.addf %277, %279 : vector<2x8x32xf32>
    %c3_91 = arith.constant 3 : index
    %c0_92 = arith.constant 0 : index
    %c0_93 = arith.constant 0 : index
    %281 = vector.load %arg7[%c3_91, %c0_92, %c0_93] : memref<9x32x128xf32, #tpu.memory_space<vmem>>, vector<1x32x96xf32>
    %282 = vector.shape_cast %281 : vector<1x32x96xf32> to vector<32x96xf32>
    %283 = vector.shape_cast %280 : vector<2x8x32xf32> to vector<16x32xf32>
    %cst_94 = arith.constant dense<0.000000e+00> : vector<16x96xf32>
    %284 = tpu.matmul %283, %282, %cst_94 {dimension_numbers = #tpu.dot_dimension_numbers<[1], [0], [0], [1], [0, 0, 1, 1], [], []>} : vector<16x32xf32>, vector<32x96xf32>, vector<16x96xf32> -> vector<16x96xf32>
    %c12 = arith.constant 12 : index
    %c0_95 = arith.constant 0 : index
    %285 = vector.load %arg6[%c12, %c0_95] : memref<26x128xf32, #tpu.memory_space<vmem>>, vector<1x96xf32>
    %286 = vector.broadcast %285 : vector<1x96xf32> to vector<16x96xf32>
    %287 = arith.addf %284, %286 : vector<16x96xf32>
    %288 = vector.shape_cast %287 : vector<16x96xf32> to vector<2x8x96xf32>
    %289 = vector.extract_strided_slice %288 {offsets = [0, 0, 0], sizes = [2, 8, 32], strides = [1, 1, 1]} : vector<2x8x96xf32> to vector<2x8x32xf32>
    %290 = vector.extract_strided_slice %288 {offsets = [0, 0, 32], sizes = [2, 8, 32], strides = [1, 1, 1]} : vector<2x8x96xf32> to vector<2x8x32xf32>
    %291 = vector.extract_strided_slice %288 {offsets = [0, 0, 64], sizes = [2, 8, 32], strides = [1, 1, 1]} : vector<2x8x96xf32> to vector<2x8x32xf32>
    %292 = vector.extract_strided_slice %289 {offsets = [0, 0, 0], sizes = [2, 8, 8], strides = [1, 1, 1]} : vector<2x8x32xf32> to vector<2x8x8xf32>
    %cst_96 = arith.constant 0.353553385 : f32
    %293 = vector.broadcast %cst_96 : f32 to vector<2x8x8xf32>
    %294 = arith.mulf %292, %293 : vector<2x8x8xf32>
    %295 = vector.extract_strided_slice %290 {offsets = [0, 0, 0], sizes = [2, 8, 8], strides = [1, 1, 1]} : vector<2x8x32xf32> to vector<2x8x8xf32>
    "tpu.trace_start"() <{level = 10 : i32, message = "bqd,bkd->bqk"}> : () -> ()
    %cst_97 = arith.constant dense<0.000000e+00> : vector<2x8x8xf32>
    %296 = tpu.matmul %294, %295, %cst_97 {dimension_numbers = #tpu.dot_dimension_numbers<[2], [2], [1], [1], [0, 0, 0, 1, 1, 1], [0], [0]>} : vector<2x8x8xf32>, vector<2x8x8xf32>, vector<2x8x8xf32> -> vector<2x8x8xf32>
    "tpu.trace_stop"() : () -> ()
    %297 = vector.broadcast %252 : vector<1x8x8xf32> to vector<2x8x8xf32>
    %298 = arith.addf %296, %297 : vector<2x8x8xf32>
    %cst_98 = arith.constant dense<0xFF800000> : vector<2x8xf32>
    %299 = vector.multi_reduction <maximumf>, %298, %cst_98 [2] : vector<2x8x8xf32> to vector<2x8xf32>
    %300 = vector.shape_cast %299 : vector<2x8xf32> to vector<2x8x1xf32>
    %301 = vector.broadcast %300 : vector<2x8x1xf32> to vector<2x8x8xf32>
    %302 = arith.subf %298, %301 : vector<2x8x8xf32>
    %303 = math.exp %302 : vector<2x8x8xf32>
    %cst_99 = arith.constant dense<0.000000e+00> : vector<2x8xf32>
    %304 = vector.multi_reduction <add>, %303, %cst_99 [2] : vector<2x8x8xf32> to vector<2x8xf32>
    %305 = vector.shape_cast %304 : vector<2x8xf32> to vector<2x8x1xf32>
    %306 = tpu.reciprocal %305 {approx = true} : vector<2x8x1xf32> -> vector<2x8x1xf32>
    %307 = vector.broadcast %306 : vector<2x8x1xf32> to vector<2x8x8xf32>
    %308 = arith.mulf %303, %307 : vector<2x8x8xf32>
    %309 = vector.extract_strided_slice %291 {offsets = [0, 0, 0], sizes = [2, 8, 8], strides = [1, 1, 1]} : vector<2x8x32xf32> to vector<2x8x8xf32>
    "tpu.trace_start"() <{level = 10 : i32, message = "bqk,bkd->bqd"}> : () -> ()
    %cst_100 = arith.constant dense<0.000000e+00> : vector<2x8x8xf32>
    %310 = tpu.matmul %308, %309, %cst_100 {dimension_numbers = #tpu.dot_dimension_numbers<[2], [1], [1], [2], [0, 0, 0, 1, 1, 2], [0], [0]>} : vector<2x8x8xf32>, vector<2x8x8xf32>, vector<2x8x8xf32> -> vector<2x8x8xf32>
    "tpu.trace_stop"() : () -> ()
    %311 = vector.extract_strided_slice %289 {offsets = [0, 0, 8], sizes = [2, 8, 8], strides = [1, 1, 1]} : vector<2x8x32xf32> to vector<2x8x8xf32>
    %cst_101 = arith.constant 0.353553385 : f32
    %312 = vector.broadcast %cst_101 : f32 to vector<2x8x8xf32>
    %313 = arith.mulf %311, %312 : vector<2x8x8xf32>
    %314 = vector.extract_strided_slice %290 {offsets = [0, 0, 8], sizes = [2, 8, 8], strides = [1, 1, 1]} : vector<2x8x32xf32> to vector<2x8x8xf32>
    "tpu.trace_start"() <{level = 10 : i32, message = "bqd,bkd->bqk"}> : () -> ()
    %cst_102 = arith.constant dense<0.000000e+00> : vector<2x8x8xf32>
    %315 = tpu.matmul %313, %314, %cst_102 {dimension_numbers = #tpu.dot_dimension_numbers<[2], [2], [1], [1], [0, 0, 0, 1, 1, 1], [0], [0]>} : vector<2x8x8xf32>, vector<2x8x8xf32>, vector<2x8x8xf32> -> vector<2x8x8xf32>
    "tpu.trace_stop"() : () -> ()
    %316 = vector.broadcast %252 : vector<1x8x8xf32> to vector<2x8x8xf32>
    %317 = arith.addf %315, %316 : vector<2x8x8xf32>
    %cst_103 = arith.constant dense<0xFF800000> : vector<2x8xf32>
    %318 = vector.multi_reduction <maximumf>, %317, %cst_103 [2] : vector<2x8x8xf32> to vector<2x8xf32>
    %319 = vector.shape_cast %318 : vector<2x8xf32> to vector<2x8x1xf32>
    %320 = vector.broadcast %319 : vector<2x8x1xf32> to vector<2x8x8xf32>
    %321 = arith.subf %317, %320 : vector<2x8x8xf32>
    %322 = math.exp %321 : vector<2x8x8xf32>
    %cst_104 = arith.constant dense<0.000000e+00> : vector<2x8xf32>
    %323 = vector.multi_reduction <add>, %322, %cst_104 [2] : vector<2x8x8xf32> to vector<2x8xf32>
    %324 = vector.shape_cast %323 : vector<2x8xf32> to vector<2x8x1xf32>
    %325 = tpu.reciprocal %324 {approx = true} : vector<2x8x1xf32> -> vector<2x8x1xf32>
    %326 = vector.broadcast %325 : vector<2x8x1xf32> to vector<2x8x8xf32>
    %327 = arith.mulf %322, %326 : vector<2x8x8xf32>
    %328 = vector.extract_strided_slice %291 {offsets = [0, 0, 8], sizes = [2, 8, 8], strides = [1, 1, 1]} : vector<2x8x32xf32> to vector<2x8x8xf32>
    "tpu.trace_start"() <{level = 10 : i32, message = "bqk,bkd->bqd"}> : () -> ()
    %cst_105 = arith.constant dense<0.000000e+00> : vector<2x8x8xf32>
    %329 = tpu.matmul %327, %328, %cst_105 {dimension_numbers = #tpu.dot_dimension_numbers<[2], [1], [1], [2], [0, 0, 0, 1, 1, 2], [0], [0]>} : vector<2x8x8xf32>, vector<2x8x8xf32>, vector<2x8x8xf32> -> vector<2x8x8xf32>
    "tpu.trace_stop"() : () -> ()
    %330 = vector.extract_strided_slice %289 {offsets = [0, 0, 16], sizes = [2, 8, 8], strides = [1, 1, 1]} : vector<2x8x32xf32> to vector<2x8x8xf32>
    %cst_106 = arith.constant 0.353553385 : f32
    %331 = vector.broadcast %cst_106 : f32 to vector<2x8x8xf32>
    %332 = arith.mulf %330, %331 : vector<2x8x8xf32>
    %333 = vector.extract_strided_slice %290 {offsets = [0, 0, 16], sizes = [2, 8, 8], strides = [1, 1, 1]} : vector<2x8x32xf32> to vector<2x8x8xf32>
    "tpu.trace_start"() <{level = 10 : i32, message = "bqd,bkd->bqk"}> : () -> ()
    %cst_107 = arith.constant dense<0.000000e+00> : vector<2x8x8xf32>
    %334 = tpu.matmul %332, %333, %cst_107 {dimension_numbers = #tpu.dot_dimension_numbers<[2], [2], [1], [1], [0, 0, 0, 1, 1, 1], [0], [0]>} : vector<2x8x8xf32>, vector<2x8x8xf32>, vector<2x8x8xf32> -> vector<2x8x8xf32>
    "tpu.trace_stop"() : () -> ()
    %335 = vector.broadcast %252 : vector<1x8x8xf32> to vector<2x8x8xf32>
    %336 = arith.addf %334, %335 : vector<2x8x8xf32>
    %cst_108 = arith.constant dense<0xFF800000> : vector<2x8xf32>
    %337 = vector.multi_reduction <maximumf>, %336, %cst_108 [2] : vector<2x8x8xf32> to vector<2x8xf32>
    %338 = vector.shape_cast %337 : vector<2x8xf32> to vector<2x8x1xf32>
    %339 = vector.broadcast %338 : vector<2x8x1xf32> to vector<2x8x8xf32>
    %340 = arith.subf %336, %339 : vector<2x8x8xf32>
    %341 = math.exp %340 : vector<2x8x8xf32>
    %cst_109 = arith.constant dense<0.000000e+00> : vector<2x8xf32>
    %342 = vector.multi_reduction <add>, %341, %cst_109 [2] : vector<2x8x8xf32> to vector<2x8xf32>
    %343 = vector.shape_cast %342 : vector<2x8xf32> to vector<2x8x1xf32>
    %344 = tpu.reciprocal %343 {approx = true} : vector<2x8x1xf32> -> vector<2x8x1xf32>
    %345 = vector.broadcast %344 : vector<2x8x1xf32> to vector<2x8x8xf32>
    %346 = arith.mulf %341, %345 : vector<2x8x8xf32>
    %347 = vector.extract_strided_slice %291 {offsets = [0, 0, 16], sizes = [2, 8, 8], strides = [1, 1, 1]} : vector<2x8x32xf32> to vector<2x8x8xf32>
    "tpu.trace_start"() <{level = 10 : i32, message = "bqk,bkd->bqd"}> : () -> ()
    %cst_110 = arith.constant dense<0.000000e+00> : vector<2x8x8xf32>
    %348 = tpu.matmul %346, %347, %cst_110 {dimension_numbers = #tpu.dot_dimension_numbers<[2], [1], [1], [2], [0, 0, 0, 1, 1, 2], [0], [0]>} : vector<2x8x8xf32>, vector<2x8x8xf32>, vector<2x8x8xf32> -> vector<2x8x8xf32>
    "tpu.trace_stop"() : () -> ()
    %349 = vector.extract_strided_slice %289 {offsets = [0, 0, 24], sizes = [2, 8, 8], strides = [1, 1, 1]} : vector<2x8x32xf32> to vector<2x8x8xf32>
    %cst_111 = arith.constant 0.353553385 : f32
    %350 = vector.broadcast %cst_111 : f32 to vector<2x8x8xf32>
    %351 = arith.mulf %349, %350 : vector<2x8x8xf32>
    %352 = vector.extract_strided_slice %290 {offsets = [0, 0, 24], sizes = [2, 8, 8], strides = [1, 1, 1]} : vector<2x8x32xf32> to vector<2x8x8xf32>
    "tpu.trace_start"() <{level = 10 : i32, message = "bqd,bkd->bqk"}> : () -> ()
    %cst_112 = arith.constant dense<0.000000e+00> : vector<2x8x8xf32>
    %353 = tpu.matmul %351, %352, %cst_112 {dimension_numbers = #tpu.dot_dimension_numbers<[2], [2], [1], [1], [0, 0, 0, 1, 1, 1], [0], [0]>} : vector<2x8x8xf32>, vector<2x8x8xf32>, vector<2x8x8xf32> -> vector<2x8x8xf32>
    "tpu.trace_stop"() : () -> ()
    %354 = vector.broadcast %252 : vector<1x8x8xf32> to vector<2x8x8xf32>
    %355 = arith.addf %353, %354 : vector<2x8x8xf32>
    %cst_113 = arith.constant dense<0xFF800000> : vector<2x8xf32>
    %356 = vector.multi_reduction <maximumf>, %355, %cst_113 [2] : vector<2x8x8xf32> to vector<2x8xf32>
    %357 = vector.shape_cast %356 : vector<2x8xf32> to vector<2x8x1xf32>
    %358 = vector.broadcast %357 : vector<2x8x1xf32> to vector<2x8x8xf32>
    %359 = arith.subf %355, %358 : vector<2x8x8xf32>
    %360 = math.exp %359 : vector<2x8x8xf32>
    %cst_114 = arith.constant dense<0.000000e+00> : vector<2x8xf32>
    %361 = vector.multi_reduction <add>, %360, %cst_114 [2] : vector<2x8x8xf32> to vector<2x8xf32>
    %362 = vector.shape_cast %361 : vector<2x8xf32> to vector<2x8x1xf32>
    %363 = tpu.reciprocal %362 {approx = true} : vector<2x8x1xf32> -> vector<2x8x1xf32>
    %364 = vector.broadcast %363 : vector<2x8x1xf32> to vector<2x8x8xf32>
    %365 = arith.mulf %360, %364 : vector<2x8x8xf32>
    %366 = vector.extract_strided_slice %291 {offsets = [0, 0, 24], sizes = [2, 8, 8], strides = [1, 1, 1]} : vector<2x8x32xf32> to vector<2x8x8xf32>
    "tpu.trace_start"() <{level = 10 : i32, message = "bqk,bkd->bqd"}> : () -> ()
    %cst_115 = arith.constant dense<0.000000e+00> : vector<2x8x8xf32>
    %367 = tpu.matmul %365, %366, %cst_115 {dimension_numbers = #tpu.dot_dimension_numbers<[2], [1], [1], [2], [0, 0, 0, 1, 1, 2], [0], [0]>} : vector<2x8x8xf32>, vector<2x8x8xf32>, vector<2x8x8xf32> -> vector<2x8x8xf32>
    "tpu.trace_stop"() : () -> ()
    %368 = tpu.concatenate %310, %329, %348, %367 in 2 : vector<2x8x8xf32>, vector<2x8x8xf32>, vector<2x8x8xf32>, vector<2x8x8xf32> -> vector<2x8x32xf32>
    %c4_116 = arith.constant 4 : index
    %c0_117 = arith.constant 0 : index
    %c0_118 = arith.constant 0 : index
    %369 = vector.load %arg7[%c4_116, %c0_117, %c0_118] : memref<9x32x128xf32, #tpu.memory_space<vmem>>, vector<1x32x32xf32>
    %370 = vector.shape_cast %369 : vector<1x32x32xf32> to vector<32x32xf32>
    %371 = vector.shape_cast %368 : vector<2x8x32xf32> to vector<16x32xf32>
    %cst_119 = arith.constant dense<0.000000e+00> : vector<16x32xf32>
    %372 = tpu.matmul %371, %370, %cst_119 {dimension_numbers = #tpu.dot_dimension_numbers<[1], [0], [0], [1], [0, 0, 1, 1], [], []>} : vector<16x32xf32>, vector<32x32xf32>, vector<16x32xf32> -> vector<16x32xf32>
    %c13 = arith.constant 13 : index
    %c0_120 = arith.constant 0 : index
    %373 = vector.load %arg6[%c13, %c0_120] : memref<26x128xf32, #tpu.memory_space<vmem>>, vector<1x32xf32>
    %374 = vector.broadcast %373 : vector<1x32xf32> to vector<16x32xf32>
    %375 = arith.addf %372, %374 : vector<16x32xf32>
    %376 = vector.shape_cast %375 : vector<16x32xf32> to vector<2x8x32xf32>
    %377 = arith.addf %245, %376 : vector<2x8x32xf32>
    %c14 = arith.constant 14 : index
    %c0_121 = arith.constant 0 : index
    %378 = vector.load %arg6[%c14, %c0_121] : memref<26x128xf32, #tpu.memory_space<vmem>>, vector<1x32xf32>
    %c15 = arith.constant 15 : index
    %c0_122 = arith.constant 0 : index
    %379 = vector.load %arg6[%c15, %c0_122] : memref<26x128xf32, #tpu.memory_space<vmem>>, vector<1x32xf32>
    %cst_123 = arith.constant dense<0.000000e+00> : vector<2x8xf32>
    %380 = vector.multi_reduction <add>, %377, %cst_123 [2] : vector<2x8x32xf32> to vector<2x8xf32>
    %381 = vector.shape_cast %380 : vector<2x8xf32> to vector<2x8x1xf32>
    %cst_124 = arith.constant 3.200000e+01 : f32
    %382 = vector.broadcast %cst_124 : f32 to vector<2x8x1xf32>
    %383 = arith.divf %381, %382 : vector<2x8x1xf32>
    %384 = vector.broadcast %383 : vector<2x8x1xf32> to vector<2x8x32xf32>
    %385 = arith.subf %377, %384 : vector<2x8x32xf32>
    %386 = vector.broadcast %383 : vector<2x8x1xf32> to vector<2x8x32xf32>
    %387 = arith.subf %377, %386 : vector<2x8x32xf32>
    %388 = arith.mulf %385, %387 : vector<2x8x32xf32>
    %cst_125 = arith.constant dense<0.000000e+00> : vector<2x8xf32>
    %389 = vector.multi_reduction <add>, %388, %cst_125 [2] : vector<2x8x32xf32> to vector<2x8xf32>
    %390 = vector.shape_cast %389 : vector<2x8xf32> to vector<2x8x1xf32>
    %cst_126 = arith.constant 3.200000e+01 : f32
    %391 = vector.broadcast %cst_126 : f32 to vector<2x8x1xf32>
    %392 = arith.divf %390, %391 : vector<2x8x1xf32>
    %393 = vector.broadcast %383 : vector<2x8x1xf32> to vector<2x8x32xf32>
    %394 = arith.subf %377, %393 : vector<2x8x32xf32>
    %cst_127 = arith.constant 9.99999974E-6 : f32
    %395 = vector.broadcast %cst_127 : f32 to vector<2x8x1xf32>
    %396 = arith.addf %392, %395 : vector<2x8x1xf32>
    %397 = math.rsqrt %396 : vector<2x8x1xf32>
    %398 = vector.broadcast %397 : vector<2x8x1xf32> to vector<2x8x32xf32>
    %399 = arith.mulf %394, %398 : vector<2x8x32xf32>
    %400 = vector.shape_cast %378 : vector<1x32xf32> to vector<1x1x32xf32>
    %401 = vector.broadcast %400 : vector<1x1x32xf32> to vector<2x8x32xf32>
    %402 = arith.mulf %399, %401 : vector<2x8x32xf32>
    %403 = vector.shape_cast %379 : vector<1x32xf32> to vector<1x1x32xf32>
    %404 = vector.broadcast %403 : vector<1x1x32xf32> to vector<2x8x32xf32>
    %405 = arith.addf %402, %404 : vector<2x8x32xf32>
    %c5_128 = arith.constant 5 : index
    %c0_129 = arith.constant 0 : index
    %c0_130 = arith.constant 0 : index
    %406 = vector.load %arg7[%c5_128, %c0_129, %c0_130] : memref<9x32x128xf32, #tpu.memory_space<vmem>>, vector<1x32x32xf32>
    %407 = vector.shape_cast %406 : vector<1x32x32xf32> to vector<32x32xf32>
    %408 = vector.shape_cast %405 : vector<2x8x32xf32> to vector<16x32xf32>
    %cst_131 = arith.constant dense<0.000000e+00> : vector<16x32xf32>
    %409 = tpu.matmul %408, %407, %cst_131 {dimension_numbers = #tpu.dot_dimension_numbers<[1], [0], [0], [1], [0, 0, 1, 1], [], []>} : vector<16x32xf32>, vector<32x32xf32>, vector<16x32xf32> -> vector<16x32xf32>
    %c16 = arith.constant 16 : index
    %c0_132 = arith.constant 0 : index
    %410 = vector.load %arg6[%c16, %c0_132] : memref<26x128xf32, #tpu.memory_space<vmem>>, vector<1x32xf32>
    %411 = vector.broadcast %410 : vector<1x32xf32> to vector<16x32xf32>
    %412 = arith.addf %409, %411 : vector<16x32xf32>
    %413 = vector.shape_cast %412 : vector<16x32xf32> to vector<2x8x32xf32>
    %c6_133 = arith.constant 6 : index
    %c0_134 = arith.constant 0 : index
    %c0_135 = arith.constant 0 : index
    %414 = vector.load %arg7[%c6_133, %c0_134, %c0_135] : memref<9x32x128xf32, #tpu.memory_space<vmem>>, vector<1x32x64xf32>
    %415 = vector.shape_cast %414 : vector<1x32x64xf32> to vector<32x64xf32>
    %416 = vector.shape_cast %231 : vector<2x8x32xf32> to vector<16x32xf32>
    %cst_136 = arith.constant dense<0.000000e+00> : vector<16x64xf32>
    %417 = tpu.matmul %416, %415, %cst_136 {dimension_numbers = #tpu.dot_dimension_numbers<[1], [0], [0], [1], [0, 0, 1, 1], [], []>} : vector<16x32xf32>, vector<32x64xf32>, vector<16x64xf32> -> vector<16x64xf32>
    %c17 = arith.constant 17 : index
    %c0_137 = arith.constant 0 : index
    %418 = vector.load %arg6[%c17, %c0_137] : memref<26x128xf32, #tpu.memory_space<vmem>>, vector<1x64xf32>
    %419 = vector.broadcast %418 : vector<1x64xf32> to vector<16x64xf32>
    %420 = arith.addf %417, %419 : vector<16x64xf32>
    %421 = vector.shape_cast %420 : vector<16x64xf32> to vector<2x8x64xf32>
    %422 = vector.extract_strided_slice %421 {offsets = [0, 0, 0], sizes = [2, 8, 32], strides = [1, 1, 1]} : vector<2x8x64xf32> to vector<2x8x32xf32>
    %423 = vector.extract_strided_slice %421 {offsets = [0, 0, 32], sizes = [2, 8, 32], strides = [1, 1, 1]} : vector<2x8x64xf32> to vector<2x8x32xf32>
    %424 = vector.extract_strided_slice %413 {offsets = [0, 0, 0], sizes = [2, 8, 8], strides = [1, 1, 1]} : vector<2x8x32xf32> to vector<2x8x8xf32>
    %cst_138 = arith.constant 0.353553385 : f32
    %425 = vector.broadcast %cst_138 : f32 to vector<2x8x8xf32>
    %426 = arith.mulf %424, %425 : vector<2x8x8xf32>
    %427 = vector.extract_strided_slice %422 {offsets = [0, 0, 0], sizes = [2, 8, 8], strides = [1, 1, 1]} : vector<2x8x32xf32> to vector<2x8x8xf32>
    "tpu.trace_start"() <{level = 10 : i32, message = "bqd,bkd->bqk"}> : () -> ()
    %cst_139 = arith.constant dense<0.000000e+00> : vector<2x8x8xf32>
    %428 = tpu.matmul %426, %427, %cst_139 {dimension_numbers = #tpu.dot_dimension_numbers<[2], [2], [1], [1], [0, 0, 0, 1, 1, 1], [0], [0]>} : vector<2x8x8xf32>, vector<2x8x8xf32>, vector<2x8x8xf32> -> vector<2x8x8xf32>
    "tpu.trace_stop"() : () -> ()
    %429 = vector.broadcast %6 : vector<2x1x8xf32> to vector<2x8x8xf32>
    %430 = arith.addf %428, %429 : vector<2x8x8xf32>
    %cst_140 = arith.constant dense<0xFF800000> : vector<2x8xf32>
    %431 = vector.multi_reduction <maximumf>, %430, %cst_140 [2] : vector<2x8x8xf32> to vector<2x8xf32>
    %432 = vector.shape_cast %431 : vector<2x8xf32> to vector<2x8x1xf32>
    %433 = vector.broadcast %432 : vector<2x8x1xf32> to vector<2x8x8xf32>
    %434 = arith.subf %430, %433 : vector<2x8x8xf32>
    %435 = math.exp %434 : vector<2x8x8xf32>
    %cst_141 = arith.constant dense<0.000000e+00> : vector<2x8xf32>
    %436 = vector.multi_reduction <add>, %435, %cst_141 [2] : vector<2x8x8xf32> to vector<2x8xf32>
    %437 = vector.shape_cast %436 : vector<2x8xf32> to vector<2x8x1xf32>
    %438 = tpu.reciprocal %437 {approx = true} : vector<2x8x1xf32> -> vector<2x8x1xf32>
    %439 = vector.broadcast %438 : vector<2x8x1xf32> to vector<2x8x8xf32>
    %440 = arith.mulf %435, %439 : vector<2x8x8xf32>
    %441 = vector.extract_strided_slice %423 {offsets = [0, 0, 0], sizes = [2, 8, 8], strides = [1, 1, 1]} : vector<2x8x32xf32> to vector<2x8x8xf32>
    "tpu.trace_start"() <{level = 10 : i32, message = "bqk,bkd->bqd"}> : () -> ()
    %cst_142 = arith.constant dense<0.000000e+00> : vector<2x8x8xf32>
    %442 = tpu.matmul %440, %441, %cst_142 {dimension_numbers = #tpu.dot_dimension_numbers<[2], [1], [1], [2], [0, 0, 0, 1, 1, 2], [0], [0]>} : vector<2x8x8xf32>, vector<2x8x8xf32>, vector<2x8x8xf32> -> vector<2x8x8xf32>
    "tpu.trace_stop"() : () -> ()
    %443 = vector.extract_strided_slice %413 {offsets = [0, 0, 8], sizes = [2, 8, 8], strides = [1, 1, 1]} : vector<2x8x32xf32> to vector<2x8x8xf32>
    %cst_143 = arith.constant 0.353553385 : f32
    %444 = vector.broadcast %cst_143 : f32 to vector<2x8x8xf32>
    %445 = arith.mulf %443, %444 : vector<2x8x8xf32>
    %446 = vector.extract_strided_slice %422 {offsets = [0, 0, 8], sizes = [2, 8, 8], strides = [1, 1, 1]} : vector<2x8x32xf32> to vector<2x8x8xf32>
    "tpu.trace_start"() <{level = 10 : i32, message = "bqd,bkd->bqk"}> : () -> ()
    %cst_144 = arith.constant dense<0.000000e+00> : vector<2x8x8xf32>
    %447 = tpu.matmul %445, %446, %cst_144 {dimension_numbers = #tpu.dot_dimension_numbers<[2], [2], [1], [1], [0, 0, 0, 1, 1, 1], [0], [0]>} : vector<2x8x8xf32>, vector<2x8x8xf32>, vector<2x8x8xf32> -> vector<2x8x8xf32>
    "tpu.trace_stop"() : () -> ()
    %448 = vector.broadcast %6 : vector<2x1x8xf32> to vector<2x8x8xf32>
    %449 = arith.addf %447, %448 : vector<2x8x8xf32>
    %cst_145 = arith.constant dense<0xFF800000> : vector<2x8xf32>
    %450 = vector.multi_reduction <maximumf>, %449, %cst_145 [2] : vector<2x8x8xf32> to vector<2x8xf32>
    %451 = vector.shape_cast %450 : vector<2x8xf32> to vector<2x8x1xf32>
    %452 = vector.broadcast %451 : vector<2x8x1xf32> to vector<2x8x8xf32>
    %453 = arith.subf %449, %452 : vector<2x8x8xf32>
    %454 = math.exp %453 : vector<2x8x8xf32>
    %cst_146 = arith.constant dense<0.000000e+00> : vector<2x8xf32>
    %455 = vector.multi_reduction <add>, %454, %cst_146 [2] : vector<2x8x8xf32> to vector<2x8xf32>
    %456 = vector.shape_cast %455 : vector<2x8xf32> to vector<2x8x1xf32>
    %457 = tpu.reciprocal %456 {approx = true} : vector<2x8x1xf32> -> vector<2x8x1xf32>
    %458 = vector.broadcast %457 : vector<2x8x1xf32> to vector<2x8x8xf32>
    %459 = arith.mulf %454, %458 : vector<2x8x8xf32>
    %460 = vector.extract_strided_slice %423 {offsets = [0, 0, 8], sizes = [2, 8, 8], strides = [1, 1, 1]} : vector<2x8x32xf32> to vector<2x8x8xf32>
    "tpu.trace_start"() <{level = 10 : i32, message = "bqk,bkd->bqd"}> : () -> ()
    %cst_147 = arith.constant dense<0.000000e+00> : vector<2x8x8xf32>
    %461 = tpu.matmul %459, %460, %cst_147 {dimension_numbers = #tpu.dot_dimension_numbers<[2], [1], [1], [2], [0, 0, 0, 1, 1, 2], [0], [0]>} : vector<2x8x8xf32>, vector<2x8x8xf32>, vector<2x8x8xf32> -> vector<2x8x8xf32>
    "tpu.trace_stop"() : () -> ()
    %462 = vector.extract_strided_slice %413 {offsets = [0, 0, 16], sizes = [2, 8, 8], strides = [1, 1, 1]} : vector<2x8x32xf32> to vector<2x8x8xf32>
    %cst_148 = arith.constant 0.353553385 : f32
    %463 = vector.broadcast %cst_148 : f32 to vector<2x8x8xf32>
    %464 = arith.mulf %462, %463 : vector<2x8x8xf32>
    %465 = vector.extract_strided_slice %422 {offsets = [0, 0, 16], sizes = [2, 8, 8], strides = [1, 1, 1]} : vector<2x8x32xf32> to vector<2x8x8xf32>
    "tpu.trace_start"() <{level = 10 : i32, message = "bqd,bkd->bqk"}> : () -> ()
    %cst_149 = arith.constant dense<0.000000e+00> : vector<2x8x8xf32>
    %466 = tpu.matmul %464, %465, %cst_149 {dimension_numbers = #tpu.dot_dimension_numbers<[2], [2], [1], [1], [0, 0, 0, 1, 1, 1], [0], [0]>} : vector<2x8x8xf32>, vector<2x8x8xf32>, vector<2x8x8xf32> -> vector<2x8x8xf32>
    "tpu.trace_stop"() : () -> ()
    %467 = vector.broadcast %6 : vector<2x1x8xf32> to vector<2x8x8xf32>
    %468 = arith.addf %466, %467 : vector<2x8x8xf32>
    %cst_150 = arith.constant dense<0xFF800000> : vector<2x8xf32>
    %469 = vector.multi_reduction <maximumf>, %468, %cst_150 [2] : vector<2x8x8xf32> to vector<2x8xf32>
    %470 = vector.shape_cast %469 : vector<2x8xf32> to vector<2x8x1xf32>
    %471 = vector.broadcast %470 : vector<2x8x1xf32> to vector<2x8x8xf32>
    %472 = arith.subf %468, %471 : vector<2x8x8xf32>
    %473 = math.exp %472 : vector<2x8x8xf32>
    %cst_151 = arith.constant dense<0.000000e+00> : vector<2x8xf32>
    %474 = vector.multi_reduction <add>, %473, %cst_151 [2] : vector<2x8x8xf32> to vector<2x8xf32>
    %475 = vector.shape_cast %474 : vector<2x8xf32> to vector<2x8x1xf32>
    %476 = tpu.reciprocal %475 {approx = true} : vector<2x8x1xf32> -> vector<2x8x1xf32>
    %477 = vector.broadcast %476 : vector<2x8x1xf32> to vector<2x8x8xf32>
    %478 = arith.mulf %473, %477 : vector<2x8x8xf32>
    %479 = vector.extract_strided_slice %423 {offsets = [0, 0, 16], sizes = [2, 8, 8], strides = [1, 1, 1]} : vector<2x8x32xf32> to vector<2x8x8xf32>
    "tpu.trace_start"() <{level = 10 : i32, message = "bqk,bkd->bqd"}> : () -> ()
    %cst_152 = arith.constant dense<0.000000e+00> : vector<2x8x8xf32>
    %480 = tpu.matmul %478, %479, %cst_152 {dimension_numbers = #tpu.dot_dimension_numbers<[2], [1], [1], [2], [0, 0, 0, 1, 1, 2], [0], [0]>} : vector<2x8x8xf32>, vector<2x8x8xf32>, vector<2x8x8xf32> -> vector<2x8x8xf32>
    "tpu.trace_stop"() : () -> ()
    %481 = vector.extract_strided_slice %413 {offsets = [0, 0, 24], sizes = [2, 8, 8], strides = [1, 1, 1]} : vector<2x8x32xf32> to vector<2x8x8xf32>
    %cst_153 = arith.constant 0.353553385 : f32
    %482 = vector.broadcast %cst_153 : f32 to vector<2x8x8xf32>
    %483 = arith.mulf %481, %482 : vector<2x8x8xf32>
    %484 = vector.extract_strided_slice %422 {offsets = [0, 0, 24], sizes = [2, 8, 8], strides = [1, 1, 1]} : vector<2x8x32xf32> to vector<2x8x8xf32>
    "tpu.trace_start"() <{level = 10 : i32, message = "bqd,bkd->bqk"}> : () -> ()
    %cst_154 = arith.constant dense<0.000000e+00> : vector<2x8x8xf32>
    %485 = tpu.matmul %483, %484, %cst_154 {dimension_numbers = #tpu.dot_dimension_numbers<[2], [2], [1], [1], [0, 0, 0, 1, 1, 1], [0], [0]>} : vector<2x8x8xf32>, vector<2x8x8xf32>, vector<2x8x8xf32> -> vector<2x8x8xf32>
    "tpu.trace_stop"() : () -> ()
    %486 = vector.broadcast %6 : vector<2x1x8xf32> to vector<2x8x8xf32>
    %487 = arith.addf %485, %486 : vector<2x8x8xf32>
    %cst_155 = arith.constant dense<0xFF800000> : vector<2x8xf32>
    %488 = vector.multi_reduction <maximumf>, %487, %cst_155 [2] : vector<2x8x8xf32> to vector<2x8xf32>
    %489 = vector.shape_cast %488 : vector<2x8xf32> to vector<2x8x1xf32>
    %490 = vector.broadcast %489 : vector<2x8x1xf32> to vector<2x8x8xf32>
    %491 = arith.subf %487, %490 : vector<2x8x8xf32>
    %492 = math.exp %491 : vector<2x8x8xf32>
    %cst_156 = arith.constant dense<0.000000e+00> : vector<2x8xf32>
    %493 = vector.multi_reduction <add>, %492, %cst_156 [2] : vector<2x8x8xf32> to vector<2x8xf32>
    %494 = vector.shape_cast %493 : vector<2x8xf32> to vector<2x8x1xf32>
    %495 = tpu.reciprocal %494 {approx = true} : vector<2x8x1xf32> -> vector<2x8x1xf32>
    %496 = vector.broadcast %495 : vector<2x8x1xf32> to vector<2x8x8xf32>
    %497 = arith.mulf %492, %496 : vector<2x8x8xf32>
    %498 = vector.extract_strided_slice %423 {offsets = [0, 0, 24], sizes = [2, 8, 8], strides = [1, 1, 1]} : vector<2x8x32xf32> to vector<2x8x8xf32>
    "tpu.trace_start"() <{level = 10 : i32, message = "bqk,bkd->bqd"}> : () -> ()
    %cst_157 = arith.constant dense<0.000000e+00> : vector<2x8x8xf32>
    %499 = tpu.matmul %497, %498, %cst_157 {dimension_numbers = #tpu.dot_dimension_numbers<[2], [1], [1], [2], [0, 0, 0, 1, 1, 2], [0], [0]>} : vector<2x8x8xf32>, vector<2x8x8xf32>, vector<2x8x8xf32> -> vector<2x8x8xf32>
    "tpu.trace_stop"() : () -> ()
    %500 = tpu.concatenate %442, %461, %480, %499 in 2 : vector<2x8x8xf32>, vector<2x8x8xf32>, vector<2x8x8xf32>, vector<2x8x8xf32> -> vector<2x8x32xf32>
    %c7_158 = arith.constant 7 : index
    %c0_159 = arith.constant 0 : index
    %c0_160 = arith.constant 0 : index
    %501 = vector.load %arg7[%c7_158, %c0_159, %c0_160] : memref<9x32x128xf32, #tpu.memory_space<vmem>>, vector<1x32x32xf32>
    %502 = vector.shape_cast %501 : vector<1x32x32xf32> to vector<32x32xf32>
    %503 = vector.shape_cast %500 : vector<2x8x32xf32> to vector<16x32xf32>
    %cst_161 = arith.constant dense<0.000000e+00> : vector<16x32xf32>
    %504 = tpu.matmul %503, %502, %cst_161 {dimension_numbers = #tpu.dot_dimension_numbers<[1], [0], [0], [1], [0, 0, 1, 1], [], []>} : vector<16x32xf32>, vector<32x32xf32>, vector<16x32xf32> -> vector<16x32xf32>
    %c18 = arith.constant 18 : index
    %c0_162 = arith.constant 0 : index
    %505 = vector.load %arg6[%c18, %c0_162] : memref<26x128xf32, #tpu.memory_space<vmem>>, vector<1x32xf32>
    %506 = vector.broadcast %505 : vector<1x32xf32> to vector<16x32xf32>
    %507 = arith.addf %504, %506 : vector<16x32xf32>
    %508 = vector.shape_cast %507 : vector<16x32xf32> to vector<2x8x32xf32>
    %509 = arith.addf %377, %508 : vector<2x8x32xf32>
    %c19 = arith.constant 19 : index
    %c0_163 = arith.constant 0 : index
    %510 = vector.load %arg6[%c19, %c0_163] : memref<26x128xf32, #tpu.memory_space<vmem>>, vector<1x32xf32>
    %c20 = arith.constant 20 : index
    %c0_164 = arith.constant 0 : index
    %511 = vector.load %arg6[%c20, %c0_164] : memref<26x128xf32, #tpu.memory_space<vmem>>, vector<1x32xf32>
    %cst_165 = arith.constant dense<0.000000e+00> : vector<2x8xf32>
    %512 = vector.multi_reduction <add>, %509, %cst_165 [2] : vector<2x8x32xf32> to vector<2x8xf32>
    %513 = vector.shape_cast %512 : vector<2x8xf32> to vector<2x8x1xf32>
    %cst_166 = arith.constant 3.200000e+01 : f32
    %514 = vector.broadcast %cst_166 : f32 to vector<2x8x1xf32>
    %515 = arith.divf %513, %514 : vector<2x8x1xf32>
    %516 = vector.broadcast %515 : vector<2x8x1xf32> to vector<2x8x32xf32>
    %517 = arith.subf %509, %516 : vector<2x8x32xf32>
    %518 = vector.broadcast %515 : vector<2x8x1xf32> to vector<2x8x32xf32>
    %519 = arith.subf %509, %518 : vector<2x8x32xf32>
    %520 = arith.mulf %517, %519 : vector<2x8x32xf32>
    %cst_167 = arith.constant dense<0.000000e+00> : vector<2x8xf32>
    %521 = vector.multi_reduction <add>, %520, %cst_167 [2] : vector<2x8x32xf32> to vector<2x8xf32>
    %522 = vector.shape_cast %521 : vector<2x8xf32> to vector<2x8x1xf32>
    %cst_168 = arith.constant 3.200000e+01 : f32
    %523 = vector.broadcast %cst_168 : f32 to vector<2x8x1xf32>
    %524 = arith.divf %522, %523 : vector<2x8x1xf32>
    %525 = vector.broadcast %515 : vector<2x8x1xf32> to vector<2x8x32xf32>
    %526 = arith.subf %509, %525 : vector<2x8x32xf32>
    %cst_169 = arith.constant 9.99999974E-6 : f32
    %527 = vector.broadcast %cst_169 : f32 to vector<2x8x1xf32>
    %528 = arith.addf %524, %527 : vector<2x8x1xf32>
    %529 = math.rsqrt %528 : vector<2x8x1xf32>
    %530 = vector.broadcast %529 : vector<2x8x1xf32> to vector<2x8x32xf32>
    %531 = arith.mulf %526, %530 : vector<2x8x32xf32>
    %532 = vector.shape_cast %510 : vector<1x32xf32> to vector<1x1x32xf32>
    %533 = vector.broadcast %532 : vector<1x1x32xf32> to vector<2x8x32xf32>
    %534 = arith.mulf %531, %533 : vector<2x8x32xf32>
    %535 = vector.shape_cast %511 : vector<1x32xf32> to vector<1x1x32xf32>
    %536 = vector.broadcast %535 : vector<1x1x32xf32> to vector<2x8x32xf32>
    %537 = arith.addf %534, %536 : vector<2x8x32xf32>
    %c8_170 = arith.constant 8 : index
    %c0_171 = arith.constant 0 : index
    %c0_172 = arith.constant 0 : index
    %538 = vector.load %arg7[%c8_170, %c0_171, %c0_172] : memref<9x32x128xf32, #tpu.memory_space<vmem>>, vector<1x32x64xf32>
    %539 = vector.shape_cast %538 : vector<1x32x64xf32> to vector<32x64xf32>
    %540 = vector.shape_cast %537 : vector<2x8x32xf32> to vector<16x32xf32>
    %cst_173 = arith.constant dense<0.000000e+00> : vector<16x64xf32>
    %541 = tpu.matmul %540, %539, %cst_173 {dimension_numbers = #tpu.dot_dimension_numbers<[1], [0], [0], [1], [0, 0, 1, 1], [], []>} : vector<16x32xf32>, vector<32x64xf32>, vector<16x64xf32> -> vector<16x64xf32>
    %c21 = arith.constant 21 : index
    %c0_174 = arith.constant 0 : index
    %542 = vector.load %arg6[%c21, %c0_174] : memref<26x128xf32, #tpu.memory_space<vmem>>, vector<1x64xf32>
    %543 = vector.broadcast %542 : vector<1x64xf32> to vector<16x64xf32>
    %544 = arith.addf %541, %543 : vector<16x64xf32>
    %545 = vector.shape_cast %544 : vector<16x64xf32> to vector<2x8x64xf32>
    %cst_175 = arith.constant 5.000000e-01 : f32
    %546 = vector.broadcast %cst_175 : f32 to vector<2x8x64xf32>
    %547 = arith.mulf %546, %545 : vector<2x8x64xf32>
    %cst_176 = arith.constant 4.471500e-02 : f32
    %548 = vector.broadcast %cst_176 : f32 to vector<2x8x64xf32>
    %549 = arith.mulf %548, %545 : vector<2x8x64xf32>
    %550 = arith.mulf %549, %545 : vector<2x8x64xf32>
    %551 = arith.mulf %550, %545 : vector<2x8x64xf32>
    %552 = arith.addf %545, %551 : vector<2x8x64xf32>
    %cst_177 = arith.constant 0.797884583 : f32
    %553 = vector.broadcast %cst_177 : f32 to vector<2x8x64xf32>
    %554 = arith.mulf %553, %552 : vector<2x8x64xf32>
    %555 = math.tanh %554 : vector<2x8x64xf32>
    %cst_178 = arith.constant 1.000000e+00 : f32
    %556 = vector.broadcast %cst_178 : f32 to vector<2x8x64xf32>
    %557 = arith.addf %556, %555 : vector<2x8x64xf32>
    %558 = arith.mulf %547, %557 : vector<2x8x64xf32>
    %c1_179 = arith.constant 1 : index
    %c0_180 = arith.constant 0 : index
    %c0_181 = arith.constant 0 : index
    %559 = vector.load %arg8[%c1_179, %c0_180, %c0_181] : memref<2x64x128xf32, #tpu.memory_space<vmem>>, vector<1x64x32xf32>
    %560 = vector.shape_cast %559 : vector<1x64x32xf32> to vector<64x32xf32>
    %561 = vector.shape_cast %558 : vector<2x8x64xf32> to vector<16x64xf32>
    %cst_182 = arith.constant dense<0.000000e+00> : vector<16x32xf32>
    %562 = tpu.matmul %561, %560, %cst_182 {dimension_numbers = #tpu.dot_dimension_numbers<[1], [0], [0], [1], [0, 0, 1, 1], [], []>} : vector<16x64xf32>, vector<64x32xf32>, vector<16x32xf32> -> vector<16x32xf32>
    %c22 = arith.constant 22 : index
    %c0_183 = arith.constant 0 : index
    %563 = vector.load %arg6[%c22, %c0_183] : memref<26x128xf32, #tpu.memory_space<vmem>>, vector<1x32xf32>
    %564 = vector.broadcast %563 : vector<1x32xf32> to vector<16x32xf32>
    %565 = arith.addf %562, %564 : vector<16x32xf32>
    %566 = vector.shape_cast %565 : vector<16x32xf32> to vector<2x8x32xf32>
    %567 = arith.addf %509, %566 : vector<2x8x32xf32>
    %c23 = arith.constant 23 : index
    %c0_184 = arith.constant 0 : index
    %568 = vector.load %arg6[%c23, %c0_184] : memref<26x128xf32, #tpu.memory_space<vmem>>, vector<1x32xf32>
    %c24 = arith.constant 24 : index
    %c0_185 = arith.constant 0 : index
    %569 = vector.load %arg6[%c24, %c0_185] : memref<26x128xf32, #tpu.memory_space<vmem>>, vector<1x32xf32>
    %cst_186 = arith.constant dense<0.000000e+00> : vector<2x8xf32>
    %570 = vector.multi_reduction <add>, %567, %cst_186 [2] : vector<2x8x32xf32> to vector<2x8xf32>
    %571 = vector.shape_cast %570 : vector<2x8xf32> to vector<2x8x1xf32>
    %cst_187 = arith.constant 3.200000e+01 : f32
    %572 = vector.broadcast %cst_187 : f32 to vector<2x8x1xf32>
    %573 = arith.divf %571, %572 : vector<2x8x1xf32>
    %574 = vector.broadcast %573 : vector<2x8x1xf32> to vector<2x8x32xf32>
    %575 = arith.subf %567, %574 : vector<2x8x32xf32>
    %576 = vector.broadcast %573 : vector<2x8x1xf32> to vector<2x8x32xf32>
    %577 = arith.subf %567, %576 : vector<2x8x32xf32>
    %578 = arith.mulf %575, %577 : vector<2x8x32xf32>
    %cst_188 = arith.constant dense<0.000000e+00> : vector<2x8xf32>
    %579 = vector.multi_reduction <add>, %578, %cst_188 [2] : vector<2x8x32xf32> to vector<2x8xf32>
    %580 = vector.shape_cast %579 : vector<2x8xf32> to vector<2x8x1xf32>
    %cst_189 = arith.constant 3.200000e+01 : f32
    %581 = vector.broadcast %cst_189 : f32 to vector<2x8x1xf32>
    %582 = arith.divf %580, %581 : vector<2x8x1xf32>
    %583 = vector.broadcast %573 : vector<2x8x1xf32> to vector<2x8x32xf32>
    %584 = arith.subf %567, %583 : vector<2x8x32xf32>
    %cst_190 = arith.constant 9.99999974E-6 : f32
    %585 = vector.broadcast %cst_190 : f32 to vector<2x8x1xf32>
    %586 = arith.addf %582, %585 : vector<2x8x1xf32>
    %587 = math.rsqrt %586 : vector<2x8x1xf32>
    %588 = vector.broadcast %587 : vector<2x8x1xf32> to vector<2x8x32xf32>
    %589 = arith.mulf %584, %588 : vector<2x8x32xf32>
    %590 = vector.shape_cast %568 : vector<1x32xf32> to vector<1x1x32xf32>
    %591 = vector.broadcast %590 : vector<1x1x32xf32> to vector<2x8x32xf32>
    %592 = arith.mulf %589, %591 : vector<2x8x32xf32>
    %593 = vector.shape_cast %569 : vector<1x32xf32> to vector<1x1x32xf32>
    %594 = vector.broadcast %593 : vector<1x1x32xf32> to vector<2x8x32xf32>
    %595 = arith.addf %592, %594 : vector<2x8x32xf32>
    %596 = vector.shape_cast %595 : vector<2x8x32xf32> to vector<16x32xf32>
    %cst_191 = arith.constant dense<0.000000e+00> : vector<16x128xf32>
    %597 = tpu.matmul %596, %0, %cst_191 {dimension_numbers = #tpu.dot_dimension_numbers<[1], [1], [0], [0], [0, 0, 1, 0], [], []>} : vector<16x32xf32>, vector<128x32xf32>, vector<16x128xf32> -> vector<16x128xf32>
    %c25 = arith.constant 25 : index
    %c0_192 = arith.constant 0 : index
    %598 = vector.load %arg6[%c25, %c0_192] : memref<26x128xf32, #tpu.memory_space<vmem>>, vector<1x128xf32>
    %599 = vector.broadcast %598 : vector<1x128xf32> to vector<16x128xf32>
    %600 = arith.addf %597, %599 : vector<16x128xf32>
    %c0_193 = arith.constant 0 : index
    %c0_194 = arith.constant 0 : index
    %601 = vector.load %arg9[%c0_193, %c0_194] : memref<16x128xf32, #tpu.memory_space<vmem>>, vector<16x128xf32>
    tpu.vector_store %arg9[%c0_193, %c0_194], %600 {strides = array<i32>} : memref<16x128xf32, #tpu.memory_space<vmem>>, vector<16x128xf32>,
    %c0_195 = arith.constant 0 : index
    %c0_196 = arith.constant 0 : index
    %602 = vector.load %arg2[%c0_195, %c0_196] : memref<16x1xi32, #tpu.memory_space<vmem>>, vector<16x1xi32>
    %cst_197 = arith.constant dense<0xFF800000> : vector<16xf32>
    %603 = vector.multi_reduction <maximumf>, %600, %cst_197 [1] : vector<16x128xf32> to vector<16xf32>
    %604 = vector.shape_cast %603 : vector<16xf32> to vector<16x1xf32>
    %605 = vector.broadcast %604 : vector<16x1xf32> to vector<16x128xf32>
    %606 = arith.subf %600, %605 : vector<16x128xf32>
    %607 = math.exp %606 : vector<16x128xf32>
    %cst_198 = arith.constant dense<0.000000e+00> : vector<16xf32>
    %608 = vector.multi_reduction <add>, %607, %cst_198 [1] : vector<16x128xf32> to vector<16xf32>
    %609 = vector.shape_cast %608 : vector<16xf32> to vector<16x1xf32>
    %610 = math.log %609 : vector<16x1xf32>
    %611 = arith.addf %604, %610 : vector<16x1xf32>
    %612 = tpu.iota {dimensions = array<i32: 1>} : vector<16x128xi32>
    %613 = vector.broadcast %602 : vector<16x1xi32> to vector<16x128xi32>
    %614 = arith.cmpi eq, %612, %613 : vector<16x128xi32>
    %cst_199 = arith.constant 0.000000e+00 : f32
    %615 = vector.broadcast %cst_199 : f32 to vector<16x128xf32>
    %616 = arith.select %614, %600, %615 : vector<16x128xi1>, vector<16x128xf32>
    %cst_200 = arith.constant dense<0.000000e+00> : vector<16xf32>
    %617 = vector.multi_reduction <add>, %616, %cst_200 [1] : vector<16x128xf32> to vector<16xf32>
    %618 = vector.shape_cast %617 : vector<16xf32> to vector<16x1xf32>
    %c0_i32 = arith.constant 0 : i32
    %619 = vector.broadcast %c0_i32 : i32 to vector<16x1xi32>
    %620 = arith.cmpi sge, %602, %619 : vector<16x1xi32>
    %621 = arith.extui %620 : vector<16x1xi1> to vector<16x1xi32>
    %622 = arith.sitofp %621 : vector<16x1xi32> to vector<16x1xf32>
    %623 = arith.subf %611, %618 : vector<16x1xf32>
    %624 = arith.mulf %623, %622 : vector<16x1xf32>
    %cst_201 = arith.constant dense<0.000000e+00> : vector<1xf32>
    %625 = vector.multi_reduction <add>, %624, %cst_201 [0] : vector<16x1xf32> to vector<1xf32>
    %626 = vector.shape_cast %625 : vector<1xf32> to vector<1x1xf32>
    %cst_202 = arith.constant dense<0.000000e+00> : vector<1xf32>
    %627 = vector.multi_reduction <add>, %622, %cst_202 [0] : vector<16x1xf32> to vector<1xf32>
    %628 = vector.shape_cast %627 : vector<1xf32> to vector<1x1xf32>
    %cst_203 = arith.constant 1.000000e+00 : f32
    %629 = vector.broadcast %cst_203 : f32 to vector<1x1xf32>
    %630 = arith.maximumf %628, %629 : vector<1x1xf32>
    %631 = arith.divf %626, %630 : vector<1x1xf32>
    %c0_204 = arith.constant 0 : index
    %c0_205 = arith.constant 0 : index
    %632 = vector.load %arg10[%c0_204, %c0_205] : memref<1x1xf32, #tpu.memory_space<vmem>>, vector<1x1xf32>
    tpu.vector_store %arg10[%c0_204, %c0_205], %631 {strides = array<i32>} : memref<1x1xf32, #tpu.memory_space<vmem>>, vector<1x1xf32>,
    return
  }
}

</mosaic_0001>

<llo_original>
// kernel: pegasus_forward.1
$region0: #{pegasus_forward.1}
  #allocation0 [shape = 'u32[]', space=smem, size = 0x4, offset = 0x4, fixed_abs, tag = 'smem constant byte address 0x4 - core index']
  #allocation1 [shape = 'u32[144,128]{1,0:T(1,128)}', space=vmem, size = 0x12000, scoped, tag = 'internal scratch']
  %s0 = inlined_call_operand.vmem [shape: s32[16,1], index: 0, kind: input, shape index: {}]
  %s1 = inlined_call_operand.vmem [shape: s32[16,1], index: 1, kind: input, shape index: {}]
  %s2 = inlined_call_operand.vmem [shape: s32[16,1], index: 2, kind: input, shape index: {}]
  %s3 = inlined_call_operand.vmem [shape: f32[2,8], index: 3, kind: input, shape index: {}]
  %s4 = inlined_call_operand.vmem [shape: f32[128,32], index: 4, kind: input, shape index: {}]
  %s5 = inlined_call_operand.vmem [shape: f32[64,32], index: 5, kind: input, shape index: {}]
  %s6 = inlined_call_operand.vmem [shape: f32[26,128], index: 6, kind: input, shape index: {}]
  %s7 = inlined_call_operand.vmem [shape: f32[9,32,128], index: 7, kind: input, shape index: {}]
  %s8 = inlined_call_operand.hbm [shape: f32[2,64,128], index: 8, kind: input, shape index: {}]
  %s9 = inlined_call_operand.hbm [shape: f32[16,128], index: 9, kind: output, shape index: {0}]
  %s10 = inlined_call_operand.hbm [shape: f32[1,1], index: 10, kind: output, shape index: {1}]
  %11 = xla_tuple %s9, %s10
  %s12 = sld [smem:[#allocation0]]
  $region58: #{pegasus_forward.1} parent=0
    _
  %s14 = ssub.s32 1, %s12
  %s15 = scalar_select 0, %s14, %s12
  $region1: #{pegasus_forward.1} parent=0
    #allocation2 [shape = 'u8[65536]{0}', space=vmem, size = 0x10000, scoped, tag = 'input window, operand 8, single buffered']
    #allocation3 [shape = 's32[1]{0}', space=sflag, size = 0x4, scoped, tag = 'scoped memory for pegasus_forward.1']
    #allocation4 [shape = 's32[1]{0}', space=sflag, size = 0x4, scoped, tag = 'scoped memory for pegasus_forward.1']
    #allocation5 [shape = 'u8[8192]{0}', space=vmem, size = 0x2000, scoped, tag = 'output window, operand 0, single buffered']
    #allocation6 [shape = 'u8[512]{0}', space=vmem, size = 0x400, scoped, tag = 'output window, operand 1, single buffered']
    #allocation7 [shape = 's32[1]{0}', space=sflag, size = 0x4, scoped, tag = 'scoped memory for pegasus_forward.1']
    %16 = vsyncpa [#allocation3], 0
    %17 = vsyncpa [#allocation4], 0
    %18 = vsyncpa [#allocation7], 0
    // Predicated region
    $region2: #{pegasus_forward.1} parent=1 // pred_check
      _
    $region3: #{pegasus_forward.1} parent=1 // pred_check_branch
      %20 = sbr.rel (0) target = $region5
    $region4: #{pegasus_forward.1} parent=1 // pred_region
      _
    $region5: #{pegasus_forward.1} parent=1 // pred_fallthru
      _
    // Predicated region
    $region6: #{pegasus_forward.1} parent=1 // pred_check
      _
    $region7: #{pegasus_forward.1} parent=1 // pred_check_branch
      %22 = sbr.rel (0) target = $region9
    $region8: #{pegasus_forward.1} parent=1 // pred_region
      _
    $region9: #{pegasus_forward.1} parent=1 // pred_fallthru
      _
    // Predicated region
    $region10: #{pegasus_forward.1} parent=1 // pred_check
      _
    $region11: #{pegasus_forward.1} parent=1 // pred_check_branch
      %24 = sbr.rel (0) target = $region13
    $region12: #{pegasus_forward.1} parent=1 // pred_region
      _
    $region13: #{pegasus_forward.1} parent=1 // pred_fallthru
      _
    // Predicated region
    $region14: #{pegasus_forward.1} parent=1 // pred_check
      _
    $region15: #{pegasus_forward.1} parent=1 // pred_check_branch
      %26 = sbr.rel (0) target = $region17
    $region16: #{pegasus_forward.1} parent=1 // pred_region
      _
    $region17: #{pegasus_forward.1} parent=1 // pred_fallthru
      _
    // Predicated region
    $region18: #{pegasus_forward.1} parent=1 // pred_check
      _
    $region19: #{pegasus_forward.1} parent=1 // pred_check_branch
      %28 = sbr.rel (0) target = $region21
    $region20: #{pegasus_forward.1} parent=1 // pred_region
      _
    $region21: #{pegasus_forward.1} parent=1 // pred_fallthru
      _
    // Predicated region
    $region22: #{pegasus_forward.1} parent=1 // pred_check
      _
    $region23: #{pegasus_forward.1} parent=1 // pred_check_branch
      %30 = sbr.rel (0) target = $region25
    $region24: #{pegasus_forward.1} parent=1 // pred_region
      _
    $region25: #{pegasus_forward.1} parent=1 // pred_fallthru
      _
    // Predicated region
    $region26: #{pegasus_forward.1} parent=1 // pred_check
      _
    $region27: #{pegasus_forward.1} parent=1 // pred_check_branch
      %32 = sbr.rel (0) target = $region29
    $region28: #{pegasus_forward.1} parent=1 // pred_region
      _
    $region29: #{pegasus_forward.1} parent=1 // pred_fallthru
      _
    // Predicated region
    $region30: #{pegasus_forward.1} parent=1 // pred_check
      _
    $region31: #{pegasus_forward.1} parent=1 // pred_check_branch
      %34 = sbr.rel (0) target = $region33
    $region32: #{pegasus_forward.1} parent=1 // pred_region
      _
    $region33: #{pegasus_forward.1} parent=1 // pred_fallthru
      _
    // Predicated region
    $region34: #{pegasus_forward.1} parent=1 // pred_check
      _
    $region35: #{pegasus_forward.1} parent=1 // pred_check_branch
      %36 = sbr.rel (0) target = $region37
    $region36: #{pegasus_forward.1} parent=1 // pred_region
      %s38 = ssub.s32 2048, 2048
      %39 = vsyncadd [#allocation3], %s38
      %s40 = sshll.u32 [#allocation2], 4
      %s41 = int_to_ptr.vmem [resolvable:$true] %s40
      %46 = dma.hbm_to_vmem [thread:$0]  %s8, 2048, %s41, [#allocation3], 128, 128, 8
    $region37: #{pegasus_forward.1} parent=1 // pred_fallthru
      _
    // Predicated region
    $region38: #{pegasus_forward.1} parent=1 // pred_check
      _
    $region39: #{pegasus_forward.1} parent=1 // pred_check_branch
      %48 = sbr.rel (0) target = $region41
    $region40: #{pegasus_forward.1} parent=1 // pred_region
      %49 = dma.done [#allocation3], 2048
    $region41: #{pegasus_forward.1} parent=1 // pred_fallthru
      _
    %v50 = vld [vmem:[%s4] sm:$0xff]
    %v51 = vld [vmem:[%s4 + $0x8] sm:$0xff]
    %v52 = vld [vmem:[%s4 + $0x10] sm:$0xff]
    %v53 = vld [vmem:[%s4 + $0x18] sm:$0xff]
    %v54 = vld [vmem:[%s4 + $0x20] sm:$0xff]
    %v55 = vld [vmem:[%s4 + $0x28] sm:$0xff]
    %v56 = vld [vmem:[%s4 + $0x30] sm:$0xff]
    %v57 = vld [vmem:[%s4 + $0x38] sm:$0xff]
    %v58 = vld [vmem:[%s4 + $0x40] sm:$0xff]
    %v59 = vld [vmem:[%s4 + $0x48] sm:$0xff]
    %v60 = vld [vmem:[%s4 + $0x50] sm:$0xff]
    %v61 = vld [vmem:[%s4 + $0x58] sm:$0xff]
    %v62 = vld [vmem:[%s4 + $0x60] sm:$0xff]
    %v63 = vld [vmem:[%s4 + $0x68] sm:$0xff]
    %v64 = vld [vmem:[%s4 + $0x70] sm:$0xff]
    %v65 = vld [vmem:[%s4 + $0x78] sm:$0xff]
    %v66 = vld [vmem:[%s3] sm:$0x3]
    %v67 = vsub.f32 1.0, %v66
    %v68 = vmul.f32 %v67, -1e+09
    %v71 = vunpack.c.l.s4 1966171168
    %v72 = vunpack.c.0.s8 %v71
    %v73 = vlaneseq
    %v74 = vshrl.u32 %v73, 7
    %v75 = vsub.s32 %v72, %v74
    %v76 = vrot.slane %v68, %v75
    %v77 = vcombine.high %v76, %v76
    %v79 = vunpack.c.l.s4 1966171168
    %v80 = vunpack.c.0.s8 %v79
    %v81 = vlaneseq
    %v82 = vshrl.u32 %v81, 7
    %v83 = vsub.s32 %v80, %v82
    %v84 = vrot.slane %v76, %v83
    %v86 = vunpack.c.l.s4 1966171168
    %v87 = vunpack.c.0.s8 %v86
    %v88 = vlaneseq
    %v89 = vshrl.u32 %v88, 7
    %v90 = vsub.s32 %v87, %v89
    %v91 = vrot.slane %v77, %v90
    %v92 = vld [vmem:[%s0] sm:$0xff]
    %v93 = vld [vmem:[%s0 + $0x8] sm:$0xff]
    %v94 = vld [vmem:[%s5] sm:$0xff]
    %v95 = vlaneseq
    %v96 = vand.u32 %v95, 127
    %97 = vset.pattern.permute.xlu0 0
    %98 = vperm.xlu0 %97, %v92
    %v99 = vpop.permute.xlu0 %98
    %100 = vset.pattern.permute.xlu0 0
    %101 = vperm.xlu0 %100, %v93
    %v102 = vpop.permute.xlu0 %101
    %vm103 = vcmp.eq.s32.totalorder %v99, %v96
    %vm104 = vcmp.eq.s32.totalorder %v102, %v96
    %v105 = vsel %vm103, 1, 0
    %v106 = vsel %vm104, 1, 0
    %v107 = vcvt.s32.f32 %v105
    %v108 = vcvt.s32.f32 %v106
    %109 = vmatprep.subr.mxu0 0.0
    %110 = vmatpush1.msra.mxu0 %v65
    %111 = vmatprep.subr.mxu0 0.0
    %112 = vmatpush1.msra.mxu0 %v64
    %113 = vmatprep.subr.mxu0 0.0
    %114 = vmatpush1.msra.mxu0 %v63
    %115 = vmatprep.subr.mxu0 0.0
    %116 = vmatpush1.msra.mxu0 %v62
    %117 = vmatprep.subr.mxu0 0.0
    %118 = vmatpush1.msra.mxu0 %v61
    %119 = vmatprep.subr.mxu0 0.0
    %120 = vmatpush1.msra.mxu0 %v60
    %121 = vmatprep.subr.mxu0 0.0
    %122 = vmatpush1.msra.mxu0 %v59
    %123 = vmatprep.subr.mxu0 0.0
    %124 = vmatpush1.msra.mxu0 %v58
    %125 = vmatprep.subr.mxu0 0.0
    %126 = vmatpush1.msra.mxu0 %v57
    %127 = vmatprep.subr.mxu0 0.0
    %128 = vmatpush1.msra.mxu0 %v56
    %129 = vmatprep.subr.mxu0 0.0
    %130 = vmatpush1.msra.mxu0 %v55
    %131 = vmatprep.subr.mxu0 0.0
    %132 = vmatpush1.msra.mxu0 %v54
    %133 = vmatprep.subr.mxu0 0.0
    %134 = vmatpush1.msra.mxu0 %v53
    %135 = vmatprep.subr.mxu0 0.0
    %136 = vmatpush1.msra.mxu0 %v52
    %137 = vmatprep.subr.mxu0 0.0
    %138 = vmatpush1.msra.mxu0 %v51
    %139 = vmatprep.subr.mxu0 0.0
    %140 = vmatpush1.msra.mxu0 %v50
    %141 = vmatprep.subr.mxu0 0.0
    %142 = vmatpush2.msra.mxu0 0.0
    %143 = vmatprep.subr.mxu0 0.0
    %144 = vmatpush2.msra.mxu0 0.0
    %145 = vmatprep.subr.mxu0 0.0
    %146 = vmatpush2.msra.mxu0 0.0
    %147 = vmatprep.subr.mxu0 0.0
    %148 = vmatpush2.msra.mxu0 0.0
    %149 = vmatprep.subr.mxu0 0.0
    %150 = vmatpush2.msra.mxu0 0.0
    %151 = vmatprep.subr.mxu0 0.0
    %152 = vmatpush2.msra.mxu0 0.0
    %153 = vmatprep.subr.mxu0 0.0
    %154 = vmatpush2.msra.mxu0 0.0
    %155 = vmatprep.subr.mxu0 0.0
    %156 = vmatpush2.msra.mxu0 0.0
    %157 = vmatprep.subr.mxu0 0.0
    %158 = vmatpush2.msra.mxu0 0.0
    %159 = vmatprep.subr.mxu0 0.0
    %160 = vmatpush2.msra.mxu0 0.0
    %161 = vmatprep.subr.mxu0 0.0
    %162 = vmatpush2.msra.mxu0 0.0
    %163 = vmatprep.subr.mxu0 0.0
    %164 = vmatpush2.msra.mxu0 0.0
    %165 = vmatprep.subr.mxu0 0.0
    %166 = vmatpush2.msra.mxu0 0.0
    %167 = vmatprep.subr.mxu0 0.0
    %168 = vmatpush2.msra.mxu0 0.0
    %169 = vmatprep.subr.mxu0 0.0
    %170 = vmatpush2.msra.mxu0 0.0
    %171 = vmatprep.subr.mxu0 0.0
    %172 = vmatpush2.msra.mxu0 0.0
    %173 = vmatprep.mubr.f32.mxu0 0.0
    %174 = vmatmul.mubr.f32.gmra.mxu0 %v107
    %v175 = vpop.f32.mrf.mxu0
    %v176 = vadd.f32 0.0, %v175
    %v177 = vpop.f32.mrf.mxu0
    %178 = vmatprep.mubr.f32.mxu0 0.0
    %179 = vmatmul.mubr.f32.gmra.mxu0 %v108
    %v180 = vpop.f32.mrf.mxu0
    %v181 = vadd.f32 0.0, %v180
    %v182 = vpop.f32.mrf.mxu0
    %183 = vdwg.mxu0
    %v184 = vmul.f32 %v176, 5.656854
    %v185 = vmul.f32 %v181, 5.656854
    %v186 = vadd.f32 %v184, %v94
    %v187 = vadd.f32 %v185, %v94
    %v188 = vld [vmem:[%s6] sm:$0x1]
    %v189 = vld [vmem:[%s6 + $0x1] sm:$0x1]
    %vm190 = vcmask 261120
    %v191 = vsel %vm190, %v186, 0.0
    %192 = vadd.xlane.f32.xlu0 %v191
    %v193 = vpop.xlane.xlu0 %192
    %v194 = vsel %vm190, %v187, 0.0
    %195 = vadd.xlane.f32.xlu0 %v194
    %v196 = vpop.xlane.xlu0 %195
    %v197 = vrcp.pop 32.0
    %v198 = vmul.f32 %v193, %v197
    %v199 = vmul.f32 %v196, %v197
    %v200 = vsub.f32 %v186, %v198
    %v201 = vsub.f32 %v187, %v199
    %v202 = vmul.f32 %v200, %v200
    %v203 = vmul.f32 %v201, %v201
    %v204 = vsel %vm190, %v202, 0.0
    %205 = vadd.xlane.f32.xlu0 %v204
    %v206 = vpop.xlane.xlu0 %205
    %v207 = vsel %vm190, %v203, 0.0
    %208 = vadd.xlane.f32.xlu0 %v207
    %v209 = vpop.xlane.xlu0 %208
    %v210 = vmul.f32 %v206, %v197
    %v211 = vmul.f32 %v209, %v197
    %v212 = vadd.f32 %v210, 1e-05
    %v213 = vadd.f32 %v211, 1e-05
    %v214 = vrsqrt.pop %v212
    %v215 = vrsqrt.pop %v213
    %v216 = vmul.f32 %v200, %v214
    %v217 = vmul.f32 %v201, %v215
    %v218 = vlaneseq
    %v219 = vshrl.u32 %v218, 7
    %v220 = vsub.s32 0, %v219
    %v221 = vrot.slane %v188, %v220
    %v222 = vmul.f32 %v216, %v221
    %v223 = vmul.f32 %v217, %v221
    %v224 = vlaneseq
    %v225 = vshrl.u32 %v224, 7
    %v226 = vsub.s32 0, %v225
    %v227 = vrot.slane %v189, %v226
    %v228 = vadd.f32 %v222, %v227
    %v229 = vadd.f32 %v223, %v227
    %v230 = vld [vmem:[%s7] sm:$0xff]
    %v231 = vld [vmem:[%s7 + $0x8] sm:$0xff]
    %v232 = vld [vmem:[%s7 + $0x10] sm:$0xff]
    %v233 = vld [vmem:[%s7 + $0x18] sm:$0xff]
    %v234 = vld [vmem:[%s6 + $0x2] sm:$0x1]
    %v235 = vlaneseq
    %v236 = vshrl.u32 %v235, 7
    %v237 = vsub.s32 0, %v236
    %v238 = vrot.slane %v234, %v237
    %v240 = vsel %vm190, %v228, 0
    %v243 = vsel %vm190, %v229, 0
    %245 = vmatprep.subr.mxu0 0.0
    %246 = vmatpush1.msra.mxu0 0.0
    %247 = vmatprep.subr.mxu0 0.0
    %248 = vmatpush1.msra.mxu0 0.0
    %249 = vmatprep.subr.mxu0 0.0
    %250 = vmatpush1.msra.mxu0 0.0
    %251 = vmatprep.subr.mxu0 0.0
    %252 = vmatpush1.msra.mxu0 0.0
    %253 = vmatprep.subr.mxu0 0.0
    %254 = vmatpush1.msra.mxu0 0.0
    %255 = vmatprep.subr.mxu0 0.0
    %256 = vmatpush1.msra.mxu0 0.0
    %257 = vmatprep.subr.mxu0 0.0
    %258 = vmatpush1.msra.mxu0 0.0
    %259 = vmatprep.subr.mxu0 0.0
    %260 = vmatpush1.msra.mxu0 0.0
    %261 = vmatprep.subr.mxu0 0.0
    %262 = vmatpush1.msra.mxu0 0.0
    %263 = vmatprep.subr.mxu0 0.0
    %264 = vmatpush1.msra.mxu0 0.0
    %265 = vmatprep.subr.mxu0 0.0
    %266 = vmatpush1.msra.mxu0 0.0
    %267 = vmatprep.subr.mxu0 0.0
    %268 = vmatpush1.msra.mxu0 0.0
    %269 = vmatprep.subr.mxu0 0.0
    %270 = vmatpush1.msra.mxu0 %v233
    %271 = vmatprep.subr.mxu0 0.0
    %272 = vmatpush1.msra.mxu0 %v232
    %273 = vmatprep.subr.mxu0 0.0
    %274 = vmatpush1.msra.mxu0 %v231
    %275 = vmatprep.subr.mxu0 0.0
    %276 = vmatpush1.msra.mxu0 %v230
    %277 = vmatprep.subr.mxu0 0.0
    %278 = vmatpush2.msra.mxu0 0.0
    %279 = vmatprep.subr.mxu0 0.0
    %280 = vmatpush2.msra.mxu0 0.0
    %281 = vmatprep.subr.mxu0 0.0
    %282 = vmatpush2.msra.mxu0 0.0
    %283 = vmatprep.subr.mxu0 0.0
    %284 = vmatpush2.msra.mxu0 0.0
    %285 = vmatprep.subr.mxu0 0.0
    %286 = vmatpush2.msra.mxu0 0.0
    %287 = vmatprep.subr.mxu0 0.0
    %288 = vmatpush2.msra.mxu0 0.0
    %289 = vmatprep.subr.mxu0 0.0
    %290 = vmatpush2.msra.mxu0 0.0
    %291 = vmatprep.subr.mxu0 0.0
    %292 = vmatpush2.msra.mxu0 0.0
    %293 = vmatprep.subr.mxu0 0.0
    %294 = vmatpush2.msra.mxu0 0.0
    %295 = vmatprep.subr.mxu0 0.0
    %296 = vmatpush2.msra.mxu0 0.0
    %297 = vmatprep.subr.mxu0 0.0
    %298 = vmatpush2.msra.mxu0 0.0
    %299 = vmatprep.subr.mxu0 0.0
    %300 = vmatpush2.msra.mxu0 0.0
    %301 = vmatprep.subr.mxu0 0.0
    %302 = vmatpush2.msra.mxu0 0.0
    %303 = vmatprep.subr.mxu0 0.0
    %304 = vmatpush2.msra.mxu0 0.0
    %305 = vmatprep.subr.mxu0 0.0
    %306 = vmatpush2.msra.mxu0 0.0
    %307 = vmatprep.subr.mxu0 0.0
    %308 = vmatpush2.msra.mxu0 0.0
    %309 = vmatprep.mubr.f32.mxu0 0.0
    %310 = vmatmul.mubr.f32.gmra.mxu0 %v240
    %v311 = vpop.f32.mrf.mxu0
    %v312 = vadd.f32 %v238, %v311
    %v313 = vpop.f32.mrf.mxu0
    %314 = vmatprep.mubr.f32.mxu0 0.0
    %315 = vmatmul.mubr.f32.gmra.mxu0 %v243
    %v316 = vpop.f32.mrf.mxu0
    %v317 = vadd.f32 %v238, %v316
    %v318 = vpop.f32.mrf.mxu0
    %319 = vdwg.mxu0
    %v320 = vmul.f32 %v312, 0.35355338
    %v321 = vmul.f32 %v317, 0.35355338
    %v322 = vlaneseq
    %v323 = vshrl.u32 %v322, 7
    %v324 = vsub.s32 0, %v323
    %v325 = vrot.slane %v84, %v324
    %v326 = vlaneseq
    %v327 = vshrl.u32 %v326, 7
    %v328 = vsub.s32 0, %v327
    %v329 = vrot.slane %v91, %v328
    %333 = vrot.lane.b32.xlu0 %v312, 96
    %v334 = vpop.permute.xlu0 %333
    %vm335 = vcmask 64512
    %v337 = vsel %vm335, %v320, 0
    %v339 = vsel %vm335, %v334, 0
    %341 = vmatprep.subr.mxu0 0.0
    %342 = vmatpush1.xpose.msra.mxu0 0.0
    %343 = vmatprep.subr.mxu0 0.0
    %344 = vmatpush1.xpose.msra.mxu0 0.0
    %345 = vmatprep.subr.mxu0 0.0
    %346 = vmatpush1.xpose.msra.mxu0 0.0
    %347 = vmatprep.subr.mxu0 0.0
    %348 = vmatpush1.xpose.msra.mxu0 0.0
    %349 = vmatprep.subr.mxu0 0.0
    %350 = vmatpush1.xpose.msra.mxu0 0.0
    %351 = vmatprep.subr.mxu0 0.0
    %352 = vmatpush1.xpose.msra.mxu0 0.0
    %353 = vmatprep.subr.mxu0 0.0
    %354 = vmatpush1.xpose.msra.mxu0 0.0
    %355 = vmatprep.subr.mxu0 0.0
    %356 = vmatpush1.xpose.msra.mxu0 0.0
    %357 = vmatprep.subr.mxu0 0.0
    %358 = vmatpush1.xpose.msra.mxu0 0.0
    %359 = vmatprep.subr.mxu0 0.0
    %360 = vmatpush1.xpose.msra.mxu0 0.0
    %361 = vmatprep.subr.mxu0 0.0
    %362 = vmatpush1.xpose.msra.mxu0 0.0
    %363 = vmatprep.subr.mxu0 0.0
    %364 = vmatpush1.xpose.msra.mxu0 0.0
    %365 = vmatprep.subr.mxu0 0.0
    %366 = vmatpush1.xpose.msra.mxu0 0.0
    %367 = vmatprep.subr.mxu0 0.0
    %368 = vmatpush1.xpose.msra.mxu0 0.0
    %369 = vmatprep.subr.mxu0 0.0
    %370 = vmatpush1.xpose.msra.mxu0 0.0
    %371 = vmatprep.subr.mxu0 0.0
    %372 = vmatpush1.xpose.msra.mxu0 %v339
    %373 = vmatprep.subr.mxu0 0.0
    %374 = vmatpush2.xpose.msra.mxu0 0.0
    %375 = vmatprep.subr.mxu0 0.0
    %376 = vmatpush2.xpose.msra.mxu0 0.0
    %377 = vmatprep.subr.mxu0 0.0
    %378 = vmatpush2.xpose.msra.mxu0 0.0
    %379 = vmatprep.subr.mxu0 0.0
    %380 = vmatpush2.xpose.msra.mxu0 0.0
    %381 = vmatprep.subr.mxu0 0.0
    %382 = vmatpush2.xpose.msra.mxu0 0.0
    %383 = vmatprep.subr.mxu0 0.0
    %384 = vmatpush2.xpose.msra.mxu0 0.0
    %385 = vmatprep.subr.mxu0 0.0
    %386 = vmatpush2.xpose.msra.mxu0 0.0
    %387 = vmatprep.subr.mxu0 0.0
    %388 = vmatpush2.xpose.msra.mxu0 0.0
    %389 = vmatprep.subr.mxu0 0.0
    %390 = vmatpush2.xpose.msra.mxu0 0.0
    %391 = vmatprep.subr.mxu0 0.0
    %392 = vmatpush2.xpose.msra.mxu0 0.0
    %393 = vmatprep.subr.mxu0 0.0
    %394 = vmatpush2.xpose.msra.mxu0 0.0
    %395 = vmatprep.subr.mxu0 0.0
    %396 = vmatpush2.xpose.msra.mxu0 0.0
    %397 = vmatprep.subr.mxu0 0.0
    %398 = vmatpush2.xpose.msra.mxu0 0.0
    %399 = vmatprep.subr.mxu0 0.0
    %400 = vmatpush2.xpose.msra.mxu0 0.0
    %401 = vmatprep.subr.mxu0 0.0
    %402 = vmatpush2.xpose.msra.mxu0 0.0
    %403 = vmatprep.subr.mxu0 0.0
    %404 = vmatpush2.xpose.msra.mxu0 0.0
    %405 = vmatprep.mubr.f32.mxu0 0.0
    %406 = vmatmul.mubr.f32.gmra.mxu0 %v337
    %v407 = vpop.f32.mrf.mxu0
    %v408 = vadd.f32 %v325, %v407
    %v409 = vpop.f32.mrf.mxu0
    %410 = vdwg.mxu0
    %412 = vrot.lane.b32.xlu0 %v317, 96
    %v413 = vpop.permute.xlu0 %412
    %v415 = vsel %vm335, %v321, 0
    %v417 = vsel %vm335, %v413, 0
    %419 = vmatprep.subr.mxu0 0.0
    %420 = vmatpush1.xpose.msra.mxu0 0.0
    %421 = vmatprep.subr.mxu0 0.0
    %422 = vmatpush1.xpose.msra.mxu0 0.0
    %423 = vmatprep.subr.mxu0 0.0
    %424 = vmatpush1.xpose.msra.mxu0 0.0
    %425 = vmatprep.subr.mxu0 0.0
    %426 = vmatpush1.xpose.msra.mxu0 0.0
    %427 = vmatprep.subr.mxu0 0.0
    %428 = vmatpush1.xpose.msra.mxu0 0.0
    %429 = vmatprep.subr.mxu0 0.0
    %430 = vmatpush1.xpose.msra.mxu0 0.0
    %431 = vmatprep.subr.mxu0 0.0
    %432 = vmatpush1.xpose.msra.mxu0 0.0
    %433 = vmatprep.subr.mxu0 0.0
    %434 = vmatpush1.xpose.msra.mxu0 0.0
    %435 = vmatprep.subr.mxu0 0.0
    %436 = vmatpush1.xpose.msra.mxu0 0.0
    %437 = vmatprep.subr.mxu0 0.0
    %438 = vmatpush1.xpose.msra.mxu0 0.0
    %439 = vmatprep.subr.mxu0 0.0
    %440 = vmatpush1.xpose.msra.mxu0 0.0
    %441 = vmatprep.subr.mxu0 0.0
    %442 = vmatpush1.xpose.msra.mxu0 0.0
    %443 = vmatprep.subr.mxu0 0.0
    %444 = vmatpush1.xpose.msra.mxu0 0.0
    %445 = vmatprep.subr.mxu0 0.0
    %446 = vmatpush1.xpose.msra.mxu0 0.0
    %447 = vmatprep.subr.mxu0 0.0
    %448 = vmatpush1.xpose.msra.mxu0 0.0
    %449 = vmatprep.subr.mxu0 0.0
    %450 = vmatpush1.xpose.msra.mxu0 %v417
    %451 = vmatprep.subr.mxu0 0.0
    %452 = vmatpush2.xpose.msra.mxu0 0.0
    %453 = vmatprep.subr.mxu0 0.0
    %454 = vmatpush2.xpose.msra.mxu0 0.0
    %455 = vmatprep.subr.mxu0 0.0
    %456 = vmatpush2.xpose.msra.mxu0 0.0
    %457 = vmatprep.subr.mxu0 0.0
    %458 = vmatpush2.xpose.msra.mxu0 0.0
    %459 = vmatprep.subr.mxu0 0.0
    %460 = vmatpush2.xpose.msra.mxu0 0.0
    %461 = vmatprep.subr.mxu0 0.0
    %462 = vmatpush2.xpose.msra.mxu0 0.0
    %463 = vmatprep.subr.mxu0 0.0
    %464 = vmatpush2.xpose.msra.mxu0 0.0
    %465 = vmatprep.subr.mxu0 0.0
    %466 = vmatpush2.xpose.msra.mxu0 0.0
    %467 = vmatprep.subr.mxu0 0.0
    %468 = vmatpush2.xpose.msra.mxu0 0.0
    %469 = vmatprep.subr.mxu0 0.0
    %470 = vmatpush2.xpose.msra.mxu0 0.0
    %471 = vmatprep.subr.mxu0 0.0
    %472 = vmatpush2.xpose.msra.mxu0 0.0
    %473 = vmatprep.subr.mxu0 0.0
    %474 = vmatpush2.xpose.msra.mxu0 0.0
    %475 = vmatprep.subr.mxu0 0.0
    %476 = vmatpush2.xpose.msra.mxu0 0.0
    %477 = vmatprep.subr.mxu0 0.0
    %478 = vmatpush2.xpose.msra.mxu0 0.0
    %479 = vmatprep.subr.mxu0 0.0
    %480 = vmatpush2.xpose.msra.mxu0 0.0
    %481 = vmatprep.subr.mxu0 0.0
    %482 = vmatpush2.xpose.msra.mxu0 0.0
    %483 = vmatprep.mubr.f32.mxu0 0.0
    %484 = vmatmul.mubr.f32.gmra.mxu0 %v415
    %v485 = vpop.f32.mrf.mxu0
    %v486 = vadd.f32 %v329, %v485
    %v487 = vpop.f32.mrf.mxu0
    %488 = vdwg.mxu0
    %v489 = vsel %vm335, %v408, -inf
    %490 = vmax.xlane.f32.xlu0 %v489
    %v491 = vpop.xlane.xlu0 %490
    %v492 = vsel %vm335, %v486, -inf
    %493 = vmax.xlane.f32.xlu0 %v492
    %v494 = vpop.xlane.xlu0 %493
    %v495 = vsub.f32 %v408, %v491
    %v496 = vsub.f32 %v486, %v494
    %v497 = vmul.f32 %v495, 1.442695
    %v498 = vpow.pop %v497
    %v499 = vmul.f32 %v496, 1.442695
    %v500 = vpow.pop %v499
    %v501 = vsel %vm335, %v498, 0.0
    %502 = vadd.xlane.f32.xlu0 %v501
    %v503 = vpop.xlane.xlu0 %502
    %v504 = vsel %vm335, %v500, 0.0
    %505 = vadd.xlane.f32.xlu0 %v504
    %v506 = vpop.xlane.xlu0 %505
    %v507 = vrcp.pop %v503
    %v508 = vrcp.pop %v506
    %v509 = vmul.f32 %v498, %v507
    %v510 = vmul.f32 %v500, %v508
    %511 = vrot.lane.b32.xlu0 %v312, 64
    %v512 = vpop.permute.xlu0 %511
    %v515 = vsel %vm335, %v509, 0
    %517 = vmatprep.subr.mxu0 0.0
    %518 = vmatpush1.msra.mxu0 0.0
    %519 = vmatprep.subr.mxu0 0.0
    %520 = vmatpush1.msra.mxu0 0.0
    %521 = vmatprep.subr.mxu0 0.0
    %522 = vmatpush1.msra.mxu0 0.0
    %523 = vmatprep.subr.mxu0 0.0
    %524 = vmatpush1.msra.mxu0 0.0
    %525 = vmatprep.subr.mxu0 0.0
    %526 = vmatpush1.msra.mxu0 0.0
    %527 = vmatprep.subr.mxu0 0.0
    %528 = vmatpush1.msra.mxu0 0.0
    %529 = vmatprep.subr.mxu0 0.0
    %530 = vmatpush1.msra.mxu0 0.0
    %531 = vmatprep.subr.mxu0 0.0
    %532 = vmatpush1.msra.mxu0 0.0
    %533 = vmatprep.subr.mxu0 0.0
    %534 = vmatpush1.msra.mxu0 0.0
    %535 = vmatprep.subr.mxu0 0.0
    %536 = vmatpush1.msra.mxu0 0.0
    %537 = vmatprep.subr.mxu0 0.0
    %538 = vmatpush1.msra.mxu0 0.0
    %539 = vmatprep.subr.mxu0 0.0
    %540 = vmatpush1.msra.mxu0 0.0
    %541 = vmatprep.subr.mxu0 0.0
    %542 = vmatpush1.msra.mxu0 0.0
    %543 = vmatprep.subr.mxu0 0.0
    %544 = vmatpush1.msra.mxu0 0.0
    %545 = vmatprep.subr.mxu0 0.0
    %546 = vmatpush1.msra.mxu0 0.0
    %547 = vmatprep.subr.mxu0 0.0
    %548 = vmatpush1.msra.mxu0 %v512
    %549 = vmatprep.subr.mxu0 0.0
    %550 = vmatpush2.msra.mxu0 0.0
    %551 = vmatprep.subr.mxu0 0.0
    %552 = vmatpush2.msra.mxu0 0.0
    %553 = vmatprep.subr.mxu0 0.0
    %554 = vmatpush2.msra.mxu0 0.0
    %555 = vmatprep.subr.mxu0 0.0
    %556 = vmatpush2.msra.mxu0 0.0
    %557 = vmatprep.subr.mxu0 0.0
    %558 = vmatpush2.msra.mxu0 0.0
    %559 = vmatprep.subr.mxu0 0.0
    %560 = vmatpush2.msra.mxu0 0.0
    %561 = vmatprep.subr.mxu0 0.0
    %562 = vmatpush2.msra.mxu0 0.0
    %563 = vmatprep.subr.mxu0 0.0
    %564 = vmatpush2.msra.mxu0 0.0
    %565 = vmatprep.subr.mxu0 0.0
    %566 = vmatpush2.msra.mxu0 0.0
    %567 = vmatprep.subr.mxu0 0.0
    %568 = vmatpush2.msra.mxu0 0.0
    %569 = vmatprep.subr.mxu0 0.0
    %570 = vmatpush2.msra.mxu0 0.0
    %571 = vmatprep.subr.mxu0 0.0
    %572 = vmatpush2.msra.mxu0 0.0
    %573 = vmatprep.subr.mxu0 0.0
    %574 = vmatpush2.msra.mxu0 0.0
    %575 = vmatprep.subr.mxu0 0.0
    %576 = vmatpush2.msra.mxu0 0.0
    %577 = vmatprep.subr.mxu0 0.0
    %578 = vmatpush2.msra.mxu0 0.0
    %579 = vmatprep.subr.mxu0 0.0
    %580 = vmatpush2.msra.mxu0 0.0
    %581 = vmatprep.mubr.f32.mxu0 0.0
    %582 = vmatmul.mubr.f32.gmra.mxu0 %v515
    %v583 = vpop.f32.mrf.mxu0
    %v584 = vadd.f32 0.0, %v583
    %v585 = vpop.f32.mrf.mxu0
    %586 = vdwg.mxu0
    %587 = vrot.lane.b32.xlu0 %v317, 64
    %v588 = vpop.permute.xlu0 %587
    %v591 = vsel %vm335, %v510, 0
    %593 = vmatprep.subr.mxu0 0.0
    %594 = vmatpush1.msra.mxu0 0.0
    %595 = vmatprep.subr.mxu0 0.0
    %596 = vmatpush1.msra.mxu0 0.0
    %597 = vmatprep.subr.mxu0 0.0
    %598 = vmatpush1.msra.mxu0 0.0
    %599 = vmatprep.subr.mxu0 0.0
    %600 = vmatpush1.msra.mxu0 0.0
    %601 = vmatprep.subr.mxu0 0.0
    %602 = vmatpush1.msra.mxu0 0.0
    %603 = vmatprep.subr.mxu0 0.0
    %604 = vmatpush1.msra.mxu0 0.0
    %605 = vmatprep.subr.mxu0 0.0
    %606 = vmatpush1.msra.mxu0 0.0
    %607 = vmatprep.subr.mxu0 0.0
    %608 = vmatpush1.msra.mxu0 0.0
    %609 = vmatprep.subr.mxu0 0.0
    %610 = vmatpush1.msra.mxu0 0.0
    %611 = vmatprep.subr.mxu0 0.0
    %612 = vmatpush1.msra.mxu0 0.0
    %613 = vmatprep.subr.mxu0 0.0
    %614 = vmatpush1.msra.mxu0 0.0
    %615 = vmatprep.subr.mxu0 0.0
    %616 = vmatpush1.msra.mxu0 0.0
    %617 = vmatprep.subr.mxu0 0.0
    %618 = vmatpush1.msra.mxu0 0.0
    %619 = vmatprep.subr.mxu0 0.0
    %620 = vmatpush1.msra.mxu0 0.0
    %621 = vmatprep.subr.mxu0 0.0
    %622 = vmatpush1.msra.mxu0 0.0
    %623 = vmatprep.subr.mxu0 0.0
    %624 = vmatpush1.msra.mxu0 %v588
    %625 = vmatprep.subr.mxu0 0.0
    %626 = vmatpush2.msra.mxu0 0.0
    %627 = vmatprep.subr.mxu0 0.0
    %628 = vmatpush2.msra.mxu0 0.0
    %629 = vmatprep.subr.mxu0 0.0
    %630 = vmatpush2.msra.mxu0 0.0
    %631 = vmatprep.subr.mxu0 0.0
    %632 = vmatpush2.msra.mxu0 0.0
    %633 = vmatprep.subr.mxu0 0.0
    %634 = vmatpush2.msra.mxu0 0.0
    %635 = vmatprep.subr.mxu0 0.0
    %636 = vmatpush2.msra.mxu0 0.0
    %637 = vmatprep.subr.mxu0 0.0
    %638 = vmatpush2.msra.mxu0 0.0
    %639 = vmatprep.subr.mxu0 0.0
    %640 = vmatpush2.msra.mxu0 0.0
    %641 = vmatprep.subr.mxu0 0.0
    %642 = vmatpush2.msra.mxu0 0.0
    %643 = vmatprep.subr.mxu0 0.0
    %644 = vmatpush2.msra.mxu0 0.0
    %645 = vmatprep.subr.mxu0 0.0
    %646 = vmatpush2.msra.mxu0 0.0
    %647 = vmatprep.subr.mxu0 0.0
    %648 = vmatpush2.msra.mxu0 0.0
    %649 = vmatprep.subr.mxu0 0.0
    %650 = vmatpush2.msra.mxu0 0.0
    %651 = vmatprep.subr.mxu0 0.0
    %652 = vmatpush2.msra.mxu0 0.0
    %653 = vmatprep.subr.mxu0 0.0
    %654 = vmatpush2.msra.mxu0 0.0
    %655 = vmatprep.subr.mxu0 0.0
    %656 = vmatpush2.msra.mxu0 0.0
    %657 = vmatprep.mubr.f32.mxu0 0.0
    %658 = vmatmul.mubr.f32.gmra.mxu0 %v591
    %v659 = vpop.f32.mrf.mxu0
    %v660 = vadd.f32 0.0, %v659
    %v661 = vpop.f32.mrf.mxu0
    %662 = vdwg.mxu0
    %663 = vrot.lane.b32.xlu0 %v320, 120
    %v664 = vpop.permute.xlu0 %663
    %665 = vrot.lane.b32.xlu0 %v312, 88
    %v666 = vpop.permute.xlu0 %665
    %v667 = vsel %vm335, %v664, 0
    %v669 = vsel %vm335, %v666, 0
    %671 = vmatprep.subr.mxu0 0.0
    %672 = vmatpush1.xpose.msra.mxu0 0.0
    %673 = vmatprep.subr.mxu0 0.0
    %674 = vmatpush1.xpose.msra.mxu0 0.0
    %675 = vmatprep.subr.mxu0 0.0
    %676 = vmatpush1.xpose.msra.mxu0 0.0
    %677 = vmatprep.subr.mxu0 0.0
    %678 = vmatpush1.xpose.msra.mxu0 0.0
    %679 = vmatprep.subr.mxu0 0.0
    %680 = vmatpush1.xpose.msra.mxu0 0.0
    %681 = vmatprep.subr.mxu0 0.0
    %682 = vmatpush1.xpose.msra.mxu0 0.0
    %683 = vmatprep.subr.mxu0 0.0
    %684 = vmatpush1.xpose.msra.mxu0 0.0
    %685 = vmatprep.subr.mxu0 0.0
    %686 = vmatpush1.xpose.msra.mxu0 0.0
    %687 = vmatprep.subr.mxu0 0.0
    %688 = vmatpush1.xpose.msra.mxu0 0.0
    %689 = vmatprep.subr.mxu0 0.0
    %690 = vmatpush1.xpose.msra.mxu0 0.0
    %691 = vmatprep.subr.mxu0 0.0
    %692 = vmatpush1.xpose.msra.mxu0 0.0
    %693 = vmatprep.subr.mxu0 0.0
    %694 = vmatpush1.xpose.msra.mxu0 0.0
    %695 = vmatprep.subr.mxu0 0.0
    %696 = vmatpush1.xpose.msra.mxu0 0.0
    %697 = vmatprep.subr.mxu0 0.0
    %698 = vmatpush1.xpose.msra.mxu0 0.0
    %699 = vmatprep.subr.mxu0 0.0
    %700 = vmatpush1.xpose.msra.mxu0 0.0
    %701 = vmatprep.subr.mxu0 0.0
    %702 = vmatpush1.xpose.msra.mxu0 %v669
    %703 = vmatprep.subr.mxu0 0.0
    %704 = vmatpush2.xpose.msra.mxu0 0.0
    %705 = vmatprep.subr.mxu0 0.0
    %706 = vmatpush2.xpose.msra.mxu0 0.0
    %707 = vmatprep.subr.mxu0 0.0
    %708 = vmatpush2.xpose.msra.mxu0 0.0
    %709 = vmatprep.subr.mxu0 0.0
    %710 = vmatpush2.xpose.msra.mxu0 0.0
    %711 = vmatprep.subr.mxu0 0.0
    %712 = vmatpush2.xpose.msra.mxu0 0.0
    %713 = vmatprep.subr.mxu0 0.0
    %714 = vmatpush2.xpose.msra.mxu0 0.0
    %715 = vmatprep.subr.mxu0 0.0
    %716 = vmatpush2.xpose.msra.mxu0 0.0
    %717 = vmatprep.subr.mxu0 0.0
    %718 = vmatpush2.xpose.msra.mxu0 0.0
    %719 = vmatprep.subr.mxu0 0.0
    %720 = vmatpush2.xpose.msra.mxu0 0.0
    %721 = vmatprep.subr.mxu0 0.0
    %722 = vmatpush2.xpose.msra.mxu0 0.0
    %723 = vmatprep.subr.mxu0 0.0
    %724 = vmatpush2.xpose.msra.mxu0 0.0
    %725 = vmatprep.subr.mxu0 0.0
    %726 = vmatpush2.xpose.msra.mxu0 0.0
    %727 = vmatprep.subr.mxu0 0.0
    %728 = vmatpush2.xpose.msra.mxu0 0.0
    %729 = vmatprep.subr.mxu0 0.0
    %730 = vmatpush2.xpose.msra.mxu0 0.0
    %731 = vmatprep.subr.mxu0 0.0
    %732 = vmatpush2.xpose.msra.mxu0 0.0
    %733 = vmatprep.subr.mxu0 0.0
    %734 = vmatpush2.xpose.msra.mxu0 0.0
    %735 = vmatprep.mubr.f32.mxu0 0.0
    %736 = vmatmul.mubr.f32.gmra.mxu0 %v667
    %v737 = vpop.f32.mrf.mxu0
    %v738 = vadd.f32 %v325, %v737
    %v739 = vpop.f32.mrf.mxu0
    %740 = vdwg.mxu0
    %741 = vrot.lane.b32.xlu0 %v321, 120
    %v742 = vpop.permute.xlu0 %741
    %743 = vrot.lane.b32.xlu0 %v317, 88
    %v744 = vpop.permute.xlu0 %743
    %v745 = vsel %vm335, %v742, 0
    %v747 = vsel %vm335, %v744, 0
    %749 = vmatprep.subr.mxu0 0.0
    %750 = vmatpush1.xpose.msra.mxu0 0.0
    %751 = vmatprep.subr.mxu0 0.0
    %752 = vmatpush1.xpose.msra.mxu0 0.0
    %753 = vmatprep.subr.mxu0 0.0
    %754 = vmatpush1.xpose.msra.mxu0 0.0
    %755 = vmatprep.subr.mxu0 0.0
    %756 = vmatpush1.xpose.msra.mxu0 0.0
    %757 = vmatprep.subr.mxu0 0.0
    %758 = vmatpush1.xpose.msra.mxu0 0.0
    %759 = vmatprep.subr.mxu0 0.0
    %760 = vmatpush1.xpose.msra.mxu0 0.0
    %761 = vmatprep.subr.mxu0 0.0
    %762 = vmatpush1.xpose.msra.mxu0 0.0
    %763 = vmatprep.subr.mxu0 0.0
    %764 = vmatpush1.xpose.msra.mxu0 0.0
    %765 = vmatprep.subr.mxu0 0.0
    %766 = vmatpush1.xpose.msra.mxu0 0.0
    %767 = vmatprep.subr.mxu0 0.0
    %768 = vmatpush1.xpose.msra.mxu0 0.0
    %769 = vmatprep.subr.mxu0 0.0
    %770 = vmatpush1.xpose.msra.mxu0 0.0
    %771 = vmatprep.subr.mxu0 0.0
    %772 = vmatpush1.xpose.msra.mxu0 0.0
    %773 = vmatprep.subr.mxu0 0.0
    %774 = vmatpush1.xpose.msra.mxu0 0.0
    %775 = vmatprep.subr.mxu0 0.0
    %776 = vmatpush1.xpose.msra.mxu0 0.0
    %777 = vmatprep.subr.mxu0 0.0
    %778 = vmatpush1.xpose.msra.mxu0 0.0
    %779 = vmatprep.subr.mxu0 0.0
    %780 = vmatpush1.xpose.msra.mxu0 %v747
    %781 = vmatprep.subr.mxu0 0.0
    %782 = vmatpush2.xpose.msra.mxu0 0.0
    %783 = vmatprep.subr.mxu0 0.0
    %784 = vmatpush2.xpose.msra.mxu0 0.0
    %785 = vmatprep.subr.mxu0 0.0
    %786 = vmatpush2.xpose.msra.mxu0 0.0
    %787 = vmatprep.subr.mxu0 0.0
    %788 = vmatpush2.xpose.msra.mxu0 0.0
    %789 = vmatprep.subr.mxu0 0.0
    %790 = vmatpush2.xpose.msra.mxu0 0.0
    %791 = vmatprep.subr.mxu0 0.0
    %792 = vmatpush2.xpose.msra.mxu0 0.0
    %793 = vmatprep.subr.mxu0 0.0
    %794 = vmatpush2.xpose.msra.mxu0 0.0
    %795 = vmatprep.subr.mxu0 0.0
    %796 = vmatpush2.xpose.msra.mxu0 0.0
    %797 = vmatprep.subr.mxu0 0.0
    %798 = vmatpush2.xpose.msra.mxu0 0.0
    %799 = vmatprep.subr.mxu0 0.0
    %800 = vmatpush2.xpose.msra.mxu0 0.0
    %801 = vmatprep.subr.mxu0 0.0
    %802 = vmatpush2.xpose.msra.mxu0 0.0
    %803 = vmatprep.subr.mxu0 0.0
    %804 = vmatpush2.xpose.msra.mxu0 0.0
    %805 = vmatprep.subr.mxu0 0.0
    %806 = vmatpush2.xpose.msra.mxu0 0.0
    %807 = vmatprep.subr.mxu0 0.0
    %808 = vmatpush2.xpose.msra.mxu0 0.0
    %809 = vmatprep.subr.mxu0 0.0
    %810 = vmatpush2.xpose.msra.mxu0 0.0
    %811 = vmatprep.subr.mxu0 0.0
    %812 = vmatpush2.xpose.msra.mxu0 0.0
    %813 = vmatprep.mubr.f32.mxu0 0.0
    %814 = vmatmul.mubr.f32.gmra.mxu0 %v745
    %v815 = vpop.f32.mrf.mxu0
    %v816 = vadd.f32 %v329, %v815
    %v817 = vpop.f32.mrf.mxu0
    %818 = vdwg.mxu0
    %v819 = vsel %vm335, %v738, -inf
    %820 = vmax.xlane.f32.xlu0 %v819
    %v821 = vpop.xlane.xlu0 %820
    %v822 = vsel %vm335, %v816, -inf
    %823 = vmax.xlane.f32.xlu0 %v822
    %v824 = vpop.xlane.xlu0 %823
    %v825 = vsub.f32 %v738, %v821
    %v826 = vsub.f32 %v816, %v824
    %v827 = vmul.f32 %v825, 1.442695
    %v828 = vpow.pop %v827
    %v829 = vmul.f32 %v826, 1.442695
    %v830 = vpow.pop %v829
    %v831 = vsel %vm335, %v828, 0.0
    %832 = vadd.xlane.f32.xlu0 %v831
    %v833 = vpop.xlane.xlu0 %832
    %v834 = vsel %vm335, %v830, 0.0
    %835 = vadd.xlane.f32.xlu0 %v834
    %v836 = vpop.xlane.xlu0 %835
    %v837 = vrcp.pop %v833
    %v838 = vrcp.pop %v836
    %v839 = vmul.f32 %v828, %v837
    %v840 = vmul.f32 %v830, %v838
    %841 = vrot.lane.b32.xlu0 %v312, 56
    %v842 = vpop.permute.xlu0 %841
    %v845 = vsel %vm335, %v839, 0
    %847 = vmatprep.subr.mxu0 0.0
    %848 = vmatpush1.msra.mxu0 0.0
    %849 = vmatprep.subr.mxu0 0.0
    %850 = vmatpush1.msra.mxu0 0.0
    %851 = vmatprep.subr.mxu0 0.0
    %852 = vmatpush1.msra.mxu0 0.0
    %853 = vmatprep.subr.mxu0 0.0
    %854 = vmatpush1.msra.mxu0 0.0
    %855 = vmatprep.subr.mxu0 0.0
    %856 = vmatpush1.msra.mxu0 0.0
    %857 = vmatprep.subr.mxu0 0.0
    %858 = vmatpush1.msra.mxu0 0.0
    %859 = vmatprep.subr.mxu0 0.0
    %860 = vmatpush1.msra.mxu0 0.0
    %861 = vmatprep.subr.mxu0 0.0
    %862 = vmatpush1.msra.mxu0 0.0
    %863 = vmatprep.subr.mxu0 0.0
    %864 = vmatpush1.msra.mxu0 0.0
    %865 = vmatprep.subr.mxu0 0.0
    %866 = vmatpush1.msra.mxu0 0.0
    %867 = vmatprep.subr.mxu0 0.0
    %868 = vmatpush1.msra.mxu0 0.0
    %869 = vmatprep.subr.mxu0 0.0
    %870 = vmatpush1.msra.mxu0 0.0
    %871 = vmatprep.subr.mxu0 0.0
    %872 = vmatpush1.msra.mxu0 0.0
    %873 = vmatprep.subr.mxu0 0.0
    %874 = vmatpush1.msra.mxu0 0.0
    %875 = vmatprep.subr.mxu0 0.0
    %876 = vmatpush1.msra.mxu0 0.0
    %877 = vmatprep.subr.mxu0 0.0
    %878 = vmatpush1.msra.mxu0 %v842
    %879 = vmatprep.subr.mxu0 0.0
    %880 = vmatpush2.msra.mxu0 0.0
    %881 = vmatprep.subr.mxu0 0.0
    %882 = vmatpush2.msra.mxu0 0.0
    %883 = vmatprep.subr.mxu0 0.0
    %884 = vmatpush2.msra.mxu0 0.0
    %885 = vmatprep.subr.mxu0 0.0
    %886 = vmatpush2.msra.mxu0 0.0
    %887 = vmatprep.subr.mxu0 0.0
    %888 = vmatpush2.msra.mxu0 0.0
    %889 = vmatprep.subr.mxu0 0.0
    %890 = vmatpush2.msra.mxu0 0.0
    %891 = vmatprep.subr.mxu0 0.0
    %892 = vmatpush2.msra.mxu0 0.0
    %893 = vmatprep.subr.mxu0 0.0
    %894 = vmatpush2.msra.mxu0 0.0
    %895 = vmatprep.subr.mxu0 0.0
    %896 = vmatpush2.msra.mxu0 0.0
    %897 = vmatprep.subr.mxu0 0.0
    %898 = vmatpush2.msra.mxu0 0.0
    %899 = vmatprep.subr.mxu0 0.0
    %900 = vmatpush2.msra.mxu0 0.0
    %901 = vmatprep.subr.mxu0 0.0
    %902 = vmatpush2.msra.mxu0 0.0
    %903 = vmatprep.subr.mxu0 0.0
    %904 = vmatpush2.msra.mxu0 0.0
    %905 = vmatprep.subr.mxu0 0.0
    %906 = vmatpush2.msra.mxu0 0.0
    %907 = vmatprep.subr.mxu0 0.0
    %908 = vmatpush2.msra.mxu0 0.0
    %909 = vmatprep.subr.mxu0 0.0
    %910 = vmatpush2.msra.mxu0 0.0
    %911 = vmatprep.mubr.f32.mxu0 0.0
    %912 = vmatmul.mubr.f32.gmra.mxu0 %v845
    %v913 = vpop.f32.mrf.mxu0
    %v914 = vadd.f32 0.0, %v913
    %v915 = vpop.f32.mrf.mxu0
    %916 = vdwg.mxu0
    %917 = vrot.lane.b32.xlu0 %v317, 56
    %v918 = vpop.permute.xlu0 %917
    %v921 = vsel %vm335, %v840, 0
    %923 = vmatprep.subr.mxu0 0.0
    %924 = vmatpush1.msra.mxu0 0.0
    %925 = vmatprep.subr.mxu0 0.0
    %926 = vmatpush1.msra.mxu0 0.0
    %927 = vmatprep.subr.mxu0 0.0
    %928 = vmatpush1.msra.mxu0 0.0
    %929 = vmatprep.subr.mxu0 0.0
    %930 = vmatpush1.msra.mxu0 0.0
    %931 = vmatprep.subr.mxu0 0.0
    %932 = vmatpush1.msra.mxu0 0.0
    %933 = vmatprep.subr.mxu0 0.0
    %934 = vmatpush1.msra.mxu0 0.0
    %935 = vmatprep.subr.mxu0 0.0
    %936 = vmatpush1.msra.mxu0 0.0
    %937 = vmatprep.subr.mxu0 0.0
    %938 = vmatpush1.msra.mxu0 0.0
    %939 = vmatprep.subr.mxu0 0.0
    %940 = vmatpush1.msra.mxu0 0.0
    %941 = vmatprep.subr.mxu0 0.0
    %942 = vmatpush1.msra.mxu0 0.0
    %943 = vmatprep.subr.mxu0 0.0
    %944 = vmatpush1.msra.mxu0 0.0
    %945 = vmatprep.subr.mxu0 0.0
    %946 = vmatpush1.msra.mxu0 0.0
    %947 = vmatprep.subr.mxu0 0.0
    %948 = vmatpush1.msra.mxu0 0.0
    %949 = vmatprep.subr.mxu0 0.0
    %950 = vmatpush1.msra.mxu0 0.0
    %951 = vmatprep.subr.mxu0 0.0
    %952 = vmatpush1.msra.mxu0 0.0
    %953 = vmatprep.subr.mxu0 0.0
    %954 = vmatpush1.msra.mxu0 %v918
    %955 = vmatprep.subr.mxu0 0.0
    %956 = vmatpush2.msra.mxu0 0.0
    %957 = vmatprep.subr.mxu0 0.0
    %958 = vmatpush2.msra.mxu0 0.0
    %959 = vmatprep.subr.mxu0 0.0
    %960 = vmatpush2.msra.mxu0 0.0
    %961 = vmatprep.subr.mxu0 0.0
    %962 = vmatpush2.msra.mxu0 0.0
    %963 = vmatprep.subr.mxu0 0.0
    %964 = vmatpush2.msra.mxu0 0.0
    %965 = vmatprep.subr.mxu0 0.0
    %966 = vmatpush2.msra.mxu0 0.0
    %967 = vmatprep.subr.mxu0 0.0
    %968 = vmatpush2.msra.mxu0 0.0
    %969 = vmatprep.subr.mxu0 0.0
    %970 = vmatpush2.msra.mxu0 0.0
    %971 = vmatprep.subr.mxu0 0.0
    %972 = vmatpush2.msra.mxu0 0.0
    %973 = vmatprep.subr.mxu0 0.0
    %974 = vmatpush2.msra.mxu0 0.0
    %975 = vmatprep.subr.mxu0 0.0
    %976 = vmatpush2.msra.mxu0 0.0
    %977 = vmatprep.subr.mxu0 0.0
    %978 = vmatpush2.msra.mxu0 0.0
    %979 = vmatprep.subr.mxu0 0.0
    %980 = vmatpush2.msra.mxu0 0.0
    %981 = vmatprep.subr.mxu0 0.0
    %982 = vmatpush2.msra.mxu0 0.0
    %983 = vmatprep.subr.mxu0 0.0
    %984 = vmatpush2.msra.mxu0 0.0
    %985 = vmatprep.subr.mxu0 0.0
    %986 = vmatpush2.msra.mxu0 0.0
    %987 = vmatprep.mubr.f32.mxu0 0.0
    %988 = vmatmul.mubr.f32.gmra.mxu0 %v921
    %v989 = vpop.f32.mrf.mxu0
    %v990 = vadd.f32 0.0, %v989
    %v991 = vpop.f32.mrf.mxu0
    %992 = vdwg.mxu0
    %993 = vrot.lane.b32.xlu0 %v320, 112
    %v994 = vpop.permute.xlu0 %993
    %995 = vrot.lane.b32.xlu0 %v312, 80
    %v996 = vpop.permute.xlu0 %995
    %v997 = vsel %vm335, %v994, 0
    %v999 = vsel %vm335, %v996, 0
    %1001 = vmatprep.subr.mxu0 0.0
    %1002 = vmatpush1.xpose.msra.mxu0 0.0
    %1003 = vmatprep.subr.mxu0 0.0
    %1004 = vmatpush1.xpose.msra.mxu0 0.0
    %1005 = vmatprep.subr.mxu0 0.0
    %1006 = vmatpush1.xpose.msra.mxu0 0.0
    %1007 = vmatprep.subr.mxu0 0.0
    %1008 = vmatpush1.xpose.msra.mxu0 0.0
    %1009 = vmatprep.subr.mxu0 0.0
    %1010 = vmatpush1.xpose.msra.mxu0 0.0
    %1011 = vmatprep.subr.mxu0 0.0
    %1012 = vmatpush1.xpose.msra.mxu0 0.0
    %1013 = vmatprep.subr.mxu0 0.0
    %1014 = vmatpush1.xpose.msra.mxu0 0.0
    %1015 = vmatprep.subr.mxu0 0.0
    %1016 = vmatpush1.xpose.msra.mxu0 0.0
    %1017 = vmatprep.subr.mxu0 0.0
    %1018 = vmatpush1.xpose.msra.mxu0 0.0
    %1019 = vmatprep.subr.mxu0 0.0
    %1020 = vmatpush1.xpose.msra.mxu0 0.0
    %1021 = vmatprep.subr.mxu0 0.0
    %1022 = vmatpush1.xpose.msra.mxu0 0.0
    %1023 = vmatprep.subr.mxu0 0.0
    %1024 = vmatpush1.xpose.msra.mxu0 0.0
    %1025 = vmatprep.subr.mxu0 0.0
    %1026 = vmatpush1.xpose.msra.mxu0 0.0
    %1027 = vmatprep.subr.mxu0 0.0
    %1028 = vmatpush1.xpose.msra.mxu0 0.0
    %1029 = vmatprep.subr.mxu0 0.0
    %1030 = vmatpush1.xpose.msra.mxu0 0.0
    %1031 = vmatprep.subr.mxu0 0.0
    %1032 = vmatpush1.xpose.msra.mxu0 %v999
    %1033 = vmatprep.subr.mxu0 0.0
    %1034 = vmatpush2.xpose.msra.mxu0 0.0
    %1035 = vmatprep.subr.mxu0 0.0
    %1036 = vmatpush2.xpose.msra.mxu0 0.0
    %1037 = vmatprep.subr.mxu0 0.0
    %1038 = vmatpush2.xpose.msra.mxu0 0.0
    %1039 = vmatprep.subr.mxu0 0.0
    %1040 = vmatpush2.xpose.msra.mxu0 0.0
    %1041 = vmatprep.subr.mxu0 0.0
    %1042 = vmatpush2.xpose.msra.mxu0 0.0
    %1043 = vmatprep.subr.mxu0 0.0
    %1044 = vmatpush2.xpose.msra.mxu0 0.0
    %1045 = vmatprep.subr.mxu0 0.0
    %1046 = vmatpush2.xpose.msra.mxu0 0.0
    %1047 = vmatprep.subr.mxu0 0.0
    %1048 = vmatpush2.xpose.msra.mxu0 0.0
    %1049 = vmatprep.subr.mxu0 0.0
    %1050 = vmatpush2.xpose.msra.mxu0 0.0
    %1051 = vmatprep.subr.mxu0 0.0
    %1052 = vmatpush2.xpose.msra.mxu0 0.0
    %1053 = vmatprep.subr.mxu0 0.0
    %1054 = vmatpush2.xpose.msra.mxu0 0.0
    %1055 = vmatprep.subr.mxu0 0.0
    %1056 = vmatpush2.xpose.msra.mxu0 0.0
    %1057 = vmatprep.subr.mxu0 0.0
    %1058 = vmatpush2.xpose.msra.mxu0 0.0
    %1059 = vmatprep.subr.mxu0 0.0
    %1060 = vmatpush2.xpose.msra.mxu0 0.0
    %1061 = vmatprep.subr.mxu0 0.0
    %1062 = vmatpush2.xpose.msra.mxu0 0.0
    %1063 = vmatprep.subr.mxu0 0.0
    %1064 = vmatpush2.xpose.msra.mxu0 0.0
    %1065 = vmatprep.mubr.f32.mxu0 0.0
    %1066 = vmatmul.mubr.f32.gmra.mxu0 %v997
    %v1067 = vpop.f32.mrf.mxu0
    %v1068 = vadd.f32 %v325, %v1067
    %v1069 = vpop.f32.mrf.mxu0
    %1070 = vdwg.mxu0
    %1071 = vrot.lane.b32.xlu0 %v321, 112
    %v1072 = vpop.permute.xlu0 %1071
    %1073 = vrot.lane.b32.xlu0 %v317, 80
    %v1074 = vpop.permute.xlu0 %1073
    %v1075 = vsel %vm335, %v1072, 0
    %v1077 = vsel %vm335, %v1074, 0
    %1079 = vmatprep.subr.mxu0 0.0
    %1080 = vmatpush1.xpose.msra.mxu0 0.0
    %1081 = vmatprep.subr.mxu0 0.0
    %1082 = vmatpush1.xpose.msra.mxu0 0.0
    %1083 = vmatprep.subr.mxu0 0.0
    %1084 = vmatpush1.xpose.msra.mxu0 0.0
    %1085 = vmatprep.subr.mxu0 0.0
    %1086 = vmatpush1.xpose.msra.mxu0 0.0
    %1087 = vmatprep.subr.mxu0 0.0
    %1088 = vmatpush1.xpose.msra.mxu0 0.0
    %1089 = vmatprep.subr.mxu0 0.0
    %1090 = vmatpush1.xpose.msra.mxu0 0.0
    %1091 = vmatprep.subr.mxu0 0.0
    %1092 = vmatpush1.xpose.msra.mxu0 0.0
    %1093 = vmatprep.subr.mxu0 0.0
    %1094 = vmatpush1.xpose.msra.mxu0 0.0
    %1095 = vmatprep.subr.mxu0 0.0
    %1096 = vmatpush1.xpose.msra.mxu0 0.0
    %1097 = vmatprep.subr.mxu0 0.0
    %1098 = vmatpush1.xpose.msra.mxu0 0.0
    %1099 = vmatprep.subr.mxu0 0.0
    %1100 = vmatpush1.xpose.msra.mxu0 0.0
    %1101 = vmatprep.subr.mxu0 0.0
    %1102 = vmatpush1.xpose.msra.mxu0 0.0
    %1103 = vmatprep.subr.mxu0 0.0
    %1104 = vmatpush1.xpose.msra.mxu0 0.0
    %1105 = vmatprep.subr.mxu0 0.0
    %1106 = vmatpush1.xpose.msra.mxu0 0.0
    %1107 = vmatprep.subr.mxu0 0.0
    %1108 = vmatpush1.xpose.msra.mxu0 0.0
    %1109 = vmatprep.subr.mxu0 0.0
    %1110 = vmatpush1.xpose.msra.mxu0 %v1077
    %1111 = vmatprep.subr.mxu0 0.0
    %1112 = vmatpush2.xpose.msra.mxu0 0.0
    %1113 = vmatprep.subr.mxu0 0.0
    %1114 = vmatpush2.xpose.msra.mxu0 0.0
    %1115 = vmatprep.subr.mxu0 0.0
    %1116 = vmatpush2.xpose.msra.mxu0 0.0
    %1117 = vmatprep.subr.mxu0 0.0
    %1118 = vmatpush2.xpose.msra.mxu0 0.0
    %1119 = vmatprep.subr.mxu0 0.0
    %1120 = vmatpush2.xpose.msra.mxu0 0.0
    %1121 = vmatprep.subr.mxu0 0.0
    %1122 = vmatpush2.xpose.msra.mxu0 0.0
    %1123 = vmatprep.subr.mxu0 0.0
    %1124 = vmatpush2.xpose.msra.mxu0 0.0
    %1125 = vmatprep.subr.mxu0 0.0
    %1126 = vmatpush2.xpose.msra.mxu0 0.0
    %1127 = vmatprep.subr.mxu0 0.0
    %1128 = vmatpush2.xpose.msra.mxu0 0.0
    %1129 = vmatprep.subr.mxu0 0.0
    %1130 = vmatpush2.xpose.msra.mxu0 0.0
    %1131 = vmatprep.subr.mxu0 0.0
    %1132 = vmatpush2.xpose.msra.mxu0 0.0
    %1133 = vmatprep.subr.mxu0 0.0
    %1134 = vmatpush2.xpose.msra.mxu0 0.0
    %1135 = vmatprep.subr.mxu0 0.0
    %1136 = vmatpush2.xpose.msra.mxu0 0.0
    %1137 = vmatprep.subr.mxu0 0.0
    %1138 = vmatpush2.xpose.msra.mxu0 0.0
    %1139 = vmatprep.subr.mxu0 0.0
    %1140 = vmatpush2.xpose.msra.mxu0 0.0
    %1141 = vmatprep.subr.mxu0 0.0
    %1142 = vmatpush2.xpose.msra.mxu0 0.0
    %1143 = vmatprep.mubr.f32.mxu0 0.0
    %1144 = vmatmul.mubr.f32.gmra.mxu0 %v1075
    %v1145 = vpop.f32.mrf.mxu0
    %v1146 = vadd.f32 %v329, %v1145
    %v1147 = vpop.f32.mrf.mxu0
    %1148 = vdwg.mxu0
    %v1149 = vsel %vm335, %v1068, -inf
    %1150 = vmax.xlane.f32.xlu0 %v1149
    %v1151 = vpop.xlane.xlu0 %1150
    %v1152 = vsel %vm335, %v1146, -inf
    %1153 = vmax.xlane.f32.xlu0 %v1152
    %v1154 = vpop.xlane.xlu0 %1153
    %v1155 = vsub.f32 %v1068, %v1151
    %v1156 = vsub.f32 %v1146, %v1154
    %v1157 = vmul.f32 %v1155, 1.442695
    %v1158 = vpow.pop %v1157
    %v1159 = vmul.f32 %v1156, 1.442695
    %v1160 = vpow.pop %v1159
    %v1161 = vsel %vm335, %v1158, 0.0
    %1162 = vadd.xlane.f32.xlu0 %v1161
    %v1163 = vpop.xlane.xlu0 %1162
    %v1164 = vsel %vm335, %v1160, 0.0
    %1165 = vadd.xlane.f32.xlu0 %v1164
    %v1166 = vpop.xlane.xlu0 %1165
    %v1167 = vrcp.pop %v1163
    %v1168 = vrcp.pop %v1166
    %v1169 = vmul.f32 %v1158, %v1167
    %v1170 = vmul.f32 %v1160, %v1168
    %1171 = vrot.lane.b32.xlu0 %v312, 48
    %v1172 = vpop.permute.xlu0 %1171
    %v1175 = vsel %vm335, %v1169, 0
    %1177 = vmatprep.subr.mxu0 0.0
    %1178 = vmatpush1.msra.mxu0 0.0
    %1179 = vmatprep.subr.mxu0 0.0
    %1180 = vmatpush1.msra.mxu0 0.0
    %1181 = vmatprep.subr.mxu0 0.0
    %1182 = vmatpush1.msra.mxu0 0.0
    %1183 = vmatprep.subr.mxu0 0.0
    %1184 = vmatpush1.msra.mxu0 0.0
    %1185 = vmatprep.subr.mxu0 0.0
    %1186 = vmatpush1.msra.mxu0 0.0
    %1187 = vmatprep.subr.mxu0 0.0
    %1188 = vmatpush1.msra.mxu0 0.0
    %1189 = vmatprep.subr.mxu0 0.0
    %1190 = vmatpush1.msra.mxu0 0.0
    %1191 = vmatprep.subr.mxu0 0.0
    %1192 = vmatpush1.msra.mxu0 0.0
    %1193 = vmatprep.subr.mxu0 0.0
    %1194 = vmatpush1.msra.mxu0 0.0
    %1195 = vmatprep.subr.mxu0 0.0
    %1196 = vmatpush1.msra.mxu0 0.0
    %1197 = vmatprep.subr.mxu0 0.0
    %1198 = vmatpush1.msra.mxu0 0.0
    %1199 = vmatprep.subr.mxu0 0.0
    %1200 = vmatpush1.msra.mxu0 0.0
    %1201 = vmatprep.subr.mxu0 0.0
    %1202 = vmatpush1.msra.mxu0 0.0
    %1203 = vmatprep.subr.mxu0 0.0
    %1204 = vmatpush1.msra.mxu0 0.0
    %1205 = vmatprep.subr.mxu0 0.0
    %1206 = vmatpush1.msra.mxu0 0.0
    %1207 = vmatprep.subr.mxu0 0.0
    %1208 = vmatpush1.msra.mxu0 %v1172
    %1209 = vmatprep.subr.mxu0 0.0
    %1210 = vmatpush2.msra.mxu0 0.0
    %1211 = vmatprep.subr.mxu0 0.0
    %1212 = vmatpush2.msra.mxu0 0.0
    %1213 = vmatprep.subr.mxu0 0.0
    %1214 = vmatpush2.msra.mxu0 0.0
    %1215 = vmatprep.subr.mxu0 0.0
    %1216 = vmatpush2.msra.mxu0 0.0
    %1217 = vmatprep.subr.mxu0 0.0
    %1218 = vmatpush2.msra.mxu0 0.0
    %1219 = vmatprep.subr.mxu0 0.0
    %1220 = vmatpush2.msra.mxu0 0.0
    %1221 = vmatprep.subr.mxu0 0.0
    %1222 = vmatpush2.msra.mxu0 0.0
    %1223 = vmatprep.subr.mxu0 0.0
    %1224 = vmatpush2.msra.mxu0 0.0
    %1225 = vmatprep.subr.mxu0 0.0
    %1226 = vmatpush2.msra.mxu0 0.0
    %1227 = vmatprep.subr.mxu0 0.0
    %1228 = vmatpush2.msra.mxu0 0.0
    %1229 = vmatprep.subr.mxu0 0.0
    %1230 = vmatpush2.msra.mxu0 0.0
    %1231 = vmatprep.subr.mxu0 0.0
    %1232 = vmatpush2.msra.mxu0 0.0
    %1233 = vmatprep.subr.mxu0 0.0
    %1234 = vmatpush2.msra.mxu0 0.0
    %1235 = vmatprep.subr.mxu0 0.0
    %1236 = vmatpush2.msra.mxu0 0.0
    %1237 = vmatprep.subr.mxu0 0.0
    %1238 = vmatpush2.msra.mxu0 0.0
    %1239 = vmatprep.subr.mxu0 0.0
    %1240 = vmatpush2.msra.mxu0 0.0
    %1241 = vmatprep.mubr.f32.mxu0 0.0
    %1242 = vmatmul.mubr.f32.gmra.mxu0 %v1175
    %v1243 = vpop.f32.mrf.mxu0
    %v1244 = vadd.f32 0.0, %v1243
    %v1245 = vpop.f32.mrf.mxu0
    %1246 = vdwg.mxu0
    %1247 = vrot.lane.b32.xlu0 %v317, 48
    %v1248 = vpop.permute.xlu0 %1247
    %v1251 = vsel %vm335, %v1170, 0
    %1253 = vmatprep.subr.mxu0 0.0
    %1254 = vmatpush1.msra.mxu0 0.0
    %1255 = vmatprep.subr.mxu0 0.0
    %1256 = vmatpush1.msra.mxu0 0.0
    %1257 = vmatprep.subr.mxu0 0.0
    %1258 = vmatpush1.msra.mxu0 0.0
    %1259 = vmatprep.subr.mxu0 0.0
    %1260 = vmatpush1.msra.mxu0 0.0
    %1261 = vmatprep.subr.mxu0 0.0
    %1262 = vmatpush1.msra.mxu0 0.0
    %1263 = vmatprep.subr.mxu0 0.0
    %1264 = vmatpush1.msra.mxu0 0.0
    %1265 = vmatprep.subr.mxu0 0.0
    %1266 = vmatpush1.msra.mxu0 0.0
    %1267 = vmatprep.subr.mxu0 0.0
    %1268 = vmatpush1.msra.mxu0 0.0
    %1269 = vmatprep.subr.mxu0 0.0
    %1270 = vmatpush1.msra.mxu0 0.0
    %1271 = vmatprep.subr.mxu0 0.0
    %1272 = vmatpush1.msra.mxu0 0.0
    %1273 = vmatprep.subr.mxu0 0.0
    %1274 = vmatpush1.msra.mxu0 0.0
    %1275 = vmatprep.subr.mxu0 0.0
    %1276 = vmatpush1.msra.mxu0 0.0
    %1277 = vmatprep.subr.mxu0 0.0
    %1278 = vmatpush1.msra.mxu0 0.0
    %1279 = vmatprep.subr.mxu0 0.0
    %1280 = vmatpush1.msra.mxu0 0.0
    %1281 = vmatprep.subr.mxu0 0.0
    %1282 = vmatpush1.msra.mxu0 0.0
    %1283 = vmatprep.subr.mxu0 0.0
    %1284 = vmatpush1.msra.mxu0 %v1248
    %1285 = vmatprep.subr.mxu0 0.0
    %1286 = vmatpush2.msra.mxu0 0.0
    %1287 = vmatprep.subr.mxu0 0.0
    %1288 = vmatpush2.msra.mxu0 0.0
    %1289 = vmatprep.subr.mxu0 0.0
    %1290 = vmatpush2.msra.mxu0 0.0
    %1291 = vmatprep.subr.mxu0 0.0
    %1292 = vmatpush2.msra.mxu0 0.0
    %1293 = vmatprep.subr.mxu0 0.0
    %1294 = vmatpush2.msra.mxu0 0.0
    %1295 = vmatprep.subr.mxu0 0.0
    %1296 = vmatpush2.msra.mxu0 0.0
    %1297 = vmatprep.subr.mxu0 0.0
    %1298 = vmatpush2.msra.mxu0 0.0
    %1299 = vmatprep.subr.mxu0 0.0
    %1300 = vmatpush2.msra.mxu0 0.0
    %1301 = vmatprep.subr.mxu0 0.0
    %1302 = vmatpush2.msra.mxu0 0.0
    %1303 = vmatprep.subr.mxu0 0.0
    %1304 = vmatpush2.msra.mxu0 0.0
    %1305 = vmatprep.subr.mxu0 0.0
    %1306 = vmatpush2.msra.mxu0 0.0
    %1307 = vmatprep.subr.mxu0 0.0
    %1308 = vmatpush2.msra.mxu0 0.0
    %1309 = vmatprep.subr.mxu0 0.0
    %1310 = vmatpush2.msra.mxu0 0.0
    %1311 = vmatprep.subr.mxu0 0.0
    %1312 = vmatpush2.msra.mxu0 0.0
    %1313 = vmatprep.subr.mxu0 0.0
    %1314 = vmatpush2.msra.mxu0 0.0
    %1315 = vmatprep.subr.mxu0 0.0
    %1316 = vmatpush2.msra.mxu0 0.0
    %1317 = vmatprep.mubr.f32.mxu0 0.0
    %1318 = vmatmul.mubr.f32.gmra.mxu0 %v1251
    %v1319 = vpop.f32.mrf.mxu0
    %v1320 = vadd.f32 0.0, %v1319
    %v1321 = vpop.f32.mrf.mxu0
    %1322 = vdwg.mxu0
    %1323 = vrot.lane.b32.xlu0 %v320, 104
    %v1324 = vpop.permute.xlu0 %1323
    %1325 = vrot.lane.b32.xlu0 %v312, 72
    %v1326 = vpop.permute.xlu0 %1325
    %v1327 = vsel %vm335, %v1324, 0
    %v1329 = vsel %vm335, %v1326, 0
    %1331 = vmatprep.subr.mxu0 0.0
    %1332 = vmatpush1.xpose.msra.mxu0 0.0
    %1333 = vmatprep.subr.mxu0 0.0
    %1334 = vmatpush1.xpose.msra.mxu0 0.0
    %1335 = vmatprep.subr.mxu0 0.0
    %1336 = vmatpush1.xpose.msra.mxu0 0.0
    %1337 = vmatprep.subr.mxu0 0.0
    %1338 = vmatpush1.xpose.msra.mxu0 0.0
    %1339 = vmatprep.subr.mxu0 0.0
    %1340 = vmatpush1.xpose.msra.mxu0 0.0
    %1341 = vmatprep.subr.mxu0 0.0
    %1342 = vmatpush1.xpose.msra.mxu0 0.0
    %1343 = vmatprep.subr.mxu0 0.0
    %1344 = vmatpush1.xpose.msra.mxu0 0.0
    %1345 = vmatprep.subr.mxu0 0.0
    %1346 = vmatpush1.xpose.msra.mxu0 0.0
    %1347 = vmatprep.subr.mxu0 0.0
    %1348 = vmatpush1.xpose.msra.mxu0 0.0
    %1349 = vmatprep.subr.mxu0 0.0
    %1350 = vmatpush1.xpose.msra.mxu0 0.0
    %1351 = vmatprep.subr.mxu0 0.0
    %1352 = vmatpush1.xpose.msra.mxu0 0.0
    %1353 = vmatprep.subr.mxu0 0.0
    %1354 = vmatpush1.xpose.msra.mxu0 0.0
    %1355 = vmatprep.subr.mxu0 0.0
    %1356 = vmatpush1.xpose.msra.mxu0 0.0
    %1357 = vmatprep.subr.mxu0 0.0
    %1358 = vmatpush1.xpose.msra.mxu0 0.0
    %1359 = vmatprep.subr.mxu0 0.0
    %1360 = vmatpush1.xpose.msra.mxu0 0.0
    %1361 = vmatprep.subr.mxu0 0.0
    %1362 = vmatpush1.xpose.msra.mxu0 %v1329
    %1363 = vmatprep.subr.mxu0 0.0
    %1364 = vmatpush2.xpose.msra.mxu0 0.0
    %1365 = vmatprep.subr.mxu0 0.0
    %1366 = vmatpush2.xpose.msra.mxu0 0.0
    %1367 = vmatprep.subr.mxu0 0.0
    %1368 = vmatpush2.xpose.msra.mxu0 0.0
    %1369 = vmatprep.subr.mxu0 0.0
    %1370 = vmatpush2.xpose.msra.mxu0 0.0
    %1371 = vmatprep.subr.mxu0 0.0
    %1372 = vmatpush2.xpose.msra.mxu0 0.0
    %1373 = vmatprep.subr.mxu0 0.0
    %1374 = vmatpush2.xpose.msra.mxu0 0.0
    %1375 = vmatprep.subr.mxu0 0.0
    %1376 = vmatpush2.xpose.msra.mxu0 0.0
    %1377 = vmatprep.subr.mxu0 0.0
    %1378 = vmatpush2.xpose.msra.mxu0 0.0
    %1379 = vmatprep.subr.mxu0 0.0
    %1380 = vmatpush2.xpose.msra.mxu0 0.0
    %1381 = vmatprep.subr.mxu0 0.0
    %1382 = vmatpush2.xpose.msra.mxu0 0.0
    %1383 = vmatprep.subr.mxu0 0.0
    %1384 = vmatpush2.xpose.msra.mxu0 0.0
    %1385 = vmatprep.subr.mxu0 0.0
    %1386 = vmatpush2.xpose.msra.mxu0 0.0
    %1387 = vmatprep.subr.mxu0 0.0
    %1388 = vmatpush2.xpose.msra.mxu0 0.0
    %1389 = vmatprep.subr.mxu0 0.0
    %1390 = vmatpush2.xpose.msra.mxu0 0.0
    %1391 = vmatprep.subr.mxu0 0.0
    %1392 = vmatpush2.xpose.msra.mxu0 0.0
    %1393 = vmatprep.subr.mxu0 0.0
    %1394 = vmatpush2.xpose.msra.mxu0 0.0
    %1395 = vmatprep.mubr.f32.mxu0 0.0
    %1396 = vmatmul.mubr.f32.gmra.mxu0 %v1327
    %v1397 = vpop.f32.mrf.mxu0
    %v1398 = vadd.f32 %v325, %v1397
    %v1399 = vpop.f32.mrf.mxu0
    %1400 = vdwg.mxu0
    %1401 = vrot.lane.b32.xlu0 %v321, 104
    %v1402 = vpop.permute.xlu0 %1401
    %1403 = vrot.lane.b32.xlu0 %v317, 72
    %v1404 = vpop.permute.xlu0 %1403
    %v1405 = vsel %vm335, %v1402, 0
    %v1407 = vsel %vm335, %v1404, 0
    %1409 = vmatprep.subr.mxu0 0.0
    %1410 = vmatpush1.xpose.msra.mxu0 0.0
    %1411 = vmatprep.subr.mxu0 0.0
    %1412 = vmatpush1.xpose.msra.mxu0 0.0
    %1413 = vmatprep.subr.mxu0 0.0
    %1414 = vmatpush1.xpose.msra.mxu0 0.0
    %1415 = vmatprep.subr.mxu0 0.0
    %1416 = vmatpush1.xpose.msra.mxu0 0.0
    %1417 = vmatprep.subr.mxu0 0.0
    %1418 = vmatpush1.xpose.msra.mxu0 0.0
    %1419 = vmatprep.subr.mxu0 0.0
    %1420 = vmatpush1.xpose.msra.mxu0 0.0
    %1421 = vmatprep.subr.mxu0 0.0
    %1422 = vmatpush1.xpose.msra.mxu0 0.0
    %1423 = vmatprep.subr.mxu0 0.0
    %1424 = vmatpush1.xpose.msra.mxu0 0.0
    %1425 = vmatprep.subr.mxu0 0.0
    %1426 = vmatpush1.xpose.msra.mxu0 0.0
    %1427 = vmatprep.subr.mxu0 0.0
    %1428 = vmatpush1.xpose.msra.mxu0 0.0
    %1429 = vmatprep.subr.mxu0 0.0
    %1430 = vmatpush1.xpose.msra.mxu0 0.0
    %1431 = vmatprep.subr.mxu0 0.0
    %1432 = vmatpush1.xpose.msra.mxu0 0.0
    %1433 = vmatprep.subr.mxu0 0.0
    %1434 = vmatpush1.xpose.msra.mxu0 0.0
    %1435 = vmatprep.subr.mxu0 0.0
    %1436 = vmatpush1.xpose.msra.mxu0 0.0
    %1437 = vmatprep.subr.mxu0 0.0
    %1438 = vmatpush1.xpose.msra.mxu0 0.0
    %1439 = vmatprep.subr.mxu0 0.0
    %1440 = vmatpush1.xpose.msra.mxu0 %v1407
    %1441 = vmatprep.subr.mxu0 0.0
    %1442 = vmatpush2.xpose.msra.mxu0 0.0
    %1443 = vmatprep.subr.mxu0 0.0
    %1444 = vmatpush2.xpose.msra.mxu0 0.0
    %1445 = vmatprep.subr.mxu0 0.0
    %1446 = vmatpush2.xpose.msra.mxu0 0.0
    %1447 = vmatprep.subr.mxu0 0.0
    %1448 = vmatpush2.xpose.msra.mxu0 0.0
    %1449 = vmatprep.subr.mxu0 0.0
    %1450 = vmatpush2.xpose.msra.mxu0 0.0
    %1451 = vmatprep.subr.mxu0 0.0
    %1452 = vmatpush2.xpose.msra.mxu0 0.0
    %1453 = vmatprep.subr.mxu0 0.0
    %1454 = vmatpush2.xpose.msra.mxu0 0.0
    %1455 = vmatprep.subr.mxu0 0.0
    %1456 = vmatpush2.xpose.msra.mxu0 0.0
    %1457 = vmatprep.subr.mxu0 0.0
    %1458 = vmatpush2.xpose.msra.mxu0 0.0
    %1459 = vmatprep.subr.mxu0 0.0
    %1460 = vmatpush2.xpose.msra.mxu0 0.0
    %1461 = vmatprep.subr.mxu0 0.0
    %1462 = vmatpush2.xpose.msra.mxu0 0.0
    %1463 = vmatprep.subr.mxu0 0.0
    %1464 = vmatpush2.xpose.msra.mxu0 0.0
    %1465 = vmatprep.subr.mxu0 0.0
    %1466 = vmatpush2.xpose.msra.mxu0 0.0
    %1467 = vmatprep.subr.mxu0 0.0
    %1468 = vmatpush2.xpose.msra.mxu0 0.0
    %1469 = vmatprep.subr.mxu0 0.0
    %1470 = vmatpush2.xpose.msra.mxu0 0.0
    %1471 = vmatprep.subr.mxu0 0.0
    %1472 = vmatpush2.xpose.msra.mxu0 0.0
    %1473 = vmatprep.mubr.f32.mxu0 0.0
    %1474 = vmatmul.mubr.f32.gmra.mxu0 %v1405
    %v1475 = vpop.f32.mrf.mxu0
    %v1476 = vadd.f32 %v329, %v1475
    %v1477 = vpop.f32.mrf.mxu0
    %1478 = vdwg.mxu0
    %v1479 = vsel %vm335, %v1398, -inf
    %1480 = vmax.xlane.f32.xlu0 %v1479
    %v1481 = vpop.xlane.xlu0 %1480
    %v1482 = vsel %vm335, %v1476, -inf
    %1483 = vmax.xlane.f32.xlu0 %v1482
    %v1484 = vpop.xlane.xlu0 %1483
    %v1485 = vsub.f32 %v1398, %v1481
    %v1486 = vsub.f32 %v1476, %v1484
    %v1487 = vmul.f32 %v1485, 1.442695
    %v1488 = vpow.pop %v1487
    %v1489 = vmul.f32 %v1486, 1.442695
    %v1490 = vpow.pop %v1489
    %v1491 = vsel %vm335, %v1488, 0.0
    %1492 = vadd.xlane.f32.xlu0 %v1491
    %v1493 = vpop.xlane.xlu0 %1492
    %v1494 = vsel %vm335, %v1490, 0.0
    %1495 = vadd.xlane.f32.xlu0 %v1494
    %v1496 = vpop.xlane.xlu0 %1495
    %v1497 = vrcp.pop %v1493
    %v1498 = vrcp.pop %v1496
    %v1499 = vmul.f32 %v1488, %v1497
    %v1500 = vmul.f32 %v1490, %v1498
    %1501 = vrot.lane.b32.xlu0 %v312, 40
    %v1502 = vpop.permute.xlu0 %1501
    %v1505 = vsel %vm335, %v1499, 0
    %1507 = vmatprep.subr.mxu0 0.0
    %1508 = vmatpush1.msra.mxu0 0.0
    %1509 = vmatprep.subr.mxu0 0.0
    %1510 = vmatpush1.msra.mxu0 0.0
    %1511 = vmatprep.subr.mxu0 0.0
    %1512 = vmatpush1.msra.mxu0 0.0
    %1513 = vmatprep.subr.mxu0 0.0
    %1514 = vmatpush1.msra.mxu0 0.0
    %1515 = vmatprep.subr.mxu0 0.0
    %1516 = vmatpush1.msra.mxu0 0.0
    %1517 = vmatprep.subr.mxu0 0.0
    %1518 = vmatpush1.msra.mxu0 0.0
    %1519 = vmatprep.subr.mxu0 0.0
    %1520 = vmatpush1.msra.mxu0 0.0
    %1521 = vmatprep.subr.mxu0 0.0
    %1522 = vmatpush1.msra.mxu0 0.0
    %1523 = vmatprep.subr.mxu0 0.0
    %1524 = vmatpush1.msra.mxu0 0.0
    %1525 = vmatprep.subr.mxu0 0.0
    %1526 = vmatpush1.msra.mxu0 0.0
    %1527 = vmatprep.subr.mxu0 0.0
    %1528 = vmatpush1.msra.mxu0 0.0
    %1529 = vmatprep.subr.mxu0 0.0
    %1530 = vmatpush1.msra.mxu0 0.0
    %1531 = vmatprep.subr.mxu0 0.0
    %1532 = vmatpush1.msra.mxu0 0.0
    %1533 = vmatprep.subr.mxu0 0.0
    %1534 = vmatpush1.msra.mxu0 0.0
    %1535 = vmatprep.subr.mxu0 0.0
    %1536 = vmatpush1.msra.mxu0 0.0
    %1537 = vmatprep.subr.mxu0 0.0
    %1538 = vmatpush1.msra.mxu0 %v1502
    %1539 = vmatprep.subr.mxu0 0.0
    %1540 = vmatpush2.msra.mxu0 0.0
    %1541 = vmatprep.subr.mxu0 0.0
    %1542 = vmatpush2.msra.mxu0 0.0
    %1543 = vmatprep.subr.mxu0 0.0
    %1544 = vmatpush2.msra.mxu0 0.0
    %1545 = vmatprep.subr.mxu0 0.0
    %1546 = vmatpush2.msra.mxu0 0.0
    %1547 = vmatprep.subr.mxu0 0.0
    %1548 = vmatpush2.msra.mxu0 0.0
    %1549 = vmatprep.subr.mxu0 0.0
    %1550 = vmatpush2.msra.mxu0 0.0
    %1551 = vmatprep.subr.mxu0 0.0
    %1552 = vmatpush2.msra.mxu0 0.0
    %1553 = vmatprep.subr.mxu0 0.0
    %1554 = vmatpush2.msra.mxu0 0.0
    %1555 = vmatprep.subr.mxu0 0.0
    %1556 = vmatpush2.msra.mxu0 0.0
    %1557 = vmatprep.subr.mxu0 0.0
    %1558 = vmatpush2.msra.mxu0 0.0
    %1559 = vmatprep.subr.mxu0 0.0
    %1560 = vmatpush2.msra.mxu0 0.0
    %1561 = vmatprep.subr.mxu0 0.0
    %1562 = vmatpush2.msra.mxu0 0.0
    %1563 = vmatprep.subr.mxu0 0.0
    %1564 = vmatpush2.msra.mxu0 0.0
    %1565 = vmatprep.subr.mxu0 0.0
    %1566 = vmatpush2.msra.mxu0 0.0
    %1567 = vmatprep.subr.mxu0 0.0
    %1568 = vmatpush2.msra.mxu0 0.0
    %1569 = vmatprep.subr.mxu0 0.0
    %1570 = vmatpush2.msra.mxu0 0.0
    %1571 = vmatprep.mubr.f32.mxu0 0.0
    %1572 = vmatmul.mubr.f32.gmra.mxu0 %v1505
    %v1573 = vpop.f32.mrf.mxu0
    %v1574 = vadd.f32 0.0, %v1573
    %v1575 = vpop.f32.mrf.mxu0
    %1576 = vdwg.mxu0
    %1577 = vrot.lane.b32.xlu0 %v317, 40
    %v1578 = vpop.permute.xlu0 %1577
    %v1581 = vsel %vm335, %v1500, 0
    %1583 = vmatprep.subr.mxu0 0.0
    %1584 = vmatpush1.msra.mxu0 0.0
    %1585 = vmatprep.subr.mxu0 0.0
    %1586 = vmatpush1.msra.mxu0 0.0
    %1587 = vmatprep.subr.mxu0 0.0
    %1588 = vmatpush1.msra.mxu0 0.0
    %1589 = vmatprep.subr.mxu0 0.0
    %1590 = vmatpush1.msra.mxu0 0.0
    %1591 = vmatprep.subr.mxu0 0.0
    %1592 = vmatpush1.msra.mxu0 0.0
    %1593 = vmatprep.subr.mxu0 0.0
    %1594 = vmatpush1.msra.mxu0 0.0
    %1595 = vmatprep.subr.mxu0 0.0
    %1596 = vmatpush1.msra.mxu0 0.0
    %1597 = vmatprep.subr.mxu0 0.0
    %1598 = vmatpush1.msra.mxu0 0.0
    %1599 = vmatprep.subr.mxu0 0.0
    %1600 = vmatpush1.msra.mxu0 0.0
    %1601 = vmatprep.subr.mxu0 0.0
    %1602 = vmatpush1.msra.mxu0 0.0
    %1603 = vmatprep.subr.mxu0 0.0
    %1604 = vmatpush1.msra.mxu0 0.0
    %1605 = vmatprep.subr.mxu0 0.0
    %1606 = vmatpush1.msra.mxu0 0.0
    %1607 = vmatprep.subr.mxu0 0.0
    %1608 = vmatpush1.msra.mxu0 0.0
    %1609 = vmatprep.subr.mxu0 0.0
    %1610 = vmatpush1.msra.mxu0 0.0
    %1611 = vmatprep.subr.mxu0 0.0
    %1612 = vmatpush1.msra.mxu0 0.0
    %1613 = vmatprep.subr.mxu0 0.0
    %1614 = vmatpush1.msra.mxu0 %v1578
    %1615 = vmatprep.subr.mxu0 0.0
    %1616 = vmatpush2.msra.mxu0 0.0
    %1617 = vmatprep.subr.mxu0 0.0
    %1618 = vmatpush2.msra.mxu0 0.0
    %1619 = vmatprep.subr.mxu0 0.0
    %1620 = vmatpush2.msra.mxu0 0.0
    %1621 = vmatprep.subr.mxu0 0.0
    %1622 = vmatpush2.msra.mxu0 0.0
    %1623 = vmatprep.subr.mxu0 0.0
    %1624 = vmatpush2.msra.mxu0 0.0
    %1625 = vmatprep.subr.mxu0 0.0
    %1626 = vmatpush2.msra.mxu0 0.0
    %1627 = vmatprep.subr.mxu0 0.0
    %1628 = vmatpush2.msra.mxu0 0.0
    %1629 = vmatprep.subr.mxu0 0.0
    %1630 = vmatpush2.msra.mxu0 0.0
    %1631 = vmatprep.subr.mxu0 0.0
    %1632 = vmatpush2.msra.mxu0 0.0
    %1633 = vmatprep.subr.mxu0 0.0
    %1634 = vmatpush2.msra.mxu0 0.0
    %1635 = vmatprep.subr.mxu0 0.0
    %1636 = vmatpush2.msra.mxu0 0.0
    %1637 = vmatprep.subr.mxu0 0.0
    %1638 = vmatpush2.msra.mxu0 0.0
    %1639 = vmatprep.subr.mxu0 0.0
    %1640 = vmatpush2.msra.mxu0 0.0
    %1641 = vmatprep.subr.mxu0 0.0
    %1642 = vmatpush2.msra.mxu0 0.0
    %1643 = vmatprep.subr.mxu0 0.0
    %1644 = vmatpush2.msra.mxu0 0.0
    %1645 = vmatprep.subr.mxu0 0.0
    %1646 = vmatpush2.msra.mxu0 0.0
    %1647 = vmatprep.mubr.f32.mxu0 0.0
    %1648 = vmatmul.mubr.f32.gmra.mxu0 %v1581
    %v1649 = vpop.f32.mrf.mxu0
    %v1650 = vadd.f32 0.0, %v1649
    %v1651 = vpop.f32.mrf.mxu0
    %1652 = vdwg.mxu0
    %1655 = vrot.lane.b32.xlu0 %v914, 8
    %v1656 = vpop.permute.xlu0 %1655
    %1657 = vrot.lane.b32.xlu0 %v990, 8
    %v1658 = vpop.permute.xlu0 %1657
    %1663 = vrot.lane.b32.xlu0 %v1244, 16
    %v1664 = vpop.permute.xlu0 %1663
    %1665 = vrot.lane.b32.xlu0 %v1320, 16
    %v1666 = vpop.permute.xlu0 %1665
    %1671 = vrot.lane.b32.xlu0 %v1574, 24
    %v1672 = vpop.permute.xlu0 %1671
    %1673 = vrot.lane.b32.xlu0 %v1650, 24
    %v1674 = vpop.permute.xlu0 %1673
    %v1677 = vsel %vm335, %v584, %v1656
    %v1678 = vsel %vm335, %v660, %v1658
    %vm1679 = vcmask 130048
    %v1680 = vsel %vm1679, %v1677, %v1664
    %v1681 = vsel %vm1679, %v1678, %v1666
    %vm1682 = vcmask 195584
    %v1683 = vsel %vm1682, %v1680, %v1672
    %v1684 = vsel %vm1682, %v1681, %v1674
    %s1685 = scalar_lea.vmem %s7, 32
    %v1686 = vld [vmem:[%s1685] sm:$0xff]
    %v1687 = vld [vmem:[%s1685 + $0x8] sm:$0xff]
    %v1688 = vld [vmem:[%s1685 + $0x10] sm:$0xff]
    %v1689 = vld [vmem:[%s1685 + $0x18] sm:$0xff]
    %v1690 = vld [vmem:[%s6 + $0x3] sm:$0x1]
    %v1691 = vlaneseq
    %v1692 = vshrl.u32 %v1691, 7
    %v1693 = vsub.s32 0, %v1692
    %v1694 = vrot.slane %v1690, %v1693
    %v1696 = vsel %vm190, %v1683, 0
    %v1699 = vsel %vm190, %v1684, 0
    %1701 = vmatprep.subr.mxu0 0.0
    %1702 = vmatpush1.msra.mxu0 0.0
    %1703 = vmatprep.subr.mxu0 0.0
    %1704 = vmatpush1.msra.mxu0 0.0
    %1705 = vmatprep.subr.mxu0 0.0
    %1706 = vmatpush1.msra.mxu0 0.0
    %1707 = vmatprep.subr.mxu0 0.0
    %1708 = vmatpush1.msra.mxu0 0.0
    %1709 = vmatprep.subr.mxu0 0.0
    %1710 = vmatpush1.msra.mxu0 0.0
    %1711 = vmatprep.subr.mxu0 0.0
    %1712 = vmatpush1.msra.mxu0 0.0
    %1713 = vmatprep.subr.mxu0 0.0
    %1714 = vmatpush1.msra.mxu0 0.0
    %1715 = vmatprep.subr.mxu0 0.0
    %1716 = vmatpush1.msra.mxu0 0.0
    %1717 = vmatprep.subr.mxu0 0.0
    %1718 = vmatpush1.msra.mxu0 0.0
    %1719 = vmatprep.subr.mxu0 0.0
    %1720 = vmatpush1.msra.mxu0 0.0
    %1721 = vmatprep.subr.mxu0 0.0
    %1722 = vmatpush1.msra.mxu0 0.0
    %1723 = vmatprep.subr.mxu0 0.0
    %1724 = vmatpush1.msra.mxu0 0.0
    %1725 = vmatprep.subr.mxu0 0.0
    %1726 = vmatpush1.msra.mxu0 %v1689
    %1727 = vmatprep.subr.mxu0 0.0
    %1728 = vmatpush1.msra.mxu0 %v1688
    %1729 = vmatprep.subr.mxu0 0.0
    %1730 = vmatpush1.msra.mxu0 %v1687
    %1731 = vmatprep.subr.mxu0 0.0
    %1732 = vmatpush1.msra.mxu0 %v1686
    %1733 = vmatprep.subr.mxu0 0.0
    %1734 = vmatpush2.msra.mxu0 0.0
    %1735 = vmatprep.subr.mxu0 0.0
    %1736 = vmatpush2.msra.mxu0 0.0
    %1737 = vmatprep.subr.mxu0 0.0
    %1738 = vmatpush2.msra.mxu0 0.0
    %1739 = vmatprep.subr.mxu0 0.0
    %1740 = vmatpush2.msra.mxu0 0.0
    %1741 = vmatprep.subr.mxu0 0.0
    %1742 = vmatpush2.msra.mxu0 0.0
    %1743 = vmatprep.subr.mxu0 0.0
    %1744 = vmatpush2.msra.mxu0 0.0
    %1745 = vmatprep.subr.mxu0 0.0
    %1746 = vmatpush2.msra.mxu0 0.0
    %1747 = vmatprep.subr.mxu0 0.0
    %1748 = vmatpush2.msra.mxu0 0.0
    %1749 = vmatprep.subr.mxu0 0.0
    %1750 = vmatpush2.msra.mxu0 0.0
    %1751 = vmatprep.subr.mxu0 0.0
    %1752 = vmatpush2.msra.mxu0 0.0
    %1753 = vmatprep.subr.mxu0 0.0
    %1754 = vmatpush2.msra.mxu0 0.0
    %1755 = vmatprep.subr.mxu0 0.0
    %1756 = vmatpush2.msra.mxu0 0.0
    %1757 = vmatprep.subr.mxu0 0.0
    %1758 = vmatpush2.msra.mxu0 0.0
    %1759 = vmatprep.subr.mxu0 0.0
    %1760 = vmatpush2.msra.mxu0 0.0
    %1761 = vmatprep.subr.mxu0 0.0
    %1762 = vmatpush2.msra.mxu0 0.0
    %1763 = vmatprep.subr.mxu0 0.0
    %1764 = vmatpush2.msra.mxu0 0.0
    %1765 = vmatprep.mubr.f32.mxu0 0.0
    %1766 = vmatmul.mubr.f32.gmra.mxu0 %v1696
    %v1767 = vpop.f32.mrf.mxu0
    %v1768 = vadd.f32 %v1694, %v1767
    %v1769 = vpop.f32.mrf.mxu0
    %1770 = vmatprep.mubr.f32.mxu0 0.0
    %1771 = vmatmul.mubr.f32.gmra.mxu0 %v1699
    %v1772 = vpop.f32.mrf.mxu0
    %v1773 = vadd.f32 %v1694, %v1772
    %v1774 = vpop.f32.mrf.mxu0
    %1775 = vdwg.mxu0
    %v1776 = vadd.f32 %v186, %v1768
    %v1777 = vadd.f32 %v187, %v1773
    %v1778 = vld [vmem:[%s6 + $0x4] sm:$0x1]
    %v1779 = vld [vmem:[%s6 + $0x5] sm:$0x1]
    %v1780 = vsel %vm190, %v1776, 0.0
    %1781 = vadd.xlane.f32.xlu0 %v1780
    %v1782 = vpop.xlane.xlu0 %1781
    %v1783 = vsel %vm190, %v1777, 0.0
    %1784 = vadd.xlane.f32.xlu0 %v1783
    %v1785 = vpop.xlane.xlu0 %1784
    %v1786 = vmul.f32 %v1782, %v197
    %v1787 = vmul.f32 %v1785, %v197
    %v1788 = vsub.f32 %v1776, %v1786
    %v1789 = vsub.f32 %v1777, %v1787
    %v1790 = vmul.f32 %v1788, %v1788
    %v1791 = vmul.f32 %v1789, %v1789
    %v1792 = vsel %vm190, %v1790, 0.0
    %1793 = vadd.xlane.f32.xlu0 %v1792
    %v1794 = vpop.xlane.xlu0 %1793
    %v1795 = vsel %vm190, %v1791, 0.0
    %1796 = vadd.xlane.f32.xlu0 %v1795
    %v1797 = vpop.xlane.xlu0 %1796
    %v1798 = vmul.f32 %v1794, %v197
    %v1799 = vmul.f32 %v1797, %v197
    %v1800 = vadd.f32 %v1798, 1e-05
    %v1801 = vadd.f32 %v1799, 1e-05
    %v1802 = vrsqrt.pop %v1800
    %v1803 = vrsqrt.pop %v1801
    %v1804 = vmul.f32 %v1788, %v1802
    %v1805 = vmul.f32 %v1789, %v1803
    %v1806 = vlaneseq
    %v1807 = vshrl.u32 %v1806, 7
    %v1808 = vsub.s32 0, %v1807
    %v1809 = vrot.slane %v1778, %v1808
    %v1810 = vmul.f32 %v1804, %v1809
    %v1811 = vmul.f32 %v1805, %v1809
    %v1812 = vlaneseq
    %v1813 = vshrl.u32 %v1812, 7
    %v1814 = vsub.s32 0, %v1813
    %v1815 = vrot.slane %v1779, %v1814
    %v1816 = vadd.f32 %v1810, %v1815
    %v1817 = vadd.f32 %v1811, %v1815
    %s1818 = scalar_lea.vmem %s7, 64
    %v1819 = vld [vmem:[%s1818] sm:$0xff]
    %v1820 = vld [vmem:[%s1818 + $0x8] sm:$0xff]
    %v1821 = vld [vmem:[%s1818 + $0x10] sm:$0xff]
    %v1822 = vld [vmem:[%s1818 + $0x18] sm:$0xff]
    %v1823 = vld [vmem:[%s6 + $0x6] sm:$0x1]
    %v1824 = vlaneseq
    %v1825 = vshrl.u32 %v1824, 7
    %v1826 = vsub.s32 0, %v1825
    %v1827 = vrot.slane %v1823, %v1826
    %v1829 = vsel %vm190, %v1816, 0
    %v1832 = vsel %vm190, %v1817, 0
    %1834 = vmatprep.subr.mxu0 0.0
    %1835 = vmatpush1.msra.mxu0 0.0
    %1836 = vmatprep.subr.mxu0 0.0
    %1837 = vmatpush1.msra.mxu0 0.0
    %1838 = vmatprep.subr.mxu0 0.0
    %1839 = vmatpush1.msra.mxu0 0.0
    %1840 = vmatprep.subr.mxu0 0.0
    %1841 = vmatpush1.msra.mxu0 0.0
    %1842 = vmatprep.subr.mxu0 0.0
    %1843 = vmatpush1.msra.mxu0 0.0
    %1844 = vmatprep.subr.mxu0 0.0
    %1845 = vmatpush1.msra.mxu0 0.0
    %1846 = vmatprep.subr.mxu0 0.0
    %1847 = vmatpush1.msra.mxu0 0.0
    %1848 = vmatprep.subr.mxu0 0.0
    %1849 = vmatpush1.msra.mxu0 0.0
    %1850 = vmatprep.subr.mxu0 0.0
    %1851 = vmatpush1.msra.mxu0 0.0
    %1852 = vmatprep.subr.mxu0 0.0
    %1853 = vmatpush1.msra.mxu0 0.0
    %1854 = vmatprep.subr.mxu0 0.0
    %1855 = vmatpush1.msra.mxu0 0.0
    %1856 = vmatprep.subr.mxu0 0.0
    %1857 = vmatpush1.msra.mxu0 0.0
    %1858 = vmatprep.subr.mxu0 0.0
    %1859 = vmatpush1.msra.mxu0 %v1822
    %1860 = vmatprep.subr.mxu0 0.0
    %1861 = vmatpush1.msra.mxu0 %v1821
    %1862 = vmatprep.subr.mxu0 0.0
    %1863 = vmatpush1.msra.mxu0 %v1820
    %1864 = vmatprep.subr.mxu0 0.0
    %1865 = vmatpush1.msra.mxu0 %v1819
    %1866 = vmatprep.subr.mxu0 0.0
    %1867 = vmatpush2.msra.mxu0 0.0
    %1868 = vmatprep.subr.mxu0 0.0
    %1869 = vmatpush2.msra.mxu0 0.0
    %1870 = vmatprep.subr.mxu0 0.0
    %1871 = vmatpush2.msra.mxu0 0.0
    %1872 = vmatprep.subr.mxu0 0.0
    %1873 = vmatpush2.msra.mxu0 0.0
    %1874 = vmatprep.subr.mxu0 0.0
    %1875 = vmatpush2.msra.mxu0 0.0
    %1876 = vmatprep.subr.mxu0 0.0
    %1877 = vmatpush2.msra.mxu0 0.0
    %1878 = vmatprep.subr.mxu0 0.0
    %1879 = vmatpush2.msra.mxu0 0.0
    %1880 = vmatprep.subr.mxu0 0.0
    %1881 = vmatpush2.msra.mxu0 0.0
    %1882 = vmatprep.subr.mxu0 0.0
    %1883 = vmatpush2.msra.mxu0 0.0
    %1884 = vmatprep.subr.mxu0 0.0
    %1885 = vmatpush2.msra.mxu0 0.0
    %1886 = vmatprep.subr.mxu0 0.0
    %1887 = vmatpush2.msra.mxu0 0.0
    %1888 = vmatprep.subr.mxu0 0.0
    %1889 = vmatpush2.msra.mxu0 0.0
    %1890 = vmatprep.subr.mxu0 0.0
    %1891 = vmatpush2.msra.mxu0 0.0
    %1892 = vmatprep.subr.mxu0 0.0
    %1893 = vmatpush2.msra.mxu0 0.0
    %1894 = vmatprep.subr.mxu0 0.0
    %1895 = vmatpush2.msra.mxu0 0.0
    %1896 = vmatprep.subr.mxu0 0.0
    %1897 = vmatpush2.msra.mxu0 0.0
    %1898 = vmatprep.mubr.f32.mxu0 0.0
    %1899 = vmatmul.mubr.f32.gmra.mxu0 %v1829
    %v1900 = vpop.f32.mrf.mxu0
    %v1901 = vadd.f32 %v1827, %v1900
    %v1902 = vpop.f32.mrf.mxu0
    %1903 = vmatprep.mubr.f32.mxu0 0.0
    %1904 = vmatmul.mubr.f32.gmra.mxu0 %v1832
    %v1905 = vpop.f32.mrf.mxu0
    %v1906 = vadd.f32 %v1827, %v1905
    %v1907 = vpop.f32.mrf.mxu0
    %1908 = vdwg.mxu0
    %v1909 = vmul.f32 %v1901, 0.5
    %v1910 = vmul.f32 %v1906, 0.5
    %v1911 = vmul.f32 %v1901, 0.044715
    %v1912 = vmul.f32 %v1906, 0.044715
    %v1913 = vmul.f32 %v1911, %v1901
    %v1914 = vmul.f32 %v1912, %v1906
    %v1915 = vmul.f32 %v1913, %v1901
    %v1916 = vmul.f32 %v1914, %v1906
    %v1917 = vadd.f32 %v1901, %v1915
    %v1918 = vadd.f32 %v1906, %v1916
    %v1919 = vmul.f32 %v1917, 0.7978846
    %v1920 = vmul.f32 %v1918, 0.7978846
    %v1921 = vtanh.pop %v1919
    %v1922 = vtanh.pop %v1920
    %v1923 = vadd.f32 %v1921, 1.0
    %v1924 = vadd.f32 %v1922, 1.0
    %v1925 = vmul.f32 %v1909, %v1923
    %v1926 = vmul.f32 %v1910, %v1924
    %v1927 = vld [vmem:[#allocation2] sm:$0xff]
    %v1928 = vld [vmem:[#allocation2 + $0x8] sm:$0xff]
    %v1929 = vld [vmem:[#allocation2 + $0x10] sm:$0xff]
    %v1930 = vld [vmem:[#allocation2 + $0x18] sm:$0xff]
    %v1931 = vld [vmem:[#allocation2 + $0x20] sm:$0xff]
    %v1932 = vld [vmem:[#allocation2 + $0x28] sm:$0xff]
    %v1933 = vld [vmem:[#allocation2 + $0x30] sm:$0xff]
    %v1934 = vld [vmem:[#allocation2 + $0x38] sm:$0xff]
    %v1935 = vld [vmem:[%s6 + $0x7] sm:$0x1]
    %v1936 = vlaneseq
    %v1937 = vshrl.u32 %v1936, 7
    %v1938 = vsub.s32 0, %v1937
    %v1939 = vrot.slane %v1935, %v1938
    %vm1940 = vcmask 523264
    %v1942 = vsel %vm1940, %v1925, 0
    %v1945 = vsel %vm1940, %v1926, 0
    %1947 = vmatprep.subr.mxu0 0.0
    %1948 = vmatpush1.msra.mxu0 0.0
    %1949 = vmatprep.subr.mxu0 0.0
    %1950 = vmatpush1.msra.mxu0 0.0
    %1951 = vmatprep.subr.mxu0 0.0
    %1952 = vmatpush1.msra.mxu0 0.0
    %1953 = vmatprep.subr.mxu0 0.0
    %1954 = vmatpush1.msra.mxu0 0.0
    %1955 = vmatprep.subr.mxu0 0.0
    %1956 = vmatpush1.msra.mxu0 0.0
    %1957 = vmatprep.subr.mxu0 0.0
    %1958 = vmatpush1.msra.mxu0 0.0
    %1959 = vmatprep.subr.mxu0 0.0
    %1960 = vmatpush1.msra.mxu0 0.0
    %1961 = vmatprep.subr.mxu0 0.0
    %1962 = vmatpush1.msra.mxu0 0.0
    %1963 = vmatprep.subr.mxu0 0.0
    %1964 = vmatpush1.msra.mxu0 %v1934
    %1965 = vmatprep.subr.mxu0 0.0
    %1966 = vmatpush1.msra.mxu0 %v1933
    %1967 = vmatprep.subr.mxu0 0.0
    %1968 = vmatpush1.msra.mxu0 %v1932
    %1969 = vmatprep.subr.mxu0 0.0
    %1970 = vmatpush1.msra.mxu0 %v1931
    %1971 = vmatprep.subr.mxu0 0.0
    %1972 = vmatpush1.msra.mxu0 %v1930
    %1973 = vmatprep.subr.mxu0 0.0
    %1974 = vmatpush1.msra.mxu0 %v1929
    %1975 = vmatprep.subr.mxu0 0.0
    %1976 = vmatpush1.msra.mxu0 %v1928
    %1977 = vmatprep.subr.mxu0 0.0
    %1978 = vmatpush1.msra.mxu0 %v1927
    %1979 = vmatprep.subr.mxu0 0.0
    %1980 = vmatpush2.msra.mxu0 0.0
    %1981 = vmatprep.subr.mxu0 0.0
    %1982 = vmatpush2.msra.mxu0 0.0
    %1983 = vmatprep.subr.mxu0 0.0
    %1984 = vmatpush2.msra.mxu0 0.0
    %1985 = vmatprep.subr.mxu0 0.0
    %1986 = vmatpush2.msra.mxu0 0.0
    %1987 = vmatprep.subr.mxu0 0.0
    %1988 = vmatpush2.msra.mxu0 0.0
    %1989 = vmatprep.subr.mxu0 0.0
    %1990 = vmatpush2.msra.mxu0 0.0
    %1991 = vmatprep.subr.mxu0 0.0
    %1992 = vmatpush2.msra.mxu0 0.0
    %1993 = vmatprep.subr.mxu0 0.0
    %1994 = vmatpush2.msra.mxu0 0.0
    %1995 = vmatprep.subr.mxu0 0.0
    %1996 = vmatpush2.msra.mxu0 0.0
    %1997 = vmatprep.subr.mxu0 0.0
    %1998 = vmatpush2.msra.mxu0 0.0
    %1999 = vmatprep.subr.mxu0 0.0
    %2000 = vmatpush2.msra.mxu0 0.0
    %2001 = vmatprep.subr.mxu0 0.0
    %2002 = vmatpush2.msra.mxu0 0.0
    %2003 = vmatprep.subr.mxu0 0.0
    %2004 = vmatpush2.msra.mxu0 0.0
    %2005 = vmatprep.subr.mxu0 0.0
    %2006 = vmatpush2.msra.mxu0 0.0
    %2007 = vmatprep.subr.mxu0 0.0
    %2008 = vmatpush2.msra.mxu0 0.0
    %2009 = vmatprep.subr.mxu0 0.0
    %2010 = vmatpush2.msra.mxu0 0.0
    %2011 = vmatprep.mubr.f32.mxu0 0.0
    %2012 = vmatmul.mubr.f32.gmra.mxu0 %v1942
    %v2013 = vpop.f32.mrf.mxu0
    %v2014 = vadd.f32 %v1939, %v2013
    %v2015 = vpop.f32.mrf.mxu0
    %2016 = vmatprep.mubr.f32.mxu0 0.0
    %2017 = vmatmul.mubr.f32.gmra.mxu0 %v1945
    %v2018 = vpop.f32.mrf.mxu0
    %v2019 = vadd.f32 %v1939, %v2018
    %v2020 = vpop.f32.mrf.mxu0
    %2021 = vdwg.mxu0
    %v2022 = vadd.f32 %v1776, %v2014
    %v2023 = vadd.f32 %v1777, %v2019
    %v2024 = vld [vmem:[%s6 + $0x8] sm:$0x1]
    %v2025 = vld [vmem:[%s6 + $0x9] sm:$0x1]
    %v2026 = vsel %vm190, %v2022, 0.0
    %2027 = vadd.xlane.f32.xlu0 %v2026
    %v2028 = vpop.xlane.xlu0 %2027
    %v2029 = vsel %vm190, %v2023, 0.0
    %2030 = vadd.xlane.f32.xlu0 %v2029
    %v2031 = vpop.xlane.xlu0 %2030
    %v2032 = vmul.f32 %v2028, %v197
    %v2033 = vmul.f32 %v2031, %v197
    %v2034 = vsub.f32 %v2022, %v2032
    %v2035 = vsub.f32 %v2023, %v2033
    %v2036 = vmul.f32 %v2034, %v2034
    %v2037 = vmul.f32 %v2035, %v2035
    %v2038 = vsel %vm190, %v2036, 0.0
    %2039 = vadd.xlane.f32.xlu0 %v2038
    %v2040 = vpop.xlane.xlu0 %2039
    %v2041 = vsel %vm190, %v2037, 0.0
    %2042 = vadd.xlane.f32.xlu0 %v2041
    %v2043 = vpop.xlane.xlu0 %2042
    %v2044 = vmul.f32 %v2040, %v197
    %v2045 = vmul.f32 %v2043, %v197
    %v2046 = vadd.f32 %v2044, 1e-05
    %v2047 = vadd.f32 %v2045, 1e-05
    %v2048 = vrsqrt.pop %v2046
    %v2049 = vrsqrt.pop %v2047
    %v2050 = vmul.f32 %v2034, %v2048
    %v2051 = vmul.f32 %v2035, %v2049
    %v2052 = vlaneseq
    %v2053 = vshrl.u32 %v2052, 7
    %v2054 = vsub.s32 0, %v2053
    %v2055 = vrot.slane %v2024, %v2054
    %v2056 = vmul.f32 %v2050, %v2055
    %v2057 = vmul.f32 %v2051, %v2055
    %v2058 = vlaneseq
    %v2059 = vshrl.u32 %v2058, 7
    %v2060 = vsub.s32 0, %v2059
    %v2061 = vrot.slane %v2025, %v2060
    %v2062 = vadd.f32 %v2056, %v2061
    %v2063 = vadd.f32 %v2057, %v2061
    %v2064 = vld [vmem:[%s1] sm:$0xff]
    %v2065 = vld [vmem:[%s1 + $0x8] sm:$0xff]
    %v2066 = vld [vmem:[%s5] sm:$0xff]
    %2067 = vset.pattern.permute.xlu0 0
    %2068 = vperm.xlu0 %2067, %v2064
    %v2069 = vpop.permute.xlu0 %2068
    %2070 = vset.pattern.permute.xlu0 0
    %2071 = vperm.xlu0 %2070, %v2065
    %v2072 = vpop.permute.xlu0 %2071
    %vm2073 = vcmp.eq.s32.totalorder %v2069, %v96
    %vm2074 = vcmp.eq.s32.totalorder %v2072, %v96
    %v2075 = vsel %vm2073, 1, 0
    %v2076 = vsel %vm2074, 1, 0
    %v2077 = vcvt.s32.f32 %v2075
    %v2078 = vcvt.s32.f32 %v2076
    %2079 = vmatprep.subr.mxu0 0.0
    %2080 = vmatpush1.msra.mxu0 %v65
    %2081 = vmatprep.subr.mxu0 0.0
    %2082 = vmatpush1.msra.mxu0 %v64
    %2083 = vmatprep.subr.mxu0 0.0
    %2084 = vmatpush1.msra.mxu0 %v63
    %2085 = vmatprep.subr.mxu0 0.0
    %2086 = vmatpush1.msra.mxu0 %v62
    %2087 = vmatprep.subr.mxu0 0.0
    %2088 = vmatpush1.msra.mxu0 %v61
    %2089 = vmatprep.subr.mxu0 0.0
    %2090 = vmatpush1.msra.mxu0 %v60
    %2091 = vmatprep.subr.mxu0 0.0
    %2092 = vmatpush1.msra.mxu0 %v59
    %2093 = vmatprep.subr.mxu0 0.0
    %2094 = vmatpush1.msra.mxu0 %v58
    %2095 = vmatprep.subr.mxu0 0.0
    %2096 = vmatpush1.msra.mxu0 %v57
    %2097 = vmatprep.subr.mxu0 0.0
    %2098 = vmatpush1.msra.mxu0 %v56
    %2099 = vmatprep.subr.mxu0 0.0
    %2100 = vmatpush1.msra.mxu0 %v55
    %2101 = vmatprep.subr.mxu0 0.0
    %2102 = vmatpush1.msra.mxu0 %v54
    %2103 = vmatprep.subr.mxu0 0.0
    %2104 = vmatpush1.msra.mxu0 %v53
    %2105 = vmatprep.subr.mxu0 0.0
    %2106 = vmatpush1.msra.mxu0 %v52
    %2107 = vmatprep.subr.mxu0 0.0
    %2108 = vmatpush1.msra.mxu0 %v51
    %2109 = vmatprep.subr.mxu0 0.0
    %2110 = vmatpush1.msra.mxu0 %v50
    %2111 = vmatprep.subr.mxu0 0.0
    %2112 = vmatpush2.msra.mxu0 0.0
    %2113 = vmatprep.subr.mxu0 0.0
    %2114 = vmatpush2.msra.mxu0 0.0
    %2115 = vmatprep.subr.mxu0 0.0
    %2116 = vmatpush2.msra.mxu0 0.0
    %2117 = vmatprep.subr.mxu0 0.0
    %2118 = vmatpush2.msra.mxu0 0.0
    %2119 = vmatprep.subr.mxu0 0.0
    %2120 = vmatpush2.msra.mxu0 0.0
    %2121 = vmatprep.subr.mxu0 0.0
    %2122 = vmatpush2.msra.mxu0 0.0
    %2123 = vmatprep.subr.mxu0 0.0
    %2124 = vmatpush2.msra.mxu0 0.0
    %2125 = vmatprep.subr.mxu0 0.0
    %2126 = vmatpush2.msra.mxu0 0.0
    %2127 = vmatprep.subr.mxu0 0.0
    %2128 = vmatpush2.msra.mxu0 0.0
    %2129 = vmatprep.subr.mxu0 0.0
    %2130 = vmatpush2.msra.mxu0 0.0
    %2131 = vmatprep.subr.mxu0 0.0
    %2132 = vmatpush2.msra.mxu0 0.0
    %2133 = vmatprep.subr.mxu0 0.0
    %2134 = vmatpush2.msra.mxu0 0.0
    %2135 = vmatprep.subr.mxu0 0.0
    %2136 = vmatpush2.msra.mxu0 0.0
    %2137 = vmatprep.subr.mxu0 0.0
    %2138 = vmatpush2.msra.mxu0 0.0
    %2139 = vmatprep.subr.mxu0 0.0
    %2140 = vmatpush2.msra.mxu0 0.0
    %2141 = vmatprep.subr.mxu0 0.0
    %2142 = vmatpush2.msra.mxu0 0.0
    %2143 = vmatprep.mubr.f32.mxu0 0.0
    %2144 = vmatmul.mubr.f32.gmra.mxu0 %v2077
    %v2145 = vpop.f32.mrf.mxu0
    %v2146 = vadd.f32 0.0, %v2145
    %v2147 = vpop.f32.mrf.mxu0
    %2148 = vmatprep.mubr.f32.mxu0 0.0
    %2149 = vmatmul.mubr.f32.gmra.mxu0 %v2078
    %v2150 = vpop.f32.mrf.mxu0
    %v2151 = vadd.f32 0.0, %v2150
    %v2152 = vpop.f32.mrf.mxu0
    %2153 = vdwg.mxu0
    %v2154 = vmul.f32 %v2146, 5.656854
    %v2155 = vmul.f32 %v2151, 5.656854
    %v2156 = vadd.f32 %v2154, %v2066
    %v2157 = vadd.f32 %v2155, %v2066
    %v2158 = vlaneseq
    %v2159 = vshrl.u32 %v2158, 7
    %vm2160 = vcmp.le.s32.totalorder %v96, %v2159
    %v2161 = vsel %vm2160, 0.0, -1e+09
    %v2162 = vld [vmem:[%s6 + $0xa] sm:$0x1]
    %v2163 = vld [vmem:[%s6 + $0xb] sm:$0x1]
    %v2164 = vsel %vm190, %v2156, 0.0
    %2165 = vadd.xlane.f32.xlu0 %v2164
    %v2166 = vpop.xlane.xlu0 %2165
    %v2167 = vsel %vm190, %v2157, 0.0
    %2168 = vadd.xlane.f32.xlu0 %v2167
    %v2169 = vpop.xlane.xlu0 %2168
    %v2170 = vmul.f32 %v2166, %v197
    %v2171 = vmul.f32 %v2169, %v197
    %v2172 = vsub.f32 %v2156, %v2170
    %v2173 = vsub.f32 %v2157, %v2171
    %v2174 = vmul.f32 %v2172, %v2172
    %v2175 = vmul.f32 %v2173, %v2173
    %v2176 = vsel %vm190, %v2174, 0.0
    %2177 = vadd.xlane.f32.xlu0 %v2176
    %v2178 = vpop.xlane.xlu0 %2177
    %v2179 = vsel %vm190, %v2175, 0.0
    %2180 = vadd.xlane.f32.xlu0 %v2179
    %v2181 = vpop.xlane.xlu0 %2180
    %v2182 = vmul.f32 %v2178, %v197
    %v2183 = vmul.f32 %v2181, %v197
    %v2184 = vadd.f32 %v2182, 1e-05
    %v2185 = vadd.f32 %v2183, 1e-05
    %v2186 = vrsqrt.pop %v2184
    %v2187 = vrsqrt.pop %v2185
    %v2188 = vmul.f32 %v2172, %v2186
    %v2189 = vmul.f32 %v2173, %v2187
    %v2190 = vlaneseq
    %v2191 = vshrl.u32 %v2190, 7
    %v2192 = vsub.s32 0, %v2191
    %v2193 = vrot.slane %v2162, %v2192
    %v2194 = vmul.f32 %v2188, %v2193
    %v2195 = vmul.f32 %v2189, %v2193
    %v2196 = vlaneseq
    %v2197 = vshrl.u32 %v2196, 7
    %v2198 = vsub.s32 0, %v2197
    %v2199 = vrot.slane %v2163, %v2198
    %v2200 = vadd.f32 %v2194, %v2199
    %v2201 = vadd.f32 %v2195, %v2199
    %s2202 = scalar_lea.vmem %s7, 96
    %v2203 = vld [vmem:[%s2202] sm:$0xff]
    %v2204 = vld [vmem:[%s2202 + $0x8] sm:$0xff]
    %v2205 = vld [vmem:[%s2202 + $0x10] sm:$0xff]
    %v2206 = vld [vmem:[%s2202 + $0x18] sm:$0xff]
    %v2207 = vld [vmem:[%s6 + $0xc] sm:$0x1]
    %v2208 = vlaneseq
    %v2209 = vshrl.u32 %v2208, 7
    %v2210 = vsub.s32 0, %v2209
    %v2211 = vrot.slane %v2207, %v2210
    %v2213 = vsel %vm190, %v2200, 0
    %v2216 = vsel %vm190, %v2201, 0
    %2218 = vmatprep.subr.mxu0 0.0
    %2219 = vmatpush1.msra.mxu0 0.0
    %2220 = vmatprep.subr.mxu0 0.0
    %2221 = vmatpush1.msra.mxu0 0.0
    %2222 = vmatprep.subr.mxu0 0.0
    %2223 = vmatpush1.msra.mxu0 0.0
    %2224 = vmatprep.subr.mxu0 0.0
    %2225 = vmatpush1.msra.mxu0 0.0
    %2226 = vmatprep.subr.mxu0 0.0
    %2227 = vmatpush1.msra.mxu0 0.0
    %2228 = vmatprep.subr.mxu0 0.0
    %2229 = vmatpush1.msra.mxu0 0.0
    %2230 = vmatprep.subr.mxu0 0.0
    %2231 = vmatpush1.msra.mxu0 0.0
    %2232 = vmatprep.subr.mxu0 0.0
    %2233 = vmatpush1.msra.mxu0 0.0
    %2234 = vmatprep.subr.mxu0 0.0
    %2235 = vmatpush1.msra.mxu0 0.0
    %2236 = vmatprep.subr.mxu0 0.0
    %2237 = vmatpush1.msra.mxu0 0.0
    %2238 = vmatprep.subr.mxu0 0.0
    %2239 = vmatpush1.msra.mxu0 0.0
    %2240 = vmatprep.subr.mxu0 0.0
    %2241 = vmatpush1.msra.mxu0 0.0
    %2242 = vmatprep.subr.mxu0 0.0
    %2243 = vmatpush1.msra.mxu0 %v2206
    %2244 = vmatprep.subr.mxu0 0.0
    %2245 = vmatpush1.msra.mxu0 %v2205
    %2246 = vmatprep.subr.mxu0 0.0
    %2247 = vmatpush1.msra.mxu0 %v2204
    %2248 = vmatprep.subr.mxu0 0.0
    %2249 = vmatpush1.msra.mxu0 %v2203
    %2250 = vmatprep.subr.mxu0 0.0
    %2251 = vmatpush2.msra.mxu0 0.0
    %2252 = vmatprep.subr.mxu0 0.0
    %2253 = vmatpush2.msra.mxu0 0.0
    %2254 = vmatprep.subr.mxu0 0.0
    %2255 = vmatpush2.msra.mxu0 0.0
    %2256 = vmatprep.subr.mxu0 0.0
    %2257 = vmatpush2.msra.mxu0 0.0
    %2258 = vmatprep.subr.mxu0 0.0
    %2259 = vmatpush2.msra.mxu0 0.0
    %2260 = vmatprep.subr.mxu0 0.0
    %2261 = vmatpush2.msra.mxu0 0.0
    %2262 = vmatprep.subr.mxu0 0.0
    %2263 = vmatpush2.msra.mxu0 0.0
    %2264 = vmatprep.subr.mxu0 0.0
    %2265 = vmatpush2.msra.mxu0 0.0
    %2266 = vmatprep.subr.mxu0 0.0
    %2267 = vmatpush2.msra.mxu0 0.0
    %2268 = vmatprep.subr.mxu0 0.0
    %2269 = vmatpush2.msra.mxu0 0.0
    %2270 = vmatprep.subr.mxu0 0.0
    %2271 = vmatpush2.msra.mxu0 0.0
    %2272 = vmatprep.subr.mxu0 0.0
    %2273 = vmatpush2.msra.mxu0 0.0
    %2274 = vmatprep.subr.mxu0 0.0
    %2275 = vmatpush2.msra.mxu0 0.0
    %2276 = vmatprep.subr.mxu0 0.0
    %2277 = vmatpush2.msra.mxu0 0.0
    %2278 = vmatprep.subr.mxu0 0.0
    %2279 = vmatpush2.msra.mxu0 0.0
    %2280 = vmatprep.subr.mxu0 0.0
    %2281 = vmatpush2.msra.mxu0 0.0
    %2282 = vmatprep.mubr.f32.mxu0 0.0
    %2283 = vmatmul.mubr.f32.gmra.mxu0 %v2213
    %v2284 = vpop.f32.mrf.mxu0
    %v2285 = vadd.f32 %v2211, %v2284
    %v2286 = vpop.f32.mrf.mxu0
    %2287 = vmatprep.mubr.f32.mxu0 0.0
    %2288 = vmatmul.mubr.f32.gmra.mxu0 %v2216
    %v2289 = vpop.f32.mrf.mxu0
    %v2290 = vadd.f32 %v2211, %v2289
    %v2291 = vpop.f32.mrf.mxu0
    %2292 = vdwg.mxu0
    %v2293 = vmul.f32 %v2285, 0.35355338
    %v2294 = vmul.f32 %v2290, 0.35355338
    %2296 = vrot.lane.b32.xlu0 %v2285, 96
    %v2297 = vpop.permute.xlu0 %2296
    %v2299 = vsel %vm335, %v2293, 0
    %v2301 = vsel %vm335, %v2297, 0
    %2303 = vmatprep.subr.mxu0 0.0
    %2304 = vmatpush1.xpose.msra.mxu0 0.0
    %2305 = vmatprep.subr.mxu0 0.0
    %2306 = vmatpush1.xpose.msra.mxu0 0.0
    %2307 = vmatprep.subr.mxu0 0.0
    %2308 = vmatpush1.xpose.msra.mxu0 0.0
    %2309 = vmatprep.subr.mxu0 0.0
    %2310 = vmatpush1.xpose.msra.mxu0 0.0
    %2311 = vmatprep.subr.mxu0 0.0
    %2312 = vmatpush1.xpose.msra.mxu0 0.0
    %2313 = vmatprep.subr.mxu0 0.0
    %2314 = vmatpush1.xpose.msra.mxu0 0.0
    %2315 = vmatprep.subr.mxu0 0.0
    %2316 = vmatpush1.xpose.msra.mxu0 0.0
    %2317 = vmatprep.subr.mxu0 0.0
    %2318 = vmatpush1.xpose.msra.mxu0 0.0
    %2319 = vmatprep.subr.mxu0 0.0
    %2320 = vmatpush1.xpose.msra.mxu0 0.0
    %2321 = vmatprep.subr.mxu0 0.0
    %2322 = vmatpush1.xpose.msra.mxu0 0.0
    %2323 = vmatprep.subr.mxu0 0.0
    %2324 = vmatpush1.xpose.msra.mxu0 0.0
    %2325 = vmatprep.subr.mxu0 0.0
    %2326 = vmatpush1.xpose.msra.mxu0 0.0
    %2327 = vmatprep.subr.mxu0 0.0
    %2328 = vmatpush1.xpose.msra.mxu0 0.0
    %2329 = vmatprep.subr.mxu0 0.0
    %2330 = vmatpush1.xpose.msra.mxu0 0.0
    %2331 = vmatprep.subr.mxu0 0.0
    %2332 = vmatpush1.xpose.msra.mxu0 0.0
    %2333 = vmatprep.subr.mxu0 0.0
    %2334 = vmatpush1.xpose.msra.mxu0 %v2301
    %2335 = vmatprep.subr.mxu0 0.0
    %2336 = vmatpush2.xpose.msra.mxu0 0.0
    %2337 = vmatprep.subr.mxu0 0.0
    %2338 = vmatpush2.xpose.msra.mxu0 0.0
    %2339 = vmatprep.subr.mxu0 0.0
    %2340 = vmatpush2.xpose.msra.mxu0 0.0
    %2341 = vmatprep.subr.mxu0 0.0
    %2342 = vmatpush2.xpose.msra.mxu0 0.0
    %2343 = vmatprep.subr.mxu0 0.0
    %2344 = vmatpush2.xpose.msra.mxu0 0.0
    %2345 = vmatprep.subr.mxu0 0.0
    %2346 = vmatpush2.xpose.msra.mxu0 0.0
    %2347 = vmatprep.subr.mxu0 0.0
    %2348 = vmatpush2.xpose.msra.mxu0 0.0
    %2349 = vmatprep.subr.mxu0 0.0
    %2350 = vmatpush2.xpose.msra.mxu0 0.0
    %2351 = vmatprep.subr.mxu0 0.0
    %2352 = vmatpush2.xpose.msra.mxu0 0.0
    %2353 = vmatprep.subr.mxu0 0.0
    %2354 = vmatpush2.xpose.msra.mxu0 0.0
    %2355 = vmatprep.subr.mxu0 0.0
    %2356 = vmatpush2.xpose.msra.mxu0 0.0
    %2357 = vmatprep.subr.mxu0 0.0
    %2358 = vmatpush2.xpose.msra.mxu0 0.0
    %2359 = vmatprep.subr.mxu0 0.0
    %2360 = vmatpush2.xpose.msra.mxu0 0.0
    %2361 = vmatprep.subr.mxu0 0.0
    %2362 = vmatpush2.xpose.msra.mxu0 0.0
    %2363 = vmatprep.subr.mxu0 0.0
    %2364 = vmatpush2.xpose.msra.mxu0 0.0
    %2365 = vmatprep.subr.mxu0 0.0
    %2366 = vmatpush2.xpose.msra.mxu0 0.0
    %2367 = vmatprep.mubr.f32.mxu0 0.0
    %2368 = vmatmul.mubr.f32.gmra.mxu0 %v2299
    %v2369 = vpop.f32.mrf.mxu0
    %v2370 = vadd.f32 %v2161, %v2369
    %v2371 = vpop.f32.mrf.mxu0
    %2372 = vdwg.mxu0
    %2374 = vrot.lane.b32.xlu0 %v2290, 96
    %v2375 = vpop.permute.xlu0 %2374
    %v2377 = vsel %vm335, %v2294, 0
    %v2379 = vsel %vm335, %v2375, 0
    %2381 = vmatprep.subr.mxu0 0.0
    %2382 = vmatpush1.xpose.msra.mxu0 0.0
    %2383 = vmatprep.subr.mxu0 0.0
    %2384 = vmatpush1.xpose.msra.mxu0 0.0
    %2385 = vmatprep.subr.mxu0 0.0
    %2386 = vmatpush1.xpose.msra.mxu0 0.0
    %2387 = vmatprep.subr.mxu0 0.0
    %2388 = vmatpush1.xpose.msra.mxu0 0.0
    %2389 = vmatprep.subr.mxu0 0.0
    %2390 = vmatpush1.xpose.msra.mxu0 0.0
    %2391 = vmatprep.subr.mxu0 0.0
    %2392 = vmatpush1.xpose.msra.mxu0 0.0
    %2393 = vmatprep.subr.mxu0 0.0
    %2394 = vmatpush1.xpose.msra.mxu0 0.0
    %2395 = vmatprep.subr.mxu0 0.0
    %2396 = vmatpush1.xpose.msra.mxu0 0.0
    %2397 = vmatprep.subr.mxu0 0.0
    %2398 = vmatpush1.xpose.msra.mxu0 0.0
    %2399 = vmatprep.subr.mxu0 0.0
    %2400 = vmatpush1.xpose.msra.mxu0 0.0
    %2401 = vmatprep.subr.mxu0 0.0
    %2402 = vmatpush1.xpose.msra.mxu0 0.0
    %2403 = vmatprep.subr.mxu0 0.0
    %2404 = vmatpush1.xpose.msra.mxu0 0.0
    %2405 = vmatprep.subr.mxu0 0.0
    %2406 = vmatpush1.xpose.msra.mxu0 0.0
    %2407 = vmatprep.subr.mxu0 0.0
    %2408 = vmatpush1.xpose.msra.mxu0 0.0
    %2409 = vmatprep.subr.mxu0 0.0
    %2410 = vmatpush1.xpose.msra.mxu0 0.0
    %2411 = vmatprep.subr.mxu0 0.0
    %2412 = vmatpush1.xpose.msra.mxu0 %v2379
    %2413 = vmatprep.subr.mxu0 0.0
    %2414 = vmatpush2.xpose.msra.mxu0 0.0
    %2415 = vmatprep.subr.mxu0 0.0
    %2416 = vmatpush2.xpose.msra.mxu0 0.0
    %2417 = vmatprep.subr.mxu0 0.0
    %2418 = vmatpush2.xpose.msra.mxu0 0.0
    %2419 = vmatprep.subr.mxu0 0.0
    %2420 = vmatpush2.xpose.msra.mxu0 0.0
    %2421 = vmatprep.subr.mxu0 0.0
    %2422 = vmatpush2.xpose.msra.mxu0 0.0
    %2423 = vmatprep.subr.mxu0 0.0
    %2424 = vmatpush2.xpose.msra.mxu0 0.0
    %2425 = vmatprep.subr.mxu0 0.0
    %2426 = vmatpush2.xpose.msra.mxu0 0.0
    %2427 = vmatprep.subr.mxu0 0.0
    %2428 = vmatpush2.xpose.msra.mxu0 0.0
    %2429 = vmatprep.subr.mxu0 0.0
    %2430 = vmatpush2.xpose.msra.mxu0 0.0
    %2431 = vmatprep.subr.mxu0 0.0
    %2432 = vmatpush2.xpose.msra.mxu0 0.0
    %2433 = vmatprep.subr.mxu0 0.0
    %2434 = vmatpush2.xpose.msra.mxu0 0.0
    %2435 = vmatprep.subr.mxu0 0.0
    %2436 = vmatpush2.xpose.msra.mxu0 0.0
    %2437 = vmatprep.subr.mxu0 0.0
    %2438 = vmatpush2.xpose.msra.mxu0 0.0
    %2439 = vmatprep.subr.mxu0 0.0
    %2440 = vmatpush2.xpose.msra.mxu0 0.0
    %2441 = vmatprep.subr.mxu0 0.0
    %2442 = vmatpush2.xpose.msra.mxu0 0.0
    %2443 = vmatprep.subr.mxu0 0.0
    %2444 = vmatpush2.xpose.msra.mxu0 0.0
    %2445 = vmatprep.mubr.f32.mxu0 0.0
    %2446 = vmatmul.mubr.f32.gmra.mxu0 %v2377
    %v2447 = vpop.f32.mrf.mxu0
    %v2448 = vadd.f32 %v2161, %v2447
    %v2449 = vpop.f32.mrf.mxu0
    %2450 = vdwg.mxu0
    %v2451 = vsel %vm335, %v2370, -inf
    %2452 = vmax.xlane.f32.xlu0 %v2451
    %v2453 = vpop.xlane.xlu0 %2452
    %v2454 = vsel %vm335, %v2448, -inf
    %2455 = vmax.xlane.f32.xlu0 %v2454
    %v2456 = vpop.xlane.xlu0 %2455
    %v2457 = vsub.f32 %v2370, %v2453
    %v2458 = vsub.f32 %v2448, %v2456
    %v2459 = vmul.f32 %v2457, 1.442695
    %v2460 = vpow.pop %v2459
    %v2461 = vmul.f32 %v2458, 1.442695
    %v2462 = vpow.pop %v2461
    %v2463 = vsel %vm335, %v2460, 0.0
    %2464 = vadd.xlane.f32.xlu0 %v2463
    %v2465 = vpop.xlane.xlu0 %2464
    %v2466 = vsel %vm335, %v2462, 0.0
    %2467 = vadd.xlane.f32.xlu0 %v2466
    %v2468 = vpop.xlane.xlu0 %2467
    %v2469 = vrcp.pop %v2465
    %v2470 = vrcp.pop %v2468
    %v2471 = vmul.f32 %v2460, %v2469
    %v2472 = vmul.f32 %v2462, %v2470
    %2473 = vrot.lane.b32.xlu0 %v2285, 64
    %v2474 = vpop.permute.xlu0 %2473
    %v2477 = vsel %vm335, %v2471, 0
    %2479 = vmatprep.subr.mxu0 0.0
    %2480 = vmatpush1.msra.mxu0 0.0
    %2481 = vmatprep.subr.mxu0 0.0
    %2482 = vmatpush1.msra.mxu0 0.0
    %2483 = vmatprep.subr.mxu0 0.0
    %2484 = vmatpush1.msra.mxu0 0.0
    %2485 = vmatprep.subr.mxu0 0.0
    %2486 = vmatpush1.msra.mxu0 0.0
    %2487 = vmatprep.subr.mxu0 0.0
    %2488 = vmatpush1.msra.mxu0 0.0
    %2489 = vmatprep.subr.mxu0 0.0
    %2490 = vmatpush1.msra.mxu0 0.0
    %2491 = vmatprep.subr.mxu0 0.0
    %2492 = vmatpush1.msra.mxu0 0.0
    %2493 = vmatprep.subr.mxu0 0.0
    %2494 = vmatpush1.msra.mxu0 0.0
    %2495 = vmatprep.subr.mxu0 0.0
    %2496 = vmatpush1.msra.mxu0 0.0
    %2497 = vmatprep.subr.mxu0 0.0
    %2498 = vmatpush1.msra.mxu0 0.0
    %2499 = vmatprep.subr.mxu0 0.0
    %2500 = vmatpush1.msra.mxu0 0.0
    %2501 = vmatprep.subr.mxu0 0.0
    %2502 = vmatpush1.msra.mxu0 0.0
    %2503 = vmatprep.subr.mxu0 0.0
    %2504 = vmatpush1.msra.mxu0 0.0
    %2505 = vmatprep.subr.mxu0 0.0
    %2506 = vmatpush1.msra.mxu0 0.0
    %2507 = vmatprep.subr.mxu0 0.0
    %2508 = vmatpush1.msra.mxu0 0.0
    %2509 = vmatprep.subr.mxu0 0.0
    %2510 = vmatpush1.msra.mxu0 %v2474
    %2511 = vmatprep.subr.mxu0 0.0
    %2512 = vmatpush2.msra.mxu0 0.0
    %2513 = vmatprep.subr.mxu0 0.0
    %2514 = vmatpush2.msra.mxu0 0.0
    %2515 = vmatprep.subr.mxu0 0.0
    %2516 = vmatpush2.msra.mxu0 0.0
    %2517 = vmatprep.subr.mxu0 0.0
    %2518 = vmatpush2.msra.mxu0 0.0
    %2519 = vmatprep.subr.mxu0 0.0
    %2520 = vmatpush2.msra.mxu0 0.0
    %2521 = vmatprep.subr.mxu0 0.0
    %2522 = vmatpush2.msra.mxu0 0.0
    %2523 = vmatprep.subr.mxu0 0.0
    %2524 = vmatpush2.msra.mxu0 0.0
    %2525 = vmatprep.subr.mxu0 0.0
    %2526 = vmatpush2.msra.mxu0 0.0
    %2527 = vmatprep.subr.mxu0 0.0
    %2528 = vmatpush2.msra.mxu0 0.0
    %2529 = vmatprep.subr.mxu0 0.0
    %2530 = vmatpush2.msra.mxu0 0.0
    %2531 = vmatprep.subr.mxu0 0.0
    %2532 = vmatpush2.msra.mxu0 0.0
    %2533 = vmatprep.subr.mxu0 0.0
    %2534 = vmatpush2.msra.mxu0 0.0
    %2535 = vmatprep.subr.mxu0 0.0
    %2536 = vmatpush2.msra.mxu0 0.0
    %2537 = vmatprep.subr.mxu0 0.0
    %2538 = vmatpush2.msra.mxu0 0.0
    %2539 = vmatprep.subr.mxu0 0.0
    %2540 = vmatpush2.msra.mxu0 0.0
    %2541 = vmatprep.subr.mxu0 0.0
    %2542 = vmatpush2.msra.mxu0 0.0
    %2543 = vmatprep.mubr.f32.mxu0 0.0
    %2544 = vmatmul.mubr.f32.gmra.mxu0 %v2477
    %v2545 = vpop.f32.mrf.mxu0
    %v2546 = vadd.f32 0.0, %v2545
    %v2547 = vpop.f32.mrf.mxu0
    %2548 = vdwg.mxu0
    %2549 = vrot.lane.b32.xlu0 %v2290, 64
    %v2550 = vpop.permute.xlu0 %2549
    %v2553 = vsel %vm335, %v2472, 0
    %2555 = vmatprep.subr.mxu0 0.0
    %2556 = vmatpush1.msra.mxu0 0.0
    %2557 = vmatprep.subr.mxu0 0.0
    %2558 = vmatpush1.msra.mxu0 0.0
    %2559 = vmatprep.subr.mxu0 0.0
    %2560 = vmatpush1.msra.mxu0 0.0
    %2561 = vmatprep.subr.mxu0 0.0
    %2562 = vmatpush1.msra.mxu0 0.0
    %2563 = vmatprep.subr.mxu0 0.0
    %2564 = vmatpush1.msra.mxu0 0.0
    %2565 = vmatprep.subr.mxu0 0.0
    %2566 = vmatpush1.msra.mxu0 0.0
    %2567 = vmatprep.subr.mxu0 0.0
    %2568 = vmatpush1.msra.mxu0 0.0
    %2569 = vmatprep.subr.mxu0 0.0
    %2570 = vmatpush1.msra.mxu0 0.0
    %2571 = vmatprep.subr.mxu0 0.0
    %2572 = vmatpush1.msra.mxu0 0.0
    %2573 = vmatprep.subr.mxu0 0.0
    %2574 = vmatpush1.msra.mxu0 0.0
    %2575 = vmatprep.subr.mxu0 0.0
    %2576 = vmatpush1.msra.mxu0 0.0
    %2577 = vmatprep.subr.mxu0 0.0
    %2578 = vmatpush1.msra.mxu0 0.0
    %2579 = vmatprep.subr.mxu0 0.0
    %2580 = vmatpush1.msra.mxu0 0.0
    %2581 = vmatprep.subr.mxu0 0.0
    %2582 = vmatpush1.msra.mxu0 0.0
    %2583 = vmatprep.subr.mxu0 0.0
    %2584 = vmatpush1.msra.mxu0 0.0
    %2585 = vmatprep.subr.mxu0 0.0
    %2586 = vmatpush1.msra.mxu0 %v2550
    %2587 = vmatprep.subr.mxu0 0.0
    %2588 = vmatpush2.msra.mxu0 0.0
    %2589 = vmatprep.subr.mxu0 0.0
    %2590 = vmatpush2.msra.mxu0 0.0
    %2591 = vmatprep.subr.mxu0 0.0
    %2592 = vmatpush2.msra.mxu0 0.0
    %2593 = vmatprep.subr.mxu0 0.0
    %2594 = vmatpush2.msra.mxu0 0.0
    %2595 = vmatprep.subr.mxu0 0.0
    %2596 = vmatpush2.msra.mxu0 0.0
    %2597 = vmatprep.subr.mxu0 0.0
    %2598 = vmatpush2.msra.mxu0 0.0
    %2599 = vmatprep.subr.mxu0 0.0
    %2600 = vmatpush2.msra.mxu0 0.0
    %2601 = vmatprep.subr.mxu0 0.0
    %2602 = vmatpush2.msra.mxu0 0.0
    %2603 = vmatprep.subr.mxu0 0.0
    %2604 = vmatpush2.msra.mxu0 0.0
    %2605 = vmatprep.subr.mxu0 0.0
    %2606 = vmatpush2.msra.mxu0 0.0
    %2607 = vmatprep.subr.mxu0 0.0
    %2608 = vmatpush2.msra.mxu0 0.0
    %2609 = vmatprep.subr.mxu0 0.0
    %2610 = vmatpush2.msra.mxu0 0.0
    %2611 = vmatprep.subr.mxu0 0.0
    %2612 = vmatpush2.msra.mxu0 0.0
    %2613 = vmatprep.subr.mxu0 0.0
    %2614 = vmatpush2.msra.mxu0 0.0
    %2615 = vmatprep.subr.mxu0 0.0
    %2616 = vmatpush2.msra.mxu0 0.0
    %2617 = vmatprep.subr.mxu0 0.0
    %2618 = vmatpush2.msra.mxu0 0.0
    %2619 = vmatprep.mubr.f32.mxu0 0.0
    %2620 = vmatmul.mubr.f32.gmra.mxu0 %v2553
    %v2621 = vpop.f32.mrf.mxu0
    %v2622 = vadd.f32 0.0, %v2621
    %v2623 = vpop.f32.mrf.mxu0
    %2624 = vdwg.mxu0
    %2625 = vrot.lane.b32.xlu0 %v2293, 120
    %v2626 = vpop.permute.xlu0 %2625
    %2627 = vrot.lane.b32.xlu0 %v2285, 88
    %v2628 = vpop.permute.xlu0 %2627
    %v2629 = vsel %vm335, %v2626, 0
    %v2631 = vsel %vm335, %v2628, 0
    %2633 = vmatprep.subr.mxu0 0.0
    %2634 = vmatpush1.xpose.msra.mxu0 0.0
    %2635 = vmatprep.subr.mxu0 0.0
    %2636 = vmatpush1.xpose.msra.mxu0 0.0
    %2637 = vmatprep.subr.mxu0 0.0
    %2638 = vmatpush1.xpose.msra.mxu0 0.0
    %2639 = vmatprep.subr.mxu0 0.0
    %2640 = vmatpush1.xpose.msra.mxu0 0.0
    %2641 = vmatprep.subr.mxu0 0.0
    %2642 = vmatpush1.xpose.msra.mxu0 0.0
    %2643 = vmatprep.subr.mxu0 0.0
    %2644 = vmatpush1.xpose.msra.mxu0 0.0
    %2645 = vmatprep.subr.mxu0 0.0
    %2646 = vmatpush1.xpose.msra.mxu0 0.0
    %2647 = vmatprep.subr.mxu0 0.0
    %2648 = vmatpush1.xpose.msra.mxu0 0.0
    %2649 = vmatprep.subr.mxu0 0.0
    %2650 = vmatpush1.xpose.msra.mxu0 0.0
    %2651 = vmatprep.subr.mxu0 0.0
    %2652 = vmatpush1.xpose.msra.mxu0 0.0
    %2653 = vmatprep.subr.mxu0 0.0
    %2654 = vmatpush1.xpose.msra.mxu0 0.0
    %2655 = vmatprep.subr.mxu0 0.0
    %2656 = vmatpush1.xpose.msra.mxu0 0.0
    %2657 = vmatprep.subr.mxu0 0.0
    %2658 = vmatpush1.xpose.msra.mxu0 0.0
    %2659 = vmatprep.subr.mxu0 0.0
    %2660 = vmatpush1.xpose.msra.mxu0 0.0
    %2661 = vmatprep.subr.mxu0 0.0
    %2662 = vmatpush1.xpose.msra.mxu0 0.0
    %2663 = vmatprep.subr.mxu0 0.0
    %2664 = vmatpush1.xpose.msra.mxu0 %v2631
    %2665 = vmatprep.subr.mxu0 0.0
    %2666 = vmatpush2.xpose.msra.mxu0 0.0
    %2667 = vmatprep.subr.mxu0 0.0
    %2668 = vmatpush2.xpose.msra.mxu0 0.0
    %2669 = vmatprep.subr.mxu0 0.0
    %2670 = vmatpush2.xpose.msra.mxu0 0.0
    %2671 = vmatprep.subr.mxu0 0.0
    %2672 = vmatpush2.xpose.msra.mxu0 0.0
    %2673 = vmatprep.subr.mxu0 0.0
    %2674 = vmatpush2.xpose.msra.mxu0 0.0
    %2675 = vmatprep.subr.mxu0 0.0
    %2676 = vmatpush2.xpose.msra.mxu0 0.0
    %2677 = vmatprep.subr.mxu0 0.0
    %2678 = vmatpush2.xpose.msra.mxu0 0.0
    %2679 = vmatprep.subr.mxu0 0.0
    %2680 = vmatpush2.xpose.msra.mxu0 0.0
    %2681 = vmatprep.subr.mxu0 0.0
    %2682 = vmatpush2.xpose.msra.mxu0 0.0
    %2683 = vmatprep.subr.mxu0 0.0
    %2684 = vmatpush2.xpose.msra.mxu0 0.0
    %2685 = vmatprep.subr.mxu0 0.0
    %2686 = vmatpush2.xpose.msra.mxu0 0.0
    %2687 = vmatprep.subr.mxu0 0.0
    %2688 = vmatpush2.xpose.msra.mxu0 0.0
    %2689 = vmatprep.subr.mxu0 0.0
    %2690 = vmatpush2.xpose.msra.mxu0 0.0
    %2691 = vmatprep.subr.mxu0 0.0
    %2692 = vmatpush2.xpose.msra.mxu0 0.0
    %2693 = vmatprep.subr.mxu0 0.0
    %2694 = vmatpush2.xpose.msra.mxu0 0.0
    %2695 = vmatprep.subr.mxu0 0.0
    %2696 = vmatpush2.xpose.msra.mxu0 0.0
    %2697 = vmatprep.mubr.f32.mxu0 0.0
    %2698 = vmatmul.mubr.f32.gmra.mxu0 %v2629
    %v2699 = vpop.f32.mrf.mxu0
    %v2700 = vadd.f32 %v2161, %v2699
    %v2701 = vpop.f32.mrf.mxu0
    %2702 = vdwg.mxu0
    %2703 = vrot.lane.b32.xlu0 %v2294, 120
    %v2704 = vpop.permute.xlu0 %2703
    %2705 = vrot.lane.b32.xlu0 %v2290, 88
    %v2706 = vpop.permute.xlu0 %2705
    %v2707 = vsel %vm335, %v2704, 0
    %v2709 = vsel %vm335, %v2706, 0
    %2711 = vmatprep.subr.mxu0 0.0
    %2712 = vmatpush1.xpose.msra.mxu0 0.0
    %2713 = vmatprep.subr.mxu0 0.0
    %2714 = vmatpush1.xpose.msra.mxu0 0.0
    %2715 = vmatprep.subr.mxu0 0.0
    %2716 = vmatpush1.xpose.msra.mxu0 0.0
    %2717 = vmatprep.subr.mxu0 0.0
    %2718 = vmatpush1.xpose.msra.mxu0 0.0
    %2719 = vmatprep.subr.mxu0 0.0
    %2720 = vmatpush1.xpose.msra.mxu0 0.0
    %2721 = vmatprep.subr.mxu0 0.0
    %2722 = vmatpush1.xpose.msra.mxu0 0.0
    %2723 = vmatprep.subr.mxu0 0.0
    %2724 = vmatpush1.xpose.msra.mxu0 0.0
    %2725 = vmatprep.subr.mxu0 0.0
    %2726 = vmatpush1.xpose.msra.mxu0 0.0
    %2727 = vmatprep.subr.mxu0 0.0
    %2728 = vmatpush1.xpose.msra.mxu0 0.0
    %2729 = vmatprep.subr.mxu0 0.0
    %2730 = vmatpush1.xpose.msra.mxu0 0.0
    %2731 = vmatprep.subr.mxu0 0.0
    %2732 = vmatpush1.xpose.msra.mxu0 0.0
    %2733 = vmatprep.subr.mxu0 0.0
    %2734 = vmatpush1.xpose.msra.mxu0 0.0
    %2735 = vmatprep.subr.mxu0 0.0
    %2736 = vmatpush1.xpose.msra.mxu0 0.0
    %2737 = vmatprep.subr.mxu0 0.0
    %2738 = vmatpush1.xpose.msra.mxu0 0.0
    %2739 = vmatprep.subr.mxu0 0.0
    %2740 = vmatpush1.xpose.msra.mxu0 0.0
    %2741 = vmatprep.subr.mxu0 0.0
    %2742 = vmatpush1.xpose.msra.mxu0 %v2709
    %2743 = vmatprep.subr.mxu0 0.0
    %2744 = vmatpush2.xpose.msra.mxu0 0.0
    %2745 = vmatprep.subr.mxu0 0.0
    %2746 = vmatpush2.xpose.msra.mxu0 0.0
    %2747 = vmatprep.subr.mxu0 0.0
    %2748 = vmatpush2.xpose.msra.mxu0 0.0
    %2749 = vmatprep.subr.mxu0 0.0
    %2750 = vmatpush2.xpose.msra.mxu0 0.0
    %2751 = vmatprep.subr.mxu0 0.0
    %2752 = vmatpush2.xpose.msra.mxu0 0.0
    %2753 = vmatprep.subr.mxu0 0.0
    %2754 = vmatpush2.xpose.msra.mxu0 0.0
    %2755 = vmatprep.subr.mxu0 0.0
    %2756 = vmatpush2.xpose.msra.mxu0 0.0
    %2757 = vmatprep.subr.mxu0 0.0
    %2758 = vmatpush2.xpose.msra.mxu0 0.0
    %2759 = vmatprep.subr.mxu0 0.0
    %2760 = vmatpush2.xpose.msra.mxu0 0.0
    %2761 = vmatprep.subr.mxu0 0.0
    %2762 = vmatpush2.xpose.msra.mxu0 0.0
    %2763 = vmatprep.subr.mxu0 0.0
    %2764 = vmatpush2.xpose.msra.mxu0 0.0
    %2765 = vmatprep.subr.mxu0 0.0
    %2766 = vmatpush2.xpose.msra.mxu0 0.0
    %2767 = vmatprep.subr.mxu0 0.0
    %2768 = vmatpush2.xpose.msra.mxu0 0.0
    %2769 = vmatprep.subr.mxu0 0.0
    %2770 = vmatpush2.xpose.msra.mxu0 0.0
    %2771 = vmatprep.subr.mxu0 0.0
    %2772 = vmatpush2.xpose.msra.mxu0 0.0
    %2773 = vmatprep.subr.mxu0 0.0
    %2774 = vmatpush2.xpose.msra.mxu0 0.0
    %2775 = vmatprep.mubr.f32.mxu0 0.0
    %2776 = vmatmul.mubr.f32.gmra.mxu0 %v2707
    %v2777 = vpop.f32.mrf.mxu0
    %v2778 = vadd.f32 %v2161, %v2777
    %v2779 = vpop.f32.mrf.mxu0
    %2780 = vdwg.mxu0
    %v2781 = vsel %vm335, %v2700, -inf
    %2782 = vmax.xlane.f32.xlu0 %v2781
    %v2783 = vpop.xlane.xlu0 %2782
    %v2784 = vsel %vm335, %v2778, -inf
    %2785 = vmax.xlane.f32.xlu0 %v2784
    %v2786 = vpop.xlane.xlu0 %2785
    %v2787 = vsub.f32 %v2700, %v2783
    %v2788 = vsub.f32 %v2778, %v2786
    %v2789 = vmul.f32 %v2787, 1.442695
    %v2790 = vpow.pop %v2789
    %v2791 = vmul.f32 %v2788, 1.442695
    %v2792 = vpow.pop %v2791
    %v2793 = vsel %vm335, %v2790, 0.0
    %2794 = vadd.xlane.f32.xlu0 %v2793
    %v2795 = vpop.xlane.xlu0 %2794
    %v2796 = vsel %vm335, %v2792, 0.0
    %2797 = vadd.xlane.f32.xlu0 %v2796
    %v2798 = vpop.xlane.xlu0 %2797
    %v2799 = vrcp.pop %v2795
    %v2800 = vrcp.pop %v2798
    %v2801 = vmul.f32 %v2790, %v2799
    %v2802 = vmul.f32 %v2792, %v2800
    %2803 = vrot.lane.b32.xlu0 %v2285, 56
    %v2804 = vpop.permute.xlu0 %2803
    %v2807 = vsel %vm335, %v2801, 0
    %2809 = vmatprep.subr.mxu0 0.0
    %2810 = vmatpush1.msra.mxu0 0.0
    %2811 = vmatprep.subr.mxu0 0.0
    %2812 = vmatpush1.msra.mxu0 0.0
    %2813 = vmatprep.subr.mxu0 0.0
    %2814 = vmatpush1.msra.mxu0 0.0
    %2815 = vmatprep.subr.mxu0 0.0
    %2816 = vmatpush1.msra.mxu0 0.0
    %2817 = vmatprep.subr.mxu0 0.0
    %2818 = vmatpush1.msra.mxu0 0.0
    %2819 = vmatprep.subr.mxu0 0.0
    %2820 = vmatpush1.msra.mxu0 0.0
    %2821 = vmatprep.subr.mxu0 0.0
    %2822 = vmatpush1.msra.mxu0 0.0
    %2823 = vmatprep.subr.mxu0 0.0
    %2824 = vmatpush1.msra.mxu0 0.0
    %2825 = vmatprep.subr.mxu0 0.0
    %2826 = vmatpush1.msra.mxu0 0.0
    %2827 = vmatprep.subr.mxu0 0.0
    %2828 = vmatpush1.msra.mxu0 0.0
    %2829 = vmatprep.subr.mxu0 0.0
    %2830 = vmatpush1.msra.mxu0 0.0
    %2831 = vmatprep.subr.mxu0 0.0
    %2832 = vmatpush1.msra.mxu0 0.0
    %2833 = vmatprep.subr.mxu0 0.0
    %2834 = vmatpush1.msra.mxu0 0.0
    %2835 = vmatprep.subr.mxu0 0.0
    %2836 = vmatpush1.msra.mxu0 0.0
    %2837 = vmatprep.subr.mxu0 0.0
    %2838 = vmatpush1.msra.mxu0 0.0
    %2839 = vmatprep.subr.mxu0 0.0
    %2840 = vmatpush1.msra.mxu0 %v2804
    %2841 = vmatprep.subr.mxu0 0.0
    %2842 = vmatpush2.msra.mxu0 0.0
    %2843 = vmatprep.subr.mxu0 0.0
    %2844 = vmatpush2.msra.mxu0 0.0
    %2845 = vmatprep.subr.mxu0 0.0
    %2846 = vmatpush2.msra.mxu0 0.0
    %2847 = vmatprep.subr.mxu0 0.0
    %2848 = vmatpush2.msra.mxu0 0.0
    %2849 = vmatprep.subr.mxu0 0.0
    %2850 = vmatpush2.msra.mxu0 0.0
    %2851 = vmatprep.subr.mxu0 0.0
    %2852 = vmatpush2.msra.mxu0 0.0
    %2853 = vmatprep.subr.mxu0 0.0
    %2854 = vmatpush2.msra.mxu0 0.0
    %2855 = vmatprep.subr.mxu0 0.0
    %2856 = vmatpush2.msra.mxu0 0.0
    %2857 = vmatprep.subr.mxu0 0.0
    %2858 = vmatpush2.msra.mxu0 0.0
    %2859 = vmatprep.subr.mxu0 0.0
    %2860 = vmatpush2.msra.mxu0 0.0
    %2861 = vmatprep.subr.mxu0 0.0
    %2862 = vmatpush2.msra.mxu0 0.0
    %2863 = vmatprep.subr.mxu0 0.0
    %2864 = vmatpush2.msra.mxu0 0.0
    %2865 = vmatprep.subr.mxu0 0.0
    %2866 = vmatpush2.msra.mxu0 0.0
    %2867 = vmatprep.subr.mxu0 0.0
    %2868 = vmatpush2.msra.mxu0 0.0
    %2869 = vmatprep.subr.mxu0 0.0
    %2870 = vmatpush2.msra.mxu0 0.0
    %2871 = vmatprep.subr.mxu0 0.0
    %2872 = vmatpush2.msra.mxu0 0.0
    %2873 = vmatprep.mubr.f32.mxu0 0.0
    %2874 = vmatmul.mubr.f32.gmra.mxu0 %v2807
    %v2875 = vpop.f32.mrf.mxu0
    %v2876 = vadd.f32 0.0, %v2875
    %v2877 = vpop.f32.mrf.mxu0
    %2878 = vdwg.mxu0
    %2879 = vrot.lane.b32.xlu0 %v2290, 56
    %v2880 = vpop.permute.xlu0 %2879
    %v2883 = vsel %vm335, %v2802, 0
    %2885 = vmatprep.subr.mxu0 0.0
    %2886 = vmatpush1.msra.mxu0 0.0
    %2887 = vmatprep.subr.mxu0 0.0
    %2888 = vmatpush1.msra.mxu0 0.0
    %2889 = vmatprep.subr.mxu0 0.0
    %2890 = vmatpush1.msra.mxu0 0.0
    %2891 = vmatprep.subr.mxu0 0.0
    %2892 = vmatpush1.msra.mxu0 0.0
    %2893 = vmatprep.subr.mxu0 0.0
    %2894 = vmatpush1.msra.mxu0 0.0
    %2895 = vmatprep.subr.mxu0 0.0
    %2896 = vmatpush1.msra.mxu0 0.0
    %2897 = vmatprep.subr.mxu0 0.0
    %2898 = vmatpush1.msra.mxu0 0.0
    %2899 = vmatprep.subr.mxu0 0.0
    %2900 = vmatpush1.msra.mxu0 0.0
    %2901 = vmatprep.subr.mxu0 0.0
    %2902 = vmatpush1.msra.mxu0 0.0
    %2903 = vmatprep.subr.mxu0 0.0
    %2904 = vmatpush1.msra.mxu0 0.0
    %2905 = vmatprep.subr.mxu0 0.0
    %2906 = vmatpush1.msra.mxu0 0.0
    %2907 = vmatprep.subr.mxu0 0.0
    %2908 = vmatpush1.msra.mxu0 0.0
    %2909 = vmatprep.subr.mxu0 0.0
    %2910 = vmatpush1.msra.mxu0 0.0
    %2911 = vmatprep.subr.mxu0 0.0
    %2912 = vmatpush1.msra.mxu0 0.0
    %2913 = vmatprep.subr.mxu0 0.0
    %2914 = vmatpush1.msra.mxu0 0.0
    %2915 = vmatprep.subr.mxu0 0.0
    %2916 = vmatpush1.msra.mxu0 %v2880
    %2917 = vmatprep.subr.mxu0 0.0
    %2918 = vmatpush2.msra.mxu0 0.0
    %2919 = vmatprep.subr.mxu0 0.0
    %2920 = vmatpush2.msra.mxu0 0.0
    %2921 = vmatprep.subr.mxu0 0.0
    %2922 = vmatpush2.msra.mxu0 0.0
    %2923 = vmatprep.subr.mxu0 0.0
    %2924 = vmatpush2.msra.mxu0 0.0
    %2925 = vmatprep.subr.mxu0 0.0
    %2926 = vmatpush2.msra.mxu0 0.0
    %2927 = vmatprep.subr.mxu0 0.0
    %2928 = vmatpush2.msra.mxu0 0.0
    %2929 = vmatprep.subr.mxu0 0.0
    %2930 = vmatpush2.msra.mxu0 0.0
    %2931 = vmatprep.subr.mxu0 0.0
    %2932 = vmatpush2.msra.mxu0 0.0
    %2933 = vmatprep.subr.mxu0 0.0
    %2934 = vmatpush2.msra.mxu0 0.0
    %2935 = vmatprep.subr.mxu0 0.0
    %2936 = vmatpush2.msra.mxu0 0.0
    %2937 = vmatprep.subr.mxu0 0.0
    %2938 = vmatpush2.msra.mxu0 0.0
    %2939 = vmatprep.subr.mxu0 0.0
    %2940 = vmatpush2.msra.mxu0 0.0
    %2941 = vmatprep.subr.mxu0 0.0
    %2942 = vmatpush2.msra.mxu0 0.0
    %2943 = vmatprep.subr.mxu0 0.0
    %2944 = vmatpush2.msra.mxu0 0.0
    %2945 = vmatprep.subr.mxu0 0.0
    %2946 = vmatpush2.msra.mxu0 0.0
    %2947 = vmatprep.subr.mxu0 0.0
    %2948 = vmatpush2.msra.mxu0 0.0
    %2949 = vmatprep.mubr.f32.mxu0 0.0
    %2950 = vmatmul.mubr.f32.gmra.mxu0 %v2883
    %v2951 = vpop.f32.mrf.mxu0
    %v2952 = vadd.f32 0.0, %v2951
    %v2953 = vpop.f32.mrf.mxu0
    %2954 = vdwg.mxu0
    %2955 = vrot.lane.b32.xlu0 %v2293, 112
    %v2956 = vpop.permute.xlu0 %2955
    %2957 = vrot.lane.b32.xlu0 %v2285, 80
    %v2958 = vpop.permute.xlu0 %2957
    %v2959 = vsel %vm335, %v2956, 0
    %v2961 = vsel %vm335, %v2958, 0
    %2963 = vmatprep.subr.mxu0 0.0
    %2964 = vmatpush1.xpose.msra.mxu0 0.0
    %2965 = vmatprep.subr.mxu0 0.0
    %2966 = vmatpush1.xpose.msra.mxu0 0.0
    %2967 = vmatprep.subr.mxu0 0.0
    %2968 = vmatpush1.xpose.msra.mxu0 0.0
    %2969 = vmatprep.subr.mxu0 0.0
    %2970 = vmatpush1.xpose.msra.mxu0 0.0
    %2971 = vmatprep.subr.mxu0 0.0
    %2972 = vmatpush1.xpose.msra.mxu0 0.0
    %2973 = vmatprep.subr.mxu0 0.0
    %2974 = vmatpush1.xpose.msra.mxu0 0.0
    %2975 = vmatprep.subr.mxu0 0.0
    %2976 = vmatpush1.xpose.msra.mxu0 0.0
    %2977 = vmatprep.subr.mxu0 0.0
    %2978 = vmatpush1.xpose.msra.mxu0 0.0
    %2979 = vmatprep.subr.mxu0 0.0
    %2980 = vmatpush1.xpose.msra.mxu0 0.0
    %2981 = vmatprep.subr.mxu0 0.0
    %2982 = vmatpush1.xpose.msra.mxu0 0.0
    %2983 = vmatprep.subr.mxu0 0.0
    %2984 = vmatpush1.xpose.msra.mxu0 0.0
    %2985 = vmatprep.subr.mxu0 0.0
    %2986 = vmatpush1.xpose.msra.mxu0 0.0
    %2987 = vmatprep.subr.mxu0 0.0
    %2988 = vmatpush1.xpose.msra.mxu0 0.0
    %2989 = vmatprep.subr.mxu0 0.0
    %2990 = vmatpush1.xpose.msra.mxu0 0.0
    %2991 = vmatprep.subr.mxu0 0.0
    %2992 = vmatpush1.xpose.msra.mxu0 0.0
    %2993 = vmatprep.subr.mxu0 0.0
    %2994 = vmatpush1.xpose.msra.mxu0 %v2961
    %2995 = vmatprep.subr.mxu0 0.0
    %2996 = vmatpush2.xpose.msra.mxu0 0.0
    %2997 = vmatprep.subr.mxu0 0.0
    %2998 = vmatpush2.xpose.msra.mxu0 0.0
    %2999 = vmatprep.subr.mxu0 0.0
    %3000 = vmatpush2.xpose.msra.mxu0 0.0
    %3001 = vmatprep.subr.mxu0 0.0
    %3002 = vmatpush2.xpose.msra.mxu0 0.0
    %3003 = vmatprep.subr.mxu0 0.0
    %3004 = vmatpush2.xpose.msra.mxu0 0.0
    %3005 = vmatprep.subr.mxu0 0.0
    %3006 = vmatpush2.xpose.msra.mxu0 0.0
    %3007 = vmatprep.subr.mxu0 0.0
    %3008 = vmatpush2.xpose.msra.mxu0 0.0
    %3009 = vmatprep.subr.mxu0 0.0
    %3010 = vmatpush2.xpose.msra.mxu0 0.0
    %3011 = vmatprep.subr.mxu0 0.0
    %3012 = vmatpush2.xpose.msra.mxu0 0.0
    %3013 = vmatprep.subr.mxu0 0.0
    %3014 = vmatpush2.xpose.msra.mxu0 0.0
    %3015 = vmatprep.subr.mxu0 0.0
    %3016 = vmatpush2.xpose.msra.mxu0 0.0
    %3017 = vmatprep.subr.mxu0 0.0
    %3018 = vmatpush2.xpose.msra.mxu0 0.0
    %3019 = vmatprep.subr.mxu0 0.0
    %3020 = vmatpush2.xpose.msra.mxu0 0.0
    %3021 = vmatprep.subr.mxu0 0.0
    %3022 = vmatpush2.xpose.msra.mxu0 0.0
    %3023 = vmatprep.subr.mxu0 0.0
    %3024 = vmatpush2.xpose.msra.mxu0 0.0
    %3025 = vmatprep.subr.mxu0 0.0
    %3026 = vmatpush2.xpose.msra.mxu0 0.0
    %3027 = vmatprep.mubr.f32.mxu0 0.0
    %3028 = vmatmul.mubr.f32.gmra.mxu0 %v2959
    %v3029 = vpop.f32.mrf.mxu0
    %v3030 = vadd.f32 %v2161, %v3029
    %v3031 = vpop.f32.mrf.mxu0
    %3032 = vdwg.mxu0
    %3033 = vrot.lane.b32.xlu0 %v2294, 112
    %v3034 = vpop.permute.xlu0 %3033
    %3035 = vrot.lane.b32.xlu0 %v2290, 80
    %v3036 = vpop.permute.xlu0 %3035
    %v3037 = vsel %vm335, %v3034, 0
    %v3039 = vsel %vm335, %v3036, 0
    %3041 = vmatprep.subr.mxu0 0.0
    %3042 = vmatpush1.xpose.msra.mxu0 0.0
    %3043 = vmatprep.subr.mxu0 0.0
    %3044 = vmatpush1.xpose.msra.mxu0 0.0
    %3045 = vmatprep.subr.mxu0 0.0
    %3046 = vmatpush1.xpose.msra.mxu0 0.0
    %3047 = vmatprep.subr.mxu0 0.0
    %3048 = vmatpush1.xpose.msra.mxu0 0.0
    %3049 = vmatprep.subr.mxu0 0.0
    %3050 = vmatpush1.xpose.msra.mxu0 0.0
    %3051 = vmatprep.subr.mxu0 0.0
    %3052 = vmatpush1.xpose.msra.mxu0 0.0
    %3053 = vmatprep.subr.mxu0 0.0
    %3054 = vmatpush1.xpose.msra.mxu0 0.0
    %3055 = vmatprep.subr.mxu0 0.0
    %3056 = vmatpush1.xpose.msra.mxu0 0.0
    %3057 = vmatprep.subr.mxu0 0.0
    %3058 = vmatpush1.xpose.msra.mxu0 0.0
    %3059 = vmatprep.subr.mxu0 0.0
    %3060 = vmatpush1.xpose.msra.mxu0 0.0
    %3061 = vmatprep.subr.mxu0 0.0
    %3062 = vmatpush1.xpose.msra.mxu0 0.0
    %3063 = vmatprep.subr.mxu0 0.0
    %3064 = vmatpush1.xpose.msra.mxu0 0.0
    %3065 = vmatprep.subr.mxu0 0.0
    %3066 = vmatpush1.xpose.msra.mxu0 0.0
    %3067 = vmatprep.subr.mxu0 0.0
    %3068 = vmatpush1.xpose.msra.mxu0 0.0
    %3069 = vmatprep.subr.mxu0 0.0
    %3070 = vmatpush1.xpose.msra.mxu0 0.0
    %3071 = vmatprep.subr.mxu0 0.0
    %3072 = vmatpush1.xpose.msra.mxu0 %v3039
    %3073 = vmatprep.subr.mxu0 0.0
    %3074 = vmatpush2.xpose.msra.mxu0 0.0
    %3075 = vmatprep.subr.mxu0 0.0
    %3076 = vmatpush2.xpose.msra.mxu0 0.0
    %3077 = vmatprep.subr.mxu0 0.0
    %3078 = vmatpush2.xpose.msra.mxu0 0.0
    %3079 = vmatprep.subr.mxu0 0.0
    %3080 = vmatpush2.xpose.msra.mxu0 0.0
    %3081 = vmatprep.subr.mxu0 0.0
    %3082 = vmatpush2.xpose.msra.mxu0 0.0
    %3083 = vmatprep.subr.mxu0 0.0
    %3084 = vmatpush2.xpose.msra.mxu0 0.0
    %3085 = vmatprep.subr.mxu0 0.0
    %3086 = vmatpush2.xpose.msra.mxu0 0.0
    %3087 = vmatprep.subr.mxu0 0.0
    %3088 = vmatpush2.xpose.msra.mxu0 0.0
    %3089 = vmatprep.subr.mxu0 0.0
    %3090 = vmatpush2.xpose.msra.mxu0 0.0
    %3091 = vmatprep.subr.mxu0 0.0
    %3092 = vmatpush2.xpose.msra.mxu0 0.0
    %3093 = vmatprep.subr.mxu0 0.0
    %3094 = vmatpush2.xpose.msra.mxu0 0.0
    %3095 = vmatprep.subr.mxu0 0.0
    %3096 = vmatpush2.xpose.msra.mxu0 0.0
    %3097 = vmatprep.subr.mxu0 0.0
    %3098 = vmatpush2.xpose.msra.mxu0 0.0
    %3099 = vmatprep.subr.mxu0 0.0
    %3100 = vmatpush2.xpose.msra.mxu0 0.0
    %3101 = vmatprep.subr.mxu0 0.0
    %3102 = vmatpush2.xpose.msra.mxu0 0.0
    %3103 = vmatprep.subr.mxu0 0.0
    %3104 = vmatpush2.xpose.msra.mxu0 0.0
    %3105 = vmatprep.mubr.f32.mxu0 0.0
    %3106 = vmatmul.mubr.f32.gmra.mxu0 %v3037
    %v3107 = vpop.f32.mrf.mxu0
    %v3108 = vadd.f32 %v2161, %v3107
    %v3109 = vpop.f32.mrf.mxu0
    %3110 = vdwg.mxu0
    %v3111 = vsel %vm335, %v3030, -inf
    %3112 = vmax.xlane.f32.xlu0 %v3111
    %v3113 = vpop.xlane.xlu0 %3112
    %v3114 = vsel %vm335, %v3108, -inf
    %3115 = vmax.xlane.f32.xlu0 %v3114
    %v3116 = vpop.xlane.xlu0 %3115
    %v3117 = vsub.f32 %v3030, %v3113
    %v3118 = vsub.f32 %v3108, %v3116
    %v3119 = vmul.f32 %v3117, 1.442695
    %v3120 = vpow.pop %v3119
    %v3121 = vmul.f32 %v3118, 1.442695
    %v3122 = vpow.pop %v3121
    %v3123 = vsel %vm335, %v3120, 0.0
    %3124 = vadd.xlane.f32.xlu0 %v3123
    %v3125 = vpop.xlane.xlu0 %3124
    %v3126 = vsel %vm335, %v3122, 0.0
    %3127 = vadd.xlane.f32.xlu0 %v3126
    %v3128 = vpop.xlane.xlu0 %3127
    %v3129 = vrcp.pop %v3125
    %v3130 = vrcp.pop %v3128
    %v3131 = vmul.f32 %v3120, %v3129
    %v3132 = vmul.f32 %v3122, %v3130
    %3133 = vrot.lane.b32.xlu0 %v2285, 48
    %v3134 = vpop.permute.xlu0 %3133
    %v3137 = vsel %vm335, %v3131, 0
    %3139 = vmatprep.subr.mxu0 0.0
    %3140 = vmatpush1.msra.mxu0 0.0
    %3141 = vmatprep.subr.mxu0 0.0
    %3142 = vmatpush1.msra.mxu0 0.0
    %3143 = vmatprep.subr.mxu0 0.0
    %3144 = vmatpush1.msra.mxu0 0.0
    %3145 = vmatprep.subr.mxu0 0.0
    %3146 = vmatpush1.msra.mxu0 0.0
    %3147 = vmatprep.subr.mxu0 0.0
    %3148 = vmatpush1.msra.mxu0 0.0
    %3149 = vmatprep.subr.mxu0 0.0
    %3150 = vmatpush1.msra.mxu0 0.0
    %3151 = vmatprep.subr.mxu0 0.0
    %3152 = vmatpush1.msra.mxu0 0.0
    %3153 = vmatprep.subr.mxu0 0.0
    %3154 = vmatpush1.msra.mxu0 0.0
    %3155 = vmatprep.subr.mxu0 0.0
    %3156 = vmatpush1.msra.mxu0 0.0
    %3157 = vmatprep.subr.mxu0 0.0
    %3158 = vmatpush1.msra.mxu0 0.0
    %3159 = vmatprep.subr.mxu0 0.0
    %3160 = vmatpush1.msra.mxu0 0.0
    %3161 = vmatprep.subr.mxu0 0.0
    %3162 = vmatpush1.msra.mxu0 0.0
    %3163 = vmatprep.subr.mxu0 0.0
    %3164 = vmatpush1.msra.mxu0 0.0
    %3165 = vmatprep.subr.mxu0 0.0
    %3166 = vmatpush1.msra.mxu0 0.0
    %3167 = vmatprep.subr.mxu0 0.0
    %3168 = vmatpush1.msra.mxu0 0.0
    %3169 = vmatprep.subr.mxu0 0.0
    %3170 = vmatpush1.msra.mxu0 %v3134
    %3171 = vmatprep.subr.mxu0 0.0
    %3172 = vmatpush2.msra.mxu0 0.0
    %3173 = vmatprep.subr.mxu0 0.0
    %3174 = vmatpush2.msra.mxu0 0.0
    %3175 = vmatprep.subr.mxu0 0.0
    %3176 = vmatpush2.msra.mxu0 0.0
    %3177 = vmatprep.subr.mxu0 0.0
    %3178 = vmatpush2.msra.mxu0 0.0
    %3179 = vmatprep.subr.mxu0 0.0
    %3180 = vmatpush2.msra.mxu0 0.0
    %3181 = vmatprep.subr.mxu0 0.0
    %3182 = vmatpush2.msra.mxu0 0.0
    %3183 = vmatprep.subr.mxu0 0.0
    %3184 = vmatpush2.msra.mxu0 0.0
    %3185 = vmatprep.subr.mxu0 0.0
    %3186 = vmatpush2.msra.mxu0 0.0
    %3187 = vmatprep.subr.mxu0 0.0
    %3188 = vmatpush2.msra.mxu0 0.0
    %3189 = vmatprep.subr.mxu0 0.0
    %3190 = vmatpush2.msra.mxu0 0.0
    %3191 = vmatprep.subr.mxu0 0.0
    %3192 = vmatpush2.msra.mxu0 0.0
    %3193 = vmatprep.subr.mxu0 0.0
    %3194 = vmatpush2.msra.mxu0 0.0
    %3195 = vmatprep.subr.mxu0 0.0
    %3196 = vmatpush2.msra.mxu0 0.0
    %3197 = vmatprep.subr.mxu0 0.0
    %3198 = vmatpush2.msra.mxu0 0.0
    %3199 = vmatprep.subr.mxu0 0.0
    %3200 = vmatpush2.msra.mxu0 0.0
    %3201 = vmatprep.subr.mxu0 0.0
    %3202 = vmatpush2.msra.mxu0 0.0
    %3203 = vmatprep.mubr.f32.mxu0 0.0
    %3204 = vmatmul.mubr.f32.gmra.mxu0 %v3137
    %v3205 = vpop.f32.mrf.mxu0
    %v3206 = vadd.f32 0.0, %v3205
    %v3207 = vpop.f32.mrf.mxu0
    %3208 = vdwg.mxu0
    %3209 = vrot.lane.b32.xlu0 %v2290, 48
    %v3210 = vpop.permute.xlu0 %3209
    %v3213 = vsel %vm335, %v3132, 0
    %3215 = vmatprep.subr.mxu0 0.0
    %3216 = vmatpush1.msra.mxu0 0.0
    %3217 = vmatprep.subr.mxu0 0.0
    %3218 = vmatpush1.msra.mxu0 0.0
    %3219 = vmatprep.subr.mxu0 0.0
    %3220 = vmatpush1.msra.mxu0 0.0
    %3221 = vmatprep.subr.mxu0 0.0
    %3222 = vmatpush1.msra.mxu0 0.0
    %3223 = vmatprep.subr.mxu0 0.0
    %3224 = vmatpush1.msra.mxu0 0.0
    %3225 = vmatprep.subr.mxu0 0.0
    %3226 = vmatpush1.msra.mxu0 0.0
    %3227 = vmatprep.subr.mxu0 0.0
    %3228 = vmatpush1.msra.mxu0 0.0
    %3229 = vmatprep.subr.mxu0 0.0
    %3230 = vmatpush1.msra.mxu0 0.0
    %3231 = vmatprep.subr.mxu0 0.0
    %3232 = vmatpush1.msra.mxu0 0.0
    %3233 = vmatprep.subr.mxu0 0.0
    %3234 = vmatpush1.msra.mxu0 0.0
    %3235 = vmatprep.subr.mxu0 0.0
    %3236 = vmatpush1.msra.mxu0 0.0
    %3237 = vmatprep.subr.mxu0 0.0
    %3238 = vmatpush1.msra.mxu0 0.0
    %3239 = vmatprep.subr.mxu0 0.0
    %3240 = vmatpush1.msra.mxu0 0.0
    %3241 = vmatprep.subr.mxu0 0.0
    %3242 = vmatpush1.msra.mxu0 0.0
    %3243 = vmatprep.subr.mxu0 0.0
    %3244 = vmatpush1.msra.mxu0 0.0
    %3245 = vmatprep.subr.mxu0 0.0
    %3246 = vmatpush1.msra.mxu0 %v3210
    %3247 = vmatprep.subr.mxu0 0.0
    %3248 = vmatpush2.msra.mxu0 0.0
    %3249 = vmatprep.subr.mxu0 0.0
    %3250 = vmatpush2.msra.mxu0 0.0
    %3251 = vmatprep.subr.mxu0 0.0
    %3252 = vmatpush2.msra.mxu0 0.0
    %3253 = vmatprep.subr.mxu0 0.0
    %3254 = vmatpush2.msra.mxu0 0.0
    %3255 = vmatprep.subr.mxu0 0.0
    %3256 = vmatpush2.msra.mxu0 0.0
    %3257 = vmatprep.subr.mxu0 0.0
    %3258 = vmatpush2.msra.mxu0 0.0
    %3259 = vmatprep.subr.mxu0 0.0
    %3260 = vmatpush2.msra.mxu0 0.0
    %3261 = vmatprep.subr.mxu0 0.0
    %3262 = vmatpush2.msra.mxu0 0.0
    %3263 = vmatprep.subr.mxu0 0.0
    %3264 = vmatpush2.msra.mxu0 0.0
    %3265 = vmatprep.subr.mxu0 0.0
    %3266 = vmatpush2.msra.mxu0 0.0
    %3267 = vmatprep.subr.mxu0 0.0
    %3268 = vmatpush2.msra.mxu0 0.0
    %3269 = vmatprep.subr.mxu0 0.0
    %3270 = vmatpush2.msra.mxu0 0.0
    %3271 = vmatprep.subr.mxu0 0.0
    %3272 = vmatpush2.msra.mxu0 0.0
    %3273 = vmatprep.subr.mxu0 0.0
    %3274 = vmatpush2.msra.mxu0 0.0
    %3275 = vmatprep.subr.mxu0 0.0
    %3276 = vmatpush2.msra.mxu0 0.0
    %3277 = vmatprep.subr.mxu0 0.0
    %3278 = vmatpush2.msra.mxu0 0.0
    %3279 = vmatprep.mubr.f32.mxu0 0.0
    %3280 = vmatmul.mubr.f32.gmra.mxu0 %v3213
    %v3281 = vpop.f32.mrf.mxu0
    %v3282 = vadd.f32 0.0, %v3281
    %v3283 = vpop.f32.mrf.mxu0
    %3284 = vdwg.mxu0
    %3285 = vrot.lane.b32.xlu0 %v2293, 104
    %v3286 = vpop.permute.xlu0 %3285
    %3287 = vrot.lane.b32.xlu0 %v2285, 72
    %v3288 = vpop.permute.xlu0 %3287
    %v3289 = vsel %vm335, %v3286, 0
    %v3291 = vsel %vm335, %v3288, 0
    %3293 = vmatprep.subr.mxu0 0.0
    %3294 = vmatpush1.xpose.msra.mxu0 0.0
    %3295 = vmatprep.subr.mxu0 0.0
    %3296 = vmatpush1.xpose.msra.mxu0 0.0
    %3297 = vmatprep.subr.mxu0 0.0
    %3298 = vmatpush1.xpose.msra.mxu0 0.0
    %3299 = vmatprep.subr.mxu0 0.0
    %3300 = vmatpush1.xpose.msra.mxu0 0.0
    %3301 = vmatprep.subr.mxu0 0.0
    %3302 = vmatpush1.xpose.msra.mxu0 0.0
    %3303 = vmatprep.subr.mxu0 0.0
    %3304 = vmatpush1.xpose.msra.mxu0 0.0
    %3305 = vmatprep.subr.mxu0 0.0
    %3306 = vmatpush1.xpose.msra.mxu0 0.0
    %3307 = vmatprep.subr.mxu0 0.0
    %3308 = vmatpush1.xpose.msra.mxu0 0.0
    %3309 = vmatprep.subr.mxu0 0.0
    %3310 = vmatpush1.xpose.msra.mxu0 0.0
    %3311 = vmatprep.subr.mxu0 0.0
    %3312 = vmatpush1.xpose.msra.mxu0 0.0
    %3313 = vmatprep.subr.mxu0 0.0
    %3314 = vmatpush1.xpose.msra.mxu0 0.0
    %3315 = vmatprep.subr.mxu0 0.0
    %3316 = vmatpush1.xpose.msra.mxu0 0.0
    %3317 = vmatprep.subr.mxu0 0.0
    %3318 = vmatpush1.xpose.msra.mxu0 0.0
    %3319 = vmatprep.subr.mxu0 0.0
    %3320 = vmatpush1.xpose.msra.mxu0 0.0
    %3321 = vmatprep.subr.mxu0 0.0
    %3322 = vmatpush1.xpose.msra.mxu0 0.0
    %3323 = vmatprep.subr.mxu0 0.0
    %3324 = vmatpush1.xpose.msra.mxu0 %v3291
    %3325 = vmatprep.subr.mxu0 0.0
    %3326 = vmatpush2.xpose.msra.mxu0 0.0
    %3327 = vmatprep.subr.mxu0 0.0
    %3328 = vmatpush2.xpose.msra.mxu0 0.0
    %3329 = vmatprep.subr.mxu0 0.0
    %3330 = vmatpush2.xpose.msra.mxu0 0.0
    %3331 = vmatprep.subr.mxu0 0.0
    %3332 = vmatpush2.xpose.msra.mxu0 0.0
    %3333 = vmatprep.subr.mxu0 0.0
    %3334 = vmatpush2.xpose.msra.mxu0 0.0
    %3335 = vmatprep.subr.mxu0 0.0
    %3336 = vmatpush2.xpose.msra.mxu0 0.0
    %3337 = vmatprep.subr.mxu0 0.0
    %3338 = vmatpush2.xpose.msra.mxu0 0.0
    %3339 = vmatprep.subr.mxu0 0.0
    %3340 = vmatpush2.xpose.msra.mxu0 0.0
    %3341 = vmatprep.subr.mxu0 0.0
    %3342 = vmatpush2.xpose.msra.mxu0 0.0
    %3343 = vmatprep.subr.mxu0 0.0
    %3344 = vmatpush2.xpose.msra.mxu0 0.0
    %3345 = vmatprep.subr.mxu0 0.0
    %3346 = vmatpush2.xpose.msra.mxu0 0.0
    %3347 = vmatprep.subr.mxu0 0.0
    %3348 = vmatpush2.xpose.msra.mxu0 0.0
    %3349 = vmatprep.subr.mxu0 0.0
    %3350 = vmatpush2.xpose.msra.mxu0 0.0
    %3351 = vmatprep.subr.mxu0 0.0
    %3352 = vmatpush2.xpose.msra.mxu0 0.0
    %3353 = vmatprep.subr.mxu0 0.0
    %3354 = vmatpush2.xpose.msra.mxu0 0.0
    %3355 = vmatprep.subr.mxu0 0.0
    %3356 = vmatpush2.xpose.msra.mxu0 0.0
    %3357 = vmatprep.mubr.f32.mxu0 0.0
    %3358 = vmatmul.mubr.f32.gmra.mxu0 %v3289
    %v3359 = vpop.f32.mrf.mxu0
    %v3360 = vadd.f32 %v2161, %v3359
    %v3361 = vpop.f32.mrf.mxu0
    %3362 = vdwg.mxu0
    %3363 = vrot.lane.b32.xlu0 %v2294, 104
    %v3364 = vpop.permute.xlu0 %3363
    %3365 = vrot.lane.b32.xlu0 %v2290, 72
    %v3366 = vpop.permute.xlu0 %3365
    %v3367 = vsel %vm335, %v3364, 0
    %v3369 = vsel %vm335, %v3366, 0
    %3371 = vmatprep.subr.mxu0 0.0
    %3372 = vmatpush1.xpose.msra.mxu0 0.0
    %3373 = vmatprep.subr.mxu0 0.0
    %3374 = vmatpush1.xpose.msra.mxu0 0.0
    %3375 = vmatprep.subr.mxu0 0.0
    %3376 = vmatpush1.xpose.msra.mxu0 0.0
    %3377 = vmatprep.subr.mxu0 0.0
    %3378 = vmatpush1.xpose.msra.mxu0 0.0
    %3379 = vmatprep.subr.mxu0 0.0
    %3380 = vmatpush1.xpose.msra.mxu0 0.0
    %3381 = vmatprep.subr.mxu0 0.0
    %3382 = vmatpush1.xpose.msra.mxu0 0.0
    %3383 = vmatprep.subr.mxu0 0.0
    %3384 = vmatpush1.xpose.msra.mxu0 0.0
    %3385 = vmatprep.subr.mxu0 0.0
    %3386 = vmatpush1.xpose.msra.mxu0 0.0
    %3387 = vmatprep.subr.mxu0 0.0
    %3388 = vmatpush1.xpose.msra.mxu0 0.0
    %3389 = vmatprep.subr.mxu0 0.0
    %3390 = vmatpush1.xpose.msra.mxu0 0.0
    %3391 = vmatprep.subr.mxu0 0.0
    %3392 = vmatpush1.xpose.msra.mxu0 0.0
    %3393 = vmatprep.subr.mxu0 0.0
    %3394 = vmatpush1.xpose.msra.mxu0 0.0
    %3395 = vmatprep.subr.mxu0 0.0
    %3396 = vmatpush1.xpose.msra.mxu0 0.0
    %3397 = vmatprep.subr.mxu0 0.0
    %3398 = vmatpush1.xpose.msra.mxu0 0.0
    %3399 = vmatprep.subr.mxu0 0.0
    %3400 = vmatpush1.xpose.msra.mxu0 0.0
    %3401 = vmatprep.subr.mxu0 0.0
    %3402 = vmatpush1.xpose.msra.mxu0 %v3369
    %3403 = vmatprep.subr.mxu0 0.0
    %3404 = vmatpush2.xpose.msra.mxu0 0.0
    %3405 = vmatprep.subr.mxu0 0.0
    %3406 = vmatpush2.xpose.msra.mxu0 0.0
    %3407 = vmatprep.subr.mxu0 0.0
    %3408 = vmatpush2.xpose.msra.mxu0 0.0
    %3409 = vmatprep.subr.mxu0 0.0
    %3410 = vmatpush2.xpose.msra.mxu0 0.0
    %3411 = vmatprep.subr.mxu0 0.0
    %3412 = vmatpush2.xpose.msra.mxu0 0.0
    %3413 = vmatprep.subr.mxu0 0.0
    %3414 = vmatpush2.xpose.msra.mxu0 0.0
    %3415 = vmatprep.subr.mxu0 0.0
    %3416 = vmatpush2.xpose.msra.mxu0 0.0
    %3417 = vmatprep.subr.mxu0 0.0
    %3418 = vmatpush2.xpose.msra.mxu0 0.0
    %3419 = vmatprep.subr.mxu0 0.0
    %3420 = vmatpush2.xpose.msra.mxu0 0.0
    %3421 = vmatprep.subr.mxu0 0.0
    %3422 = vmatpush2.xpose.msra.mxu0 0.0
    %3423 = vmatprep.subr.mxu0 0.0
    %3424 = vmatpush2.xpose.msra.mxu0 0.0
    %3425 = vmatprep.subr.mxu0 0.0
    %3426 = vmatpush2.xpose.msra.mxu0 0.0
    %3427 = vmatprep.subr.mxu0 0.0
    %3428 = vmatpush2.xpose.msra.mxu0 0.0
    %3429 = vmatprep.subr.mxu0 0.0
    %3430 = vmatpush2.xpose.msra.mxu0 0.0
    %3431 = vmatprep.subr.mxu0 0.0
    %3432 = vmatpush2.xpose.msra.mxu0 0.0
    %3433 = vmatprep.subr.mxu0 0.0
    %3434 = vmatpush2.xpose.msra.mxu0 0.0
    %3435 = vmatprep.mubr.f32.mxu0 0.0
    %3436 = vmatmul.mubr.f32.gmra.mxu0 %v3367
    %v3437 = vpop.f32.mrf.mxu0
    %v3438 = vadd.f32 %v2161, %v3437
    %v3439 = vpop.f32.mrf.mxu0
    %3440 = vdwg.mxu0
    %v3441 = vsel %vm335, %v3360, -inf
    %3442 = vmax.xlane.f32.xlu0 %v3441
    %v3443 = vpop.xlane.xlu0 %3442
    %v3444 = vsel %vm335, %v3438, -inf
    %3445 = vmax.xlane.f32.xlu0 %v3444
    %v3446 = vpop.xlane.xlu0 %3445
    %v3447 = vsub.f32 %v3360, %v3443
    %v3448 = vsub.f32 %v3438, %v3446
    %v3449 = vmul.f32 %v3447, 1.442695
    %v3450 = vpow.pop %v3449
    %v3451 = vmul.f32 %v3448, 1.442695
    %v3452 = vpow.pop %v3451
    %v3453 = vsel %vm335, %v3450, 0.0
    %3454 = vadd.xlane.f32.xlu0 %v3453
    %v3455 = vpop.xlane.xlu0 %3454
    %v3456 = vsel %vm335, %v3452, 0.0
    %3457 = vadd.xlane.f32.xlu0 %v3456
    %v3458 = vpop.xlane.xlu0 %3457
    %v3459 = vrcp.pop %v3455
    %v3460 = vrcp.pop %v3458
    %v3461 = vmul.f32 %v3450, %v3459
    %v3462 = vmul.f32 %v3452, %v3460
    %3463 = vrot.lane.b32.xlu0 %v2285, 40
    %v3464 = vpop.permute.xlu0 %3463
    %v3467 = vsel %vm335, %v3461, 0
    %3469 = vmatprep.subr.mxu0 0.0
    %3470 = vmatpush1.msra.mxu0 0.0
    %3471 = vmatprep.subr.mxu0 0.0
    %3472 = vmatpush1.msra.mxu0 0.0
    %3473 = vmatprep.subr.mxu0 0.0
    %3474 = vmatpush1.msra.mxu0 0.0
    %3475 = vmatprep.subr.mxu0 0.0
    %3476 = vmatpush1.msra.mxu0 0.0
    %3477 = vmatprep.subr.mxu0 0.0
    %3478 = vmatpush1.msra.mxu0 0.0
    %3479 = vmatprep.subr.mxu0 0.0
    %3480 = vmatpush1.msra.mxu0 0.0
    %3481 = vmatprep.subr.mxu0 0.0
    %3482 = vmatpush1.msra.mxu0 0.0
    %3483 = vmatprep.subr.mxu0 0.0
    %3484 = vmatpush1.msra.mxu0 0.0
    %3485 = vmatprep.subr.mxu0 0.0
    %3486 = vmatpush1.msra.mxu0 0.0
    %3487 = vmatprep.subr.mxu0 0.0
    %3488 = vmatpush1.msra.mxu0 0.0
    %3489 = vmatprep.subr.mxu0 0.0
    %3490 = vmatpush1.msra.mxu0 0.0
    %3491 = vmatprep.subr.mxu0 0.0
    %3492 = vmatpush1.msra.mxu0 0.0
    %3493 = vmatprep.subr.mxu0 0.0
    %3494 = vmatpush1.msra.mxu0 0.0
    %3495 = vmatprep.subr.mxu0 0.0
    %3496 = vmatpush1.msra.mxu0 0.0
    %3497 = vmatprep.subr.mxu0 0.0
    %3498 = vmatpush1.msra.mxu0 0.0
    %3499 = vmatprep.subr.mxu0 0.0
    %3500 = vmatpush1.msra.mxu0 %v3464
    %3501 = vmatprep.subr.mxu0 0.0
    %3502 = vmatpush2.msra.mxu0 0.0
    %3503 = vmatprep.subr.mxu0 0.0
    %3504 = vmatpush2.msra.mxu0 0.0
    %3505 = vmatprep.subr.mxu0 0.0
    %3506 = vmatpush2.msra.mxu0 0.0
    %3507 = vmatprep.subr.mxu0 0.0
    %3508 = vmatpush2.msra.mxu0 0.0
    %3509 = vmatprep.subr.mxu0 0.0
    %3510 = vmatpush2.msra.mxu0 0.0
    %3511 = vmatprep.subr.mxu0 0.0
    %3512 = vmatpush2.msra.mxu0 0.0
    %3513 = vmatprep.subr.mxu0 0.0
    %3514 = vmatpush2.msra.mxu0 0.0
    %3515 = vmatprep.subr.mxu0 0.0
    %3516 = vmatpush2.msra.mxu0 0.0
    %3517 = vmatprep.subr.mxu0 0.0
    %3518 = vmatpush2.msra.mxu0 0.0
    %3519 = vmatprep.subr.mxu0 0.0
    %3520 = vmatpush2.msra.mxu0 0.0
    %3521 = vmatprep.subr.mxu0 0.0
    %3522 = vmatpush2.msra.mxu0 0.0
    %3523 = vmatprep.subr.mxu0 0.0
    %3524 = vmatpush2.msra.mxu0 0.0
    %3525 = vmatprep.subr.mxu0 0.0
    %3526 = vmatpush2.msra.mxu0 0.0
    %3527 = vmatprep.subr.mxu0 0.0
    %3528 = vmatpush2.msra.mxu0 0.0
    %3529 = vmatprep.subr.mxu0 0.0
    %3530 = vmatpush2.msra.mxu0 0.0
    %3531 = vmatprep.subr.mxu0 0.0
    %3532 = vmatpush2.msra.mxu0 0.0
    %3533 = vmatprep.mubr.f32.mxu0 0.0
    %3534 = vmatmul.mubr.f32.gmra.mxu0 %v3467
    %v3535 = vpop.f32.mrf.mxu0
    %v3536 = vadd.f32 0.0, %v3535
    %v3537 = vpop.f32.mrf.mxu0
    %3538 = vdwg.mxu0
    %3539 = vrot.lane.b32.xlu0 %v2290, 40
    %v3540 = vpop.permute.xlu0 %3539
    %v3543 = vsel %vm335, %v3462, 0
    %3545 = vmatprep.subr.mxu0 0.0
    %3546 = vmatpush1.msra.mxu0 0.0
    %3547 = vmatprep.subr.mxu0 0.0
    %3548 = vmatpush1.msra.mxu0 0.0
    %3549 = vmatprep.subr.mxu0 0.0
    %3550 = vmatpush1.msra.mxu0 0.0
    %3551 = vmatprep.subr.mxu0 0.0
    %3552 = vmatpush1.msra.mxu0 0.0
    %3553 = vmatprep.subr.mxu0 0.0
    %3554 = vmatpush1.msra.mxu0 0.0
    %3555 = vmatprep.subr.mxu0 0.0
    %3556 = vmatpush1.msra.mxu0 0.0
    %3557 = vmatprep.subr.mxu0 0.0
    %3558 = vmatpush1.msra.mxu0 0.0
    %3559 = vmatprep.subr.mxu0 0.0
    %3560 = vmatpush1.msra.mxu0 0.0
    %3561 = vmatprep.subr.mxu0 0.0
    %3562 = vmatpush1.msra.mxu0 0.0
    %3563 = vmatprep.subr.mxu0 0.0
    %3564 = vmatpush1.msra.mxu0 0.0
    %3565 = vmatprep.subr.mxu0 0.0
    %3566 = vmatpush1.msra.mxu0 0.0
    %3567 = vmatprep.subr.mxu0 0.0
    %3568 = vmatpush1.msra.mxu0 0.0
    %3569 = vmatprep.subr.mxu0 0.0
    %3570 = vmatpush1.msra.mxu0 0.0
    %3571 = vmatprep.subr.mxu0 0.0
    %3572 = vmatpush1.msra.mxu0 0.0
    %3573 = vmatprep.subr.mxu0 0.0
    %3574 = vmatpush1.msra.mxu0 0.0
    %3575 = vmatprep.subr.mxu0 0.0
    %3576 = vmatpush1.msra.mxu0 %v3540
    %3577 = vmatprep.subr.mxu0 0.0
    %3578 = vmatpush2.msra.mxu0 0.0
    %3579 = vmatprep.subr.mxu0 0.0
    %3580 = vmatpush2.msra.mxu0 0.0
    %3581 = vmatprep.subr.mxu0 0.0
    %3582 = vmatpush2.msra.mxu0 0.0
    %3583 = vmatprep.subr.mxu0 0.0
    %3584 = vmatpush2.msra.mxu0 0.0
    %3585 = vmatprep.subr.mxu0 0.0
    %3586 = vmatpush2.msra.mxu0 0.0
    %3587 = vmatprep.subr.mxu0 0.0
    %3588 = vmatpush2.msra.mxu0 0.0
    %3589 = vmatprep.subr.mxu0 0.0
    %3590 = vmatpush2.msra.mxu0 0.0
    %3591 = vmatprep.subr.mxu0 0.0
    %3592 = vmatpush2.msra.mxu0 0.0
    %3593 = vmatprep.subr.mxu0 0.0
    %3594 = vmatpush2.msra.mxu0 0.0
    %3595 = vmatprep.subr.mxu0 0.0
    %3596 = vmatpush2.msra.mxu0 0.0
    %3597 = vmatprep.subr.mxu0 0.0
    %3598 = vmatpush2.msra.mxu0 0.0
    %3599 = vmatprep.subr.mxu0 0.0
    %3600 = vmatpush2.msra.mxu0 0.0
    %3601 = vmatprep.subr.mxu0 0.0
    %3602 = vmatpush2.msra.mxu0 0.0
    %3603 = vmatprep.subr.mxu0 0.0
    %3604 = vmatpush2.msra.mxu0 0.0
    %3605 = vmatprep.subr.mxu0 0.0
    %3606 = vmatpush2.msra.mxu0 0.0
    %3607 = vmatprep.subr.mxu0 0.0
    %3608 = vmatpush2.msra.mxu0 0.0
    %3609 = vmatprep.mubr.f32.mxu0 0.0
    %3610 = vmatmul.mubr.f32.gmra.mxu0 %v3543
    %v3611 = vpop.f32.mrf.mxu0
    %v3612 = vadd.f32 0.0, %v3611
    %v3613 = vpop.f32.mrf.mxu0
    %3614 = vdwg.mxu0
    %3617 = vrot.lane.b32.xlu0 %v2876, 8
    %v3618 = vpop.permute.xlu0 %3617
    %3619 = vrot.lane.b32.xlu0 %v2952, 8
    %v3620 = vpop.permute.xlu0 %3619
    %3625 = vrot.lane.b32.xlu0 %v3206, 16
    %v3626 = vpop.permute.xlu0 %3625
    %3627 = vrot.lane.b32.xlu0 %v3282, 16
    %v3628 = vpop.permute.xlu0 %3627
    %3633 = vrot.lane.b32.xlu0 %v3536, 24
    %v3634 = vpop.permute.xlu0 %3633
    %3635 = vrot.lane.b32.xlu0 %v3612, 24
    %v3636 = vpop.permute.xlu0 %3635
    %v3639 = vsel %vm335, %v2546, %v3618
    %v3640 = vsel %vm335, %v2622, %v3620
    %v3641 = vsel %vm1679, %v3639, %v3626
    %v3642 = vsel %vm1679, %v3640, %v3628
    %v3643 = vsel %vm1682, %v3641, %v3634
    %v3644 = vsel %vm1682, %v3642, %v3636
    %s3645 = scalar_lea.vmem %s7, 128
    %v3646 = vld [vmem:[%s3645] sm:$0xff]
    %v3647 = vld [vmem:[%s3645 + $0x8] sm:$0xff]
    %v3648 = vld [vmem:[%s3645 + $0x10] sm:$0xff]
    %v3649 = vld [vmem:[%s3645 + $0x18] sm:$0xff]
    %v3650 = vld [vmem:[%s6 + $0xd] sm:$0x1]
    %v3651 = vlaneseq
    %v3652 = vshrl.u32 %v3651, 7
    %v3653 = vsub.s32 0, %v3652
    %v3654 = vrot.slane %v3650, %v3653
    %v3656 = vsel %vm190, %v3643, 0
    %v3659 = vsel %vm190, %v3644, 0
    %3661 = vmatprep.subr.mxu0 0.0
    %3662 = vmatpush1.msra.mxu0 0.0
    %3663 = vmatprep.subr.mxu0 0.0
    %3664 = vmatpush1.msra.mxu0 0.0
    %3665 = vmatprep.subr.mxu0 0.0
    %3666 = vmatpush1.msra.mxu0 0.0
    %3667 = vmatprep.subr.mxu0 0.0
    %3668 = vmatpush1.msra.mxu0 0.0
    %3669 = vmatprep.subr.mxu0 0.0
    %3670 = vmatpush1.msra.mxu0 0.0
    %3671 = vmatprep.subr.mxu0 0.0
    %3672 = vmatpush1.msra.mxu0 0.0
    %3673 = vmatprep.subr.mxu0 0.0
    %3674 = vmatpush1.msra.mxu0 0.0
    %3675 = vmatprep.subr.mxu0 0.0
    %3676 = vmatpush1.msra.mxu0 0.0
    %3677 = vmatprep.subr.mxu0 0.0
    %3678 = vmatpush1.msra.mxu0 0.0
    %3679 = vmatprep.subr.mxu0 0.0
    %3680 = vmatpush1.msra.mxu0 0.0
    %3681 = vmatprep.subr.mxu0 0.0
    %3682 = vmatpush1.msra.mxu0 0.0
    %3683 = vmatprep.subr.mxu0 0.0
    %3684 = vmatpush1.msra.mxu0 0.0
    %3685 = vmatprep.subr.mxu0 0.0
    %3686 = vmatpush1.msra.mxu0 %v3649
    %3687 = vmatprep.subr.mxu0 0.0
    %3688 = vmatpush1.msra.mxu0 %v3648
    %3689 = vmatprep.subr.mxu0 0.0
    %3690 = vmatpush1.msra.mxu0 %v3647
    %3691 = vmatprep.subr.mxu0 0.0
    %3692 = vmatpush1.msra.mxu0 %v3646
    %3693 = vmatprep.subr.mxu0 0.0
    %3694 = vmatpush2.msra.mxu0 0.0
    %3695 = vmatprep.subr.mxu0 0.0
    %3696 = vmatpush2.msra.mxu0 0.0
    %3697 = vmatprep.subr.mxu0 0.0
    %3698 = vmatpush2.msra.mxu0 0.0
    %3699 = vmatprep.subr.mxu0 0.0
    %3700 = vmatpush2.msra.mxu0 0.0
    %3701 = vmatprep.subr.mxu0 0.0
    %3702 = vmatpush2.msra.mxu0 0.0
    %3703 = vmatprep.subr.mxu0 0.0
    %3704 = vmatpush2.msra.mxu0 0.0
    %3705 = vmatprep.subr.mxu0 0.0
    %3706 = vmatpush2.msra.mxu0 0.0
    %3707 = vmatprep.subr.mxu0 0.0
    %3708 = vmatpush2.msra.mxu0 0.0
    %3709 = vmatprep.subr.mxu0 0.0
    %3710 = vmatpush2.msra.mxu0 0.0
    %3711 = vmatprep.subr.mxu0 0.0
    %3712 = vmatpush2.msra.mxu0 0.0
    %3713 = vmatprep.subr.mxu0 0.0
    %3714 = vmatpush2.msra.mxu0 0.0
    %3715 = vmatprep.subr.mxu0 0.0
    %3716 = vmatpush2.msra.mxu0 0.0
    %3717 = vmatprep.subr.mxu0 0.0
    %3718 = vmatpush2.msra.mxu0 0.0
    %3719 = vmatprep.subr.mxu0 0.0
    %3720 = vmatpush2.msra.mxu0 0.0
    %3721 = vmatprep.subr.mxu0 0.0
    %3722 = vmatpush2.msra.mxu0 0.0
    %3723 = vmatprep.subr.mxu0 0.0
    %3724 = vmatpush2.msra.mxu0 0.0
    %3725 = vmatprep.mubr.f32.mxu0 0.0
    %3726 = vmatmul.mubr.f32.gmra.mxu0 %v3656
    %v3727 = vpop.f32.mrf.mxu0
    %v3728 = vadd.f32 %v3654, %v3727
    %v3729 = vpop.f32.mrf.mxu0
    %3730 = vmatprep.mubr.f32.mxu0 0.0
    %3731 = vmatmul.mubr.f32.gmra.mxu0 %v3659
    %v3732 = vpop.f32.mrf.mxu0
    %v3733 = vadd.f32 %v3654, %v3732
    %v3734 = vpop.f32.mrf.mxu0
    %3735 = vdwg.mxu0
    %v3736 = vadd.f32 %v2156, %v3728
    %v3737 = vadd.f32 %v2157, %v3733
    %v3738 = vld [vmem:[%s6 + $0xe] sm:$0x1]
    %v3739 = vld [vmem:[%s6 + $0xf] sm:$0x1]
    %v3740 = vsel %vm190, %v3736, 0.0
    %3741 = vadd.xlane.f32.xlu0 %v3740
    %v3742 = vpop.xlane.xlu0 %3741
    %v3743 = vsel %vm190, %v3737, 0.0
    %3744 = vadd.xlane.f32.xlu0 %v3743
    %v3745 = vpop.xlane.xlu0 %3744
    %v3746 = vmul.f32 %v3742, %v197
    %v3747 = vmul.f32 %v3745, %v197
    %v3748 = vsub.f32 %v3736, %v3746
    %v3749 = vsub.f32 %v3737, %v3747
    %v3750 = vmul.f32 %v3748, %v3748
    %v3751 = vmul.f32 %v3749, %v3749
    %v3752 = vsel %vm190, %v3750, 0.0
    %3753 = vadd.xlane.f32.xlu0 %v3752
    %v3754 = vpop.xlane.xlu0 %3753
    %v3755 = vsel %vm190, %v3751, 0.0
    %3756 = vadd.xlane.f32.xlu0 %v3755
    %v3757 = vpop.xlane.xlu0 %3756
    %v3758 = vmul.f32 %v3754, %v197
    %v3759 = vmul.f32 %v3757, %v197
    %v3760 = vadd.f32 %v3758, 1e-05
    %v3761 = vadd.f32 %v3759, 1e-05
    %v3762 = vrsqrt.pop %v3760
    %v3763 = vrsqrt.pop %v3761
    %v3764 = vmul.f32 %v3748, %v3762
    %v3765 = vmul.f32 %v3749, %v3763
    %v3766 = vlaneseq
    %v3767 = vshrl.u32 %v3766, 7
    %v3768 = vsub.s32 0, %v3767
    %v3769 = vrot.slane %v3738, %v3768
    %v3770 = vmul.f32 %v3764, %v3769
    %v3771 = vmul.f32 %v3765, %v3769
    %v3772 = vlaneseq
    %v3773 = vshrl.u32 %v3772, 7
    %v3774 = vsub.s32 0, %v3773
    %v3775 = vrot.slane %v3739, %v3774
    %v3776 = vadd.f32 %v3770, %v3775
    %v3777 = vadd.f32 %v3771, %v3775
    %s3778 = scalar_lea.vmem %s7, 160
    %v3779 = vld [vmem:[%s3778] sm:$0xff]
    %v3780 = vld [vmem:[%s3778 + $0x8] sm:$0xff]
    %v3781 = vld [vmem:[%s3778 + $0x10] sm:$0xff]
    %v3782 = vld [vmem:[%s3778 + $0x18] sm:$0xff]
    %v3783 = vld [vmem:[%s6 + $0x10] sm:$0x1]
    %v3784 = vlaneseq
    %v3785 = vshrl.u32 %v3784, 7
    %v3786 = vsub.s32 0, %v3785
    %v3787 = vrot.slane %v3783, %v3786
    %v3789 = vsel %vm190, %v3776, 0
    %v3792 = vsel %vm190, %v3777, 0
    %3794 = vmatprep.subr.mxu0 0.0
    %3795 = vmatpush1.msra.mxu0 0.0
    %3796 = vmatprep.subr.mxu0 0.0
    %3797 = vmatpush1.msra.mxu0 0.0
    %3798 = vmatprep.subr.mxu0 0.0
    %3799 = vmatpush1.msra.mxu0 0.0
    %3800 = vmatprep.subr.mxu0 0.0
    %3801 = vmatpush1.msra.mxu0 0.0
    %3802 = vmatprep.subr.mxu0 0.0
    %3803 = vmatpush1.msra.mxu0 0.0
    %3804 = vmatprep.subr.mxu0 0.0
    %3805 = vmatpush1.msra.mxu0 0.0
    %3806 = vmatprep.subr.mxu0 0.0
    %3807 = vmatpush1.msra.mxu0 0.0
    %3808 = vmatprep.subr.mxu0 0.0
    %3809 = vmatpush1.msra.mxu0 0.0
    %3810 = vmatprep.subr.mxu0 0.0
    %3811 = vmatpush1.msra.mxu0 0.0
    %3812 = vmatprep.subr.mxu0 0.0
    %3813 = vmatpush1.msra.mxu0 0.0
    %3814 = vmatprep.subr.mxu0 0.0
    %3815 = vmatpush1.msra.mxu0 0.0
    %3816 = vmatprep.subr.mxu0 0.0
    %3817 = vmatpush1.msra.mxu0 0.0
    %3818 = vmatprep.subr.mxu0 0.0
    %3819 = vmatpush1.msra.mxu0 %v3782
    %3820 = vmatprep.subr.mxu0 0.0
    %3821 = vmatpush1.msra.mxu0 %v3781
    %3822 = vmatprep.subr.mxu0 0.0
    %3823 = vmatpush1.msra.mxu0 %v3780
    %3824 = vmatprep.subr.mxu0 0.0
    %3825 = vmatpush1.msra.mxu0 %v3779
    %3826 = vmatprep.subr.mxu0 0.0
    %3827 = vmatpush2.msra.mxu0 0.0
    %3828 = vmatprep.subr.mxu0 0.0
    %3829 = vmatpush2.msra.mxu0 0.0
    %3830 = vmatprep.subr.mxu0 0.0
    %3831 = vmatpush2.msra.mxu0 0.0
    %3832 = vmatprep.subr.mxu0 0.0
    %3833 = vmatpush2.msra.mxu0 0.0
    %3834 = vmatprep.subr.mxu0 0.0
    %3835 = vmatpush2.msra.mxu0 0.0
    %3836 = vmatprep.subr.mxu0 0.0
    %3837 = vmatpush2.msra.mxu0 0.0
    %3838 = vmatprep.subr.mxu0 0.0
    %3839 = vmatpush2.msra.mxu0 0.0
    %3840 = vmatprep.subr.mxu0 0.0
    %3841 = vmatpush2.msra.mxu0 0.0
    %3842 = vmatprep.subr.mxu0 0.0
    %3843 = vmatpush2.msra.mxu0 0.0
    %3844 = vmatprep.subr.mxu0 0.0
    %3845 = vmatpush2.msra.mxu0 0.0
    %3846 = vmatprep.subr.mxu0 0.0
    %3847 = vmatpush2.msra.mxu0 0.0
    %3848 = vmatprep.subr.mxu0 0.0
    %3849 = vmatpush2.msra.mxu0 0.0
    %3850 = vmatprep.subr.mxu0 0.0
    %3851 = vmatpush2.msra.mxu0 0.0
    %3852 = vmatprep.subr.mxu0 0.0
    %3853 = vmatpush2.msra.mxu0 0.0
    %3854 = vmatprep.subr.mxu0 0.0
    %3855 = vmatpush2.msra.mxu0 0.0
    %3856 = vmatprep.subr.mxu0 0.0
    %3857 = vmatpush2.msra.mxu0 0.0
    %3858 = vmatprep.mubr.f32.mxu0 0.0
    %3859 = vmatmul.mubr.f32.gmra.mxu0 %v3789
    %v3860 = vpop.f32.mrf.mxu0
    %v3861 = vadd.f32 %v3787, %v3860
    %v3862 = vpop.f32.mrf.mxu0
    %3863 = vmatprep.mubr.f32.mxu0 0.0
    %3864 = vmatmul.mubr.f32.gmra.mxu0 %v3792
    %v3865 = vpop.f32.mrf.mxu0
    %v3866 = vadd.f32 %v3787, %v3865
    %v3867 = vpop.f32.mrf.mxu0
    %3868 = vdwg.mxu0
    %s3869 = scalar_lea.vmem %s7, 192
    %v3870 = vld [vmem:[%s3869] sm:$0xff]
    %v3871 = vld [vmem:[%s3869 + $0x8] sm:$0xff]
    %v3872 = vld [vmem:[%s3869 + $0x10] sm:$0xff]
    %v3873 = vld [vmem:[%s3869 + $0x18] sm:$0xff]
    %v3874 = vld [vmem:[%s6 + $0x11] sm:$0x1]
    %v3875 = vlaneseq
    %v3876 = vshrl.u32 %v3875, 7
    %v3877 = vsub.s32 0, %v3876
    %v3878 = vrot.slane %v3874, %v3877
    %v3880 = vsel %vm190, %v2062, 0
    %v3883 = vsel %vm190, %v2063, 0
    %3885 = vmatprep.subr.mxu0 0.0
    %3886 = vmatpush1.msra.mxu0 0.0
    %3887 = vmatprep.subr.mxu0 0.0
    %3888 = vmatpush1.msra.mxu0 0.0
    %3889 = vmatprep.subr.mxu0 0.0
    %3890 = vmatpush1.msra.mxu0 0.0
    %3891 = vmatprep.subr.mxu0 0.0
    %3892 = vmatpush1.msra.mxu0 0.0
    %3893 = vmatprep.subr.mxu0 0.0
    %3894 = vmatpush1.msra.mxu0 0.0
    %3895 = vmatprep.subr.mxu0 0.0
    %3896 = vmatpush1.msra.mxu0 0.0
    %3897 = vmatprep.subr.mxu0 0.0
    %3898 = vmatpush1.msra.mxu0 0.0
    %3899 = vmatprep.subr.mxu0 0.0
    %3900 = vmatpush1.msra.mxu0 0.0
    %3901 = vmatprep.subr.mxu0 0.0
    %3902 = vmatpush1.msra.mxu0 0.0
    %3903 = vmatprep.subr.mxu0 0.0
    %3904 = vmatpush1.msra.mxu0 0.0
    %3905 = vmatprep.subr.mxu0 0.0
    %3906 = vmatpush1.msra.mxu0 0.0
    %3907 = vmatprep.subr.mxu0 0.0
    %3908 = vmatpush1.msra.mxu0 0.0
    %3909 = vmatprep.subr.mxu0 0.0
    %3910 = vmatpush1.msra.mxu0 %v3873
    %3911 = vmatprep.subr.mxu0 0.0
    %3912 = vmatpush1.msra.mxu0 %v3872
    %3913 = vmatprep.subr.mxu0 0.0
    %3914 = vmatpush1.msra.mxu0 %v3871
    %3915 = vmatprep.subr.mxu0 0.0
    %3916 = vmatpush1.msra.mxu0 %v3870
    %3917 = vmatprep.subr.mxu0 0.0
    %3918 = vmatpush2.msra.mxu0 0.0
    %3919 = vmatprep.subr.mxu0 0.0
    %3920 = vmatpush2.msra.mxu0 0.0
    %3921 = vmatprep.subr.mxu0 0.0
    %3922 = vmatpush2.msra.mxu0 0.0
    %3923 = vmatprep.subr.mxu0 0.0
    %3924 = vmatpush2.msra.mxu0 0.0
    %3925 = vmatprep.subr.mxu0 0.0
    %3926 = vmatpush2.msra.mxu0 0.0
    %3927 = vmatprep.subr.mxu0 0.0
    %3928 = vmatpush2.msra.mxu0 0.0
    %3929 = vmatprep.subr.mxu0 0.0
    %3930 = vmatpush2.msra.mxu0 0.0
    %3931 = vmatprep.subr.mxu0 0.0
    %3932 = vmatpush2.msra.mxu0 0.0
    %3933 = vmatprep.subr.mxu0 0.0
    %3934 = vmatpush2.msra.mxu0 0.0
    %3935 = vmatprep.subr.mxu0 0.0
    %3936 = vmatpush2.msra.mxu0 0.0
    %3937 = vmatprep.subr.mxu0 0.0
    %3938 = vmatpush2.msra.mxu0 0.0
    %3939 = vmatprep.subr.mxu0 0.0
    %3940 = vmatpush2.msra.mxu0 0.0
    %3941 = vmatprep.subr.mxu0 0.0
    %3942 = vmatpush2.msra.mxu0 0.0
    %3943 = vmatprep.subr.mxu0 0.0
    %3944 = vmatpush2.msra.mxu0 0.0
    %3945 = vmatprep.subr.mxu0 0.0
    %3946 = vmatpush2.msra.mxu0 0.0
    %3947 = vmatprep.subr.mxu0 0.0
    %3948 = vmatpush2.msra.mxu0 0.0
    %3949 = vmatprep.mubr.f32.mxu0 0.0
    %3950 = vmatmul.mubr.f32.gmra.mxu0 %v3880
    %v3951 = vpop.f32.mrf.mxu0
    %v3952 = vadd.f32 %v3878, %v3951
    %v3953 = vpop.f32.mrf.mxu0
    %3954 = vmatprep.mubr.f32.mxu0 0.0
    %3955 = vmatmul.mubr.f32.gmra.mxu0 %v3883
    %v3956 = vpop.f32.mrf.mxu0
    %v3957 = vadd.f32 %v3878, %v3956
    %v3958 = vpop.f32.mrf.mxu0
    %3959 = vdwg.mxu0
    %v3960 = vmul.f32 %v3861, 0.35355338
    %v3961 = vmul.f32 %v3866, 0.35355338
    %v3963 = vsel %vm335, %v3960, 0
    %v3966 = vsel %vm335, %v3952, 0
    %3968 = vmatprep.subr.mxu0 0.0
    %3969 = vmatpush1.xpose.msra.mxu0 0.0
    %3970 = vmatprep.subr.mxu0 0.0
    %3971 = vmatpush1.xpose.msra.mxu0 0.0
    %3972 = vmatprep.subr.mxu0 0.0
    %3973 = vmatpush1.xpose.msra.mxu0 0.0
    %3974 = vmatprep.subr.mxu0 0.0
    %3975 = vmatpush1.xpose.msra.mxu0 0.0
    %3976 = vmatprep.subr.mxu0 0.0
    %3977 = vmatpush1.xpose.msra.mxu0 0.0
    %3978 = vmatprep.subr.mxu0 0.0
    %3979 = vmatpush1.xpose.msra.mxu0 0.0
    %3980 = vmatprep.subr.mxu0 0.0
    %3981 = vmatpush1.xpose.msra.mxu0 0.0
    %3982 = vmatprep.subr.mxu0 0.0
    %3983 = vmatpush1.xpose.msra.mxu0 0.0
    %3984 = vmatprep.subr.mxu0 0.0
    %3985 = vmatpush1.xpose.msra.mxu0 0.0
    %3986 = vmatprep.subr.mxu0 0.0
    %3987 = vmatpush1.xpose.msra.mxu0 0.0
    %3988 = vmatprep.subr.mxu0 0.0
    %3989 = vmatpush1.xpose.msra.mxu0 0.0
    %3990 = vmatprep.subr.mxu0 0.0
    %3991 = vmatpush1.xpose.msra.mxu0 0.0
    %3992 = vmatprep.subr.mxu0 0.0
    %3993 = vmatpush1.xpose.msra.mxu0 0.0
    %3994 = vmatprep.subr.mxu0 0.0
    %3995 = vmatpush1.xpose.msra.mxu0 0.0
    %3996 = vmatprep.subr.mxu0 0.0
    %3997 = vmatpush1.xpose.msra.mxu0 0.0
    %3998 = vmatprep.subr.mxu0 0.0
    %3999 = vmatpush1.xpose.msra.mxu0 %v3966
    %4000 = vmatprep.subr.mxu0 0.0
    %4001 = vmatpush2.xpose.msra.mxu0 0.0
    %4002 = vmatprep.subr.mxu0 0.0
    %4003 = vmatpush2.xpose.msra.mxu0 0.0
    %4004 = vmatprep.subr.mxu0 0.0
    %4005 = vmatpush2.xpose.msra.mxu0 0.0
    %4006 = vmatprep.subr.mxu0 0.0
    %4007 = vmatpush2.xpose.msra.mxu0 0.0
    %4008 = vmatprep.subr.mxu0 0.0
    %4009 = vmatpush2.xpose.msra.mxu0 0.0
    %4010 = vmatprep.subr.mxu0 0.0
    %4011 = vmatpush2.xpose.msra.mxu0 0.0
    %4012 = vmatprep.subr.mxu0 0.0
    %4013 = vmatpush2.xpose.msra.mxu0 0.0
    %4014 = vmatprep.subr.mxu0 0.0
    %4015 = vmatpush2.xpose.msra.mxu0 0.0
    %4016 = vmatprep.subr.mxu0 0.0
    %4017 = vmatpush2.xpose.msra.mxu0 0.0
    %4018 = vmatprep.subr.mxu0 0.0
    %4019 = vmatpush2.xpose.msra.mxu0 0.0
    %4020 = vmatprep.subr.mxu0 0.0
    %4021 = vmatpush2.xpose.msra.mxu0 0.0
    %4022 = vmatprep.subr.mxu0 0.0
    %4023 = vmatpush2.xpose.msra.mxu0 0.0
    %4024 = vmatprep.subr.mxu0 0.0
    %4025 = vmatpush2.xpose.msra.mxu0 0.0
    %4026 = vmatprep.subr.mxu0 0.0
    %4027 = vmatpush2.xpose.msra.mxu0 0.0
    %4028 = vmatprep.subr.mxu0 0.0
    %4029 = vmatpush2.xpose.msra.mxu0 0.0
    %4030 = vmatprep.subr.mxu0 0.0
    %4031 = vmatpush2.xpose.msra.mxu0 0.0
    %4032 = vmatprep.mubr.f32.mxu0 0.0
    %4033 = vmatmul.mubr.f32.gmra.mxu0 %v3963
    %v4034 = vpop.f32.mrf.mxu0
    %v4035 = vadd.f32 %v325, %v4034
    %v4036 = vpop.f32.mrf.mxu0
    %4037 = vdwg.mxu0
    %v4039 = vsel %vm335, %v3961, 0
    %v4042 = vsel %vm335, %v3957, 0
    %4044 = vmatprep.subr.mxu0 0.0
    %4045 = vmatpush1.xpose.msra.mxu0 0.0
    %4046 = vmatprep.subr.mxu0 0.0
    %4047 = vmatpush1.xpose.msra.mxu0 0.0
    %4048 = vmatprep.subr.mxu0 0.0
    %4049 = vmatpush1.xpose.msra.mxu0 0.0
    %4050 = vmatprep.subr.mxu0 0.0
    %4051 = vmatpush1.xpose.msra.mxu0 0.0
    %4052 = vmatprep.subr.mxu0 0.0
    %4053 = vmatpush1.xpose.msra.mxu0 0.0
    %4054 = vmatprep.subr.mxu0 0.0
    %4055 = vmatpush1.xpose.msra.mxu0 0.0
    %4056 = vmatprep.subr.mxu0 0.0
    %4057 = vmatpush1.xpose.msra.mxu0 0.0
    %4058 = vmatprep.subr.mxu0 0.0
    %4059 = vmatpush1.xpose.msra.mxu0 0.0
    %4060 = vmatprep.subr.mxu0 0.0
    %4061 = vmatpush1.xpose.msra.mxu0 0.0
    %4062 = vmatprep.subr.mxu0 0.0
    %4063 = vmatpush1.xpose.msra.mxu0 0.0
    %4064 = vmatprep.subr.mxu0 0.0
    %4065 = vmatpush1.xpose.msra.mxu0 0.0
    %4066 = vmatprep.subr.mxu0 0.0
    %4067 = vmatpush1.xpose.msra.mxu0 0.0
    %4068 = vmatprep.subr.mxu0 0.0
    %4069 = vmatpush1.xpose.msra.mxu0 0.0
    %4070 = vmatprep.subr.mxu0 0.0
    %4071 = vmatpush1.xpose.msra.mxu0 0.0
    %4072 = vmatprep.subr.mxu0 0.0
    %4073 = vmatpush1.xpose.msra.mxu0 0.0
    %4074 = vmatprep.subr.mxu0 0.0
    %4075 = vmatpush1.xpose.msra.mxu0 %v4042
    %4076 = vmatprep.subr.mxu0 0.0
    %4077 = vmatpush2.xpose.msra.mxu0 0.0
    %4078 = vmatprep.subr.mxu0 0.0
    %4079 = vmatpush2.xpose.msra.mxu0 0.0
    %4080 = vmatprep.subr.mxu0 0.0
    %4081 = vmatpush2.xpose.msra.mxu0 0.0
    %4082 = vmatprep.subr.mxu0 0.0
    %4083 = vmatpush2.xpose.msra.mxu0 0.0
    %4084 = vmatprep.subr.mxu0 0.0
    %4085 = vmatpush2.xpose.msra.mxu0 0.0
    %4086 = vmatprep.subr.mxu0 0.0
    %4087 = vmatpush2.xpose.msra.mxu0 0.0
    %4088 = vmatprep.subr.mxu0 0.0
    %4089 = vmatpush2.xpose.msra.mxu0 0.0
    %4090 = vmatprep.subr.mxu0 0.0
    %4091 = vmatpush2.xpose.msra.mxu0 0.0
    %4092 = vmatprep.subr.mxu0 0.0
    %4093 = vmatpush2.xpose.msra.mxu0 0.0
    %4094 = vmatprep.subr.mxu0 0.0
    %4095 = vmatpush2.xpose.msra.mxu0 0.0
    %4096 = vmatprep.subr.mxu0 0.0
    %4097 = vmatpush2.xpose.msra.mxu0 0.0
    %4098 = vmatprep.subr.mxu0 0.0
    %4099 = vmatpush2.xpose.msra.mxu0 0.0
    %4100 = vmatprep.subr.mxu0 0.0
    %4101 = vmatpush2.xpose.msra.mxu0 0.0
    %4102 = vmatprep.subr.mxu0 0.0
    %4103 = vmatpush2.xpose.msra.mxu0 0.0
    %4104 = vmatprep.subr.mxu0 0.0
    %4105 = vmatpush2.xpose.msra.mxu0 0.0
    %4106 = vmatprep.subr.mxu0 0.0
    %4107 = vmatpush2.xpose.msra.mxu0 0.0
    %4108 = vmatprep.mubr.f32.mxu0 0.0
    %4109 = vmatmul.mubr.f32.gmra.mxu0 %v4039
    %v4110 = vpop.f32.mrf.mxu0
    %v4111 = vadd.f32 %v329, %v4110
    %v4112 = vpop.f32.mrf.mxu0
    %4113 = vdwg.mxu0
    %v4114 = vsel %vm335, %v4035, -inf
    %4115 = vmax.xlane.f32.xlu0 %v4114
    %v4116 = vpop.xlane.xlu0 %4115
    %v4117 = vsel %vm335, %v4111, -inf
    %4118 = vmax.xlane.f32.xlu0 %v4117
    %v4119 = vpop.xlane.xlu0 %4118
    %v4120 = vsub.f32 %v4035, %v4116
    %v4121 = vsub.f32 %v4111, %v4119
    %v4122 = vmul.f32 %v4120, 1.442695
    %v4123 = vpow.pop %v4122
    %v4124 = vmul.f32 %v4121, 1.442695
    %v4125 = vpow.pop %v4124
    %v4126 = vsel %vm335, %v4123, 0.0
    %4127 = vadd.xlane.f32.xlu0 %v4126
    %v4128 = vpop.xlane.xlu0 %4127
    %v4129 = vsel %vm335, %v4125, 0.0
    %4130 = vadd.xlane.f32.xlu0 %v4129
    %v4131 = vpop.xlane.xlu0 %4130
    %v4132 = vrcp.pop %v4128
    %v4133 = vrcp.pop %v4131
    %v4134 = vmul.f32 %v4123, %v4132
    %v4135 = vmul.f32 %v4125, %v4133
    %4136 = vrot.lane.b32.xlu0 %v3952, 96
    %v4137 = vpop.permute.xlu0 %4136
    %v4140 = vsel %vm335, %v4134, 0
    %4142 = vmatprep.subr.mxu0 0.0
    %4143 = vmatpush1.msra.mxu0 0.0
    %4144 = vmatprep.subr.mxu0 0.0
    %4145 = vmatpush1.msra.mxu0 0.0
    %4146 = vmatprep.subr.mxu0 0.0
    %4147 = vmatpush1.msra.mxu0 0.0
    %4148 = vmatprep.subr.mxu0 0.0
    %4149 = vmatpush1.msra.mxu0 0.0
    %4150 = vmatprep.subr.mxu0 0.0
    %4151 = vmatpush1.msra.mxu0 0.0
    %4152 = vmatprep.subr.mxu0 0.0
    %4153 = vmatpush1.msra.mxu0 0.0
    %4154 = vmatprep.subr.mxu0 0.0
    %4155 = vmatpush1.msra.mxu0 0.0
    %4156 = vmatprep.subr.mxu0 0.0
    %4157 = vmatpush1.msra.mxu0 0.0
    %4158 = vmatprep.subr.mxu0 0.0
    %4159 = vmatpush1.msra.mxu0 0.0
    %4160 = vmatprep.subr.mxu0 0.0
    %4161 = vmatpush1.msra.mxu0 0.0
    %4162 = vmatprep.subr.mxu0 0.0
    %4163 = vmatpush1.msra.mxu0 0.0
    %4164 = vmatprep.subr.mxu0 0.0
    %4165 = vmatpush1.msra.mxu0 0.0
    %4166 = vmatprep.subr.mxu0 0.0
    %4167 = vmatpush1.msra.mxu0 0.0
    %4168 = vmatprep.subr.mxu0 0.0
    %4169 = vmatpush1.msra.mxu0 0.0
    %4170 = vmatprep.subr.mxu0 0.0
    %4171 = vmatpush1.msra.mxu0 0.0
    %4172 = vmatprep.subr.mxu0 0.0
    %4173 = vmatpush1.msra.mxu0 %v4137
    %4174 = vmatprep.subr.mxu0 0.0
    %4175 = vmatpush2.msra.mxu0 0.0
    %4176 = vmatprep.subr.mxu0 0.0
    %4177 = vmatpush2.msra.mxu0 0.0
    %4178 = vmatprep.subr.mxu0 0.0
    %4179 = vmatpush2.msra.mxu0 0.0
    %4180 = vmatprep.subr.mxu0 0.0
    %4181 = vmatpush2.msra.mxu0 0.0
    %4182 = vmatprep.subr.mxu0 0.0
    %4183 = vmatpush2.msra.mxu0 0.0
    %4184 = vmatprep.subr.mxu0 0.0
    %4185 = vmatpush2.msra.mxu0 0.0
    %4186 = vmatprep.subr.mxu0 0.0
    %4187 = vmatpush2.msra.mxu0 0.0
    %4188 = vmatprep.subr.mxu0 0.0
    %4189 = vmatpush2.msra.mxu0 0.0
    %4190 = vmatprep.subr.mxu0 0.0
    %4191 = vmatpush2.msra.mxu0 0.0
    %4192 = vmatprep.subr.mxu0 0.0
    %4193 = vmatpush2.msra.mxu0 0.0
    %4194 = vmatprep.subr.mxu0 0.0
    %4195 = vmatpush2.msra.mxu0 0.0
    %4196 = vmatprep.subr.mxu0 0.0
    %4197 = vmatpush2.msra.mxu0 0.0
    %4198 = vmatprep.subr.mxu0 0.0
    %4199 = vmatpush2.msra.mxu0 0.0
    %4200 = vmatprep.subr.mxu0 0.0
    %4201 = vmatpush2.msra.mxu0 0.0
    %4202 = vmatprep.subr.mxu0 0.0
    %4203 = vmatpush2.msra.mxu0 0.0
    %4204 = vmatprep.subr.mxu0 0.0
    %4205 = vmatpush2.msra.mxu0 0.0
    %4206 = vmatprep.mubr.f32.mxu0 0.0
    %4207 = vmatmul.mubr.f32.gmra.mxu0 %v4140
    %v4208 = vpop.f32.mrf.mxu0
    %v4209 = vadd.f32 0.0, %v4208
    %v4210 = vpop.f32.mrf.mxu0
    %4211 = vdwg.mxu0
    %4212 = vrot.lane.b32.xlu0 %v3957, 96
    %v4213 = vpop.permute.xlu0 %4212
    %v4216 = vsel %vm335, %v4135, 0
    %4218 = vmatprep.subr.mxu0 0.0
    %4219 = vmatpush1.msra.mxu0 0.0
    %4220 = vmatprep.subr.mxu0 0.0
    %4221 = vmatpush1.msra.mxu0 0.0
    %4222 = vmatprep.subr.mxu0 0.0
    %4223 = vmatpush1.msra.mxu0 0.0
    %4224 = vmatprep.subr.mxu0 0.0
    %4225 = vmatpush1.msra.mxu0 0.0
    %4226 = vmatprep.subr.mxu0 0.0
    %4227 = vmatpush1.msra.mxu0 0.0
    %4228 = vmatprep.subr.mxu0 0.0
    %4229 = vmatpush1.msra.mxu0 0.0
    %4230 = vmatprep.subr.mxu0 0.0
    %4231 = vmatpush1.msra.mxu0 0.0
    %4232 = vmatprep.subr.mxu0 0.0
    %4233 = vmatpush1.msra.mxu0 0.0
    %4234 = vmatprep.subr.mxu0 0.0
    %4235 = vmatpush1.msra.mxu0 0.0
    %4236 = vmatprep.subr.mxu0 0.0
    %4237 = vmatpush1.msra.mxu0 0.0
    %4238 = vmatprep.subr.mxu0 0.0
    %4239 = vmatpush1.msra.mxu0 0.0
    %4240 = vmatprep.subr.mxu0 0.0
    %4241 = vmatpush1.msra.mxu0 0.0
    %4242 = vmatprep.subr.mxu0 0.0
    %4243 = vmatpush1.msra.mxu0 0.0
    %4244 = vmatprep.subr.mxu0 0.0
    %4245 = vmatpush1.msra.mxu0 0.0
    %4246 = vmatprep.subr.mxu0 0.0
    %4247 = vmatpush1.msra.mxu0 0.0
    %4248 = vmatprep.subr.mxu0 0.0
    %4249 = vmatpush1.msra.mxu0 %v4213
    %4250 = vmatprep.subr.mxu0 0.0
    %4251 = vmatpush2.msra.mxu0 0.0
    %4252 = vmatprep.subr.mxu0 0.0
    %4253 = vmatpush2.msra.mxu0 0.0
    %4254 = vmatprep.subr.mxu0 0.0
    %4255 = vmatpush2.msra.mxu0 0.0
    %4256 = vmatprep.subr.mxu0 0.0
    %4257 = vmatpush2.msra.mxu0 0.0
    %4258 = vmatprep.subr.mxu0 0.0
    %4259 = vmatpush2.msra.mxu0 0.0
    %4260 = vmatprep.subr.mxu0 0.0
    %4261 = vmatpush2.msra.mxu0 0.0
    %4262 = vmatprep.subr.mxu0 0.0
    %4263 = vmatpush2.msra.mxu0 0.0
    %4264 = vmatprep.subr.mxu0 0.0
    %4265 = vmatpush2.msra.mxu0 0.0
    %4266 = vmatprep.subr.mxu0 0.0
    %4267 = vmatpush2.msra.mxu0 0.0
    %4268 = vmatprep.subr.mxu0 0.0
    %4269 = vmatpush2.msra.mxu0 0.0
    %4270 = vmatprep.subr.mxu0 0.0
    %4271 = vmatpush2.msra.mxu0 0.0
    %4272 = vmatprep.subr.mxu0 0.0
    %4273 = vmatpush2.msra.mxu0 0.0
    %4274 = vmatprep.subr.mxu0 0.0
    %4275 = vmatpush2.msra.mxu0 0.0
    %4276 = vmatprep.subr.mxu0 0.0
    %4277 = vmatpush2.msra.mxu0 0.0
    %4278 = vmatprep.subr.mxu0 0.0
    %4279 = vmatpush2.msra.mxu0 0.0
    %4280 = vmatprep.subr.mxu0 0.0
    %4281 = vmatpush2.msra.mxu0 0.0
    %4282 = vmatprep.mubr.f32.mxu0 0.0
    %4283 = vmatmul.mubr.f32.gmra.mxu0 %v4216
    %v4284 = vpop.f32.mrf.mxu0
    %v4285 = vadd.f32 0.0, %v4284
    %v4286 = vpop.f32.mrf.mxu0
    %4287 = vdwg.mxu0
    %4288 = vrot.lane.b32.xlu0 %v3960, 120
    %v4289 = vpop.permute.xlu0 %4288
    %4290 = vrot.lane.b32.xlu0 %v3952, 120
    %v4291 = vpop.permute.xlu0 %4290
    %v4292 = vsel %vm335, %v4289, 0
    %v4294 = vsel %vm335, %v4291, 0
    %4296 = vmatprep.subr.mxu0 0.0
    %4297 = vmatpush1.xpose.msra.mxu0 0.0
    %4298 = vmatprep.subr.mxu0 0.0
    %4299 = vmatpush1.xpose.msra.mxu0 0.0
    %4300 = vmatprep.subr.mxu0 0.0
    %4301 = vmatpush1.xpose.msra.mxu0 0.0
    %4302 = vmatprep.subr.mxu0 0.0
    %4303 = vmatpush1.xpose.msra.mxu0 0.0
    %4304 = vmatprep.subr.mxu0 0.0
    %4305 = vmatpush1.xpose.msra.mxu0 0.0
    %4306 = vmatprep.subr.mxu0 0.0
    %4307 = vmatpush1.xpose.msra.mxu0 0.0
    %4308 = vmatprep.subr.mxu0 0.0
    %4309 = vmatpush1.xpose.msra.mxu0 0.0
    %4310 = vmatprep.subr.mxu0 0.0
    %4311 = vmatpush1.xpose.msra.mxu0 0.0
    %4312 = vmatprep.subr.mxu0 0.0
    %4313 = vmatpush1.xpose.msra.mxu0 0.0
    %4314 = vmatprep.subr.mxu0 0.0
    %4315 = vmatpush1.xpose.msra.mxu0 0.0
    %4316 = vmatprep.subr.mxu0 0.0
    %4317 = vmatpush1.xpose.msra.mxu0 0.0
    %4318 = vmatprep.subr.mxu0 0.0
    %4319 = vmatpush1.xpose.msra.mxu0 0.0
    %4320 = vmatprep.subr.mxu0 0.0
    %4321 = vmatpush1.xpose.msra.mxu0 0.0
    %4322 = vmatprep.subr.mxu0 0.0
    %4323 = vmatpush1.xpose.msra.mxu0 0.0
    %4324 = vmatprep.subr.mxu0 0.0
    %4325 = vmatpush1.xpose.msra.mxu0 0.0
    %4326 = vmatprep.subr.mxu0 0.0
    %4327 = vmatpush1.xpose.msra.mxu0 %v4294
    %4328 = vmatprep.subr.mxu0 0.0
    %4329 = vmatpush2.xpose.msra.mxu0 0.0
    %4330 = vmatprep.subr.mxu0 0.0
    %4331 = vmatpush2.xpose.msra.mxu0 0.0
    %4332 = vmatprep.subr.mxu0 0.0
    %4333 = vmatpush2.xpose.msra.mxu0 0.0
    %4334 = vmatprep.subr.mxu0 0.0
    %4335 = vmatpush2.xpose.msra.mxu0 0.0
    %4336 = vmatprep.subr.mxu0 0.0
    %4337 = vmatpush2.xpose.msra.mxu0 0.0
    %4338 = vmatprep.subr.mxu0 0.0
    %4339 = vmatpush2.xpose.msra.mxu0 0.0
    %4340 = vmatprep.subr.mxu0 0.0
    %4341 = vmatpush2.xpose.msra.mxu0 0.0
    %4342 = vmatprep.subr.mxu0 0.0
    %4343 = vmatpush2.xpose.msra.mxu0 0.0
    %4344 = vmatprep.subr.mxu0 0.0
    %4345 = vmatpush2.xpose.msra.mxu0 0.0
    %4346 = vmatprep.subr.mxu0 0.0
    %4347 = vmatpush2.xpose.msra.mxu0 0.0
    %4348 = vmatprep.subr.mxu0 0.0
    %4349 = vmatpush2.xpose.msra.mxu0 0.0
    %4350 = vmatprep.subr.mxu0 0.0
    %4351 = vmatpush2.xpose.msra.mxu0 0.0
    %4352 = vmatprep.subr.mxu0 0.0
    %4353 = vmatpush2.xpose.msra.mxu0 0.0
    %4354 = vmatprep.subr.mxu0 0.0
    %4355 = vmatpush2.xpose.msra.mxu0 0.0
    %4356 = vmatprep.subr.mxu0 0.0
    %4357 = vmatpush2.xpose.msra.mxu0 0.0
    %4358 = vmatprep.subr.mxu0 0.0
    %4359 = vmatpush2.xpose.msra.mxu0 0.0
    %4360 = vmatprep.mubr.f32.mxu0 0.0
    %4361 = vmatmul.mubr.f32.gmra.mxu0 %v4292
    %v4362 = vpop.f32.mrf.mxu0
    %v4363 = vadd.f32 %v325, %v4362
    %v4364 = vpop.f32.mrf.mxu0
    %4365 = vdwg.mxu0
    %4366 = vrot.lane.b32.xlu0 %v3961, 120
    %v4367 = vpop.permute.xlu0 %4366
    %4368 = vrot.lane.b32.xlu0 %v3957, 120
    %v4369 = vpop.permute.xlu0 %4368
    %v4370 = vsel %vm335, %v4367, 0
    %v4372 = vsel %vm335, %v4369, 0
    %4374 = vmatprep.subr.mxu0 0.0
    %4375 = vmatpush1.xpose.msra.mxu0 0.0
    %4376 = vmatprep.subr.mxu0 0.0
    %4377 = vmatpush1.xpose.msra.mxu0 0.0
    %4378 = vmatprep.subr.mxu0 0.0
    %4379 = vmatpush1.xpose.msra.mxu0 0.0
    %4380 = vmatprep.subr.mxu0 0.0
    %4381 = vmatpush1.xpose.msra.mxu0 0.0
    %4382 = vmatprep.subr.mxu0 0.0
    %4383 = vmatpush1.xpose.msra.mxu0 0.0
    %4384 = vmatprep.subr.mxu0 0.0
    %4385 = vmatpush1.xpose.msra.mxu0 0.0
    %4386 = vmatprep.subr.mxu0 0.0
    %4387 = vmatpush1.xpose.msra.mxu0 0.0
    %4388 = vmatprep.subr.mxu0 0.0
    %4389 = vmatpush1.xpose.msra.mxu0 0.0
    %4390 = vmatprep.subr.mxu0 0.0
    %4391 = vmatpush1.xpose.msra.mxu0 0.0
    %4392 = vmatprep.subr.mxu0 0.0
    %4393 = vmatpush1.xpose.msra.mxu0 0.0
    %4394 = vmatprep.subr.mxu0 0.0
    %4395 = vmatpush1.xpose.msra.mxu0 0.0
    %4396 = vmatprep.subr.mxu0 0.0
    %4397 = vmatpush1.xpose.msra.mxu0 0.0
    %4398 = vmatprep.subr.mxu0 0.0
    %4399 = vmatpush1.xpose.msra.mxu0 0.0
    %4400 = vmatprep.subr.mxu0 0.0
    %4401 = vmatpush1.xpose.msra.mxu0 0.0
    %4402 = vmatprep.subr.mxu0 0.0
    %4403 = vmatpush1.xpose.msra.mxu0 0.0
    %4404 = vmatprep.subr.mxu0 0.0
    %4405 = vmatpush1.xpose.msra.mxu0 %v4372
    %4406 = vmatprep.subr.mxu0 0.0
    %4407 = vmatpush2.xpose.msra.mxu0 0.0
    %4408 = vmatprep.subr.mxu0 0.0
    %4409 = vmatpush2.xpose.msra.mxu0 0.0
    %4410 = vmatprep.subr.mxu0 0.0
    %4411 = vmatpush2.xpose.msra.mxu0 0.0
    %4412 = vmatprep.subr.mxu0 0.0
    %4413 = vmatpush2.xpose.msra.mxu0 0.0
    %4414 = vmatprep.subr.mxu0 0.0
    %4415 = vmatpush2.xpose.msra.mxu0 0.0
    %4416 = vmatprep.subr.mxu0 0.0
    %4417 = vmatpush2.xpose.msra.mxu0 0.0
    %4418 = vmatprep.subr.mxu0 0.0
    %4419 = vmatpush2.xpose.msra.mxu0 0.0
    %4420 = vmatprep.subr.mxu0 0.0
    %4421 = vmatpush2.xpose.msra.mxu0 0.0
    %4422 = vmatprep.subr.mxu0 0.0
    %4423 = vmatpush2.xpose.msra.mxu0 0.0
    %4424 = vmatprep.subr.mxu0 0.0
    %4425 = vmatpush2.xpose.msra.mxu0 0.0
    %4426 = vmatprep.subr.mxu0 0.0
    %4427 = vmatpush2.xpose.msra.mxu0 0.0
    %4428 = vmatprep.subr.mxu0 0.0
    %4429 = vmatpush2.xpose.msra.mxu0 0.0
    %4430 = vmatprep.subr.mxu0 0.0
    %4431 = vmatpush2.xpose.msra.mxu0 0.0
    %4432 = vmatprep.subr.mxu0 0.0
    %4433 = vmatpush2.xpose.msra.mxu0 0.0
    %4434 = vmatprep.subr.mxu0 0.0
    %4435 = vmatpush2.xpose.msra.mxu0 0.0
    %4436 = vmatprep.subr.mxu0 0.0
    %4437 = vmatpush2.xpose.msra.mxu0 0.0
    %4438 = vmatprep.mubr.f32.mxu0 0.0
    %4439 = vmatmul.mubr.f32.gmra.mxu0 %v4370
    %v4440 = vpop.f32.mrf.mxu0
    %v4441 = vadd.f32 %v329, %v4440
    %v4442 = vpop.f32.mrf.mxu0
    %4443 = vdwg.mxu0
    %v4444 = vsel %vm335, %v4363, -inf
    %4445 = vmax.xlane.f32.xlu0 %v4444
    %v4446 = vpop.xlane.xlu0 %4445
    %v4447 = vsel %vm335, %v4441, -inf
    %4448 = vmax.xlane.f32.xlu0 %v4447
    %v4449 = vpop.xlane.xlu0 %4448
    %v4450 = vsub.f32 %v4363, %v4446
    %v4451 = vsub.f32 %v4441, %v4449
    %v4452 = vmul.f32 %v4450, 1.442695
    %v4453 = vpow.pop %v4452
    %v4454 = vmul.f32 %v4451, 1.442695
    %v4455 = vpow.pop %v4454
    %v4456 = vsel %vm335, %v4453, 0.0
    %4457 = vadd.xlane.f32.xlu0 %v4456
    %v4458 = vpop.xlane.xlu0 %4457
    %v4459 = vsel %vm335, %v4455, 0.0
    %4460 = vadd.xlane.f32.xlu0 %v4459
    %v4461 = vpop.xlane.xlu0 %4460
    %v4462 = vrcp.pop %v4458
    %v4463 = vrcp.pop %v4461
    %v4464 = vmul.f32 %v4453, %v4462
    %v4465 = vmul.f32 %v4455, %v4463
    %4466 = vrot.lane.b32.xlu0 %v3952, 88
    %v4467 = vpop.permute.xlu0 %4466
    %v4470 = vsel %vm335, %v4464, 0
    %4472 = vmatprep.subr.mxu0 0.0
    %4473 = vmatpush1.msra.mxu0 0.0
    %4474 = vmatprep.subr.mxu0 0.0
    %4475 = vmatpush1.msra.mxu0 0.0
    %4476 = vmatprep.subr.mxu0 0.0
    %4477 = vmatpush1.msra.mxu0 0.0
    %4478 = vmatprep.subr.mxu0 0.0
    %4479 = vmatpush1.msra.mxu0 0.0
    %4480 = vmatprep.subr.mxu0 0.0
    %4481 = vmatpush1.msra.mxu0 0.0
    %4482 = vmatprep.subr.mxu0 0.0
    %4483 = vmatpush1.msra.mxu0 0.0
    %4484 = vmatprep.subr.mxu0 0.0
    %4485 = vmatpush1.msra.mxu0 0.0
    %4486 = vmatprep.subr.mxu0 0.0
    %4487 = vmatpush1.msra.mxu0 0.0
    %4488 = vmatprep.subr.mxu0 0.0
    %4489 = vmatpush1.msra.mxu0 0.0
    %4490 = vmatprep.subr.mxu0 0.0
    %4491 = vmatpush1.msra.mxu0 0.0
    %4492 = vmatprep.subr.mxu0 0.0
    %4493 = vmatpush1.msra.mxu0 0.0
    %4494 = vmatprep.subr.mxu0 0.0
    %4495 = vmatpush1.msra.mxu0 0.0
    %4496 = vmatprep.subr.mxu0 0.0
    %4497 = vmatpush1.msra.mxu0 0.0
    %4498 = vmatprep.subr.mxu0 0.0
    %4499 = vmatpush1.msra.mxu0 0.0
    %4500 = vmatprep.subr.mxu0 0.0
    %4501 = vmatpush1.msra.mxu0 0.0
    %4502 = vmatprep.subr.mxu0 0.0
    %4503 = vmatpush1.msra.mxu0 %v4467
    %4504 = vmatprep.subr.mxu0 0.0
    %4505 = vmatpush2.msra.mxu0 0.0
    %4506 = vmatprep.subr.mxu0 0.0
    %4507 = vmatpush2.msra.mxu0 0.0
    %4508 = vmatprep.subr.mxu0 0.0
    %4509 = vmatpush2.msra.mxu0 0.0
    %4510 = vmatprep.subr.mxu0 0.0
    %4511 = vmatpush2.msra.mxu0 0.0
    %4512 = vmatprep.subr.mxu0 0.0
    %4513 = vmatpush2.msra.mxu0 0.0
    %4514 = vmatprep.subr.mxu0 0.0
    %4515 = vmatpush2.msra.mxu0 0.0
    %4516 = vmatprep.subr.mxu0 0.0
    %4517 = vmatpush2.msra.mxu0 0.0
    %4518 = vmatprep.subr.mxu0 0.0
    %4519 = vmatpush2.msra.mxu0 0.0
    %4520 = vmatprep.subr.mxu0 0.0
    %4521 = vmatpush2.msra.mxu0 0.0
    %4522 = vmatprep.subr.mxu0 0.0
    %4523 = vmatpush2.msra.mxu0 0.0
    %4524 = vmatprep.subr.mxu0 0.0
    %4525 = vmatpush2.msra.mxu0 0.0
    %4526 = vmatprep.subr.mxu0 0.0
    %4527 = vmatpush2.msra.mxu0 0.0
    %4528 = vmatprep.subr.mxu0 0.0
    %4529 = vmatpush2.msra.mxu0 0.0
    %4530 = vmatprep.subr.mxu0 0.0
    %4531 = vmatpush2.msra.mxu0 0.0
    %4532 = vmatprep.subr.mxu0 0.0
    %4533 = vmatpush2.msra.mxu0 0.0
    %4534 = vmatprep.subr.mxu0 0.0
    %4535 = vmatpush2.msra.mxu0 0.0
    %4536 = vmatprep.mubr.f32.mxu0 0.0
    %4537 = vmatmul.mubr.f32.gmra.mxu0 %v4470
    %v4538 = vpop.f32.mrf.mxu0
    %v4539 = vadd.f32 0.0, %v4538
    %v4540 = vpop.f32.mrf.mxu0
    %4541 = vdwg.mxu0
    %4542 = vrot.lane.b32.xlu0 %v3957, 88
    %v4543 = vpop.permute.xlu0 %4542
    %v4546 = vsel %vm335, %v4465, 0
    %4548 = vmatprep.subr.mxu0 0.0
    %4549 = vmatpush1.msra.mxu0 0.0
    %4550 = vmatprep.subr.mxu0 0.0
    %4551 = vmatpush1.msra.mxu0 0.0
    %4552 = vmatprep.subr.mxu0 0.0
    %4553 = vmatpush1.msra.mxu0 0.0
    %4554 = vmatprep.subr.mxu0 0.0
    %4555 = vmatpush1.msra.mxu0 0.0
    %4556 = vmatprep.subr.mxu0 0.0
    %4557 = vmatpush1.msra.mxu0 0.0
    %4558 = vmatprep.subr.mxu0 0.0
    %4559 = vmatpush1.msra.mxu0 0.0
    %4560 = vmatprep.subr.mxu0 0.0
    %4561 = vmatpush1.msra.mxu0 0.0
    %4562 = vmatprep.subr.mxu0 0.0
    %4563 = vmatpush1.msra.mxu0 0.0
    %4564 = vmatprep.subr.mxu0 0.0
    %4565 = vmatpush1.msra.mxu0 0.0
    %4566 = vmatprep.subr.mxu0 0.0
    %4567 = vmatpush1.msra.mxu0 0.0
    %4568 = vmatprep.subr.mxu0 0.0
    %4569 = vmatpush1.msra.mxu0 0.0
    %4570 = vmatprep.subr.mxu0 0.0
    %4571 = vmatpush1.msra.mxu0 0.0
    %4572 = vmatprep.subr.mxu0 0.0
    %4573 = vmatpush1.msra.mxu0 0.0
    %4574 = vmatprep.subr.mxu0 0.0
    %4575 = vmatpush1.msra.mxu0 0.0
    %4576 = vmatprep.subr.mxu0 0.0
    %4577 = vmatpush1.msra.mxu0 0.0
    %4578 = vmatprep.subr.mxu0 0.0
    %4579 = vmatpush1.msra.mxu0 %v4543
    %4580 = vmatprep.subr.mxu0 0.0
    %4581 = vmatpush2.msra.mxu0 0.0
    %4582 = vmatprep.subr.mxu0 0.0
    %4583 = vmatpush2.msra.mxu0 0.0
    %4584 = vmatprep.subr.mxu0 0.0
    %4585 = vmatpush2.msra.mxu0 0.0
    %4586 = vmatprep.subr.mxu0 0.0
    %4587 = vmatpush2.msra.mxu0 0.0
    %4588 = vmatprep.subr.mxu0 0.0
    %4589 = vmatpush2.msra.mxu0 0.0
    %4590 = vmatprep.subr.mxu0 0.0
    %4591 = vmatpush2.msra.mxu0 0.0
    %4592 = vmatprep.subr.mxu0 0.0
    %4593 = vmatpush2.msra.mxu0 0.0
    %4594 = vmatprep.subr.mxu0 0.0
    %4595 = vmatpush2.msra.mxu0 0.0
    %4596 = vmatprep.subr.mxu0 0.0
    %4597 = vmatpush2.msra.mxu0 0.0
    %4598 = vmatprep.subr.mxu0 0.0
    %4599 = vmatpush2.msra.mxu0 0.0
    %4600 = vmatprep.subr.mxu0 0.0
    %4601 = vmatpush2.msra.mxu0 0.0
    %4602 = vmatprep.subr.mxu0 0.0
    %4603 = vmatpush2.msra.mxu0 0.0
    %4604 = vmatprep.subr.mxu0 0.0
    %4605 = vmatpush2.msra.mxu0 0.0
    %4606 = vmatprep.subr.mxu0 0.0
    %4607 = vmatpush2.msra.mxu0 0.0
    %4608 = vmatprep.subr.mxu0 0.0
    %4609 = vmatpush2.msra.mxu0 0.0
    %4610 = vmatprep.subr.mxu0 0.0
    %4611 = vmatpush2.msra.mxu0 0.0
    %4612 = vmatprep.mubr.f32.mxu0 0.0
    %4613 = vmatmul.mubr.f32.gmra.mxu0 %v4546
    %v4614 = vpop.f32.mrf.mxu0
    %v4615 = vadd.f32 0.0, %v4614
    %v4616 = vpop.f32.mrf.mxu0
    %4617 = vdwg.mxu0
    %4618 = vrot.lane.b32.xlu0 %v3960, 112
    %v4619 = vpop.permute.xlu0 %4618
    %4620 = vrot.lane.b32.xlu0 %v3952, 112
    %v4621 = vpop.permute.xlu0 %4620
    %v4622 = vsel %vm335, %v4619, 0
    %v4624 = vsel %vm335, %v4621, 0
    %4626 = vmatprep.subr.mxu0 0.0
    %4627 = vmatpush1.xpose.msra.mxu0 0.0
    %4628 = vmatprep.subr.mxu0 0.0
    %4629 = vmatpush1.xpose.msra.mxu0 0.0
    %4630 = vmatprep.subr.mxu0 0.0
    %4631 = vmatpush1.xpose.msra.mxu0 0.0
    %4632 = vmatprep.subr.mxu0 0.0
    %4633 = vmatpush1.xpose.msra.mxu0 0.0
    %4634 = vmatprep.subr.mxu0 0.0
    %4635 = vmatpush1.xpose.msra.mxu0 0.0
    %4636 = vmatprep.subr.mxu0 0.0
    %4637 = vmatpush1.xpose.msra.mxu0 0.0
    %4638 = vmatprep.subr.mxu0 0.0
    %4639 = vmatpush1.xpose.msra.mxu0 0.0
    %4640 = vmatprep.subr.mxu0 0.0
    %4641 = vmatpush1.xpose.msra.mxu0 0.0
    %4642 = vmatprep.subr.mxu0 0.0
    %4643 = vmatpush1.xpose.msra.mxu0 0.0
    %4644 = vmatprep.subr.mxu0 0.0
    %4645 = vmatpush1.xpose.msra.mxu0 0.0
    %4646 = vmatprep.subr.mxu0 0.0
    %4647 = vmatpush1.xpose.msra.mxu0 0.0
    %4648 = vmatprep.subr.mxu0 0.0
    %4649 = vmatpush1.xpose.msra.mxu0 0.0
    %4650 = vmatprep.subr.mxu0 0.0
    %4651 = vmatpush1.xpose.msra.mxu0 0.0
    %4652 = vmatprep.subr.mxu0 0.0
    %4653 = vmatpush1.xpose.msra.mxu0 0.0
    %4654 = vmatprep.subr.mxu0 0.0
    %4655 = vmatpush1.xpose.msra.mxu0 0.0
    %4656 = vmatprep.subr.mxu0 0.0
    %4657 = vmatpush1.xpose.msra.mxu0 %v4624
    %4658 = vmatprep.subr.mxu0 0.0
    %4659 = vmatpush2.xpose.msra.mxu0 0.0
    %4660 = vmatprep.subr.mxu0 0.0
    %4661 = vmatpush2.xpose.msra.mxu0 0.0
    %4662 = vmatprep.subr.mxu0 0.0
    %4663 = vmatpush2.xpose.msra.mxu0 0.0
    %4664 = vmatprep.subr.mxu0 0.0
    %4665 = vmatpush2.xpose.msra.mxu0 0.0
    %4666 = vmatprep.subr.mxu0 0.0
    %4667 = vmatpush2.xpose.msra.mxu0 0.0
    %4668 = vmatprep.subr.mxu0 0.0
    %4669 = vmatpush2.xpose.msra.mxu0 0.0
    %4670 = vmatprep.subr.mxu0 0.0
    %4671 = vmatpush2.xpose.msra.mxu0 0.0
    %4672 = vmatprep.subr.mxu0 0.0
    %4673 = vmatpush2.xpose.msra.mxu0 0.0
    %4674 = vmatprep.subr.mxu0 0.0
    %4675 = vmatpush2.xpose.msra.mxu0 0.0
    %4676 = vmatprep.subr.mxu0 0.0
    %4677 = vmatpush2.xpose.msra.mxu0 0.0
    %4678 = vmatprep.subr.mxu0 0.0
    %4679 = vmatpush2.xpose.msra.mxu0 0.0
    %4680 = vmatprep.subr.mxu0 0.0
    %4681 = vmatpush2.xpose.msra.mxu0 0.0
    %4682 = vmatprep.subr.mxu0 0.0
    %4683 = vmatpush2.xpose.msra.mxu0 0.0
    %4684 = vmatprep.subr.mxu0 0.0
    %4685 = vmatpush2.xpose.msra.mxu0 0.0
    %4686 = vmatprep.subr.mxu0 0.0
    %4687 = vmatpush2.xpose.msra.mxu0 0.0
    %4688 = vmatprep.subr.mxu0 0.0
    %4689 = vmatpush2.xpose.msra.mxu0 0.0
    %4690 = vmatprep.mubr.f32.mxu0 0.0
    %4691 = vmatmul.mubr.f32.gmra.mxu0 %v4622
    %v4692 = vpop.f32.mrf.mxu0
    %v4693 = vadd.f32 %v325, %v4692
    %v4694 = vpop.f32.mrf.mxu0
    %4695 = vdwg.mxu0
    %4696 = vrot.lane.b32.xlu0 %v3961, 112
    %v4697 = vpop.permute.xlu0 %4696
    %4698 = vrot.lane.b32.xlu0 %v3957, 112
    %v4699 = vpop.permute.xlu0 %4698
    %v4700 = vsel %vm335, %v4697, 0
    %v4702 = vsel %vm335, %v4699, 0
    %4704 = vmatprep.subr.mxu0 0.0
    %4705 = vmatpush1.xpose.msra.mxu0 0.0
    %4706 = vmatprep.subr.mxu0 0.0
    %4707 = vmatpush1.xpose.msra.mxu0 0.0
    %4708 = vmatprep.subr.mxu0 0.0
    %4709 = vmatpush1.xpose.msra.mxu0 0.0
    %4710 = vmatprep.subr.mxu0 0.0
    %4711 = vmatpush1.xpose.msra.mxu0 0.0
    %4712 = vmatprep.subr.mxu0 0.0
    %4713 = vmatpush1.xpose.msra.mxu0 0.0
    %4714 = vmatprep.subr.mxu0 0.0
    %4715 = vmatpush1.xpose.msra.mxu0 0.0
    %4716 = vmatprep.subr.mxu0 0.0
    %4717 = vmatpush1.xpose.msra.mxu0 0.0
    %4718 = vmatprep.subr.mxu0 0.0
    %4719 = vmatpush1.xpose.msra.mxu0 0.0
    %4720 = vmatprep.subr.mxu0 0.0
    %4721 = vmatpush1.xpose.msra.mxu0 0.0
    %4722 = vmatprep.subr.mxu0 0.0
    %4723 = vmatpush1.xpose.msra.mxu0 0.0
    %4724 = vmatprep.subr.mxu0 0.0
    %4725 = vmatpush1.xpose.msra.mxu0 0.0
    %4726 = vmatprep.subr.mxu0 0.0
    %4727 = vmatpush1.xpose.msra.mxu0 0.0
    %4728 = vmatprep.subr.mxu0 0.0
    %4729 = vmatpush1.xpose.msra.mxu0 0.0
    %4730 = vmatprep.subr.mxu0 0.0
    %4731 = vmatpush1.xpose.msra.mxu0 0.0
    %4732 = vmatprep.subr.mxu0 0.0
    %4733 = vmatpush1.xpose.msra.mxu0 0.0
    %4734 = vmatprep.subr.mxu0 0.0
    %4735 = vmatpush1.xpose.msra.mxu0 %v4702
    %4736 = vmatprep.subr.mxu0 0.0
    %4737 = vmatpush2.xpose.msra.mxu0 0.0
    %4738 = vmatprep.subr.mxu0 0.0
    %4739 = vmatpush2.xpose.msra.mxu0 0.0
    %4740 = vmatprep.subr.mxu0 0.0
    %4741 = vmatpush2.xpose.msra.mxu0 0.0
    %4742 = vmatprep.subr.mxu0 0.0
    %4743 = vmatpush2.xpose.msra.mxu0 0.0
    %4744 = vmatprep.subr.mxu0 0.0
    %4745 = vmatpush2.xpose.msra.mxu0 0.0
    %4746 = vmatprep.subr.mxu0 0.0
    %4747 = vmatpush2.xpose.msra.mxu0 0.0
    %4748 = vmatprep.subr.mxu0 0.0
    %4749 = vmatpush2.xpose.msra.mxu0 0.0
    %4750 = vmatprep.subr.mxu0 0.0
    %4751 = vmatpush2.xpose.msra.mxu0 0.0
    %4752 = vmatprep.subr.mxu0 0.0
    %4753 = vmatpush2.xpose.msra.mxu0 0.0
    %4754 = vmatprep.subr.mxu0 0.0
    %4755 = vmatpush2.xpose.msra.mxu0 0.0
    %4756 = vmatprep.subr.mxu0 0.0
    %4757 = vmatpush2.xpose.msra.mxu0 0.0
    %4758 = vmatprep.subr.mxu0 0.0
    %4759 = vmatpush2.xpose.msra.mxu0 0.0
    %4760 = vmatprep.subr.mxu0 0.0
    %4761 = vmatpush2.xpose.msra.mxu0 0.0
    %4762 = vmatprep.subr.mxu0 0.0
    %4763 = vmatpush2.xpose.msra.mxu0 0.0
    %4764 = vmatprep.subr.mxu0 0.0
    %4765 = vmatpush2.xpose.msra.mxu0 0.0
    %4766 = vmatprep.subr.mxu0 0.0
    %4767 = vmatpush2.xpose.msra.mxu0 0.0
    %4768 = vmatprep.mubr.f32.mxu0 0.0
    %4769 = vmatmul.mubr.f32.gmra.mxu0 %v4700
    %v4770 = vpop.f32.mrf.mxu0
    %v4771 = vadd.f32 %v329, %v4770
    %v4772 = vpop.f32.mrf.mxu0
    %4773 = vdwg.mxu0
    %v4774 = vsel %vm335, %v4693, -inf
    %4775 = vmax.xlane.f32.xlu0 %v4774
    %v4776 = vpop.xlane.xlu0 %4775
    %v4777 = vsel %vm335, %v4771, -inf
    %4778 = vmax.xlane.f32.xlu0 %v4777
    %v4779 = vpop.xlane.xlu0 %4778
    %v4780 = vsub.f32 %v4693, %v4776
    %v4781 = vsub.f32 %v4771, %v4779
    %v4782 = vmul.f32 %v4780, 1.442695
    %v4783 = vpow.pop %v4782
    %v4784 = vmul.f32 %v4781, 1.442695
    %v4785 = vpow.pop %v4784
    %v4786 = vsel %vm335, %v4783, 0.0
    %4787 = vadd.xlane.f32.xlu0 %v4786
    %v4788 = vpop.xlane.xlu0 %4787
    %v4789 = vsel %vm335, %v4785, 0.0
    %4790 = vadd.xlane.f32.xlu0 %v4789
    %v4791 = vpop.xlane.xlu0 %4790
    %v4792 = vrcp.pop %v4788
    %v4793 = vrcp.pop %v4791
    %v4794 = vmul.f32 %v4783, %v4792
    %v4795 = vmul.f32 %v4785, %v4793
    %4796 = vrot.lane.b32.xlu0 %v3952, 80
    %v4797 = vpop.permute.xlu0 %4796
    %v4800 = vsel %vm335, %v4794, 0
    %4802 = vmatprep.subr.mxu0 0.0
    %4803 = vmatpush1.msra.mxu0 0.0
    %4804 = vmatprep.subr.mxu0 0.0
    %4805 = vmatpush1.msra.mxu0 0.0
    %4806 = vmatprep.subr.mxu0 0.0
    %4807 = vmatpush1.msra.mxu0 0.0
    %4808 = vmatprep.subr.mxu0 0.0
    %4809 = vmatpush1.msra.mxu0 0.0
    %4810 = vmatprep.subr.mxu0 0.0
    %4811 = vmatpush1.msra.mxu0 0.0
    %4812 = vmatprep.subr.mxu0 0.0
    %4813 = vmatpush1.msra.mxu0 0.0
    %4814 = vmatprep.subr.mxu0 0.0
    %4815 = vmatpush1.msra.mxu0 0.0
    %4816 = vmatprep.subr.mxu0 0.0
    %4817 = vmatpush1.msra.mxu0 0.0
    %4818 = vmatprep.subr.mxu0 0.0
    %4819 = vmatpush1.msra.mxu0 0.0
    %4820 = vmatprep.subr.mxu0 0.0
    %4821 = vmatpush1.msra.mxu0 0.0
    %4822 = vmatprep.subr.mxu0 0.0
    %4823 = vmatpush1.msra.mxu0 0.0
    %4824 = vmatprep.subr.mxu0 0.0
    %4825 = vmatpush1.msra.mxu0 0.0
    %4826 = vmatprep.subr.mxu0 0.0
    %4827 = vmatpush1.msra.mxu0 0.0
    %4828 = vmatprep.subr.mxu0 0.0
    %4829 = vmatpush1.msra.mxu0 0.0
    %4830 = vmatprep.subr.mxu0 0.0
    %4831 = vmatpush1.msra.mxu0 0.0
    %4832 = vmatprep.subr.mxu0 0.0
    %4833 = vmatpush1.msra.mxu0 %v4797
    %4834 = vmatprep.subr.mxu0 0.0
    %4835 = vmatpush2.msra.mxu0 0.0
    %4836 = vmatprep.subr.mxu0 0.0
    %4837 = vmatpush2.msra.mxu0 0.0
    %4838 = vmatprep.subr.mxu0 0.0
    %4839 = vmatpush2.msra.mxu0 0.0
    %4840 = vmatprep.subr.mxu0 0.0
    %4841 = vmatpush2.msra.mxu0 0.0
    %4842 = vmatprep.subr.mxu0 0.0
    %4843 = vmatpush2.msra.mxu0 0.0
    %4844 = vmatprep.subr.mxu0 0.0
    %4845 = vmatpush2.msra.mxu0 0.0
    %4846 = vmatprep.subr.mxu0 0.0
    %4847 = vmatpush2.msra.mxu0 0.0
    %4848 = vmatprep.subr.mxu0 0.0
    %4849 = vmatpush2.msra.mxu0 0.0
    %4850 = vmatprep.subr.mxu0 0.0
    %4851 = vmatpush2.msra.mxu0 0.0
    %4852 = vmatprep.subr.mxu0 0.0
    %4853 = vmatpush2.msra.mxu0 0.0
    %4854 = vmatprep.subr.mxu0 0.0
    %4855 = vmatpush2.msra.mxu0 0.0
    %4856 = vmatprep.subr.mxu0 0.0
    %4857 = vmatpush2.msra.mxu0 0.0
    %4858 = vmatprep.subr.mxu0 0.0
    %4859 = vmatpush2.msra.mxu0 0.0
    %4860 = vmatprep.subr.mxu0 0.0
    %4861 = vmatpush2.msra.mxu0 0.0
    %4862 = vmatprep.subr.mxu0 0.0
    %4863 = vmatpush2.msra.mxu0 0.0
    %4864 = vmatprep.subr.mxu0 0.0
    %4865 = vmatpush2.msra.mxu0 0.0
    %4866 = vmatprep.mubr.f32.mxu0 0.0
    %4867 = vmatmul.mubr.f32.gmra.mxu0 %v4800
    %v4868 = vpop.f32.mrf.mxu0
    %v4869 = vadd.f32 0.0, %v4868
    %v4870 = vpop.f32.mrf.mxu0
    %4871 = vdwg.mxu0
    %4872 = vrot.lane.b32.xlu0 %v3957, 80
    %v4873 = vpop.permute.xlu0 %4872
    %v4876 = vsel %vm335, %v4795, 0
    %4878 = vmatprep.subr.mxu0 0.0
    %4879 = vmatpush1.msra.mxu0 0.0
    %4880 = vmatprep.subr.mxu0 0.0
    %4881 = vmatpush1.msra.mxu0 0.0
    %4882 = vmatprep.subr.mxu0 0.0
    %4883 = vmatpush1.msra.mxu0 0.0
    %4884 = vmatprep.subr.mxu0 0.0
    %4885 = vmatpush1.msra.mxu0 0.0
    %4886 = vmatprep.subr.mxu0 0.0
    %4887 = vmatpush1.msra.mxu0 0.0
    %4888 = vmatprep.subr.mxu0 0.0
    %4889 = vmatpush1.msra.mxu0 0.0
    %4890 = vmatprep.subr.mxu0 0.0
    %4891 = vmatpush1.msra.mxu0 0.0
    %4892 = vmatprep.subr.mxu0 0.0
    %4893 = vmatpush1.msra.mxu0 0.0
    %4894 = vmatprep.subr.mxu0 0.0
    %4895 = vmatpush1.msra.mxu0 0.0
    %4896 = vmatprep.subr.mxu0 0.0
    %4897 = vmatpush1.msra.mxu0 0.0
    %4898 = vmatprep.subr.mxu0 0.0
    %4899 = vmatpush1.msra.mxu0 0.0
    %4900 = vmatprep.subr.mxu0 0.0
    %4901 = vmatpush1.msra.mxu0 0.0
    %4902 = vmatprep.subr.mxu0 0.0
    %4903 = vmatpush1.msra.mxu0 0.0
    %4904 = vmatprep.subr.mxu0 0.0
    %4905 = vmatpush1.msra.mxu0 0.0
    %4906 = vmatprep.subr.mxu0 0.0
    %4907 = vmatpush1.msra.mxu0 0.0
    %4908 = vmatprep.subr.mxu0 0.0
    %4909 = vmatpush1.msra.mxu0 %v4873
    %4910 = vmatprep.subr.mxu0 0.0
    %4911 = vmatpush2.msra.mxu0 0.0
    %4912 = vmatprep.subr.mxu0 0.0
    %4913 = vmatpush2.msra.mxu0 0.0
    %4914 = vmatprep.subr.mxu0 0.0
    %4915 = vmatpush2.msra.mxu0 0.0
    %4916 = vmatprep.subr.mxu0 0.0
    %4917 = vmatpush2.msra.mxu0 0.0
    %4918 = vmatprep.subr.mxu0 0.0
    %4919 = vmatpush2.msra.mxu0 0.0
    %4920 = vmatprep.subr.mxu0 0.0
    %4921 = vmatpush2.msra.mxu0 0.0
    %4922 = vmatprep.subr.mxu0 0.0
    %4923 = vmatpush2.msra.mxu0 0.0
    %4924 = vmatprep.subr.mxu0 0.0
    %4925 = vmatpush2.msra.mxu0 0.0
    %4926 = vmatprep.subr.mxu0 0.0
    %4927 = vmatpush2.msra.mxu0 0.0
    %4928 = vmatprep.subr.mxu0 0.0
    %4929 = vmatpush2.msra.mxu0 0.0
    %4930 = vmatprep.subr.mxu0 0.0
    %4931 = vmatpush2.msra.mxu0 0.0
    %4932 = vmatprep.subr.mxu0 0.0
    %4933 = vmatpush2.msra.mxu0 0.0
    %4934 = vmatprep.subr.mxu0 0.0
    %4935 = vmatpush2.msra.mxu0 0.0
    %4936 = vmatprep.subr.mxu0 0.0
    %4937 = vmatpush2.msra.mxu0 0.0
    %4938 = vmatprep.subr.mxu0 0.0
    %4939 = vmatpush2.msra.mxu0 0.0
    %4940 = vmatprep.subr.mxu0 0.0
    %4941 = vmatpush2.msra.mxu0 0.0
    %4942 = vmatprep.mubr.f32.mxu0 0.0
    %4943 = vmatmul.mubr.f32.gmra.mxu0 %v4876
    %v4944 = vpop.f32.mrf.mxu0
    %v4945 = vadd.f32 0.0, %v4944
    %v4946 = vpop.f32.mrf.mxu0
    %4947 = vdwg.mxu0
    %4948 = vrot.lane.b32.xlu0 %v3960, 104
    %v4949 = vpop.permute.xlu0 %4948
    %4950 = vrot.lane.b32.xlu0 %v3952, 104
    %v4951 = vpop.permute.xlu0 %4950
    %v4952 = vsel %vm335, %v4949, 0
    %v4954 = vsel %vm335, %v4951, 0
    %4956 = vmatprep.subr.mxu0 0.0
    %4957 = vmatpush1.xpose.msra.mxu0 0.0
    %4958 = vmatprep.subr.mxu0 0.0
    %4959 = vmatpush1.xpose.msra.mxu0 0.0
    %4960 = vmatprep.subr.mxu0 0.0
    %4961 = vmatpush1.xpose.msra.mxu0 0.0
    %4962 = vmatprep.subr.mxu0 0.0
    %4963 = vmatpush1.xpose.msra.mxu0 0.0
    %4964 = vmatprep.subr.mxu0 0.0
    %4965 = vmatpush1.xpose.msra.mxu0 0.0
    %4966 = vmatprep.subr.mxu0 0.0
    %4967 = vmatpush1.xpose.msra.mxu0 0.0
    %4968 = vmatprep.subr.mxu0 0.0
    %4969 = vmatpush1.xpose.msra.mxu0 0.0
    %4970 = vmatprep.subr.mxu0 0.0
    %4971 = vmatpush1.xpose.msra.mxu0 0.0
    %4972 = vmatprep.subr.mxu0 0.0
    %4973 = vmatpush1.xpose.msra.mxu0 0.0
    %4974 = vmatprep.subr.mxu0 0.0
    %4975 = vmatpush1.xpose.msra.mxu0 0.0
    %4976 = vmatprep.subr.mxu0 0.0
    %4977 = vmatpush1.xpose.msra.mxu0 0.0
    %4978 = vmatprep.subr.mxu0 0.0
    %4979 = vmatpush1.xpose.msra.mxu0 0.0
    %4980 = vmatprep.subr.mxu0 0.0
    %4981 = vmatpush1.xpose.msra.mxu0 0.0
    %4982 = vmatprep.subr.mxu0 0.0
    %4983 = vmatpush1.xpose.msra.mxu0 0.0
    %4984 = vmatprep.subr.mxu0 0.0
    %4985 = vmatpush1.xpose.msra.mxu0 0.0
    %4986 = vmatprep.subr.mxu0 0.0
    %4987 = vmatpush1.xpose.msra.mxu0 %v4954
    %4988 = vmatprep.subr.mxu0 0.0
    %4989 = vmatpush2.xpose.msra.mxu0 0.0
    %4990 = vmatprep.subr.mxu0 0.0
    %4991 = vmatpush2.xpose.msra.mxu0 0.0
    %4992 = vmatprep.subr.mxu0 0.0
    %4993 = vmatpush2.xpose.msra.mxu0 0.0
    %4994 = vmatprep.subr.mxu0 0.0
    %4995 = vmatpush2.xpose.msra.mxu0 0.0
    %4996 = vmatprep.subr.mxu0 0.0
    %4997 = vmatpush2.xpose.msra.mxu0 0.0
    %4998 = vmatprep.subr.mxu0 0.0
    %4999 = vmatpush2.xpose.msra.mxu0 0.0
    %5000 = vmatprep.subr.mxu0 0.0
    %5001 = vmatpush2.xpose.msra.mxu0 0.0
    %5002 = vmatprep.subr.mxu0 0.0
    %5003 = vmatpush2.xpose.msra.mxu0 0.0
    %5004 = vmatprep.subr.mxu0 0.0
    %5005 = vmatpush2.xpose.msra.mxu0 0.0
    %5006 = vmatprep.subr.mxu0 0.0
    %5007 = vmatpush2.xpose.msra.mxu0 0.0
    %5008 = vmatprep.subr.mxu0 0.0
    %5009 = vmatpush2.xpose.msra.mxu0 0.0
    %5010 = vmatprep.subr.mxu0 0.0
    %5011 = vmatpush2.xpose.msra.mxu0 0.0
    %5012 = vmatprep.subr.mxu0 0.0
    %5013 = vmatpush2.xpose.msra.mxu0 0.0
    %5014 = vmatprep.subr.mxu0 0.0
    %5015 = vmatpush2.xpose.msra.mxu0 0.0
    %5016 = vmatprep.subr.mxu0 0.0
    %5017 = vmatpush2.xpose.msra.mxu0 0.0
    %5018 = vmatprep.subr.mxu0 0.0
    %5019 = vmatpush2.xpose.msra.mxu0 0.0
    %5020 = vmatprep.mubr.f32.mxu0 0.0
    %5021 = vmatmul.mubr.f32.gmra.mxu0 %v4952
    %v5022 = vpop.f32.mrf.mxu0
    %v5023 = vadd.f32 %v325, %v5022
    %v5024 = vpop.f32.mrf.mxu0
    %5025 = vdwg.mxu0
    %5026 = vrot.lane.b32.xlu0 %v3961, 104
    %v5027 = vpop.permute.xlu0 %5026
    %5028 = vrot.lane.b32.xlu0 %v3957, 104
    %v5029 = vpop.permute.xlu0 %5028
    %v5030 = vsel %vm335, %v5027, 0
    %v5032 = vsel %vm335, %v5029, 0
    %5034 = vmatprep.subr.mxu0 0.0
    %5035 = vmatpush1.xpose.msra.mxu0 0.0
    %5036 = vmatprep.subr.mxu0 0.0
    %5037 = vmatpush1.xpose.msra.mxu0 0.0
    %5038 = vmatprep.subr.mxu0 0.0
    %5039 = vmatpush1.xpose.msra.mxu0 0.0
    %5040 = vmatprep.subr.mxu0 0.0
    %5041 = vmatpush1.xpose.msra.mxu0 0.0
    %5042 = vmatprep.subr.mxu0 0.0
    %5043 = vmatpush1.xpose.msra.mxu0 0.0
    %5044 = vmatprep.subr.mxu0 0.0
    %5045 = vmatpush1.xpose.msra.mxu0 0.0
    %5046 = vmatprep.subr.mxu0 0.0
    %5047 = vmatpush1.xpose.msra.mxu0 0.0
    %5048 = vmatprep.subr.mxu0 0.0
    %5049 = vmatpush1.xpose.msra.mxu0 0.0
    %5050 = vmatprep.subr.mxu0 0.0
    %5051 = vmatpush1.xpose.msra.mxu0 0.0
    %5052 = vmatprep.subr.mxu0 0.0
    %5053 = vmatpush1.xpose.msra.mxu0 0.0
    %5054 = vmatprep.subr.mxu0 0.0
    %5055 = vmatpush1.xpose.msra.mxu0 0.0
    %5056 = vmatprep.subr.mxu0 0.0
    %5057 = vmatpush1.xpose.msra.mxu0 0.0
    %5058 = vmatprep.subr.mxu0 0.0
    %5059 = vmatpush1.xpose.msra.mxu0 0.0
    %5060 = vmatprep.subr.mxu0 0.0
    %5061 = vmatpush1.xpose.msra.mxu0 0.0
    %5062 = vmatprep.subr.mxu0 0.0
    %5063 = vmatpush1.xpose.msra.mxu0 0.0
    %5064 = vmatprep.subr.mxu0 0.0
    %5065 = vmatpush1.xpose.msra.mxu0 %v5032
    %5066 = vmatprep.subr.mxu0 0.0
    %5067 = vmatpush2.xpose.msra.mxu0 0.0
    %5068 = vmatprep.subr.mxu0 0.0
    %5069 = vmatpush2.xpose.msra.mxu0 0.0
    %5070 = vmatprep.subr.mxu0 0.0
    %5071 = vmatpush2.xpose.msra.mxu0 0.0
    %5072 = vmatprep.subr.mxu0 0.0
    %5073 = vmatpush2.xpose.msra.mxu0 0.0
    %5074 = vmatprep.subr.mxu0 0.0
    %5075 = vmatpush2.xpose.msra.mxu0 0.0
    %5076 = vmatprep.subr.mxu0 0.0
    %5077 = vmatpush2.xpose.msra.mxu0 0.0
    %5078 = vmatprep.subr.mxu0 0.0
    %5079 = vmatpush2.xpose.msra.mxu0 0.0
    %5080 = vmatprep.subr.mxu0 0.0
    %5081 = vmatpush2.xpose.msra.mxu0 0.0
    %5082 = vmatprep.subr.mxu0 0.0
    %5083 = vmatpush2.xpose.msra.mxu0 0.0
    %5084 = vmatprep.subr.mxu0 0.0
    %5085 = vmatpush2.xpose.msra.mxu0 0.0
    %5086 = vmatprep.subr.mxu0 0.0
    %5087 = vmatpush2.xpose.msra.mxu0 0.0
    %5088 = vmatprep.subr.mxu0 0.0
    %5089 = vmatpush2.xpose.msra.mxu0 0.0
    %5090 = vmatprep.subr.mxu0 0.0
    %5091 = vmatpush2.xpose.msra.mxu0 0.0
    %5092 = vmatprep.subr.mxu0 0.0
    %5093 = vmatpush2.xpose.msra.mxu0 0.0
    %5094 = vmatprep.subr.mxu0 0.0
    %5095 = vmatpush2.xpose.msra.mxu0 0.0
    %5096 = vmatprep.subr.mxu0 0.0
    %5097 = vmatpush2.xpose.msra.mxu0 0.0
    %5098 = vmatprep.mubr.f32.mxu0 0.0
    %5099 = vmatmul.mubr.f32.gmra.mxu0 %v5030
    %v5100 = vpop.f32.mrf.mxu0
    %v5101 = vadd.f32 %v329, %v5100
    %v5102 = vpop.f32.mrf.mxu0
    %5103 = vdwg.mxu0
    %v5104 = vsel %vm335, %v5023, -inf
    %5105 = vmax.xlane.f32.xlu0 %v5104
    %v5106 = vpop.xlane.xlu0 %5105
    %v5107 = vsel %vm335, %v5101, -inf
    %5108 = vmax.xlane.f32.xlu0 %v5107
    %v5109 = vpop.xlane.xlu0 %5108
    %v5110 = vsub.f32 %v5023, %v5106
    %v5111 = vsub.f32 %v5101, %v5109
    %v5112 = vmul.f32 %v5110, 1.442695
    %v5113 = vpow.pop %v5112
    %v5114 = vmul.f32 %v5111, 1.442695
    %v5115 = vpow.pop %v5114
    %v5116 = vsel %vm335, %v5113, 0.0
    %5117 = vadd.xlane.f32.xlu0 %v5116
    %v5118 = vpop.xlane.xlu0 %5117
    %v5119 = vsel %vm335, %v5115, 0.0
    %5120 = vadd.xlane.f32.xlu0 %v5119
    %v5121 = vpop.xlane.xlu0 %5120
    %v5122 = vrcp.pop %v5118
    %v5123 = vrcp.pop %v5121
    %v5124 = vmul.f32 %v5113, %v5122
    %v5125 = vmul.f32 %v5115, %v5123
    %5126 = vrot.lane.b32.xlu0 %v3952, 72
    %v5127 = vpop.permute.xlu0 %5126
    %v5130 = vsel %vm335, %v5124, 0
    %5132 = vmatprep.subr.mxu0 0.0
    %5133 = vmatpush1.msra.mxu0 0.0
    %5134 = vmatprep.subr.mxu0 0.0
    %5135 = vmatpush1.msra.mxu0 0.0
    %5136 = vmatprep.subr.mxu0 0.0
    %5137 = vmatpush1.msra.mxu0 0.0
    %5138 = vmatprep.subr.mxu0 0.0
    %5139 = vmatpush1.msra.mxu0 0.0
    %5140 = vmatprep.subr.mxu0 0.0
    %5141 = vmatpush1.msra.mxu0 0.0
    %5142 = vmatprep.subr.mxu0 0.0
    %5143 = vmatpush1.msra.mxu0 0.0
    %5144 = vmatprep.subr.mxu0 0.0
    %5145 = vmatpush1.msra.mxu0 0.0
    %5146 = vmatprep.subr.mxu0 0.0
    %5147 = vmatpush1.msra.mxu0 0.0
    %5148 = vmatprep.subr.mxu0 0.0
    %5149 = vmatpush1.msra.mxu0 0.0
    %5150 = vmatprep.subr.mxu0 0.0
    %5151 = vmatpush1.msra.mxu0 0.0
    %5152 = vmatprep.subr.mxu0 0.0
    %5153 = vmatpush1.msra.mxu0 0.0
    %5154 = vmatprep.subr.mxu0 0.0
    %5155 = vmatpush1.msra.mxu0 0.0
    %5156 = vmatprep.subr.mxu0 0.0
    %5157 = vmatpush1.msra.mxu0 0.0
    %5158 = vmatprep.subr.mxu0 0.0
    %5159 = vmatpush1.msra.mxu0 0.0
    %5160 = vmatprep.subr.mxu0 0.0
    %5161 = vmatpush1.msra.mxu0 0.0
    %5162 = vmatprep.subr.mxu0 0.0
    %5163 = vmatpush1.msra.mxu0 %v5127
    %5164 = vmatprep.subr.mxu0 0.0
    %5165 = vmatpush2.msra.mxu0 0.0
    %5166 = vmatprep.subr.mxu0 0.0
    %5167 = vmatpush2.msra.mxu0 0.0
    %5168 = vmatprep.subr.mxu0 0.0
    %5169 = vmatpush2.msra.mxu0 0.0
    %5170 = vmatprep.subr.mxu0 0.0
    %5171 = vmatpush2.msra.mxu0 0.0
    %5172 = vmatprep.subr.mxu0 0.0
    %5173 = vmatpush2.msra.mxu0 0.0
    %5174 = vmatprep.subr.mxu0 0.0
    %5175 = vmatpush2.msra.mxu0 0.0
    %5176 = vmatprep.subr.mxu0 0.0
    %5177 = vmatpush2.msra.mxu0 0.0
    %5178 = vmatprep.subr.mxu0 0.0
    %5179 = vmatpush2.msra.mxu0 0.0
    %5180 = vmatprep.subr.mxu0 0.0
    %5181 = vmatpush2.msra.mxu0 0.0
    %5182 = vmatprep.subr.mxu0 0.0
    %5183 = vmatpush2.msra.mxu0 0.0
    %5184 = vmatprep.subr.mxu0 0.0
    %5185 = vmatpush2.msra.mxu0 0.0
    %5186 = vmatprep.subr.mxu0 0.0
    %5187 = vmatpush2.msra.mxu0 0.0
    %5188 = vmatprep.subr.mxu0 0.0
    %5189 = vmatpush2.msra.mxu0 0.0
    %5190 = vmatprep.subr.mxu0 0.0
    %5191 = vmatpush2.msra.mxu0 0.0
    %5192 = vmatprep.subr.mxu0 0.0
    %5193 = vmatpush2.msra.mxu0 0.0
    %5194 = vmatprep.subr.mxu0 0.0
    %5195 = vmatpush2.msra.mxu0 0.0
    %5196 = vmatprep.mubr.f32.mxu0 0.0
    %5197 = vmatmul.mubr.f32.gmra.mxu0 %v5130
    %v5198 = vpop.f32.mrf.mxu0
    %v5199 = vadd.f32 0.0, %v5198
    %v5200 = vpop.f32.mrf.mxu0
    %5201 = vdwg.mxu0
    %5202 = vrot.lane.b32.xlu0 %v3957, 72
    %v5203 = vpop.permute.xlu0 %5202
    %v5206 = vsel %vm335, %v5125, 0
    %5208 = vmatprep.subr.mxu0 0.0
    %5209 = vmatpush1.msra.mxu0 0.0
    %5210 = vmatprep.subr.mxu0 0.0
    %5211 = vmatpush1.msra.mxu0 0.0
    %5212 = vmatprep.subr.mxu0 0.0
    %5213 = vmatpush1.msra.mxu0 0.0
    %5214 = vmatprep.subr.mxu0 0.0
    %5215 = vmatpush1.msra.mxu0 0.0
    %5216 = vmatprep.subr.mxu0 0.0
    %5217 = vmatpush1.msra.mxu0 0.0
    %5218 = vmatprep.subr.mxu0 0.0
    %5219 = vmatpush1.msra.mxu0 0.0
    %5220 = vmatprep.subr.mxu0 0.0
    %5221 = vmatpush1.msra.mxu0 0.0
    %5222 = vmatprep.subr.mxu0 0.0
    %5223 = vmatpush1.msra.mxu0 0.0
    %5224 = vmatprep.subr.mxu0 0.0
    %5225 = vmatpush1.msra.mxu0 0.0
    %5226 = vmatprep.subr.mxu0 0.0
    %5227 = vmatpush1.msra.mxu0 0.0
    %5228 = vmatprep.subr.mxu0 0.0
    %5229 = vmatpush1.msra.mxu0 0.0
    %5230 = vmatprep.subr.mxu0 0.0
    %5231 = vmatpush1.msra.mxu0 0.0
    %5232 = vmatprep.subr.mxu0 0.0
    %5233 = vmatpush1.msra.mxu0 0.0
    %5234 = vmatprep.subr.mxu0 0.0
    %5235 = vmatpush1.msra.mxu0 0.0
    %5236 = vmatprep.subr.mxu0 0.0
    %5237 = vmatpush1.msra.mxu0 0.0
    %5238 = vmatprep.subr.mxu0 0.0
    %5239 = vmatpush1.msra.mxu0 %v5203
    %5240 = vmatprep.subr.mxu0 0.0
    %5241 = vmatpush2.msra.mxu0 0.0
    %5242 = vmatprep.subr.mxu0 0.0
    %5243 = vmatpush2.msra.mxu0 0.0
    %5244 = vmatprep.subr.mxu0 0.0
    %5245 = vmatpush2.msra.mxu0 0.0
    %5246 = vmatprep.subr.mxu0 0.0
    %5247 = vmatpush2.msra.mxu0 0.0
    %5248 = vmatprep.subr.mxu0 0.0
    %5249 = vmatpush2.msra.mxu0 0.0
    %5250 = vmatprep.subr.mxu0 0.0
    %5251 = vmatpush2.msra.mxu0 0.0
    %5252 = vmatprep.subr.mxu0 0.0
    %5253 = vmatpush2.msra.mxu0 0.0
    %5254 = vmatprep.subr.mxu0 0.0
    %5255 = vmatpush2.msra.mxu0 0.0
    %5256 = vmatprep.subr.mxu0 0.0
    %5257 = vmatpush2.msra.mxu0 0.0
    %5258 = vmatprep.subr.mxu0 0.0
    %5259 = vmatpush2.msra.mxu0 0.0
    %5260 = vmatprep.subr.mxu0 0.0
    %5261 = vmatpush2.msra.mxu0 0.0
    %5262 = vmatprep.subr.mxu0 0.0
    %5263 = vmatpush2.msra.mxu0 0.0
    %5264 = vmatprep.subr.mxu0 0.0
    %5265 = vmatpush2.msra.mxu0 0.0
    %5266 = vmatprep.subr.mxu0 0.0
    %5267 = vmatpush2.msra.mxu0 0.0
    %5268 = vmatprep.subr.mxu0 0.0
    %5269 = vmatpush2.msra.mxu0 0.0
    %5270 = vmatprep.subr.mxu0 0.0
    %5271 = vmatpush2.msra.mxu0 0.0
    %5272 = vmatprep.mubr.f32.mxu0 0.0
    %5273 = vmatmul.mubr.f32.gmra.mxu0 %v5206
    %v5274 = vpop.f32.mrf.mxu0
    %v5275 = vadd.f32 0.0, %v5274
    %v5276 = vpop.f32.mrf.mxu0
    %5277 = vdwg.mxu0
    %5280 = vrot.lane.b32.xlu0 %v4539, 8
    %v5281 = vpop.permute.xlu0 %5280
    %5282 = vrot.lane.b32.xlu0 %v4615, 8
    %v5283 = vpop.permute.xlu0 %5282
    %5288 = vrot.lane.b32.xlu0 %v4869, 16
    %v5289 = vpop.permute.xlu0 %5288
    %5290 = vrot.lane.b32.xlu0 %v4945, 16
    %v5291 = vpop.permute.xlu0 %5290
    %5296 = vrot.lane.b32.xlu0 %v5199, 24
    %v5297 = vpop.permute.xlu0 %5296
    %5298 = vrot.lane.b32.xlu0 %v5275, 24
    %v5299 = vpop.permute.xlu0 %5298
    %v5302 = vsel %vm335, %v4209, %v5281
    %v5303 = vsel %vm335, %v4285, %v5283
    %v5304 = vsel %vm1679, %v5302, %v5289
    %v5305 = vsel %vm1679, %v5303, %v5291
    %v5306 = vsel %vm1682, %v5304, %v5297
    %v5307 = vsel %vm1682, %v5305, %v5299
    %s5308 = scalar_lea.vmem %s7, 224
    %v5309 = vld [vmem:[%s5308] sm:$0xff]
    %v5310 = vld [vmem:[%s5308 + $0x8] sm:$0xff]
    %v5311 = vld [vmem:[%s5308 + $0x10] sm:$0xff]
    %v5312 = vld [vmem:[%s5308 + $0x18] sm:$0xff]
    %v5313 = vld [vmem:[%s6 + $0x12] sm:$0x1]
    %v5314 = vlaneseq
    %v5315 = vshrl.u32 %v5314, 7
    %v5316 = vsub.s32 0, %v5315
    %v5317 = vrot.slane %v5313, %v5316
    %v5319 = vsel %vm190, %v5306, 0
    %v5322 = vsel %vm190, %v5307, 0
    %5324 = vmatprep.subr.mxu0 0.0
    %5325 = vmatpush1.msra.mxu0 0.0
    %5326 = vmatprep.subr.mxu0 0.0
    %5327 = vmatpush1.msra.mxu0 0.0
    %5328 = vmatprep.subr.mxu0 0.0
    %5329 = vmatpush1.msra.mxu0 0.0
    %5330 = vmatprep.subr.mxu0 0.0
    %5331 = vmatpush1.msra.mxu0 0.0
    %5332 = vmatprep.subr.mxu0 0.0
    %5333 = vmatpush1.msra.mxu0 0.0
    %5334 = vmatprep.subr.mxu0 0.0
    %5335 = vmatpush1.msra.mxu0 0.0
    %5336 = vmatprep.subr.mxu0 0.0
    %5337 = vmatpush1.msra.mxu0 0.0
    %5338 = vmatprep.subr.mxu0 0.0
    %5339 = vmatpush1.msra.mxu0 0.0
    %5340 = vmatprep.subr.mxu0 0.0
    %5341 = vmatpush1.msra.mxu0 0.0
    %5342 = vmatprep.subr.mxu0 0.0
    %5343 = vmatpush1.msra.mxu0 0.0
    %5344 = vmatprep.subr.mxu0 0.0
    %5345 = vmatpush1.msra.mxu0 0.0
    %5346 = vmatprep.subr.mxu0 0.0
    %5347 = vmatpush1.msra.mxu0 0.0
    %5348 = vmatprep.subr.mxu0 0.0
    %5349 = vmatpush1.msra.mxu0 %v5312
    %5350 = vmatprep.subr.mxu0 0.0
    %5351 = vmatpush1.msra.mxu0 %v5311
    %5352 = vmatprep.subr.mxu0 0.0
    %5353 = vmatpush1.msra.mxu0 %v5310
    %5354 = vmatprep.subr.mxu0 0.0
    %5355 = vmatpush1.msra.mxu0 %v5309
    %5356 = vmatprep.subr.mxu0 0.0
    %5357 = vmatpush2.msra.mxu0 0.0
    %5358 = vmatprep.subr.mxu0 0.0
    %5359 = vmatpush2.msra.mxu0 0.0
    %5360 = vmatprep.subr.mxu0 0.0
    %5361 = vmatpush2.msra.mxu0 0.0
    %5362 = vmatprep.subr.mxu0 0.0
    %5363 = vmatpush2.msra.mxu0 0.0
    %5364 = vmatprep.subr.mxu0 0.0
    %5365 = vmatpush2.msra.mxu0 0.0
    %5366 = vmatprep.subr.mxu0 0.0
    %5367 = vmatpush2.msra.mxu0 0.0
    %5368 = vmatprep.subr.mxu0 0.0
    %5369 = vmatpush2.msra.mxu0 0.0
    %5370 = vmatprep.subr.mxu0 0.0
    %5371 = vmatpush2.msra.mxu0 0.0
    %5372 = vmatprep.subr.mxu0 0.0
    %5373 = vmatpush2.msra.mxu0 0.0
    %5374 = vmatprep.subr.mxu0 0.0
    %5375 = vmatpush2.msra.mxu0 0.0
    %5376 = vmatprep.subr.mxu0 0.0
    %5377 = vmatpush2.msra.mxu0 0.0
    %5378 = vmatprep.subr.mxu0 0.0
    %5379 = vmatpush2.msra.mxu0 0.0
    %5380 = vmatprep.subr.mxu0 0.0
    %5381 = vmatpush2.msra.mxu0 0.0
    %5382 = vmatprep.subr.mxu0 0.0
    %5383 = vmatpush2.msra.mxu0 0.0
    %5384 = vmatprep.subr.mxu0 0.0
    %5385 = vmatpush2.msra.mxu0 0.0
    %5386 = vmatprep.subr.mxu0 0.0
    %5387 = vmatpush2.msra.mxu0 0.0
    %5388 = vmatprep.mubr.f32.mxu0 0.0
    %5389 = vmatmul.mubr.f32.gmra.mxu0 %v5319
    %v5390 = vpop.f32.mrf.mxu0
    %v5391 = vadd.f32 %v5317, %v5390
    %v5392 = vpop.f32.mrf.mxu0
    %5393 = vmatprep.mubr.f32.mxu0 0.0
    %5394 = vmatmul.mubr.f32.gmra.mxu0 %v5322
    %v5395 = vpop.f32.mrf.mxu0
    %v5396 = vadd.f32 %v5317, %v5395
    %v5397 = vpop.f32.mrf.mxu0
    %5398 = vdwg.mxu0
    %v5399 = vadd.f32 %v3736, %v5391
    %v5400 = vadd.f32 %v3737, %v5396
    %v5401 = vld [vmem:[%s6 + $0x13] sm:$0x1]
    %v5402 = vld [vmem:[%s6 + $0x14] sm:$0x1]
    %v5403 = vsel %vm190, %v5399, 0.0
    %5404 = vadd.xlane.f32.xlu0 %v5403
    %v5405 = vpop.xlane.xlu0 %5404
    %v5406 = vsel %vm190, %v5400, 0.0
    %5407 = vadd.xlane.f32.xlu0 %v5406
    %v5408 = vpop.xlane.xlu0 %5407
    %v5409 = vmul.f32 %v5405, %v197
    %v5410 = vmul.f32 %v5408, %v197
    %v5411 = vsub.f32 %v5399, %v5409
    %v5412 = vsub.f32 %v5400, %v5410
    %v5413 = vmul.f32 %v5411, %v5411
    %v5414 = vmul.f32 %v5412, %v5412
    %v5415 = vsel %vm190, %v5413, 0.0
    %5416 = vadd.xlane.f32.xlu0 %v5415
    %v5417 = vpop.xlane.xlu0 %5416
    %v5418 = vsel %vm190, %v5414, 0.0
    %5419 = vadd.xlane.f32.xlu0 %v5418
    %v5420 = vpop.xlane.xlu0 %5419
    %v5421 = vmul.f32 %v5417, %v197
    %v5422 = vmul.f32 %v5420, %v197
    %v5423 = vadd.f32 %v5421, 1e-05
    %v5424 = vadd.f32 %v5422, 1e-05
    %v5425 = vrsqrt.pop %v5423
    %v5426 = vrsqrt.pop %v5424
    %v5427 = vmul.f32 %v5411, %v5425
    %v5428 = vmul.f32 %v5412, %v5426
    %v5429 = vlaneseq
    %v5430 = vshrl.u32 %v5429, 7
    %v5431 = vsub.s32 0, %v5430
    %v5432 = vrot.slane %v5401, %v5431
    %v5433 = vmul.f32 %v5427, %v5432
    %v5434 = vmul.f32 %v5428, %v5432
    %v5435 = vlaneseq
    %v5436 = vshrl.u32 %v5435, 7
    %v5437 = vsub.s32 0, %v5436
    %v5438 = vrot.slane %v5402, %v5437
    %v5439 = vadd.f32 %v5433, %v5438
    %v5440 = vadd.f32 %v5434, %v5438
    %s5441 = scalar_lea.vmem %s7, 256
    %v5442 = vld [vmem:[%s5441] sm:$0xff]
    %v5443 = vld [vmem:[%s5441 + $0x8] sm:$0xff]
    %v5444 = vld [vmem:[%s5441 + $0x10] sm:$0xff]
    %v5445 = vld [vmem:[%s5441 + $0x18] sm:$0xff]
    %v5446 = vld [vmem:[%s6 + $0x15] sm:$0x1]
    %v5447 = vlaneseq
    %v5448 = vshrl.u32 %v5447, 7
    %v5449 = vsub.s32 0, %v5448
    %v5450 = vrot.slane %v5446, %v5449
    %v5452 = vsel %vm190, %v5439, 0
    %v5455 = vsel %vm190, %v5440, 0
    %5457 = vmatprep.subr.mxu0 0.0
    %5458 = vmatpush1.msra.mxu0 0.0
    %5459 = vmatprep.subr.mxu0 0.0
    %5460 = vmatpush1.msra.mxu0 0.0
    %5461 = vmatprep.subr.mxu0 0.0
    %5462 = vmatpush1.msra.mxu0 0.0
    %5463 = vmatprep.subr.mxu0 0.0
    %5464 = vmatpush1.msra.mxu0 0.0
    %5465 = vmatprep.subr.mxu0 0.0
    %5466 = vmatpush1.msra.mxu0 0.0
    %5467 = vmatprep.subr.mxu0 0.0
    %5468 = vmatpush1.msra.mxu0 0.0
    %5469 = vmatprep.subr.mxu0 0.0
    %5470 = vmatpush1.msra.mxu0 0.0
    %5471 = vmatprep.subr.mxu0 0.0
    %5472 = vmatpush1.msra.mxu0 0.0
    %5473 = vmatprep.subr.mxu0 0.0
    %5474 = vmatpush1.msra.mxu0 0.0
    %5475 = vmatprep.subr.mxu0 0.0
    %5476 = vmatpush1.msra.mxu0 0.0
    %5477 = vmatprep.subr.mxu0 0.0
    %5478 = vmatpush1.msra.mxu0 0.0
    %5479 = vmatprep.subr.mxu0 0.0
    %5480 = vmatpush1.msra.mxu0 0.0
    %5481 = vmatprep.subr.mxu0 0.0
    %5482 = vmatpush1.msra.mxu0 %v5445
    %5483 = vmatprep.subr.mxu0 0.0
    %5484 = vmatpush1.msra.mxu0 %v5444
    %5485 = vmatprep.subr.mxu0 0.0
    %5486 = vmatpush1.msra.mxu0 %v5443
    %5487 = vmatprep.subr.mxu0 0.0
    %5488 = vmatpush1.msra.mxu0 %v5442
    %5489 = vmatprep.subr.mxu0 0.0
    %5490 = vmatpush2.msra.mxu0 0.0
    %5491 = vmatprep.subr.mxu0 0.0
    %5492 = vmatpush2.msra.mxu0 0.0
    %5493 = vmatprep.subr.mxu0 0.0
    %5494 = vmatpush2.msra.mxu0 0.0
    %5495 = vmatprep.subr.mxu0 0.0
    %5496 = vmatpush2.msra.mxu0 0.0
    %5497 = vmatprep.subr.mxu0 0.0
    %5498 = vmatpush2.msra.mxu0 0.0
    %5499 = vmatprep.subr.mxu0 0.0
    %5500 = vmatpush2.msra.mxu0 0.0
    %5501 = vmatprep.subr.mxu0 0.0
    %5502 = vmatpush2.msra.mxu0 0.0
    %5503 = vmatprep.subr.mxu0 0.0
    %5504 = vmatpush2.msra.mxu0 0.0
    %5505 = vmatprep.subr.mxu0 0.0
    %5506 = vmatpush2.msra.mxu0 0.0
    %5507 = vmatprep.subr.mxu0 0.0
    %5508 = vmatpush2.msra.mxu0 0.0
    %5509 = vmatprep.subr.mxu0 0.0
    %5510 = vmatpush2.msra.mxu0 0.0
    %5511 = vmatprep.subr.mxu0 0.0
    %5512 = vmatpush2.msra.mxu0 0.0
    %5513 = vmatprep.subr.mxu0 0.0
    %5514 = vmatpush2.msra.mxu0 0.0
    %5515 = vmatprep.subr.mxu0 0.0
    %5516 = vmatpush2.msra.mxu0 0.0
    %5517 = vmatprep.subr.mxu0 0.0
    %5518 = vmatpush2.msra.mxu0 0.0
    %5519 = vmatprep.subr.mxu0 0.0
    %5520 = vmatpush2.msra.mxu0 0.0
    %5521 = vmatprep.mubr.f32.mxu0 0.0
    %5522 = vmatmul.mubr.f32.gmra.mxu0 %v5452
    %v5523 = vpop.f32.mrf.mxu0
    %v5524 = vadd.f32 %v5450, %v5523
    %v5525 = vpop.f32.mrf.mxu0
    %5526 = vmatprep.mubr.f32.mxu0 0.0
    %5527 = vmatmul.mubr.f32.gmra.mxu0 %v5455
    %v5528 = vpop.f32.mrf.mxu0
    %v5529 = vadd.f32 %v5450, %v5528
    %v5530 = vpop.f32.mrf.mxu0
    %5531 = vdwg.mxu0
    %v5532 = vmul.f32 %v5524, 0.5
    %v5533 = vmul.f32 %v5529, 0.5
    %v5534 = vmul.f32 %v5524, 0.044715
    %v5535 = vmul.f32 %v5529, 0.044715
    %v5536 = vmul.f32 %v5534, %v5524
    %v5537 = vmul.f32 %v5535, %v5529
    %v5538 = vmul.f32 %v5536, %v5524
    %v5539 = vmul.f32 %v5537, %v5529
    %v5540 = vadd.f32 %v5524, %v5538
    %v5541 = vadd.f32 %v5529, %v5539
    %v5542 = vmul.f32 %v5540, 0.7978846
    %v5543 = vmul.f32 %v5541, 0.7978846
    %v5544 = vtanh.pop %v5542
    %v5545 = vtanh.pop %v5543
    %v5546 = vadd.f32 %v5544, 1.0
    %v5547 = vadd.f32 %v5545, 1.0
    %v5548 = vmul.f32 %v5532, %v5546
    %v5549 = vmul.f32 %v5533, %v5547
    %s5550 = scalar_lea.vmem [#allocation2], 64
    %v5551 = vld [vmem:[%s5550] sm:$0xff]
    %v5552 = vld [vmem:[%s5550 + $0x8] sm:$0xff]
    %v5553 = vld [vmem:[%s5550 + $0x10] sm:$0xff]
    %v5554 = vld [vmem:[%s5550 + $0x18] sm:$0xff]
    %v5555 = vld [vmem:[%s5550 + $0x20] sm:$0xff]
    %v5556 = vld [vmem:[%s5550 + $0x28] sm:$0xff]
    %v5557 = vld [vmem:[%s5550 + $0x30] sm:$0xff]
    %v5558 = vld [vmem:[%s5550 + $0x38] sm:$0xff]
    %v5559 = vld [vmem:[%s6 + $0x16] sm:$0x1]
    %v5560 = vlaneseq
    %v5561 = vshrl.u32 %v5560, 7
    %v5562 = vsub.s32 0, %v5561
    %v5563 = vrot.slane %v5559, %v5562
    %v5565 = vsel %vm1940, %v5548, 0
    %v5568 = vsel %vm1940, %v5549, 0
    %5570 = vmatprep.subr.mxu0 0.0
    %5571 = vmatpush1.msra.mxu0 0.0
    %5572 = vmatprep.subr.mxu0 0.0
    %5573 = vmatpush1.msra.mxu0 0.0
    %5574 = vmatprep.subr.mxu0 0.0
    %5575 = vmatpush1.msra.mxu0 0.0
    %5576 = vmatprep.subr.mxu0 0.0
    %5577 = vmatpush1.msra.mxu0 0.0
    %5578 = vmatprep.subr.mxu0 0.0
    %5579 = vmatpush1.msra.mxu0 0.0
    %5580 = vmatprep.subr.mxu0 0.0
    %5581 = vmatpush1.msra.mxu0 0.0
    %5582 = vmatprep.subr.mxu0 0.0
    %5583 = vmatpush1.msra.mxu0 0.0
    %5584 = vmatprep.subr.mxu0 0.0
    %5585 = vmatpush1.msra.mxu0 0.0
    %5586 = vmatprep.subr.mxu0 0.0
    %5587 = vmatpush1.msra.mxu0 %v5558
    %5588 = vmatprep.subr.mxu0 0.0
    %5589 = vmatpush1.msra.mxu0 %v5557
    %5590 = vmatprep.subr.mxu0 0.0
    %5591 = vmatpush1.msra.mxu0 %v5556
    %5592 = vmatprep.subr.mxu0 0.0
    %5593 = vmatpush1.msra.mxu0 %v5555
    %5594 = vmatprep.subr.mxu0 0.0
    %5595 = vmatpush1.msra.mxu0 %v5554
    %5596 = vmatprep.subr.mxu0 0.0
    %5597 = vmatpush1.msra.mxu0 %v5553
    %5598 = vmatprep.subr.mxu0 0.0
    %5599 = vmatpush1.msra.mxu0 %v5552
    %5600 = vmatprep.subr.mxu0 0.0
    %5601 = vmatpush1.msra.mxu0 %v5551
    %5602 = vmatprep.subr.mxu0 0.0
    %5603 = vmatpush2.msra.mxu0 0.0
    %5604 = vmatprep.subr.mxu0 0.0
    %5605 = vmatpush2.msra.mxu0 0.0
    %5606 = vmatprep.subr.mxu0 0.0
    %5607 = vmatpush2.msra.mxu0 0.0
    %5608 = vmatprep.subr.mxu0 0.0
    %5609 = vmatpush2.msra.mxu0 0.0
    %5610 = vmatprep.subr.mxu0 0.0
    %5611 = vmatpush2.msra.mxu0 0.0
    %5612 = vmatprep.subr.mxu0 0.0
    %5613 = vmatpush2.msra.mxu0 0.0
    %5614 = vmatprep.subr.mxu0 0.0
    %5615 = vmatpush2.msra.mxu0 0.0
    %5616 = vmatprep.subr.mxu0 0.0
    %5617 = vmatpush2.msra.mxu0 0.0
    %5618 = vmatprep.subr.mxu0 0.0
    %5619 = vmatpush2.msra.mxu0 0.0
    %5620 = vmatprep.subr.mxu0 0.0
    %5621 = vmatpush2.msra.mxu0 0.0
    %5622 = vmatprep.subr.mxu0 0.0
    %5623 = vmatpush2.msra.mxu0 0.0
    %5624 = vmatprep.subr.mxu0 0.0
    %5625 = vmatpush2.msra.mxu0 0.0
    %5626 = vmatprep.subr.mxu0 0.0
    %5627 = vmatpush2.msra.mxu0 0.0
    %5628 = vmatprep.subr.mxu0 0.0
    %5629 = vmatpush2.msra.mxu0 0.0
    %5630 = vmatprep.subr.mxu0 0.0
    %5631 = vmatpush2.msra.mxu0 0.0
    %5632 = vmatprep.subr.mxu0 0.0
    %5633 = vmatpush2.msra.mxu0 0.0
    %5634 = vmatprep.mubr.f32.mxu0 0.0
    %5635 = vmatmul.mubr.f32.gmra.mxu0 %v5565
    %v5636 = vpop.f32.mrf.mxu0
    %v5637 = vadd.f32 %v5563, %v5636
    %v5638 = vpop.f32.mrf.mxu0
    %5639 = vmatprep.mubr.f32.mxu0 0.0
    %5640 = vmatmul.mubr.f32.gmra.mxu0 %v5568
    %v5641 = vpop.f32.mrf.mxu0
    %v5642 = vadd.f32 %v5563, %v5641
    %v5643 = vpop.f32.mrf.mxu0
    %5644 = vdwg.mxu0
    %v5645 = vadd.f32 %v5399, %v5637
    %v5646 = vadd.f32 %v5400, %v5642
    %v5647 = vld [vmem:[%s6 + $0x17] sm:$0x1]
    %v5648 = vld [vmem:[%s6 + $0x18] sm:$0x1]
    %v5649 = vsel %vm190, %v5645, 0.0
    %5650 = vadd.xlane.f32.xlu0 %v5649
    %v5651 = vpop.xlane.xlu0 %5650
    %v5652 = vsel %vm190, %v5646, 0.0
    %5653 = vadd.xlane.f32.xlu0 %v5652
    %v5654 = vpop.xlane.xlu0 %5653
    %v5655 = vmul.f32 %v5651, %v197
    %v5656 = vmul.f32 %v5654, %v197
    %v5657 = vsub.f32 %v5645, %v5655
    %v5658 = vsub.f32 %v5646, %v5656
    %v5659 = vmul.f32 %v5657, %v5657
    %v5660 = vmul.f32 %v5658, %v5658
    %v5661 = vsel %vm190, %v5659, 0.0
    %5662 = vadd.xlane.f32.xlu0 %v5661
    %v5663 = vpop.xlane.xlu0 %5662
    %v5664 = vsel %vm190, %v5660, 0.0
    %5665 = vadd.xlane.f32.xlu0 %v5664
    %v5666 = vpop.xlane.xlu0 %5665
    %v5667 = vmul.f32 %v5663, %v197
    %v5668 = vmul.f32 %v5666, %v197
    %v5669 = vadd.f32 %v5667, 1e-05
    %v5670 = vadd.f32 %v5668, 1e-05
    %v5671 = vrsqrt.pop %v5669
    %v5672 = vrsqrt.pop %v5670
    %v5673 = vmul.f32 %v5657, %v5671
    %v5674 = vmul.f32 %v5658, %v5672
    %v5675 = vlaneseq
    %v5676 = vshrl.u32 %v5675, 7
    %v5677 = vsub.s32 0, %v5676
    %v5678 = vrot.slane %v5647, %v5677
    %v5679 = vmul.f32 %v5673, %v5678
    %v5680 = vmul.f32 %v5674, %v5678
    %v5681 = vlaneseq
    %v5682 = vshrl.u32 %v5681, 7
    %v5683 = vsub.s32 0, %v5682
    %v5684 = vrot.slane %v5648, %v5683
    %v5685 = vadd.f32 %v5679, %v5684
    %v5686 = vadd.f32 %v5680, %v5684
    %v5687 = vld [vmem:[%s6 + $0x19] sm:$0x1]
    %v5688 = vlaneseq
    %v5689 = vshrl.u32 %v5688, 7
    %v5690 = vsub.s32 0, %v5689
    %v5691 = vrot.slane %v5687, %v5690
    %v5693 = vsel %vm190, %v5685, 0
    %v5696 = vsel %vm190, %v5686, 0
    %v5699 = vsel %vm190, %v50, 0
    %v5702 = vsel %vm190, %v51, 0
    %v5705 = vsel %vm190, %v52, 0
    %v5708 = vsel %vm190, %v53, 0
    %v5711 = vsel %vm190, %v54, 0
    %v5714 = vsel %vm190, %v55, 0
    %v5717 = vsel %vm190, %v56, 0
    %v5720 = vsel %vm190, %v57, 0
    %v5723 = vsel %vm190, %v58, 0
    %v5726 = vsel %vm190, %v59, 0
    %v5729 = vsel %vm190, %v60, 0
    %v5732 = vsel %vm190, %v61, 0
    %v5735 = vsel %vm190, %v62, 0
    %v5738 = vsel %vm190, %v63, 0
    %v5741 = vsel %vm190, %v64, 0
    %v5744 = vsel %vm190, %v65, 0
    %5746 = vmatprep.subr.mxu0 0.0
    %5747 = vmatpush1.xpose.msra.mxu0 %v5744
    %5748 = vmatprep.subr.mxu0 0.0
    %5749 = vmatpush1.xpose.msra.mxu0 %v5741
    %5750 = vmatprep.subr.mxu0 0.0
    %5751 = vmatpush1.xpose.msra.mxu0 %v5738
    %5752 = vmatprep.subr.mxu0 0.0
    %5753 = vmatpush1.xpose.msra.mxu0 %v5735
    %5754 = vmatprep.subr.mxu0 0.0
    %5755 = vmatpush1.xpose.msra.mxu0 %v5732
    %5756 = vmatprep.subr.mxu0 0.0
    %5757 = vmatpush1.xpose.msra.mxu0 %v5729
    %5758 = vmatprep.subr.mxu0 0.0
    %5759 = vmatpush1.xpose.msra.mxu0 %v5726
    %5760 = vmatprep.subr.mxu0 0.0
    %5761 = vmatpush1.xpose.msra.mxu0 %v5723
    %5762 = vmatprep.subr.mxu0 0.0
    %5763 = vmatpush1.xpose.msra.mxu0 %v5720
    %5764 = vmatprep.subr.mxu0 0.0
    %5765 = vmatpush1.xpose.msra.mxu0 %v5717
    %5766 = vmatprep.subr.mxu0 0.0
    %5767 = vmatpush1.xpose.msra.mxu0 %v5714
    %5768 = vmatprep.subr.mxu0 0.0
    %5769 = vmatpush1.xpose.msra.mxu0 %v5711
    %5770 = vmatprep.subr.mxu0 0.0
    %5771 = vmatpush1.xpose.msra.mxu0 %v5708
    %5772 = vmatprep.subr.mxu0 0.0
    %5773 = vmatpush1.xpose.msra.mxu0 %v5705
    %5774 = vmatprep.subr.mxu0 0.0
    %5775 = vmatpush1.xpose.msra.mxu0 %v5702
    %5776 = vmatprep.subr.mxu0 0.0
    %5777 = vmatpush1.xpose.msra.mxu0 %v5699
    %5778 = vmatprep.subr.mxu0 0.0
    %5779 = vmatpush2.xpose.msra.mxu0 0.0
    %5780 = vmatprep.subr.mxu0 0.0
    %5781 = vmatpush2.xpose.msra.mxu0 0.0
    %5782 = vmatprep.subr.mxu0 0.0
    %5783 = vmatpush2.xpose.msra.mxu0 0.0
    %5784 = vmatprep.subr.mxu0 0.0
    %5785 = vmatpush2.xpose.msra.mxu0 0.0
    %5786 = vmatprep.subr.mxu0 0.0
    %5787 = vmatpush2.xpose.msra.mxu0 0.0
    %5788 = vmatprep.subr.mxu0 0.0
    %5789 = vmatpush2.xpose.msra.mxu0 0.0
    %5790 = vmatprep.subr.mxu0 0.0
    %5791 = vmatpush2.xpose.msra.mxu0 0.0
    %5792 = vmatprep.subr.mxu0 0.0
    %5793 = vmatpush2.xpose.msra.mxu0 0.0
    %5794 = vmatprep.subr.mxu0 0.0
    %5795 = vmatpush2.xpose.msra.mxu0 0.0
    %5796 = vmatprep.subr.mxu0 0.0
    %5797 = vmatpush2.xpose.msra.mxu0 0.0
    %5798 = vmatprep.subr.mxu0 0.0
    %5799 = vmatpush2.xpose.msra.mxu0 0.0
    %5800 = vmatprep.subr.mxu0 0.0
    %5801 = vmatpush2.xpose.msra.mxu0 0.0
    %5802 = vmatprep.subr.mxu0 0.0
    %5803 = vmatpush2.xpose.msra.mxu0 0.0
    %5804 = vmatprep.subr.mxu0 0.0
    %5805 = vmatpush2.xpose.msra.mxu0 0.0
    %5806 = vmatprep.subr.mxu0 0.0
    %5807 = vmatpush2.xpose.msra.mxu0 0.0
    %5808 = vmatprep.subr.mxu0 0.0
    %5809 = vmatpush2.xpose.msra.mxu0 0.0
    %5810 = vmatprep.mubr.f32.mxu0 0.0
    %5811 = vmatmul.mubr.f32.gmra.mxu0 %v5693
    %v5812 = vpop.f32.mrf.mxu0
    %v5813 = vadd.f32 %v5691, %v5812
    %v5814 = vpop.f32.mrf.mxu0
    %5815 = vmatprep.mubr.f32.mxu0 0.0
    %5816 = vmatmul.mubr.f32.gmra.mxu0 %v5696
    %v5817 = vpop.f32.mrf.mxu0
    %v5818 = vadd.f32 %v5691, %v5817
    %v5819 = vpop.f32.mrf.mxu0
    %5820 = vdwg.mxu0
    %5821 = vst [vmem:[#allocation5] sm:$0xff] %v5813
    %5822 = vst [vmem:[#allocation5 + $0x8] sm:$0xff] %v5818
    %v5823 = vld [vmem:[%s2] sm:$0xff]
    %v5824 = vld [vmem:[%s2 + $0x8] sm:$0xff]
    %5825 = vmax.xlane.f32.xlu0 %v5813
    %v5826 = vpop.xlane.xlu0 %5825
    %5827 = vmax.xlane.f32.xlu0 %v5818
    %v5828 = vpop.xlane.xlu0 %5827
    %v5829 = vsub.f32 %v5813, %v5826
    %v5830 = vsub.f32 %v5818, %v5828
    %v5831 = vmul.f32 %v5829, 1.442695
    %v5832 = vpow.pop %v5831
    %v5833 = vmul.f32 %v5830, 1.442695
    %v5834 = vpow.pop %v5833
    %5835 = vadd.xlane.f32.xlu0 %v5832
    %v5836 = vpop.xlane.xlu0 %5835
    %5837 = vadd.xlane.f32.xlu0 %v5834
    %v5838 = vpop.xlane.xlu0 %5837
    %v5839 = vlog2.pop %v5836
    %v5840 = vmul.f32 %v5839, 0.6931472
    %v5841 = vlog2.pop %v5838
    %v5842 = vmul.f32 %v5841, 0.6931472
    %v5843 = vadd.f32 %v5826, %v5840
    %v5844 = vadd.f32 %v5828, %v5842
    %5845 = vset.pattern.permute.xlu0 0
    %5846 = vperm.xlu0 %5845, %v5823
    %v5847 = vpop.permute.xlu0 %5846
    %5848 = vset.pattern.permute.xlu0 0
    %5849 = vperm.xlu0 %5848, %v5824
    %v5850 = vpop.permute.xlu0 %5849
    %vm5851 = vcmp.eq.s32.totalorder %v96, %v5847
    %vm5852 = vcmp.eq.s32.totalorder %v96, %v5850
    %v5853 = vsel %vm5851, %v5813, 0.0
    %v5854 = vsel %vm5852, %v5818, 0.0
    %5855 = vadd.xlane.f32.xlu0 %v5853
    %v5856 = vpop.xlane.xlu0 %5855
    %5857 = vadd.xlane.f32.xlu0 %v5854
    %v5858 = vpop.xlane.xlu0 %5857
    %vm5859 = vcmp.ge.s32.totalorder %v5823, 0
    %vm5860 = vcmp.ge.s32.totalorder %v5824, 0
    %v5861 = vsel %vm5859, 1, 0
    %v5862 = vsel %vm5860, 1, 0
    %v5863 = vcvt.s32.f32 %v5861
    %v5864 = vcvt.s32.f32 %v5862
    %v5865 = vsub.f32 %v5843, %v5856
    %v5866 = vsub.f32 %v5844, %v5858
    %v5867 = vmul.f32 %v5865, %v5863
    %v5868 = vmul.f32 %v5866, %v5864
    %vm5869 = vcmask 7168
    %v5870 = vsel %vm5869, %v5867, 0.0
    %v5871 = vsel %vm5869, %v5868, 0.0
    %v5872 = vadd.f32 %v5870, %v5871
    %v5873 = vrot.slane %v5872, 4
    %v5874 = vadd.f32 %v5872, %v5873
    %v5875 = vrot.slane %v5874, 2
    %v5876 = vadd.f32 %v5874, %v5875
    %v5877 = vrot.slane %v5876, 1
    %v5878 = vadd.f32 %v5876, %v5877
    %v5879 = vsel %vm5869, %v5863, 0.0
    %v5880 = vsel %vm5869, %v5864, 0.0
    %v5881 = vadd.f32 %v5879, %v5880
    %v5882 = vrot.slane %v5881, 4
    %v5883 = vadd.f32 %v5881, %v5882
    %v5884 = vrot.slane %v5883, 2
    %v5885 = vadd.f32 %v5883, %v5884
    %v5886 = vrot.slane %v5885, 1
    %v5887 = vadd.f32 %v5885, %v5886
    %v5888 = vmax.f32 %v5887, 1.0
    %v5889 = vrcp.pop %v5888
    %v5890 = vmul.f32 %v5878, %v5889
    %vm5891 = vcmask 0
    %5892 = vst.msk [vmem:[#allocation6] sm:$0x1] %vm5891, %v5890
    // Predicated region
    $region42: #{pegasus_forward.1} parent=1 // pred_check
      _
    $region43: #{pegasus_forward.1} parent=1 // pred_check_branch
      %5894 = sbr.rel (0) target = $region45
    $region44: #{pegasus_forward.1} parent=1 // pred_region
      %s5896 = ssub.s32 256, 256
      %5897 = vsyncadd [#allocation4], %s5896
      %s5898 = sshll.u32 [#allocation5], 4
      %s5899 = int_to_ptr.vmem [resolvable:$true] %s5898
      %5904 = dma.vmem_to_hbm [thread:$0]  %s5899, 256, %s9, [#allocation4], 128, 128, 8
    $region45: #{pegasus_forward.1} parent=1 // pred_fallthru
      _
    // Predicated region
    $region46: #{pegasus_forward.1} parent=1 // pred_check
      _
    $region47: #{pegasus_forward.1} parent=1 // pred_check_branch
      %5906 = sbr.rel (0) target = $region49
    $region48: #{pegasus_forward.1} parent=1 // pred_region
      %s5908 = ssub.s32 16, 16
      %5909 = vsyncadd [#allocation7], %s5908
      %s5911 = sshll.u32 [#allocation6], 4
      %s5912 = int_to_ptr.vmem [resolvable:$true] %s5911
      %5914 = dma.vmem_to_hbm [thread:$0]  %s5912, 16, %s10, [#allocation7]
    $region49: #{pegasus_forward.1} parent=1 // pred_fallthru
      _
    // Predicated region
    $region50: #{pegasus_forward.1} parent=1 // pred_check
      _
    $region51: #{pegasus_forward.1} parent=1 // pred_check_branch
      %5916 = sbr.rel (0) target = $region53
    $region52: #{pegasus_forward.1} parent=1 // pred_region
      %5917 = dma.done [#allocation4], 256
    $region53: #{pegasus_forward.1} parent=1 // pred_fallthru
      _
    // Predicated region
    $region54: #{pegasus_forward.1} parent=1 // pred_check
      _
    $region55: #{pegasus_forward.1} parent=1 // pred_check_branch
      %5919 = sbr.rel (0) target = $region57
    $region56: #{pegasus_forward.1} parent=1 // pred_region
      %5920 = dma.done [#allocation7], 16
    $region57: #{pegasus_forward.1} parent=1 // pred_fallthru
      _
    %5921 = vsyncpa [#allocation3], 1
    %5922 = vsyncpa [#allocation4], 1
    %5923 = vsyncpa [#allocation7], 1

</llo_original>
